<compile_context>
chip_gen: v7x
topology: tpu7x:2x2x1
jax: 0.10.0
libtpu: 0.0.40
codegen_flags: <defaults>
</compile_context>

<pallas_src>
import numpy as np

import jax
import jax.numpy as jnp
from jax import lax
from jax.experimental import pallas as pl
from jax.experimental.pallas import tpu as pltpu


# ---------------------------------------------------------------------------
# Kernel 1: conv1 + relu + pool + conv2 (in-kernel taps) + relu + pool
# ---------------------------------------------------------------------------
def _conv_stack_kernel(p_ref, w1_ref, b1_ref, w2_ref, b2_ref, s_ref,
                       o_ref, x1_ref):
    # ---- conv1 as im2col matmul, fused bias + relu + 2x2 maxpool ----------
    # Patch rows are ordered q*200 + (ho*14 + wo) with q = dh*2 + dw the
    # position inside the 2x2 pool window, so the pool is just a max over the
    # four aligned 200-row chunks (no strided ops, no reshapes).
    pooled1 = None
    for q in range(4):
        a = jnp.dot(p_ref[pl.ds(q * 200, 200), :], w1_ref[...],
                    preferred_element_type=jnp.float32)            # (200, 64)
        a = jnp.maximum(a + b1_ref[...], 0.0)
        pooled1 = a if pooled1 is None else jnp.maximum(pooled1, a)
    # rows 0..195 of x1 are the pooled 14x14 map (row = h*14 + w), rows
    # 196..199 are padding that is never read below.
    x1_ref[...] = pooled1.astype(jnp.bfloat16)

    # ---- conv2: 25 shifted-tap matmuls accumulated in f32 ------------------
    # For tap (kh, kw): contribution to output row r = ho*14 + wo is
    # x1[r + kh*14 + kw] @ W2[kh, kw].  Rows with wo >= 10 are wrap-around
    # garbage and are never selected by the pooling matrices.
    acc2 = None
    for kh in range(5):
        for kw in range(5):
            t = kh * 5 + kw
            off = kh * 14 + kw
            c = jnp.dot(x1_ref[pl.ds(off, 136), :], w2_ref[t],
                        preferred_element_type=jnp.float32)        # (136, 64)
            acc2 = c if acc2 is None else acc2 + c
    r2 = jnp.maximum(acc2 + b2_ref[...], 0.0)                      # (136, 64)

    # ---- 2x2 maxpool of the 10x10 grid via four 0/1 selection matmuls ------
    pooled2 = None
    for i in range(4):
        cand = jnp.dot(s_ref[i], r2, preferred_element_type=jnp.float32)  # (32, 64)
        pooled2 = cand if pooled2 is None else jnp.maximum(pooled2, cand)
    o_ref[...] = pooled2                                           # rows 0..24 valid


def conv_stack(patches, w1mat, b1, w2taps, b2, sel):
    B = patches.shape[0]
    return pl.pallas_call(
        _conv_stack_kernel,
        out_shape=jax.ShapeDtypeStruct((B, 32, 64), jnp.float32),
        grid=(B,),
        in_specs=[
            pl.BlockSpec((None, 800, 128), lambda b: (b, 0, 0)),   # patches
            pl.BlockSpec((128, 64), lambda b: (0, 0)),             # conv1 weight
            pl.BlockSpec((1, 64), lambda b: (0, 0)),               # conv1 bias
            pl.BlockSpec((25, 64, 64), lambda b: (0, 0, 0)),       # conv2 taps
            pl.BlockSpec((1, 64), lambda b: (0, 0)),               # conv2 bias
            pl.BlockSpec((4, 32, 136), lambda b: (0, 0, 0)),       # pool selectors
        ],
        out_specs=pl.BlockSpec((None, 32, 64), lambda b: (b, 0, 0)),
        scratch_shapes=[pltpu.VMEM((200, 64), jnp.bfloat16)],
        compiler_params=pltpu.CompilerParams(
            dimension_semantics=("parallel",)),
    )(patches, w1mat, b1, w2taps, b2, sel)


# ---------------------------------------------------------------------------
# Kernel 2: fc1 + relu + fc2 + relu + fc3, fully fused (weights resident in VMEM)
# ---------------------------------------------------------------------------
def _fc_stack_kernel(x_ref, w1_ref, b1_ref, w2_ref, b2_ref, w3_ref, b3_ref,
                     o_ref):
    x = x_ref[...].astype(jnp.bfloat16)
    h = jnp.dot(x, w1_ref[...], preferred_element_type=jnp.float32) + b1_ref[...]
    h = jnp.maximum(h, 0.0).astype(jnp.bfloat16)
    h = jnp.dot(h, w2_ref[...], preferred_element_type=jnp.float32) + b2_ref[...]
    h = jnp.maximum(h, 0.0).astype(jnp.bfloat16)
    o_ref[...] = jnp.dot(h, w3_ref[...], preferred_element_type=jnp.float32) + b3_ref[...]


def fc_stack(x, w1, b1, w2, b2, w3, b3):
    B = x.shape[0]
    return pl.pallas_call(
        _fc_stack_kernel,
        out_shape=jax.ShapeDtypeStruct((B, 100), jnp.float32),
        grid=(1,),
        in_specs=[
            pl.BlockSpec((B, 1600), lambda i: (0, 0)),
            pl.BlockSpec((1600, 384), lambda i: (0, 0)),
            pl.BlockSpec((1, 384), lambda i: (0, 0)),
            pl.BlockSpec((384, 192), lambda i: (0, 0)),
            pl.BlockSpec((1, 192), lambda i: (0, 0)),
            pl.BlockSpec((192, 100), lambda i: (0, 0)),
            pl.BlockSpec((1, 100), lambda i: (0, 0)),
        ],
        out_specs=pl.BlockSpec((B, 100), lambda i: (0, 0)),
        compiler_params=pltpu.CompilerParams(
            dimension_semantics=("arbitrary",)),
    )(x, w1, b1, w2, b2, w3, b3)


# ---------------------------------------------------------------------------
# Host-side glue: patch extraction / weight layout prep (tiny XLA ops)
# ---------------------------------------------------------------------------
def _conv1_patches(x):
    """x: (B, 3, 32, 32) -> (B, 800, 128) bf16 im2col patches.

    Row order: q*200 + (ho*14 + wo), q = dh*2 + dw, output pixel (2ho+dh, 2wo+dw)
    (4 zero pad rows per q block).  Col order: cin*25 + kh*5 + kw (zero padded
    75 -> 128)."""
    B = x.shape[0]
    taps = [x[:, :, kh:kh + 28, kw:kw + 28] for kh in range(5) for kw in range(5)]
    p = jnp.stack(taps, axis=-1)                      # (B, 3, 28, 28, 25)
    p = p.reshape(B, 3, 14, 2, 14, 2, 25)             # (B, cin, ho, dh, wo, dw, tap)
    p = p.transpose(0, 3, 5, 2, 4, 1, 6)              # (B, dh, dw, ho, wo, cin, tap)
    p = p.reshape(B, 4, 196, 75)
    p = jnp.pad(p, ((0, 0), (0, 0), (0, 4), (0, 53)))
    return p.reshape(B, 800, 128).astype(jnp.bfloat16)


def _pool_select_matrices():
    """(4, 32, 136) 0/1 matrices: sel[dh*2+dw, ph*5+pw, (2ph+dh)*14+(2pw+dw)] = 1."""
    s = np.zeros((4, 32, 136), np.float32)
    for dh in range(2):
        for dw in range(2):
            for ph in range(5):
                for pw in range(5):
                    s[dh * 2 + dw, ph * 5 + pw,
                      (2 * ph + dh) * 14 + (2 * pw + dw)] = 1.0
    return jnp.asarray(s)


def model_forward(x, params):
    (w1, b1, w2, b2, fw1, fb1, fw2, fb2, fw3, fb3) = params
    B = x.shape[0]

    patches = _conv1_patches(x)                                        # (B, 800, 128)
    w1mat = jnp.pad(w1.reshape(64, 75).T, ((0, 53), (0, 0))).astype(jnp.bfloat16)
    w2taps = jnp.transpose(w2, (2, 3, 1, 0)).reshape(25, 64, 64).astype(jnp.bfloat16)
    sel = _pool_select_matrices()

    pooled = conv_stack(patches, w1mat, b1.reshape(1, 64),
                        w2taps, b2.reshape(1, 64), sel)                # (B, 32, 64)
    # Flatten in PyTorch (C, H, W) order: feature = c*25 + h*5 + w.
    xf = pooled[:, :25, :].transpose(0, 2, 1).reshape(B, 1600)

    return fc_stack(xf,
                    fw1.T.astype(jnp.bfloat16), fb1.reshape(1, 384),
                    fw2.T.astype(jnp.bfloat16), fb2.reshape(1, 192),
                    fw3.T.astype(jnp.bfloat16), fb3.reshape(1, 100))


# ---------------------------------------------------------------------------
# Pure-JAX reference (for correctness check)
# ---------------------------------------------------------------------------
def reference_forward(x, params):
    (w1, b1, w2, b2, fw1, fb1, fw2, fb2, fw3, fb3) = params

    def conv(a, w, b):
        y = lax.conv_general_dilated(
            a, w, window_strides=(1, 1), padding="VALID",
            dimension_numbers=("NCHW", "OIHW", "NCHW"),
            precision=lax.Precision.HIGHEST)
        return y + b[None, :, None, None]

    def pool(a):
        return lax.reduce_window(a, -jnp.inf, lax.max,
                                 (1, 1, 2, 2), (1, 1, 2, 2), "VALID")

    a = pool(jax.nn.relu(conv(x, w1, b1)))
    a = pool(jax.nn.relu(conv(a, w2, b2)))
    a = a.reshape(a.shape[0], -1)
    a = jax.nn.relu(a @ fw1.T + fb1)
    a = jax.nn.relu(a @ fw2.T + fb2)
    return a @ fw3.T + fb3


# ---------------------------------------------------------------------------
# Deterministic parameter init (PyTorch-style uniform(-1/sqrt(fan_in), ...))
# ---------------------------------------------------------------------------
def init_params(key):
    def u(k, shape, fan_in):
        bound = 1.0 / jnp.sqrt(fan_in)
        return jax.random.uniform(k, shape, jnp.float32, -bound, bound)

    ks = jax.random.split(key, 10)
    w1 = u(ks[0], (64, 3, 5, 5), 3 * 25)
    b1 = u(ks[1], (64,), 3 * 25)
    w2 = u(ks[2], (64, 64, 5, 5), 64 * 25)
    b2 = u(ks[3], (64,), 64 * 25)
    fw1 = u(ks[4], (384, 1600), 1600)
    fb1 = u(ks[5], (384,), 1600)
    fw2 = u(ks[6], (192, 384), 384)
    fb2 = u(ks[7], (192,), 384)
    fw3 = u(ks[8], (100, 192), 192)
    fb3 = u(ks[9], (100,), 192)
    return (w1, b1, w2, b2, fw1, fb1, fw2, fb2, fw3, fb3)


if __name__ == "__main__":
    key = jax.random.PRNGKey(0)
    pkey, xkey = jax.random.split(key)
    params = init_params(pkey)

    # CIFAR-100 sized input (the 1600-wide flatten requires 3x32x32), batch=2.
    x = jax.random.normal(xkey, (2, 3, 32, 32), dtype=jnp.float32)

    out = jax.block_until_ready(jax.jit(model_forward)(x, params))
    assert out.shape == (2, 100) and out.dtype == jnp.float32

    ref = jax.block_until_ready(reference_forward(x, params))
    # bf16 matmul inputs (f32 accumulation) -> slightly looser tolerance.
    assert jnp.allclose(out, ref, rtol=2e-2, atol=2e-2), (
        "mismatch vs reference: max abs err "
        f"{float(jnp.max(jnp.abs(out - ref)))}")

    print("KERNEL_OK")
</pallas_src>

<mosaic_0001>
module attributes {stable_mosaic.version = 11 : i64} {
  func.func @_conv_stack_kernel(%arg0: i32, %arg1: memref<1x800x128xbf16, #tpu.memory_space<vmem>>, %arg2: memref<128x64xbf16, #tpu.memory_space<vmem>>, %arg3: memref<1x64xf32, #tpu.memory_space<vmem>>, %arg4: memref<25x64x64xbf16, #tpu.memory_space<vmem>>, %arg5: memref<1x64xf32, #tpu.memory_space<vmem>>, %arg6: memref<4x32x136xf32, #tpu.memory_space<vmem>>, %arg7: memref<1x32x64xf32, #tpu.memory_space<vmem>>, %arg8: memref<200x64xbf16, #tpu.memory_space<vmem>>) attributes {dimension_semantics = [#tpu.dimension_semantics<parallel>], iteration_bounds = array<i64: 2>, scalar_prefetch = 0 : i64, scratch_operands = 1 : i64, tpu.core_type = #tpu.core_type<tc>, window_params = [{transform_indices = @transform_0, window_bounds = array<i64: 1, 800, 128>}, {pipeline_mode = #tpu.pipeline_mode<synchronous>, transform_indices = @transform_1, window_bounds = array<i64: 128, 64>}, {pipeline_mode = #tpu.pipeline_mode<synchronous>, transform_indices = @transform_2, window_bounds = array<i64: 1, 64>}, {pipeline_mode = #tpu.pipeline_mode<synchronous>, transform_indices = @transform_3, window_bounds = array<i64: 25, 64, 64>}, {pipeline_mode = #tpu.pipeline_mode<synchronous>, transform_indices = @transform_4, window_bounds = array<i64: 1, 64>}, {pipeline_mode = #tpu.pipeline_mode<synchronous>, transform_indices = @transform_5, window_bounds = array<i64: 4, 32, 136>}, {transform_indices = @transform_6, window_bounds = array<i64: 1, 32, 64>}]} {
    %c0 = arith.constant 0 : index
    %c0_0 = arith.constant 0 : index
    %c0_1 = arith.constant 0 : index
    %0 = vector.load %arg1[%c0, %c0_0, %c0_1] : memref<1x800x128xbf16, #tpu.memory_space<vmem>>, vector<1x200x128xbf16>
    %1 = vector.shape_cast %0 : vector<1x200x128xbf16> to vector<200x128xbf16>
    %c0_2 = arith.constant 0 : index
    %c0_3 = arith.constant 0 : index
    %2 = vector.load %arg2[%c0_2, %c0_3] : memref<128x64xbf16, #tpu.memory_space<vmem>>, vector<128x64xbf16>
    %cst = arith.constant dense<0.000000e+00> : vector<200x64xf32>
    %3 = tpu.matmul %1, %2, %cst {dimension_numbers = #tpu.dot_dimension_numbers<[1], [0], [0], [1], [0, 0, 1, 1], [], []>} : vector<200x128xbf16>, vector<128x64xbf16>, vector<200x64xf32> -> vector<200x64xf32>
    %c0_4 = arith.constant 0 : index
    %c0_5 = arith.constant 0 : index
    %4 = vector.load %arg3[%c0_4, %c0_5] : memref<1x64xf32, #tpu.memory_space<vmem>>, vector<1x64xf32>
    %5 = vector.broadcast %4 : vector<1x64xf32> to vector<200x64xf32>
    %6 = arith.addf %3, %5 : vector<200x64xf32>
    %cst_6 = arith.constant 0.000000e+00 : f32
    %7 = vector.broadcast %cst_6 : f32 to vector<200x64xf32>
    %8 = arith.maximumf %6, %7 : vector<200x64xf32>
    %c0_7 = arith.constant 0 : index
    %c200 = arith.constant 200 : index
    %c0_8 = arith.constant 0 : index
    %9 = vector.load %arg1[%c0_7, %c200, %c0_8] : memref<1x800x128xbf16, #tpu.memory_space<vmem>>, vector<1x200x128xbf16>
    %10 = vector.shape_cast %9 : vector<1x200x128xbf16> to vector<200x128xbf16>
    %c0_9 = arith.constant 0 : index
    %c0_10 = arith.constant 0 : index
    %11 = vector.load %arg2[%c0_9, %c0_10] : memref<128x64xbf16, #tpu.memory_space<vmem>>, vector<128x64xbf16>
    %cst_11 = arith.constant dense<0.000000e+00> : vector<200x64xf32>
    %12 = tpu.matmul %10, %11, %cst_11 {dimension_numbers = #tpu.dot_dimension_numbers<[1], [0], [0], [1], [0, 0, 1, 1], [], []>} : vector<200x128xbf16>, vector<128x64xbf16>, vector<200x64xf32> -> vector<200x64xf32>
    %c0_12 = arith.constant 0 : index
    %c0_13 = arith.constant 0 : index
    %13 = vector.load %arg3[%c0_12, %c0_13] : memref<1x64xf32, #tpu.memory_space<vmem>>, vector<1x64xf32>
    %14 = vector.broadcast %13 : vector<1x64xf32> to vector<200x64xf32>
    %15 = arith.addf %12, %14 : vector<200x64xf32>
    %cst_14 = arith.constant 0.000000e+00 : f32
    %16 = vector.broadcast %cst_14 : f32 to vector<200x64xf32>
    %17 = arith.maximumf %15, %16 : vector<200x64xf32>
    %18 = arith.maximumf %8, %17 : vector<200x64xf32>
    %c0_15 = arith.constant 0 : index
    %c400 = arith.constant 400 : index
    %c0_16 = arith.constant 0 : index
    %19 = vector.load %arg1[%c0_15, %c400, %c0_16] : memref<1x800x128xbf16, #tpu.memory_space<vmem>>, vector<1x200x128xbf16>
    %20 = vector.shape_cast %19 : vector<1x200x128xbf16> to vector<200x128xbf16>
    %c0_17 = arith.constant 0 : index
    %c0_18 = arith.constant 0 : index
    %21 = vector.load %arg2[%c0_17, %c0_18] : memref<128x64xbf16, #tpu.memory_space<vmem>>, vector<128x64xbf16>
    %cst_19 = arith.constant dense<0.000000e+00> : vector<200x64xf32>
    %22 = tpu.matmul %20, %21, %cst_19 {dimension_numbers = #tpu.dot_dimension_numbers<[1], [0], [0], [1], [0, 0, 1, 1], [], []>} : vector<200x128xbf16>, vector<128x64xbf16>, vector<200x64xf32> -> vector<200x64xf32>
    %c0_20 = arith.constant 0 : index
    %c0_21 = arith.constant 0 : index
    %23 = vector.load %arg3[%c0_20, %c0_21] : memref<1x64xf32, #tpu.memory_space<vmem>>, vector<1x64xf32>
    %24 = vector.broadcast %23 : vector<1x64xf32> to vector<200x64xf32>
    %25 = arith.addf %22, %24 : vector<200x64xf32>
    %cst_22 = arith.constant 0.000000e+00 : f32
    %26 = vector.broadcast %cst_22 : f32 to vector<200x64xf32>
    %27 = arith.maximumf %25, %26 : vector<200x64xf32>
    %28 = arith.maximumf %18, %27 : vector<200x64xf32>
    %c0_23 = arith.constant 0 : index
    %c600 = arith.constant 600 : index
    %c0_24 = arith.constant 0 : index
    %29 = vector.load %arg1[%c0_23, %c600, %c0_24] : memref<1x800x128xbf16, #tpu.memory_space<vmem>>, vector<1x200x128xbf16>
    %30 = vector.shape_cast %29 : vector<1x200x128xbf16> to vector<200x128xbf16>
    %c0_25 = arith.constant 0 : index
    %c0_26 = arith.constant 0 : index
    %31 = vector.load %arg2[%c0_25, %c0_26] : memref<128x64xbf16, #tpu.memory_space<vmem>>, vector<128x64xbf16>
    %cst_27 = arith.constant dense<0.000000e+00> : vector<200x64xf32>
    %32 = tpu.matmul %30, %31, %cst_27 {dimension_numbers = #tpu.dot_dimension_numbers<[1], [0], [0], [1], [0, 0, 1, 1], [], []>} : vector<200x128xbf16>, vector<128x64xbf16>, vector<200x64xf32> -> vector<200x64xf32>
    %c0_28 = arith.constant 0 : index
    %c0_29 = arith.constant 0 : index
    %33 = vector.load %arg3[%c0_28, %c0_29] : memref<1x64xf32, #tpu.memory_space<vmem>>, vector<1x64xf32>
    %34 = vector.broadcast %33 : vector<1x64xf32> to vector<200x64xf32>
    %35 = arith.addf %32, %34 : vector<200x64xf32>
    %cst_30 = arith.constant 0.000000e+00 : f32
    %36 = vector.broadcast %cst_30 : f32 to vector<200x64xf32>
    %37 = arith.maximumf %35, %36 : vector<200x64xf32>
    %38 = arith.maximumf %28, %37 : vector<200x64xf32>
    %39 = arith.truncf %38 : vector<200x64xf32> to vector<200x64xbf16>
    %c0_31 = arith.constant 0 : index
    %c0_32 = arith.constant 0 : index
    %40 = vector.load %arg8[%c0_31, %c0_32] : memref<200x64xbf16, #tpu.memory_space<vmem>>, vector<200x64xbf16>
    tpu.vector_store %arg8[%c0_31, %c0_32], %39 {strides = array<i32>} : memref<200x64xbf16, #tpu.memory_space<vmem>>, vector<200x64xbf16>,
    %c0_33 = arith.constant 0 : index
    %c0_34 = arith.constant 0 : index
    %41 = vector.load %arg8[%c0_33, %c0_34] : memref<200x64xbf16, #tpu.memory_space<vmem>>, vector<136x64xbf16>
    %c0_35 = arith.constant 0 : index
    %c0_36 = arith.constant 0 : index
    %c0_37 = arith.constant 0 : index
    %42 = vector.load %arg4[%c0_35, %c0_36, %c0_37] : memref<25x64x64xbf16, #tpu.memory_space<vmem>>, vector<1x64x64xbf16>
    %43 = vector.shape_cast %42 : vector<1x64x64xbf16> to vector<64x64xbf16>
    %cst_38 = arith.constant dense<0.000000e+00> : vector<136x64xf32>
    %44 = tpu.matmul %41, %43, %cst_38 {dimension_numbers = #tpu.dot_dimension_numbers<[1], [0], [0], [1], [0, 0, 1, 1], [], []>} : vector<136x64xbf16>, vector<64x64xbf16>, vector<136x64xf32> -> vector<136x64xf32>
    %c1 = arith.constant 1 : index
    %c0_39 = arith.constant 0 : index
    %45 = vector.load %arg8[%c1, %c0_39] : memref<200x64xbf16, #tpu.memory_space<vmem>>, vector<136x64xbf16>
    %c1_40 = arith.constant 1 : index
    %c0_41 = arith.constant 0 : index
    %c0_42 = arith.constant 0 : index
    %46 = vector.load %arg4[%c1_40, %c0_41, %c0_42] : memref<25x64x64xbf16, #tpu.memory_space<vmem>>, vector<1x64x64xbf16>
    %47 = vector.shape_cast %46 : vector<1x64x64xbf16> to vector<64x64xbf16>
    %cst_43 = arith.constant dense<0.000000e+00> : vector<136x64xf32>
    %48 = tpu.matmul %45, %47, %cst_43 {dimension_numbers = #tpu.dot_dimension_numbers<[1], [0], [0], [1], [0, 0, 1, 1], [], []>} : vector<136x64xbf16>, vector<64x64xbf16>, vector<136x64xf32> -> vector<136x64xf32>
    %49 = arith.addf %44, %48 : vector<136x64xf32>
    %c2 = arith.constant 2 : index
    %c0_44 = arith.constant 0 : index
    %50 = vector.load %arg8[%c2, %c0_44] : memref<200x64xbf16, #tpu.memory_space<vmem>>, vector<136x64xbf16>
    %c2_45 = arith.constant 2 : index
    %c0_46 = arith.constant 0 : index
    %c0_47 = arith.constant 0 : index
    %51 = vector.load %arg4[%c2_45, %c0_46, %c0_47] : memref<25x64x64xbf16, #tpu.memory_space<vmem>>, vector<1x64x64xbf16>
    %52 = vector.shape_cast %51 : vector<1x64x64xbf16> to vector<64x64xbf16>
    %cst_48 = arith.constant dense<0.000000e+00> : vector<136x64xf32>
    %53 = tpu.matmul %50, %52, %cst_48 {dimension_numbers = #tpu.dot_dimension_numbers<[1], [0], [0], [1], [0, 0, 1, 1], [], []>} : vector<136x64xbf16>, vector<64x64xbf16>, vector<136x64xf32> -> vector<136x64xf32>
    %54 = arith.addf %49, %53 : vector<136x64xf32>
    %c3 = arith.constant 3 : index
    %c0_49 = arith.constant 0 : index
    %55 = vector.load %arg8[%c3, %c0_49] : memref<200x64xbf16, #tpu.memory_space<vmem>>, vector<136x64xbf16>
    %c3_50 = arith.constant 3 : index
    %c0_51 = arith.constant 0 : index
    %c0_52 = arith.constant 0 : index
    %56 = vector.load %arg4[%c3_50, %c0_51, %c0_52] : memref<25x64x64xbf16, #tpu.memory_space<vmem>>, vector<1x64x64xbf16>
    %57 = vector.shape_cast %56 : vector<1x64x64xbf16> to vector<64x64xbf16>
    %cst_53 = arith.constant dense<0.000000e+00> : vector<136x64xf32>
    %58 = tpu.matmul %55, %57, %cst_53 {dimension_numbers = #tpu.dot_dimension_numbers<[1], [0], [0], [1], [0, 0, 1, 1], [], []>} : vector<136x64xbf16>, vector<64x64xbf16>, vector<136x64xf32> -> vector<136x64xf32>
    %59 = arith.addf %54, %58 : vector<136x64xf32>
    %c4 = arith.constant 4 : index
    %c0_54 = arith.constant 0 : index
    %60 = vector.load %arg8[%c4, %c0_54] : memref<200x64xbf16, #tpu.memory_space<vmem>>, vector<136x64xbf16>
    %c4_55 = arith.constant 4 : index
    %c0_56 = arith.constant 0 : index
    %c0_57 = arith.constant 0 : index
    %61 = vector.load %arg4[%c4_55, %c0_56, %c0_57] : memref<25x64x64xbf16, #tpu.memory_space<vmem>>, vector<1x64x64xbf16>
    %62 = vector.shape_cast %61 : vector<1x64x64xbf16> to vector<64x64xbf16>
    %cst_58 = arith.constant dense<0.000000e+00> : vector<136x64xf32>
    %63 = tpu.matmul %60, %62, %cst_58 {dimension_numbers = #tpu.dot_dimension_numbers<[1], [0], [0], [1], [0, 0, 1, 1], [], []>} : vector<136x64xbf16>, vector<64x64xbf16>, vector<136x64xf32> -> vector<136x64xf32>
    %64 = arith.addf %59, %63 : vector<136x64xf32>
    %c14 = arith.constant 14 : index
    %c0_59 = arith.constant 0 : index
    %65 = vector.load %arg8[%c14, %c0_59] : memref<200x64xbf16, #tpu.memory_space<vmem>>, vector<136x64xbf16>
    %c5 = arith.constant 5 : index
    %c0_60 = arith.constant 0 : index
    %c0_61 = arith.constant 0 : index
    %66 = vector.load %arg4[%c5, %c0_60, %c0_61] : memref<25x64x64xbf16, #tpu.memory_space<vmem>>, vector<1x64x64xbf16>
    %67 = vector.shape_cast %66 : vector<1x64x64xbf16> to vector<64x64xbf16>
    %cst_62 = arith.constant dense<0.000000e+00> : vector<136x64xf32>
    %68 = tpu.matmul %65, %67, %cst_62 {dimension_numbers = #tpu.dot_dimension_numbers<[1], [0], [0], [1], [0, 0, 1, 1], [], []>} : vector<136x64xbf16>, vector<64x64xbf16>, vector<136x64xf32> -> vector<136x64xf32>
    %69 = arith.addf %64, %68 : vector<136x64xf32>
    %c15 = arith.constant 15 : index
    %c0_63 = arith.constant 0 : index
    %70 = vector.load %arg8[%c15, %c0_63] : memref<200x64xbf16, #tpu.memory_space<vmem>>, vector<136x64xbf16>
    %c6 = arith.constant 6 : index
    %c0_64 = arith.constant 0 : index
    %c0_65 = arith.constant 0 : index
    %71 = vector.load %arg4[%c6, %c0_64, %c0_65] : memref<25x64x64xbf16, #tpu.memory_space<vmem>>, vector<1x64x64xbf16>
    %72 = vector.shape_cast %71 : vector<1x64x64xbf16> to vector<64x64xbf16>
    %cst_66 = arith.constant dense<0.000000e+00> : vector<136x64xf32>
    %73 = tpu.matmul %70, %72, %cst_66 {dimension_numbers = #tpu.dot_dimension_numbers<[1], [0], [0], [1], [0, 0, 1, 1], [], []>} : vector<136x64xbf16>, vector<64x64xbf16>, vector<136x64xf32> -> vector<136x64xf32>
    %74 = arith.addf %69, %73 : vector<136x64xf32>
    %c16 = arith.constant 16 : index
    %c0_67 = arith.constant 0 : index
    %75 = vector.load %arg8[%c16, %c0_67] : memref<200x64xbf16, #tpu.memory_space<vmem>>, vector<136x64xbf16>
    %c7 = arith.constant 7 : index
    %c0_68 = arith.constant 0 : index
    %c0_69 = arith.constant 0 : index
    %76 = vector.load %arg4[%c7, %c0_68, %c0_69] : memref<25x64x64xbf16, #tpu.memory_space<vmem>>, vector<1x64x64xbf16>
    %77 = vector.shape_cast %76 : vector<1x64x64xbf16> to vector<64x64xbf16>
    %cst_70 = arith.constant dense<0.000000e+00> : vector<136x64xf32>
    %78 = tpu.matmul %75, %77, %cst_70 {dimension_numbers = #tpu.dot_dimension_numbers<[1], [0], [0], [1], [0, 0, 1, 1], [], []>} : vector<136x64xbf16>, vector<64x64xbf16>, vector<136x64xf32> -> vector<136x64xf32>
    %79 = arith.addf %74, %78 : vector<136x64xf32>
    %c17 = arith.constant 17 : index
    %c0_71 = arith.constant 0 : index
    %80 = vector.load %arg8[%c17, %c0_71] : memref<200x64xbf16, #tpu.memory_space<vmem>>, vector<136x64xbf16>
    %c8 = arith.constant 8 : index
    %c0_72 = arith.constant 0 : index
    %c0_73 = arith.constant 0 : index
    %81 = vector.load %arg4[%c8, %c0_72, %c0_73] : memref<25x64x64xbf16, #tpu.memory_space<vmem>>, vector<1x64x64xbf16>
    %82 = vector.shape_cast %81 : vector<1x64x64xbf16> to vector<64x64xbf16>
    %cst_74 = arith.constant dense<0.000000e+00> : vector<136x64xf32>
    %83 = tpu.matmul %80, %82, %cst_74 {dimension_numbers = #tpu.dot_dimension_numbers<[1], [0], [0], [1], [0, 0, 1, 1], [], []>} : vector<136x64xbf16>, vector<64x64xbf16>, vector<136x64xf32> -> vector<136x64xf32>
    %84 = arith.addf %79, %83 : vector<136x64xf32>
    %c18 = arith.constant 18 : index
    %c0_75 = arith.constant 0 : index
    %85 = vector.load %arg8[%c18, %c0_75] : memref<200x64xbf16, #tpu.memory_space<vmem>>, vector<136x64xbf16>
    %c9 = arith.constant 9 : index
    %c0_76 = arith.constant 0 : index
    %c0_77 = arith.constant 0 : index
    %86 = vector.load %arg4[%c9, %c0_76, %c0_77] : memref<25x64x64xbf16, #tpu.memory_space<vmem>>, vector<1x64x64xbf16>
    %87 = vector.shape_cast %86 : vector<1x64x64xbf16> to vector<64x64xbf16>
    %cst_78 = arith.constant dense<0.000000e+00> : vector<136x64xf32>
    %88 = tpu.matmul %85, %87, %cst_78 {dimension_numbers = #tpu.dot_dimension_numbers<[1], [0], [0], [1], [0, 0, 1, 1], [], []>} : vector<136x64xbf16>, vector<64x64xbf16>, vector<136x64xf32> -> vector<136x64xf32>
    %89 = arith.addf %84, %88 : vector<136x64xf32>
    %c28 = arith.constant 28 : index
    %c0_79 = arith.constant 0 : index
    %90 = vector.load %arg8[%c28, %c0_79] : memref<200x64xbf16, #tpu.memory_space<vmem>>, vector<136x64xbf16>
    %c10 = arith.constant 10 : index
    %c0_80 = arith.constant 0 : index
    %c0_81 = arith.constant 0 : index
    %91 = vector.load %arg4[%c10, %c0_80, %c0_81] : memref<25x64x64xbf16, #tpu.memory_space<vmem>>, vector<1x64x64xbf16>
    %92 = vector.shape_cast %91 : vector<1x64x64xbf16> to vector<64x64xbf16>
    %cst_82 = arith.constant dense<0.000000e+00> : vector<136x64xf32>
    %93 = tpu.matmul %90, %92, %cst_82 {dimension_numbers = #tpu.dot_dimension_numbers<[1], [0], [0], [1], [0, 0, 1, 1], [], []>} : vector<136x64xbf16>, vector<64x64xbf16>, vector<136x64xf32> -> vector<136x64xf32>
    %94 = arith.addf %89, %93 : vector<136x64xf32>
    %c29 = arith.constant 29 : index
    %c0_83 = arith.constant 0 : index
    %95 = vector.load %arg8[%c29, %c0_83] : memref<200x64xbf16, #tpu.memory_space<vmem>>, vector<136x64xbf16>
    %c11 = arith.constant 11 : index
    %c0_84 = arith.constant 0 : index
    %c0_85 = arith.constant 0 : index
    %96 = vector.load %arg4[%c11, %c0_84, %c0_85] : memref<25x64x64xbf16, #tpu.memory_space<vmem>>, vector<1x64x64xbf16>
    %97 = vector.shape_cast %96 : vector<1x64x64xbf16> to vector<64x64xbf16>
    %cst_86 = arith.constant dense<0.000000e+00> : vector<136x64xf32>
    %98 = tpu.matmul %95, %97, %cst_86 {dimension_numbers = #tpu.dot_dimension_numbers<[1], [0], [0], [1], [0, 0, 1, 1], [], []>} : vector<136x64xbf16>, vector<64x64xbf16>, vector<136x64xf32> -> vector<136x64xf32>
    %99 = arith.addf %94, %98 : vector<136x64xf32>
    %c30 = arith.constant 30 : index
    %c0_87 = arith.constant 0 : index
    %100 = vector.load %arg8[%c30, %c0_87] : memref<200x64xbf16, #tpu.memory_space<vmem>>, vector<136x64xbf16>
    %c12 = arith.constant 12 : index
    %c0_88 = arith.constant 0 : index
    %c0_89 = arith.constant 0 : index
    %101 = vector.load %arg4[%c12, %c0_88, %c0_89] : memref<25x64x64xbf16, #tpu.memory_space<vmem>>, vector<1x64x64xbf16>
    %102 = vector.shape_cast %101 : vector<1x64x64xbf16> to vector<64x64xbf16>
    %cst_90 = arith.constant dense<0.000000e+00> : vector<136x64xf32>
    %103 = tpu.matmul %100, %102, %cst_90 {dimension_numbers = #tpu.dot_dimension_numbers<[1], [0], [0], [1], [0, 0, 1, 1], [], []>} : vector<136x64xbf16>, vector<64x64xbf16>, vector<136x64xf32> -> vector<136x64xf32>
    %104 = arith.addf %99, %103 : vector<136x64xf32>
    %c31 = arith.constant 31 : index
    %c0_91 = arith.constant 0 : index
    %105 = vector.load %arg8[%c31, %c0_91] : memref<200x64xbf16, #tpu.memory_space<vmem>>, vector<136x64xbf16>
    %c13 = arith.constant 13 : index
    %c0_92 = arith.constant 0 : index
    %c0_93 = arith.constant 0 : index
    %106 = vector.load %arg4[%c13, %c0_92, %c0_93] : memref<25x64x64xbf16, #tpu.memory_space<vmem>>, vector<1x64x64xbf16>
    %107 = vector.shape_cast %106 : vector<1x64x64xbf16> to vector<64x64xbf16>
    %cst_94 = arith.constant dense<0.000000e+00> : vector<136x64xf32>
    %108 = tpu.matmul %105, %107, %cst_94 {dimension_numbers = #tpu.dot_dimension_numbers<[1], [0], [0], [1], [0, 0, 1, 1], [], []>} : vector<136x64xbf16>, vector<64x64xbf16>, vector<136x64xf32> -> vector<136x64xf32>
    %109 = arith.addf %104, %108 : vector<136x64xf32>
    %c32 = arith.constant 32 : index
    %c0_95 = arith.constant 0 : index
    %110 = vector.load %arg8[%c32, %c0_95] : memref<200x64xbf16, #tpu.memory_space<vmem>>, vector<136x64xbf16>
    %c14_96 = arith.constant 14 : index
    %c0_97 = arith.constant 0 : index
    %c0_98 = arith.constant 0 : index
    %111 = vector.load %arg4[%c14_96, %c0_97, %c0_98] : memref<25x64x64xbf16, #tpu.memory_space<vmem>>, vector<1x64x64xbf16>
    %112 = vector.shape_cast %111 : vector<1x64x64xbf16> to vector<64x64xbf16>
    %cst_99 = arith.constant dense<0.000000e+00> : vector<136x64xf32>
    %113 = tpu.matmul %110, %112, %cst_99 {dimension_numbers = #tpu.dot_dimension_numbers<[1], [0], [0], [1], [0, 0, 1, 1], [], []>} : vector<136x64xbf16>, vector<64x64xbf16>, vector<136x64xf32> -> vector<136x64xf32>
    %114 = arith.addf %109, %113 : vector<136x64xf32>
    %c42 = arith.constant 42 : index
    %c0_100 = arith.constant 0 : index
    %115 = vector.load %arg8[%c42, %c0_100] : memref<200x64xbf16, #tpu.memory_space<vmem>>, vector<136x64xbf16>
    %c15_101 = arith.constant 15 : index
    %c0_102 = arith.constant 0 : index
    %c0_103 = arith.constant 0 : index
    %116 = vector.load %arg4[%c15_101, %c0_102, %c0_103] : memref<25x64x64xbf16, #tpu.memory_space<vmem>>, vector<1x64x64xbf16>
    %117 = vector.shape_cast %116 : vector<1x64x64xbf16> to vector<64x64xbf16>
    %cst_104 = arith.constant dense<0.000000e+00> : vector<136x64xf32>
    %118 = tpu.matmul %115, %117, %cst_104 {dimension_numbers = #tpu.dot_dimension_numbers<[1], [0], [0], [1], [0, 0, 1, 1], [], []>} : vector<136x64xbf16>, vector<64x64xbf16>, vector<136x64xf32> -> vector<136x64xf32>
    %119 = arith.addf %114, %118 : vector<136x64xf32>
    %c43 = arith.constant 43 : index
    %c0_105 = arith.constant 0 : index
    %120 = vector.load %arg8[%c43, %c0_105] : memref<200x64xbf16, #tpu.memory_space<vmem>>, vector<136x64xbf16>
    %c16_106 = arith.constant 16 : index
    %c0_107 = arith.constant 0 : index
    %c0_108 = arith.constant 0 : index
    %121 = vector.load %arg4[%c16_106, %c0_107, %c0_108] : memref<25x64x64xbf16, #tpu.memory_space<vmem>>, vector<1x64x64xbf16>
    %122 = vector.shape_cast %121 : vector<1x64x64xbf16> to vector<64x64xbf16>
    %cst_109 = arith.constant dense<0.000000e+00> : vector<136x64xf32>
    %123 = tpu.matmul %120, %122, %cst_109 {dimension_numbers = #tpu.dot_dimension_numbers<[1], [0], [0], [1], [0, 0, 1, 1], [], []>} : vector<136x64xbf16>, vector<64x64xbf16>, vector<136x64xf32> -> vector<136x64xf32>
    %124 = arith.addf %119, %123 : vector<136x64xf32>
    %c44 = arith.constant 44 : index
    %c0_110 = arith.constant 0 : index
    %125 = vector.load %arg8[%c44, %c0_110] : memref<200x64xbf16, #tpu.memory_space<vmem>>, vector<136x64xbf16>
    %c17_111 = arith.constant 17 : index
    %c0_112 = arith.constant 0 : index
    %c0_113 = arith.constant 0 : index
    %126 = vector.load %arg4[%c17_111, %c0_112, %c0_113] : memref<25x64x64xbf16, #tpu.memory_space<vmem>>, vector<1x64x64xbf16>
    %127 = vector.shape_cast %126 : vector<1x64x64xbf16> to vector<64x64xbf16>
    %cst_114 = arith.constant dense<0.000000e+00> : vector<136x64xf32>
    %128 = tpu.matmul %125, %127, %cst_114 {dimension_numbers = #tpu.dot_dimension_numbers<[1], [0], [0], [1], [0, 0, 1, 1], [], []>} : vector<136x64xbf16>, vector<64x64xbf16>, vector<136x64xf32> -> vector<136x64xf32>
    %129 = arith.addf %124, %128 : vector<136x64xf32>
    %c45 = arith.constant 45 : index
    %c0_115 = arith.constant 0 : index
    %130 = vector.load %arg8[%c45, %c0_115] : memref<200x64xbf16, #tpu.memory_space<vmem>>, vector<136x64xbf16>
    %c18_116 = arith.constant 18 : index
    %c0_117 = arith.constant 0 : index
    %c0_118 = arith.constant 0 : index
    %131 = vector.load %arg4[%c18_116, %c0_117, %c0_118] : memref<25x64x64xbf16, #tpu.memory_space<vmem>>, vector<1x64x64xbf16>
    %132 = vector.shape_cast %131 : vector<1x64x64xbf16> to vector<64x64xbf16>
    %cst_119 = arith.constant dense<0.000000e+00> : vector<136x64xf32>
    %133 = tpu.matmul %130, %132, %cst_119 {dimension_numbers = #tpu.dot_dimension_numbers<[1], [0], [0], [1], [0, 0, 1, 1], [], []>} : vector<136x64xbf16>, vector<64x64xbf16>, vector<136x64xf32> -> vector<136x64xf32>
    %134 = arith.addf %129, %133 : vector<136x64xf32>
    %c46 = arith.constant 46 : index
    %c0_120 = arith.constant 0 : index
    %135 = vector.load %arg8[%c46, %c0_120] : memref<200x64xbf16, #tpu.memory_space<vmem>>, vector<136x64xbf16>
    %c19 = arith.constant 19 : index
    %c0_121 = arith.constant 0 : index
    %c0_122 = arith.constant 0 : index
    %136 = vector.load %arg4[%c19, %c0_121, %c0_122] : memref<25x64x64xbf16, #tpu.memory_space<vmem>>, vector<1x64x64xbf16>
    %137 = vector.shape_cast %136 : vector<1x64x64xbf16> to vector<64x64xbf16>
    %cst_123 = arith.constant dense<0.000000e+00> : vector<136x64xf32>
    %138 = tpu.matmul %135, %137, %cst_123 {dimension_numbers = #tpu.dot_dimension_numbers<[1], [0], [0], [1], [0, 0, 1, 1], [], []>} : vector<136x64xbf16>, vector<64x64xbf16>, vector<136x64xf32> -> vector<136x64xf32>
    %139 = arith.addf %134, %138 : vector<136x64xf32>
    %c56 = arith.constant 56 : index
    %c0_124 = arith.constant 0 : index
    %140 = vector.load %arg8[%c56, %c0_124] : memref<200x64xbf16, #tpu.memory_space<vmem>>, vector<136x64xbf16>
    %c20 = arith.constant 20 : index
    %c0_125 = arith.constant 0 : index
    %c0_126 = arith.constant 0 : index
    %141 = vector.load %arg4[%c20, %c0_125, %c0_126] : memref<25x64x64xbf16, #tpu.memory_space<vmem>>, vector<1x64x64xbf16>
    %142 = vector.shape_cast %141 : vector<1x64x64xbf16> to vector<64x64xbf16>
    %cst_127 = arith.constant dense<0.000000e+00> : vector<136x64xf32>
    %143 = tpu.matmul %140, %142, %cst_127 {dimension_numbers = #tpu.dot_dimension_numbers<[1], [0], [0], [1], [0, 0, 1, 1], [], []>} : vector<136x64xbf16>, vector<64x64xbf16>, vector<136x64xf32> -> vector<136x64xf32>
    %144 = arith.addf %139, %143 : vector<136x64xf32>
    %c57 = arith.constant 57 : index
    %c0_128 = arith.constant 0 : index
    %145 = vector.load %arg8[%c57, %c0_128] : memref<200x64xbf16, #tpu.memory_space<vmem>>, vector<136x64xbf16>
    %c21 = arith.constant 21 : index
    %c0_129 = arith.constant 0 : index
    %c0_130 = arith.constant 0 : index
    %146 = vector.load %arg4[%c21, %c0_129, %c0_130] : memref<25x64x64xbf16, #tpu.memory_space<vmem>>, vector<1x64x64xbf16>
    %147 = vector.shape_cast %146 : vector<1x64x64xbf16> to vector<64x64xbf16>
    %cst_131 = arith.constant dense<0.000000e+00> : vector<136x64xf32>
    %148 = tpu.matmul %145, %147, %cst_131 {dimension_numbers = #tpu.dot_dimension_numbers<[1], [0], [0], [1], [0, 0, 1, 1], [], []>} : vector<136x64xbf16>, vector<64x64xbf16>, vector<136x64xf32> -> vector<136x64xf32>
    %149 = arith.addf %144, %148 : vector<136x64xf32>
    %c58 = arith.constant 58 : index
    %c0_132 = arith.constant 0 : index
    %150 = vector.load %arg8[%c58, %c0_132] : memref<200x64xbf16, #tpu.memory_space<vmem>>, vector<136x64xbf16>
    %c22 = arith.constant 22 : index
    %c0_133 = arith.constant 0 : index
    %c0_134 = arith.constant 0 : index
    %151 = vector.load %arg4[%c22, %c0_133, %c0_134] : memref<25x64x64xbf16, #tpu.memory_space<vmem>>, vector<1x64x64xbf16>
    %152 = vector.shape_cast %151 : vector<1x64x64xbf16> to vector<64x64xbf16>
    %cst_135 = arith.constant dense<0.000000e+00> : vector<136x64xf32>
    %153 = tpu.matmul %150, %152, %cst_135 {dimension_numbers = #tpu.dot_dimension_numbers<[1], [0], [0], [1], [0, 0, 1, 1], [], []>} : vector<136x64xbf16>, vector<64x64xbf16>, vector<136x64xf32> -> vector<136x64xf32>
    %154 = arith.addf %149, %153 : vector<136x64xf32>
    %c59 = arith.constant 59 : index
    %c0_136 = arith.constant 0 : index
    %155 = vector.load %arg8[%c59, %c0_136] : memref<200x64xbf16, #tpu.memory_space<vmem>>, vector<136x64xbf16>
    %c23 = arith.constant 23 : index
    %c0_137 = arith.constant 0 : index
    %c0_138 = arith.constant 0 : index
    %156 = vector.load %arg4[%c23, %c0_137, %c0_138] : memref<25x64x64xbf16, #tpu.memory_space<vmem>>, vector<1x64x64xbf16>
    %157 = vector.shape_cast %156 : vector<1x64x64xbf16> to vector<64x64xbf16>
    %cst_139 = arith.constant dense<0.000000e+00> : vector<136x64xf32>
    %158 = tpu.matmul %155, %157, %cst_139 {dimension_numbers = #tpu.dot_dimension_numbers<[1], [0], [0], [1], [0, 0, 1, 1], [], []>} : vector<136x64xbf16>, vector<64x64xbf16>, vector<136x64xf32> -> vector<136x64xf32>
    %159 = arith.addf %154, %158 : vector<136x64xf32>
    %c60 = arith.constant 60 : index
    %c0_140 = arith.constant 0 : index
    %160 = vector.load %arg8[%c60, %c0_140] : memref<200x64xbf16, #tpu.memory_space<vmem>>, vector<136x64xbf16>
    %c24 = arith.constant 24 : index
    %c0_141 = arith.constant 0 : index
    %c0_142 = arith.constant 0 : index
    %161 = vector.load %arg4[%c24, %c0_141, %c0_142] : memref<25x64x64xbf16, #tpu.memory_space<vmem>>, vector<1x64x64xbf16>
    %162 = vector.shape_cast %161 : vector<1x64x64xbf16> to vector<64x64xbf16>
    %cst_143 = arith.constant dense<0.000000e+00> : vector<136x64xf32>
    %163 = tpu.matmul %160, %162, %cst_143 {dimension_numbers = #tpu.dot_dimension_numbers<[1], [0], [0], [1], [0, 0, 1, 1], [], []>} : vector<136x64xbf16>, vector<64x64xbf16>, vector<136x64xf32> -> vector<136x64xf32>
    %164 = arith.addf %159, %163 : vector<136x64xf32>
    %c0_144 = arith.constant 0 : index
    %c0_145 = arith.constant 0 : index
    %165 = vector.load %arg5[%c0_144, %c0_145] : memref<1x64xf32, #tpu.memory_space<vmem>>, vector<1x64xf32>
    %166 = vector.broadcast %165 : vector<1x64xf32> to vector<136x64xf32>
    %167 = arith.addf %164, %166 : vector<136x64xf32>
    %cst_146 = arith.constant 0.000000e+00 : f32
    %168 = vector.broadcast %cst_146 : f32 to vector<136x64xf32>
    %169 = arith.maximumf %167, %168 : vector<136x64xf32>
    %c0_147 = arith.constant 0 : index
    %c0_148 = arith.constant 0 : index
    %c0_149 = arith.constant 0 : index
    %170 = vector.load %arg6[%c0_147, %c0_148, %c0_149] : memref<4x32x136xf32, #tpu.memory_space<vmem>>, vector<1x32x136xf32>
    %171 = vector.shape_cast %170 : vector<1x32x136xf32> to vector<32x136xf32>
    %cst_150 = arith.constant dense<0.000000e+00> : vector<32x64xf32>
    %172 = tpu.matmul %171, %169, %cst_150 {dimension_numbers = #tpu.dot_dimension_numbers<[1], [0], [0], [1], [0, 0, 1, 1], [], []>} : vector<32x136xf32>, vector<136x64xf32>, vector<32x64xf32> -> vector<32x64xf32>
    %c1_151 = arith.constant 1 : index
    %c0_152 = arith.constant 0 : index
    %c0_153 = arith.constant 0 : index
    %173 = vector.load %arg6[%c1_151, %c0_152, %c0_153] : memref<4x32x136xf32, #tpu.memory_space<vmem>>, vector<1x32x136xf32>
    %174 = vector.shape_cast %173 : vector<1x32x136xf32> to vector<32x136xf32>
    %cst_154 = arith.constant dense<0.000000e+00> : vector<32x64xf32>
    %175 = tpu.matmul %174, %169, %cst_154 {dimension_numbers = #tpu.dot_dimension_numbers<[1], [0], [0], [1], [0, 0, 1, 1], [], []>} : vector<32x136xf32>, vector<136x64xf32>, vector<32x64xf32> -> vector<32x64xf32>
    %176 = arith.maximumf %172, %175 : vector<32x64xf32>
    %c2_155 = arith.constant 2 : index
    %c0_156 = arith.constant 0 : index
    %c0_157 = arith.constant 0 : index
    %177 = vector.load %arg6[%c2_155, %c0_156, %c0_157] : memref<4x32x136xf32, #tpu.memory_space<vmem>>, vector<1x32x136xf32>
    %178 = vector.shape_cast %177 : vector<1x32x136xf32> to vector<32x136xf32>
    %cst_158 = arith.constant dense<0.000000e+00> : vector<32x64xf32>
    %179 = tpu.matmul %178, %169, %cst_158 {dimension_numbers = #tpu.dot_dimension_numbers<[1], [0], [0], [1], [0, 0, 1, 1], [], []>} : vector<32x136xf32>, vector<136x64xf32>, vector<32x64xf32> -> vector<32x64xf32>
    %180 = arith.maximumf %176, %179 : vector<32x64xf32>
    %c3_159 = arith.constant 3 : index
    %c0_160 = arith.constant 0 : index
    %c0_161 = arith.constant 0 : index
    %181 = vector.load %arg6[%c3_159, %c0_160, %c0_161] : memref<4x32x136xf32, #tpu.memory_space<vmem>>, vector<1x32x136xf32>
    %182 = vector.shape_cast %181 : vector<1x32x136xf32> to vector<32x136xf32>
    %cst_162 = arith.constant dense<0.000000e+00> : vector<32x64xf32>
    %183 = tpu.matmul %182, %169, %cst_162 {dimension_numbers = #tpu.dot_dimension_numbers<[1], [0], [0], [1], [0, 0, 1, 1], [], []>} : vector<32x136xf32>, vector<136x64xf32>, vector<32x64xf32> -> vector<32x64xf32>
    %184 = arith.maximumf %180, %183 : vector<32x64xf32>
    %c0_163 = arith.constant 0 : index
    %c0_164 = arith.constant 0 : index
    %c0_165 = arith.constant 0 : index
    %185 = vector.load %arg7[%c0_163, %c0_164, %c0_165] : memref<1x32x64xf32, #tpu.memory_space<vmem>>, vector<1x32x64xf32>
    %186 = vector.shape_cast %185 : vector<1x32x64xf32> to vector<32x64xf32>
    %187 = vector.shape_cast %184 : vector<32x64xf32> to vector<1x32x64xf32>
    tpu.vector_store %arg7[%c0_163, %c0_164, %c0_165], %187 {strides = array<i32>} : memref<1x32x64xf32, #tpu.memory_space<vmem>>, vector<1x32x64xf32>,
    return
  }
  func.func @transform_0(%arg0: i32) -> (i32, i32, i32) {
    %c0_i32 = arith.constant 0 : i32
    %c0_i32_0 = arith.constant 0 : i32
    %c0_i32_1 = arith.constant 0 : i32
    return %arg0, %c0_i32, %c0_i32_0 : i32, i32, i32
  }
  func.func @transform_1(%arg0: i32) -> (i32, i32) {
    %c0_i32 = arith.constant 0 : i32
    %c0_i32_0 = arith.constant 0 : i32
    %c0_i32_1 = arith.constant 0 : i32
    return %c0_i32, %c0_i32_0 : i32, i32
  }
  func.func @transform_2(%arg0: i32) -> (i32, i32) {
    %c0_i32 = arith.constant 0 : i32
    %c0_i32_0 = arith.constant 0 : i32
    %c0_i32_1 = arith.constant 0 : i32
    return %c0_i32, %c0_i32_0 : i32, i32
  }
  func.func @transform_3(%arg0: i32) -> (i32, i32, i32) {
    %c0_i32 = arith.constant 0 : i32
    %c0_i32_0 = arith.constant 0 : i32
    %c0_i32_1 = arith.constant 0 : i32
    %c0_i32_2 = arith.constant 0 : i32
    return %c0_i32, %c0_i32_0, %c0_i32_1 : i32, i32, i32
  }
  func.func @transform_4(%arg0: i32) -> (i32, i32) {
    %c0_i32 = arith.constant 0 : i32
    %c0_i32_0 = arith.constant 0 : i32
    %c0_i32_1 = arith.constant 0 : i32
    return %c0_i32, %c0_i32_0 : i32, i32
  }
  func.func @transform_5(%arg0: i32) -> (i32, i32, i32) {
    %c0_i32 = arith.constant 0 : i32
    %c0_i32_0 = arith.constant 0 : i32
    %c0_i32_1 = arith.constant 0 : i32
    %c0_i32_2 = arith.constant 0 : i32
    return %c0_i32, %c0_i32_0, %c0_i32_1 : i32, i32, i32
  }
  func.func @transform_6(%arg0: i32) -> (i32, i32, i32) {
    %c0_i32 = arith.constant 0 : i32
    %c0_i32_0 = arith.constant 0 : i32
    %c0_i32_1 = arith.constant 0 : i32
    return %arg0, %c0_i32, %c0_i32_0 : i32, i32, i32
  }
}

module attributes {stable_mosaic.version = 11 : i64} {
  func.func @_fc_stack_kernel(%arg0: i32, %arg1: memref<2x1600xf32, #tpu.memory_space<vmem>>, %arg2: memref<1600x384xbf16, #tpu.memory_space<vmem>>, %arg3: memref<1x384xf32, #tpu.memory_space<vmem>>, %arg4: memref<384x192xbf16, #tpu.memory_space<vmem>>, %arg5: memref<1x192xf32, #tpu.memory_space<vmem>>, %arg6: memref<192x100xbf16, #tpu.memory_space<vmem>>, %arg7: memref<1x100xf32, #tpu.memory_space<vmem>>, %arg8: memref<2x100xf32, #tpu.memory_space<vmem>>) attributes {dimension_semantics = [#tpu.dimension_semantics<arbitrary>], iteration_bounds = array<i64: 1>, scalar_prefetch = 0 : i64, scratch_operands = 0 : i64, tpu.core_type = #tpu.core_type<tc>, window_params = [{pipeline_mode = #tpu.pipeline_mode<synchronous>, transform_indices = @transform_0, window_bounds = array<i64: 2, 1600>}, {pipeline_mode = #tpu.pipeline_mode<synchronous>, transform_indices = @transform_1, window_bounds = array<i64: 1600, 384>}, {pipeline_mode = #tpu.pipeline_mode<synchronous>, transform_indices = @transform_2, window_bounds = array<i64: 1, 384>}, {pipeline_mode = #tpu.pipeline_mode<synchronous>, transform_indices = @transform_3, window_bounds = array<i64: 384, 192>}, {pipeline_mode = #tpu.pipeline_mode<synchronous>, transform_indices = @transform_4, window_bounds = array<i64: 1, 192>}, {pipeline_mode = #tpu.pipeline_mode<synchronous>, transform_indices = @transform_5, window_bounds = array<i64: 192, 100>}, {pipeline_mode = #tpu.pipeline_mode<synchronous>, transform_indices = @transform_6, window_bounds = array<i64: 1, 100>}, {pipeline_mode = #tpu.pipeline_mode<synchronous>, transform_indices = @transform_7, window_bounds = array<i64: 2, 100>}]} {
    %c0 = arith.constant 0 : index
    %c0_0 = arith.constant 0 : index
    %0 = vector.load %arg1[%c0, %c0_0] : memref<2x1600xf32, #tpu.memory_space<vmem>>, vector<2x1600xf32>
    %1 = arith.truncf %0 : vector<2x1600xf32> to vector<2x1600xbf16>
    %c0_1 = arith.constant 0 : index
    %c0_2 = arith.constant 0 : index
    %2 = vector.load %arg2[%c0_1, %c0_2] : memref<1600x384xbf16, #tpu.memory_space<vmem>>, vector<1600x384xbf16>
    %cst = arith.constant dense<0.000000e+00> : vector<2x384xf32>
    %3 = tpu.matmul %1, %2, %cst {dimension_numbers = #tpu.dot_dimension_numbers<[1], [0], [0], [1], [0, 0, 1, 1], [], []>} : vector<2x1600xbf16>, vector<1600x384xbf16>, vector<2x384xf32> -> vector<2x384xf32>
    %c0_3 = arith.constant 0 : index
    %c0_4 = arith.constant 0 : index
    %4 = vector.load %arg3[%c0_3, %c0_4] : memref<1x384xf32, #tpu.memory_space<vmem>>, vector<1x384xf32>
    %5 = vector.broadcast %4 : vector<1x384xf32> to vector<2x384xf32>
    %6 = arith.addf %3, %5 : vector<2x384xf32>
    %cst_5 = arith.constant 0.000000e+00 : f32
    %7 = vector.broadcast %cst_5 : f32 to vector<2x384xf32>
    %8 = arith.maximumf %6, %7 : vector<2x384xf32>
    %9 = arith.truncf %8 : vector<2x384xf32> to vector<2x384xbf16>
    %c0_6 = arith.constant 0 : index
    %c0_7 = arith.constant 0 : index
    %10 = vector.load %arg4[%c0_6, %c0_7] : memref<384x192xbf16, #tpu.memory_space<vmem>>, vector<384x192xbf16>
    %cst_8 = arith.constant dense<0.000000e+00> : vector<2x192xf32>
    %11 = tpu.matmul %9, %10, %cst_8 {dimension_numbers = #tpu.dot_dimension_numbers<[1], [0], [0], [1], [0, 0, 1, 1], [], []>} : vector<2x384xbf16>, vector<384x192xbf16>, vector<2x192xf32> -> vector<2x192xf32>
    %c0_9 = arith.constant 0 : index
    %c0_10 = arith.constant 0 : index
    %12 = vector.load %arg5[%c0_9, %c0_10] : memref<1x192xf32, #tpu.memory_space<vmem>>, vector<1x192xf32>
    %13 = vector.broadcast %12 : vector<1x192xf32> to vector<2x192xf32>
    %14 = arith.addf %11, %13 : vector<2x192xf32>
    %cst_11 = arith.constant 0.000000e+00 : f32
    %15 = vector.broadcast %cst_11 : f32 to vector<2x192xf32>
    %16 = arith.maximumf %14, %15 : vector<2x192xf32>
    %17 = arith.truncf %16 : vector<2x192xf32> to vector<2x192xbf16>
    %c0_12 = arith.constant 0 : index
    %c0_13 = arith.constant 0 : index
    %18 = vector.load %arg6[%c0_12, %c0_13] : memref<192x100xbf16, #tpu.memory_space<vmem>>, vector<192x100xbf16>
    %cst_14 = arith.constant dense<0.000000e+00> : vector<2x100xf32>
    %19 = tpu.matmul %17, %18, %cst_14 {dimension_numbers = #tpu.dot_dimension_numbers<[1], [0], [0], [1], [0, 0, 1, 1], [], []>} : vector<2x192xbf16>, vector<192x100xbf16>, vector<2x100xf32> -> vector<2x100xf32>
    %c0_15 = arith.constant 0 : index
    %c0_16 = arith.constant 0 : index
    %20 = vector.load %arg7[%c0_15, %c0_16] : memref<1x100xf32, #tpu.memory_space<vmem>>, vector<1x100xf32>
    %21 = vector.broadcast %20 : vector<1x100xf32> to vector<2x100xf32>
    %22 = arith.addf %19, %21 : vector<2x100xf32>
    %c0_17 = arith.constant 0 : index
    %c0_18 = arith.constant 0 : index
    %23 = vector.load %arg8[%c0_17, %c0_18] : memref<2x100xf32, #tpu.memory_space<vmem>>, vector<2x100xf32>
    tpu.vector_store %arg8[%c0_17, %c0_18], %22 {strides = array<i32>} : memref<2x100xf32, #tpu.memory_space<vmem>>, vector<2x100xf32>,
    return
  }
  func.func @transform_0(%arg0: i32) -> (i32, i32) {
    %c0_i32 = arith.constant 0 : i32
    %c0_i32_0 = arith.constant 0 : i32
    %c0_i32_1 = arith.constant 0 : i32
    return %c0_i32, %c0_i32_0 : i32, i32
  }
  func.func @transform_1(%arg0: i32) -> (i32, i32) {
    %c0_i32 = arith.constant 0 : i32
    %c0_i32_0 = arith.constant 0 : i32
    %c0_i32_1 = arith.constant 0 : i32
    return %c0_i32, %c0_i32_0 : i32, i32
  }
  func.func @transform_2(%arg0: i32) -> (i32, i32) {
    %c0_i32 = arith.constant 0 : i32
    %c0_i32_0 = arith.constant 0 : i32
    %c0_i32_1 = arith.constant 0 : i32
    return %c0_i32, %c0_i32_0 : i32, i32
  }
  func.func @transform_3(%arg0: i32) -> (i32, i32) {
    %c0_i32 = arith.constant 0 : i32
    %c0_i32_0 = arith.constant 0 : i32
    %c0_i32_1 = arith.constant 0 : i32
    return %c0_i32, %c0_i32_0 : i32, i32
  }
  func.func @transform_4(%arg0: i32) -> (i32, i32) {
    %c0_i32 = arith.constant 0 : i32
    %c0_i32_0 = arith.constant 0 : i32
    %c0_i32_1 = arith.constant 0 : i32
    return %c0_i32, %c0_i32_0 : i32, i32
  }
  func.func @transform_5(%arg0: i32) -> (i32, i32) {
    %c0_i32 = arith.constant 0 : i32
    %c0_i32_0 = arith.constant 0 : i32
    %c0_i32_1 = arith.constant 0 : i32
    return %c0_i32, %c0_i32_0 : i32, i32
  }
  func.func @transform_6(%arg0: i32) -> (i32, i32) {
    %c0_i32 = arith.constant 0 : i32
    %c0_i32_0 = arith.constant 0 : i32
    %c0_i32_1 = arith.constant 0 : i32
    return %c0_i32, %c0_i32_0 : i32, i32
  }
  func.func @transform_7(%arg0: i32) -> (i32, i32) {
    %c0_i32 = arith.constant 0 : i32
    %c0_i32_0 = arith.constant 0 : i32
    %c0_i32_1 = arith.constant 0 : i32
    return %c0_i32, %c0_i32_0 : i32, i32
  }
}

</mosaic_0001>

<llo_original>
// kernel: model_forward.2
$region0: #{model_forward.2}
  #allocation0 [shape = 'u32[]', space=smem, size = 0x4, offset = 0x4, fixed_abs, tag = 'smem constant byte address 0x4 - core index']
  #allocation1 [shape = 'u32[144,128]{1,0:T(1,128)}', space=vmem, size = 0x12000, scoped, tag = 'internal scratch']
  #allocation2 [shape = 'bf16[200,64]{1,0:T(8,128)(2,1)}', space=vmem, size = 0xc800, scoped, tag = 'scratch operand']
  %s0 = inlined_call_operand.vmem [shape: bf16[2,800,128], index: 0, kind: input, shape index: {}]
  %s1 = inlined_call_operand.vmem [shape: bf16[128,64], index: 1, kind: input, shape index: {}]
  %s2 = inlined_call_operand.vmem [shape: f32[1,64], index: 2, kind: input, shape index: {}]
  %s3 = inlined_call_operand.vmem [shape: bf16[25,64,64], index: 3, kind: input, shape index: {}]
  %s4 = inlined_call_operand.vmem [shape: f32[1,64], index: 4, kind: input, shape index: {}]
  %s5 = inlined_call_operand.vmem [shape: f32[4,32,136], index: 5, kind: input, shape index: {}]
  %s6 = inlined_call_operand.vmem [shape: f32[2,32,64], index: 6, kind: output, shape index: {}]
  %s7 = sld [smem:[#allocation0]]
  $region57: #{model_forward.2} parent=0
    _
  %s9 = ssub.s32 1, %s7
  %s10 = scalar_select 0, %s9, %s7
  loop: start=0, step=1, limit=4
  $region2: #{model_forward.2} parent=0 // loop_pre_header
    _
  $region3: #{model_forward.2} parent=0 // loop_header
    %s12 = sphi 0, %s16
    %p13 = scmp.ge.s32.totalorder %s12, 4
    %s22 = sphi 0, %s24
    %s25 = sphi 0, %s22
    %s26 = sphi 0, %s25
    %s42 = sphi 0, %s26
    %s46 = sphi 0, %s46
    %s48 = sphi 0, %s46
    %s49 = sphi 0, %s48
    %s63 = sphi 0, %s49
    %s67 = sphi 0, %s67
    %s69 = sphi 0, %s67
    %s70 = sphi 0, %s69
    %s84 = sphi 0, %s70
    %s88 = sphi 0, %s88
    %s90 = sphi 0, %s88
    %s91 = sphi 0, %s90
    %s105 = sphi 0, %s91
    %s109 = sphi 0, %s109
    %s111 = sphi 0, %s109
    %s112 = sphi 0, %s111
    %s126 = sphi 0, %s112
    %s130 = sphi 0, %s130
    %s132 = sphi 0, %s130
    %s133 = sphi 0, %s132
    %s147 = sphi 0, %s133
    %s153 = sphi 0, %s155
    %s156 = sphi 0, %s153
    %s157 = sphi 0, %s156
    %s173 = sphi 0, %s157
  $region4: #{model_forward.2} parent=0 // loop_header_branch
    %15 = sbr.rel (%p13) target = $region8
  $region5: #{model_forward.2} parent=0 // loop_body
    %s17 = ssub.s32 %s12, 1
    %s18 = ssub.s32 %s12, 2
    %s19 = sadd.s32 %s12, 1
    %s20 = ssub.s32 %s12, %s19
    %p21 = scmp.eq.s32.totalorder %s20, 0
    %s23 = sadd.s32 %s22, 1
    %s24 = scalar_select %p21, %s22, %s23
    %p27 = pneg %p21
    %p28 = scmp.eq.s32.totalorder %s12, 1
    %p29 = por %p27, %p28
    %p30 = scmp.ne.s32.totalorder %s22, %s25
    %p31 = scmp.eq.s32.totalorder %s12, 0
    %p32 = por %p30, %p31
    %p33 = scmp.ne.s32.totalorder %s22, %s25
    %p34 = scmp.eq.s32.totalorder %s17, 1
    %p35 = por %p33, %p34
    %p36 = scmp.ne.s32.totalorder %s25, %s26
    %p37 = scmp.eq.s32.totalorder %s17, 0
    %p38 = por %p36, %p37
    %p39 = scmp.ne.s32.totalorder %s25, %s26
    %p40 = scmp.eq.s32.totalorder %s18, 1
    %p41 = por %p39, %p40
    %p43 = scmp.ne.s32.totalorder %s26, %s42
    %p44 = scmp.eq.s32.totalorder %s18, 0
    %p45 = por %p43, %p44
    %s47 = sadd.s32 %s46, 1
    %p50 = scmp.eq.s32.totalorder %s12, 1
    %p51 = scmp.ne.s32.totalorder %s46, %s48
    %p52 = scmp.eq.s32.totalorder %s12, 0
    %p53 = por %p51, %p52
    %p54 = scmp.ne.s32.totalorder %s46, %s48
    %p55 = scmp.eq.s32.totalorder %s17, 1
    %p56 = por %p54, %p55
    %p57 = scmp.ne.s32.totalorder %s48, %s49
    %p58 = scmp.eq.s32.totalorder %s17, 0
    %p59 = por %p57, %p58
    %p60 = scmp.ne.s32.totalorder %s48, %s49
    %p61 = scmp.eq.s32.totalorder %s18, 1
    %p62 = por %p60, %p61
    %p64 = scmp.ne.s32.totalorder %s49, %s63
    %p65 = scmp.eq.s32.totalorder %s18, 0
    %p66 = por %p64, %p65
    %s68 = sadd.s32 %s67, 1
    %p71 = scmp.eq.s32.totalorder %s12, 1
    %p72 = scmp.ne.s32.totalorder %s67, %s69
    %p73 = scmp.eq.s32.totalorder %s12, 0
    %p74 = por %p72, %p73
    %p75 = scmp.ne.s32.totalorder %s67, %s69
    %p76 = scmp.eq.s32.totalorder %s17, 1
    %p77 = por %p75, %p76
    %p78 = scmp.ne.s32.totalorder %s69, %s70
    %p79 = scmp.eq.s32.totalorder %s17, 0
    %p80 = por %p78, %p79
    %p81 = scmp.ne.s32.totalorder %s69, %s70
    %p82 = scmp.eq.s32.totalorder %s18, 1
    %p83 = por %p81, %p82
    %p85 = scmp.ne.s32.totalorder %s70, %s84
    %p86 = scmp.eq.s32.totalorder %s18, 0
    %p87 = por %p85, %p86
    %s89 = sadd.s32 %s88, 1
    %p92 = scmp.eq.s32.totalorder %s12, 1
    %p93 = scmp.ne.s32.totalorder %s88, %s90
    %p94 = scmp.eq.s32.totalorder %s12, 0
    %p95 = por %p93, %p94
    %p96 = scmp.ne.s32.totalorder %s88, %s90
    %p97 = scmp.eq.s32.totalorder %s17, 1
    %p98 = por %p96, %p97
    %p99 = scmp.ne.s32.totalorder %s90, %s91
    %p100 = scmp.eq.s32.totalorder %s17, 0
    %p101 = por %p99, %p100
    %p102 = scmp.ne.s32.totalorder %s90, %s91
    %p103 = scmp.eq.s32.totalorder %s18, 1
    %p104 = por %p102, %p103
    %p106 = scmp.ne.s32.totalorder %s91, %s105
    %p107 = scmp.eq.s32.totalorder %s18, 0
    %p108 = por %p106, %p107
    %s110 = sadd.s32 %s109, 1
    %p113 = scmp.eq.s32.totalorder %s12, 1
    %p114 = scmp.ne.s32.totalorder %s109, %s111
    %p115 = scmp.eq.s32.totalorder %s12, 0
    %p116 = por %p114, %p115
    %p117 = scmp.ne.s32.totalorder %s109, %s111
    %p118 = scmp.eq.s32.totalorder %s17, 1
    %p119 = por %p117, %p118
    %p120 = scmp.ne.s32.totalorder %s111, %s112
    %p121 = scmp.eq.s32.totalorder %s17, 0
    %p122 = por %p120, %p121
    %p123 = scmp.ne.s32.totalorder %s111, %s112
    %p124 = scmp.eq.s32.totalorder %s18, 1
    %p125 = por %p123, %p124
    %p127 = scmp.ne.s32.totalorder %s112, %s126
    %p128 = scmp.eq.s32.totalorder %s18, 0
    %p129 = por %p127, %p128
    %s131 = sadd.s32 %s130, 1
    %p134 = scmp.eq.s32.totalorder %s12, 1
    %p135 = scmp.ne.s32.totalorder %s130, %s132
    %p136 = scmp.eq.s32.totalorder %s12, 0
    %p137 = por %p135, %p136
    %p138 = scmp.ne.s32.totalorder %s130, %s132
    %p139 = scmp.eq.s32.totalorder %s17, 1
    %p140 = por %p138, %p139
    %p141 = scmp.ne.s32.totalorder %s132, %s133
    %p142 = scmp.eq.s32.totalorder %s17, 0
    %p143 = por %p141, %p142
    %p144 = scmp.ne.s32.totalorder %s132, %s133
    %p145 = scmp.eq.s32.totalorder %s18, 1
    %p146 = por %p144, %p145
    %p148 = scmp.ne.s32.totalorder %s133, %s147
    %p149 = scmp.eq.s32.totalorder %s18, 0
    %p150 = por %p148, %p149
    %s151 = ssub.s32 %s12, %s19
    %p152 = scmp.eq.s32.totalorder %s151, 0
    %s154 = sadd.s32 %s153, 1
    %s155 = scalar_select %p152, %s153, %s154
    %p158 = pneg %p152
    %p159 = scmp.eq.s32.totalorder %s12, 1
    %p160 = por %p158, %p159
    %p161 = scmp.ne.s32.totalorder %s153, %s156
    %p162 = scmp.eq.s32.totalorder %s12, 0
    %p163 = por %p161, %p162
    %p164 = scmp.ne.s32.totalorder %s153, %s156
    %p165 = scmp.eq.s32.totalorder %s17, 1
    %p166 = por %p164, %p165
    %p167 = scmp.ne.s32.totalorder %s156, %s157
    %p168 = scmp.eq.s32.totalorder %s17, 0
    %p169 = por %p167, %p168
    %p170 = scmp.ne.s32.totalorder %s156, %s157
    %p171 = scmp.eq.s32.totalorder %s18, 1
    %p172 = por %p170, %p171
    %p174 = scmp.ne.s32.totalorder %s157, %s173
    %p175 = scmp.eq.s32.totalorder %s18, 0
    %p176 = por %p174, %p175
    %p177 = scmp.le.s32.totalorder 1, %s12
    %p178 = scmp.lt.s32.totalorder %s12, 3
    %p179 = pnand %p177, %p178
    %p180 = pneg %p179
    // Predicated region
    $region9: #{model_forward.2} parent=5 // pred_check
      _
    $region10: #{model_forward.2} parent=5 // pred_check_branch
      %182 = sbr.rel (%p179) target = $region12
    $region11: #{model_forward.2} parent=5 // pred_region
      %s183 = ssub.s32 %s12, 1
      // Predicated region
      $region13: #{model_forward.2} parent=11 // pred_check
        %p184 = pneg %p59
      $region14: #{model_forward.2} parent=11 // pred_check_branch
        %186 = sbr.rel (%p184) target = $region16
      $region15: #{model_forward.2} parent=11 // pred_region
        _
      $region16: #{model_forward.2} parent=11 // pred_fallthru
        _
      // Predicated region
      $region17: #{model_forward.2} parent=11 // pred_check
        %p187 = pneg %p80
      $region18: #{model_forward.2} parent=11 // pred_check_branch
        %189 = sbr.rel (%p187) target = $region20
      $region19: #{model_forward.2} parent=11 // pred_region
        _
      $region20: #{model_forward.2} parent=11 // pred_fallthru
        _
      // Predicated region
      $region21: #{model_forward.2} parent=11 // pred_check
        %p190 = pneg %p101
      $region22: #{model_forward.2} parent=11 // pred_check_branch
        %192 = sbr.rel (%p190) target = $region24
      $region23: #{model_forward.2} parent=11 // pred_region
        _
      $region24: #{model_forward.2} parent=11 // pred_fallthru
        _
      // Predicated region
      $region25: #{model_forward.2} parent=11 // pred_check
        %p193 = pneg %p122
      $region26: #{model_forward.2} parent=11 // pred_check_branch
        %195 = sbr.rel (%p193) target = $region28
      $region27: #{model_forward.2} parent=11 // pred_region
        _
      $region28: #{model_forward.2} parent=11 // pred_fallthru
        _
      // Predicated region
      $region29: #{model_forward.2} parent=11 // pred_check
        %p196 = pneg %p143
      $region30: #{model_forward.2} parent=11 // pred_check_branch
        %198 = sbr.rel (%p196) target = $region32
      $region31: #{model_forward.2} parent=11 // pred_region
        _
      $region32: #{model_forward.2} parent=11 // pred_fallthru
        _
    $region12: #{model_forward.2} parent=5 // pred_fallthru
      _
    %p199 = scmp.lt.s32.totalorder %s12, 2
    // Predicated region
    $region33: #{model_forward.2} parent=5 // pred_check
      %p200 = pneg %p199
    $region34: #{model_forward.2} parent=5 // pred_check_branch
      %202 = sbr.rel (%p200) target = $region36
    $region35: #{model_forward.2} parent=5 // pred_region
      // Predicated region
      $region37: #{model_forward.2} parent=35 // pred_check
        %p203 = pneg %p32
      $region38: #{model_forward.2} parent=35 // pred_check_branch
        %205 = sbr.rel (%p203) target = $region40
      $region39: #{model_forward.2} parent=35 // pred_region
        %p206 = scmp.lt.s32.totalorder %s12, 1
        %s207 = scalar_select %p206, %s12, 1
        %s208 = smul.addr %s207, 100
        %s209 = smul.addr %s208, 4
        %s210 = scalar_lea.vmem %s0, %s209
      $region40: #{model_forward.2} parent=35 // pred_fallthru
        _
    $region36: #{model_forward.2} parent=5 // pred_fallthru
      _
    %p211 = scmp.le.s32.totalorder 1, %s12
    %p212 = scmp.lt.s32.totalorder %s12, 3
    %p213 = pnand %p211, %p212
    %p214 = pneg %p213
    // Predicated region
    $region41: #{model_forward.2} parent=5 // pred_check
      _
    $region42: #{model_forward.2} parent=5 // pred_check_branch
      %216 = sbr.rel (%p213) target = $region44
    $region43: #{model_forward.2} parent=5 // pred_region
      %s217 = ssub.s32 %s12, 1
      %p218 = scmp.lt.s32.totalorder %s17, 1
      %s219 = scalar_select %p218, %s17, 1
      %s220 = smul.addr %s219, 100
      %s221 = smul.addr %s220, 4
      %s222 = scalar_lea.vmem %s0, %s221
      %p223 = pneg %p38
      %p224 = pneg %p35
      %p225 = pneg %p59
      %p226 = pneg %p56
      %p227 = pneg %p80
      %p228 = pneg %p77
      %p229 = pneg %p101
      %p230 = pneg %p98
      %p231 = pneg %p122
      %p232 = pneg %p119
      %p233 = pneg %p143
      %p234 = pneg %p140
      %p235 = pneg %p169
      %p236 = pneg %p166
      %p237 = scmp.lt.s32.totalorder %s17, 1
      %s238 = scalar_select %p237, %s17, 1
      %s239 = smul.addr %s238, 4
      %s240 = smul.addr %s239, 8
      %s241 = scalar_lea.vmem %s6, %s240
      %p242 = scmp.lt.s32.totalorder %s17, 1
      %s243 = scalar_select %p242, %s17, 1
      %s244 = smul.addr %s243, 100
      %s245 = smul.addr %s244, 4
      %s246 = scalar_lea.vmem %s0, %s245
      %p247 = scmp.lt.s32.totalorder %s17, 1
      %s248 = scalar_select %p247, %s17, 1
      %s249 = smul.addr %s248, 4
      %s250 = smul.addr %s249, 8
      %s251 = scalar_lea.vmem %s6, %s250
      %v253 = vld [vmem:[%s246] sm:$0xf]
      %v254 = vld [vmem:[%s246 + $0x4] sm:$0xf]
      %v255 = vld [vmem:[%s246 + $0x8] sm:$0xf]
      %v256 = vld [vmem:[%s246 + $0xc] sm:$0xf]
      %v257 = vld [vmem:[%s246 + $0x10] sm:$0xf]
      %v258 = vld [vmem:[%s246 + $0x14] sm:$0xf]
      %v259 = vld [vmem:[%s246 + $0x18] sm:$0xf]
      %v260 = vld [vmem:[%s246 + $0x1c] sm:$0xf]
      %v261 = vld [vmem:[%s246 + $0x20] sm:$0xf]
      %v262 = vld [vmem:[%s246 + $0x24] sm:$0xf]
      %v263 = vld [vmem:[%s246 + $0x28] sm:$0xf]
      %v264 = vld [vmem:[%s246 + $0x2c] sm:$0xf]
      %v265 = vld [vmem:[%s246 + $0x30] sm:$0xf]
      %v266 = vld [vmem:[%s246 + $0x34] sm:$0xf]
      %v267 = vld [vmem:[%s246 + $0x38] sm:$0xf]
      %v268 = vld [vmem:[%s246 + $0x3c] sm:$0xf]
      %v269 = vld [vmem:[%s246 + $0x40] sm:$0xf]
      %v270 = vld [vmem:[%s246 + $0x44] sm:$0xf]
      %v271 = vld [vmem:[%s246 + $0x48] sm:$0xf]
      %v272 = vld [vmem:[%s246 + $0x4c] sm:$0xf]
      %v273 = vld [vmem:[%s246 + $0x50] sm:$0xf]
      %v274 = vld [vmem:[%s246 + $0x54] sm:$0xf]
      %v275 = vld [vmem:[%s246 + $0x58] sm:$0xf]
      %v276 = vld [vmem:[%s246 + $0x5c] sm:$0xf]
      %v277 = vld [vmem:[%s246 + $0x60] sm:$0xf]
      %v278 = vld [vmem:[%s1] sm:$0xf]
      %v279 = vld [vmem:[%s1 + $0x4] sm:$0xf]
      %v280 = vld [vmem:[%s1 + $0x8] sm:$0xf]
      %v281 = vld [vmem:[%s1 + $0xc] sm:$0xf]
      %v282 = vld [vmem:[%s1 + $0x10] sm:$0xf]
      %v283 = vld [vmem:[%s1 + $0x14] sm:$0xf]
      %v284 = vld [vmem:[%s1 + $0x18] sm:$0xf]
      %v285 = vld [vmem:[%s1 + $0x1c] sm:$0xf]
      %v286 = vld [vmem:[%s1 + $0x20] sm:$0xf]
      %v287 = vld [vmem:[%s1 + $0x24] sm:$0xf]
      %v288 = vld [vmem:[%s1 + $0x28] sm:$0xf]
      %v289 = vld [vmem:[%s1 + $0x2c] sm:$0xf]
      %v290 = vld [vmem:[%s1 + $0x30] sm:$0xf]
      %v291 = vld [vmem:[%s1 + $0x34] sm:$0xf]
      %v292 = vld [vmem:[%s1 + $0x38] sm:$0xf]
      %v293 = vld [vmem:[%s1 + $0x3c] sm:$0xf]
      %v294 = vld [vmem:[%s2] sm:$0x1]
      %v296 = vlaneseq
      %v297 = vshrl.u32 %v296, 7
      %v298 = vsub.s32 0, %v297
      %v299 = vrot.slane %v294, %v298
      %v326 = vunpack.c.l.b16 %v253
      %v327 = vunpack.c.l.b16 %v254
      %v328 = vunpack.c.l.b16 %v255
      %v329 = vunpack.c.l.b16 %v256
      %v330 = vunpack.c.l.b16 %v257
      %v331 = vunpack.c.l.b16 %v258
      %v332 = vunpack.c.l.b16 %v259
      %v333 = vunpack.c.l.b16 %v260
      %v334 = vunpack.c.l.b16 %v261
      %v335 = vunpack.c.l.b16 %v262
      %v336 = vunpack.c.l.b16 %v263
      %v337 = vunpack.c.l.b16 %v264
      %v338 = vunpack.c.l.b16 %v265
      %v339 = vunpack.c.l.b16 %v266
      %v340 = vunpack.c.l.b16 %v267
      %v341 = vunpack.c.l.b16 %v268
      %v342 = vunpack.c.l.b16 %v269
      %v343 = vunpack.c.l.b16 %v270
      %v344 = vunpack.c.l.b16 %v271
      %v345 = vunpack.c.l.b16 %v272
      %v346 = vunpack.c.l.b16 %v273
      %v347 = vunpack.c.l.b16 %v274
      %v348 = vunpack.c.l.b16 %v275
      %v349 = vunpack.c.l.b16 %v276
      %v350 = vunpack.c.l.b16 %v277
      %v351 = vpack.c.b16 %v327, %v326
      %v352 = vpack.c.b16 %v329, %v328
      %v353 = vpack.c.b16 %v331, %v330
      %v354 = vpack.c.b16 %v333, %v332
      %v355 = vpack.c.b16 %v335, %v334
      %v356 = vpack.c.b16 %v337, %v336
      %v357 = vpack.c.b16 %v339, %v338
      %v358 = vpack.c.b16 %v341, %v340
      %v359 = vpack.c.b16 %v343, %v342
      %v360 = vpack.c.b16 %v345, %v344
      %v361 = vpack.c.b16 %v347, %v346
      %v362 = vpack.c.b16 %v349, %v348
      %v363 = vpack.c.b16 %v350, %v350
      %v393 = vunpack.c.l.b16 %v278
      %v394 = vunpack.c.l.b16 %v279
      %v395 = vunpack.c.l.b16 %v280
      %v396 = vunpack.c.l.b16 %v281
      %v397 = vunpack.c.l.b16 %v282
      %v398 = vunpack.c.l.b16 %v283
      %v399 = vunpack.c.l.b16 %v284
      %v400 = vunpack.c.l.b16 %v285
      %v401 = vunpack.c.l.b16 %v286
      %v402 = vunpack.c.l.b16 %v287
      %v403 = vunpack.c.l.b16 %v288
      %v404 = vunpack.c.l.b16 %v289
      %v405 = vunpack.c.l.b16 %v290
      %v406 = vunpack.c.l.b16 %v291
      %v407 = vunpack.c.l.b16 %v292
      %v408 = vunpack.c.l.b16 %v293
      %v409 = vpack.c.b16 %v394, %v393
      %v410 = vpack.c.b16 %v396, %v395
      %v411 = vpack.c.b16 %v398, %v397
      %v412 = vpack.c.b16 %v400, %v399
      %v413 = vpack.c.b16 %v402, %v401
      %v414 = vpack.c.b16 %v404, %v403
      %v415 = vpack.c.b16 %v406, %v405
      %v416 = vpack.c.b16 %v408, %v407
      %425 = vmatprep.subr.bf16.mxu0 0
      %426 = vmatpush1.bf16.msra.mxu0 %v409
      %427 = vmatprep.subr.bf16.mxu0 0
      %428 = vmatpush1.bf16.msra.mxu0 %v410
      %429 = vmatprep.subr.bf16.mxu0 0
      %430 = vmatpush1.bf16.msra.mxu0 %v411
      %431 = vmatprep.subr.bf16.mxu0 0
      %432 = vmatpush1.bf16.msra.mxu0 %v412
      %433 = vmatprep.subr.bf16.mxu0 0
      %434 = vmatpush1.bf16.msra.mxu0 %v413
      %435 = vmatprep.subr.bf16.mxu0 0
      %436 = vmatpush1.bf16.msra.mxu0 %v414
      %437 = vmatprep.subr.bf16.mxu0 0
      %438 = vmatpush1.bf16.msra.mxu0 %v415
      %439 = vmatprep.subr.bf16.mxu0 0
      %440 = vmatpush1.bf16.msra.mxu0 %v416
      %441 = vmatprep.subr.bf16.mxu0 0
      %442 = vmatpush1.bf16.msra.mxu0 0
      %443 = vmatprep.subr.bf16.mxu0 0
      %444 = vmatpush1.bf16.msra.mxu0 0
      %445 = vmatprep.subr.bf16.mxu0 0
      %446 = vmatpush1.bf16.msra.mxu0 0
      %447 = vmatprep.subr.bf16.mxu0 0
      %448 = vmatpush1.bf16.msra.mxu0 0
      %449 = vmatprep.subr.bf16.mxu0 0
      %450 = vmatpush1.bf16.msra.mxu0 0
      %451 = vmatprep.subr.bf16.mxu0 0
      %452 = vmatpush1.bf16.msra.mxu0 0
      %453 = vmatprep.subr.bf16.mxu0 0
      %454 = vmatpush1.bf16.msra.mxu0 0
      %455 = vmatprep.subr.bf16.mxu0 0
      %456 = vmatpush1.bf16.msra.mxu0 0
      %457 = vmatprep.mubr.bf16.mxu0 0
      %458 = vmatmul.mubr.bf16.gmra.mrb[0].mxu0 %v351
      %v459 = vpop.f32.mrb[0].mxu0
      %v460 = vadd.f32 %v299, %v459
      %v461 = vpop.f32.mrb[0].mxu0
      %v462 = vpop.f32.mrb[0].mxu0
      %v463 = vadd.f32 %v299, %v462
      %v464 = vpop.f32.mrb[0].mxu0
      %465 = vmatprep.mubr.bf16.mxu0 0
      %466 = vmatmul.mubr.bf16.gmra.mrb[0].mxu0 %v352
      %v467 = vpop.f32.mrb[0].mxu0
      %v468 = vadd.f32 %v299, %v467
      %v469 = vpop.f32.mrb[0].mxu0
      %v470 = vpop.f32.mrb[0].mxu0
      %v471 = vadd.f32 %v299, %v470
      %v472 = vpop.f32.mrb[0].mxu0
      %473 = vmatprep.mubr.bf16.mxu0 0
      %474 = vmatmul.mubr.bf16.gmra.mrb[0].mxu0 %v353
      %v475 = vpop.f32.mrb[0].mxu0
      %v476 = vadd.f32 %v299, %v475
      %v477 = vpop.f32.mrb[0].mxu0
      %v478 = vpop.f32.mrb[0].mxu0
      %v479 = vadd.f32 %v299, %v478
      %v480 = vpop.f32.mrb[0].mxu0
      %481 = vmatprep.mubr.bf16.mxu0 0
      %482 = vmatmul.mubr.bf16.gmra.mrb[0].mxu0 %v354
      %v483 = vpop.f32.mrb[0].mxu0
      %v484 = vadd.f32 %v299, %v483
      %v485 = vpop.f32.mrb[0].mxu0
      %v486 = vpop.f32.mrb[0].mxu0
      %v487 = vadd.f32 %v299, %v486
      %v488 = vpop.f32.mrb[0].mxu0
      %489 = vmatprep.mubr.bf16.mxu0 0
      %490 = vmatmul.mubr.bf16.gmra.mrb[0].mxu0 %v355
      %v491 = vpop.f32.mrb[0].mxu0
      %v492 = vadd.f32 %v299, %v491
      %v493 = vpop.f32.mrb[0].mxu0
      %v494 = vpop.f32.mrb[0].mxu0
      %v495 = vadd.f32 %v299, %v494
      %v496 = vpop.f32.mrb[0].mxu0
      %497 = vmatprep.mubr.bf16.mxu0 0
      %498 = vmatmul.mubr.bf16.gmra.mrb[0].mxu0 %v356
      %v499 = vpop.f32.mrb[0].mxu0
      %v500 = vadd.f32 %v299, %v499
      %v501 = vpop.f32.mrb[0].mxu0
      %v502 = vpop.f32.mrb[0].mxu0
      %v503 = vadd.f32 %v299, %v502
      %v504 = vpop.f32.mrb[0].mxu0
      %505 = vmatprep.mubr.bf16.mxu0 0
      %506 = vmatmul.mubr.bf16.gmra.mrb[0].mxu0 %v357
      %v507 = vpop.f32.mrb[0].mxu0
      %v508 = vadd.f32 %v299, %v507
      %v509 = vpop.f32.mrb[0].mxu0
      %v510 = vpop.f32.mrb[0].mxu0
      %v511 = vadd.f32 %v299, %v510
      %v512 = vpop.f32.mrb[0].mxu0
      %513 = vmatprep.mubr.bf16.mxu0 0
      %514 = vmatmul.mubr.bf16.gmra.mrb[0].mxu0 %v358
      %v515 = vpop.f32.mrb[0].mxu0
      %v516 = vadd.f32 %v299, %v515
      %v517 = vpop.f32.mrb[0].mxu0
      %v518 = vpop.f32.mrb[0].mxu0
      %v519 = vadd.f32 %v299, %v518
      %v520 = vpop.f32.mrb[0].mxu0
      %521 = vmatprep.mubr.bf16.mxu0 0
      %522 = vmatmul.mubr.bf16.gmra.mrb[0].mxu0 %v359
      %v523 = vpop.f32.mrb[0].mxu0
      %v524 = vadd.f32 %v299, %v523
      %v525 = vpop.f32.mrb[0].mxu0
      %v526 = vpop.f32.mrb[0].mxu0
      %v527 = vadd.f32 %v299, %v526
      %v528 = vpop.f32.mrb[0].mxu0
      %529 = vmatprep.mubr.bf16.mxu0 0
      %530 = vmatmul.mubr.bf16.gmra.mrb[0].mxu0 %v360
      %v531 = vpop.f32.mrb[0].mxu0
      %v532 = vadd.f32 %v299, %v531
      %v533 = vpop.f32.mrb[0].mxu0
      %v534 = vpop.f32.mrb[0].mxu0
      %v535 = vadd.f32 %v299, %v534
      %v536 = vpop.f32.mrb[0].mxu0
      %537 = vmatprep.mubr.bf16.mxu0 0
      %538 = vmatmul.mubr.bf16.gmra.mrb[0].mxu0 %v361
      %v539 = vpop.f32.mrb[0].mxu0
      %v540 = vadd.f32 %v299, %v539
      %v541 = vpop.f32.mrb[0].mxu0
      %v542 = vpop.f32.mrb[0].mxu0
      %v543 = vadd.f32 %v299, %v542
      %v544 = vpop.f32.mrb[0].mxu0
      %545 = vmatprep.mubr.bf16.mxu0 0
      %546 = vmatmul.mubr.bf16.gmra.mrb[0].mxu0 %v362
      %v547 = vpop.f32.mrb[0].mxu0
      %v548 = vadd.f32 %v299, %v547
      %v549 = vpop.f32.mrb[0].mxu0
      %v550 = vpop.f32.mrb[0].mxu0
      %v551 = vadd.f32 %v299, %v550
      %v552 = vpop.f32.mrb[0].mxu0
      %553 = vmatprep.mubr.bf16.mxu0 0
      %554 = vmatmul.mubr.bf16.gmra.mrb[0].mxu0 %v363
      %v555 = vpop.f32.mrb[0].mxu0
      %v556 = vadd.f32 %v299, %v555
      %v557 = vpop.f32.mrb[0].mxu0
      %v558 = vpop.f32.mrb[0].mxu0
      %v559 = vpop.f32.mrb[0].mxu0
      %560 = vdwg.mxu0
      %v561 = vmax.f32 %v460, 0.0
      %v562 = vmax.f32 %v463, 0.0
      %v563 = vmax.f32 %v468, 0.0
      %v564 = vmax.f32 %v471, 0.0
      %v565 = vmax.f32 %v476, 0.0
      %v566 = vmax.f32 %v479, 0.0
      %v567 = vmax.f32 %v484, 0.0
      %v568 = vmax.f32 %v487, 0.0
      %v569 = vmax.f32 %v492, 0.0
      %v570 = vmax.f32 %v495, 0.0
      %v571 = vmax.f32 %v500, 0.0
      %v572 = vmax.f32 %v503, 0.0
      %v573 = vmax.f32 %v508, 0.0
      %v574 = vmax.f32 %v511, 0.0
      %v575 = vmax.f32 %v516, 0.0
      %v576 = vmax.f32 %v519, 0.0
      %v577 = vmax.f32 %v524, 0.0
      %v578 = vmax.f32 %v527, 0.0
      %v579 = vmax.f32 %v532, 0.0
      %v580 = vmax.f32 %v535, 0.0
      %v581 = vmax.f32 %v540, 0.0
      %v582 = vmax.f32 %v543, 0.0
      %v583 = vmax.f32 %v548, 0.0
      %v584 = vmax.f32 %v551, 0.0
      %v585 = vmax.f32 %v556, 0.0
      %v586 = vld [vmem:[%s246 + $0x64] sm:$0xf]
      %v587 = vld [vmem:[%s246 + $0x68] sm:$0xf]
      %v588 = vld [vmem:[%s246 + $0x6c] sm:$0xf]
      %v589 = vld [vmem:[%s246 + $0x70] sm:$0xf]
      %v590 = vld [vmem:[%s246 + $0x74] sm:$0xf]
      %v591 = vld [vmem:[%s246 + $0x78] sm:$0xf]
      %v592 = vld [vmem:[%s246 + $0x7c] sm:$0xf]
      %v593 = vld [vmem:[%s246 + $0x80] sm:$0xf]
      %v594 = vld [vmem:[%s246 + $0x84] sm:$0xf]
      %v595 = vld [vmem:[%s246 + $0x88] sm:$0xf]
      %v596 = vld [vmem:[%s246 + $0x8c] sm:$0xf]
      %v597 = vld [vmem:[%s246 + $0x90] sm:$0xf]
      %v598 = vld [vmem:[%s246 + $0x94] sm:$0xf]
      %v599 = vld [vmem:[%s246 + $0x98] sm:$0xf]
      %v600 = vld [vmem:[%s246 + $0x9c] sm:$0xf]
      %v601 = vld [vmem:[%s246 + $0xa0] sm:$0xf]
      %v602 = vld [vmem:[%s246 + $0xa4] sm:$0xf]
      %v603 = vld [vmem:[%s246 + $0xa8] sm:$0xf]
      %v604 = vld [vmem:[%s246 + $0xac] sm:$0xf]
      %v605 = vld [vmem:[%s246 + $0xb0] sm:$0xf]
      %v606 = vld [vmem:[%s246 + $0xb4] sm:$0xf]
      %v607 = vld [vmem:[%s246 + $0xb8] sm:$0xf]
      %v608 = vld [vmem:[%s246 + $0xbc] sm:$0xf]
      %v609 = vld [vmem:[%s246 + $0xc0] sm:$0xf]
      %v610 = vld [vmem:[%s246 + $0xc4] sm:$0xf]
      %v636 = vunpack.c.l.b16 %v586
      %v637 = vunpack.c.l.b16 %v587
      %v638 = vunpack.c.l.b16 %v588
      %v639 = vunpack.c.l.b16 %v589
      %v640 = vunpack.c.l.b16 %v590
      %v641 = vunpack.c.l.b16 %v591
      %v642 = vunpack.c.l.b16 %v592
      %v643 = vunpack.c.l.b16 %v593
      %v644 = vunpack.c.l.b16 %v594
      %v645 = vunpack.c.l.b16 %v595
      %v646 = vunpack.c.l.b16 %v596
      %v647 = vunpack.c.l.b16 %v597
      %v648 = vunpack.c.l.b16 %v598
      %v649 = vunpack.c.l.b16 %v599
      %v650 = vunpack.c.l.b16 %v600
      %v651 = vunpack.c.l.b16 %v601
      %v652 = vunpack.c.l.b16 %v602
      %v653 = vunpack.c.l.b16 %v603
      %v654 = vunpack.c.l.b16 %v604
      %v655 = vunpack.c.l.b16 %v605
      %v656 = vunpack.c.l.b16 %v606
      %v657 = vunpack.c.l.b16 %v607
      %v658 = vunpack.c.l.b16 %v608
      %v659 = vunpack.c.l.b16 %v609
      %v660 = vunpack.c.l.b16 %v610
      %v661 = vpack.c.b16 %v637, %v636
      %v662 = vpack.c.b16 %v639, %v638
      %v663 = vpack.c.b16 %v641, %v640
      %v664 = vpack.c.b16 %v643, %v642
      %v665 = vpack.c.b16 %v645, %v644
      %v666 = vpack.c.b16 %v647, %v646
      %v667 = vpack.c.b16 %v649, %v648
      %v668 = vpack.c.b16 %v651, %v650
      %v669 = vpack.c.b16 %v653, %v652
      %v670 = vpack.c.b16 %v655, %v654
      %v671 = vpack.c.b16 %v657, %v656
      %v672 = vpack.c.b16 %v659, %v658
      %v673 = vpack.c.b16 %v660, %v660
      %687 = vmatprep.subr.bf16.mxu0 0
      %688 = vmatpush1.bf16.msra.mxu0 %v409
      %689 = vmatprep.subr.bf16.mxu0 0
      %690 = vmatpush1.bf16.msra.mxu0 %v410
      %691 = vmatprep.subr.bf16.mxu0 0
      %692 = vmatpush1.bf16.msra.mxu0 %v411
      %693 = vmatprep.subr.bf16.mxu0 0
      %694 = vmatpush1.bf16.msra.mxu0 %v412
      %695 = vmatprep.subr.bf16.mxu0 0
      %696 = vmatpush1.bf16.msra.mxu0 %v413
      %697 = vmatprep.subr.bf16.mxu0 0
      %698 = vmatpush1.bf16.msra.mxu0 %v414
      %699 = vmatprep.subr.bf16.mxu0 0
      %700 = vmatpush1.bf16.msra.mxu0 %v415
      %701 = vmatprep.subr.bf16.mxu0 0
      %702 = vmatpush1.bf16.msra.mxu0 %v416
      %703 = vmatprep.subr.bf16.mxu0 0
      %704 = vmatpush1.bf16.msra.mxu0 0
      %705 = vmatprep.subr.bf16.mxu0 0
      %706 = vmatpush1.bf16.msra.mxu0 0
      %707 = vmatprep.subr.bf16.mxu0 0
      %708 = vmatpush1.bf16.msra.mxu0 0
      %709 = vmatprep.subr.bf16.mxu0 0
      %710 = vmatpush1.bf16.msra.mxu0 0
      %711 = vmatprep.subr.bf16.mxu0 0
      %712 = vmatpush1.bf16.msra.mxu0 0
      %713 = vmatprep.subr.bf16.mxu0 0
      %714 = vmatpush1.bf16.msra.mxu0 0
      %715 = vmatprep.subr.bf16.mxu0 0
      %716 = vmatpush1.bf16.msra.mxu0 0
      %717 = vmatprep.subr.bf16.mxu0 0
      %718 = vmatpush1.bf16.msra.mxu0 0
      %719 = vmatprep.mubr.bf16.mxu0 0
      %720 = vmatmul.mubr.bf16.gmra.mrb[0].mxu0 %v661
      %v721 = vpop.f32.mrb[0].mxu0
      %v722 = vadd.f32 %v299, %v721
      %v723 = vpop.f32.mrb[0].mxu0
      %v724 = vpop.f32.mrb[0].mxu0
      %v725 = vadd.f32 %v299, %v724
      %v726 = vpop.f32.mrb[0].mxu0
      %727 = vmatprep.mubr.bf16.mxu0 0
      %728 = vmatmul.mubr.bf16.gmra.mrb[0].mxu0 %v662
      %v729 = vpop.f32.mrb[0].mxu0
      %v730 = vadd.f32 %v299, %v729
      %v731 = vpop.f32.mrb[0].mxu0
      %v732 = vpop.f32.mrb[0].mxu0
      %v733 = vadd.f32 %v299, %v732
      %v734 = vpop.f32.mrb[0].mxu0
      %735 = vmatprep.mubr.bf16.mxu0 0
      %736 = vmatmul.mubr.bf16.gmra.mrb[0].mxu0 %v663
      %v737 = vpop.f32.mrb[0].mxu0
      %v738 = vadd.f32 %v299, %v737
      %v739 = vpop.f32.mrb[0].mxu0
      %v740 = vpop.f32.mrb[0].mxu0
      %v741 = vadd.f32 %v299, %v740
      %v742 = vpop.f32.mrb[0].mxu0
      %743 = vmatprep.mubr.bf16.mxu0 0
      %744 = vmatmul.mubr.bf16.gmra.mrb[0].mxu0 %v664
      %v745 = vpop.f32.mrb[0].mxu0
      %v746 = vadd.f32 %v299, %v745
      %v747 = vpop.f32.mrb[0].mxu0
      %v748 = vpop.f32.mrb[0].mxu0
      %v749 = vadd.f32 %v299, %v748
      %v750 = vpop.f32.mrb[0].mxu0
      %751 = vmatprep.mubr.bf16.mxu0 0
      %752 = vmatmul.mubr.bf16.gmra.mrb[0].mxu0 %v665
      %v753 = vpop.f32.mrb[0].mxu0
      %v754 = vadd.f32 %v299, %v753
      %v755 = vpop.f32.mrb[0].mxu0
      %v756 = vpop.f32.mrb[0].mxu0
      %v757 = vadd.f32 %v299, %v756
      %v758 = vpop.f32.mrb[0].mxu0
      %759 = vmatprep.mubr.bf16.mxu0 0
      %760 = vmatmul.mubr.bf16.gmra.mrb[0].mxu0 %v666
      %v761 = vpop.f32.mrb[0].mxu0
      %v762 = vadd.f32 %v299, %v761
      %v763 = vpop.f32.mrb[0].mxu0
      %v764 = vpop.f32.mrb[0].mxu0
      %v765 = vadd.f32 %v299, %v764
      %v766 = vpop.f32.mrb[0].mxu0
      %767 = vmatprep.mubr.bf16.mxu0 0
      %768 = vmatmul.mubr.bf16.gmra.mrb[0].mxu0 %v667
      %v769 = vpop.f32.mrb[0].mxu0
      %v770 = vadd.f32 %v299, %v769
      %v771 = vpop.f32.mrb[0].mxu0
      %v772 = vpop.f32.mrb[0].mxu0
      %v773 = vadd.f32 %v299, %v772
      %v774 = vpop.f32.mrb[0].mxu0
      %775 = vmatprep.mubr.bf16.mxu0 0
      %776 = vmatmul.mubr.bf16.gmra.mrb[0].mxu0 %v668
      %v777 = vpop.f32.mrb[0].mxu0
      %v778 = vadd.f32 %v299, %v777
      %v779 = vpop.f32.mrb[0].mxu0
      %v780 = vpop.f32.mrb[0].mxu0
      %v781 = vadd.f32 %v299, %v780
      %v782 = vpop.f32.mrb[0].mxu0
      %783 = vmatprep.mubr.bf16.mxu0 0
      %784 = vmatmul.mubr.bf16.gmra.mrb[0].mxu0 %v669
      %v785 = vpop.f32.mrb[0].mxu0
      %v786 = vadd.f32 %v299, %v785
      %v787 = vpop.f32.mrb[0].mxu0
      %v788 = vpop.f32.mrb[0].mxu0
      %v789 = vadd.f32 %v299, %v788
      %v790 = vpop.f32.mrb[0].mxu0
      %791 = vmatprep.mubr.bf16.mxu0 0
      %792 = vmatmul.mubr.bf16.gmra.mrb[0].mxu0 %v670
      %v793 = vpop.f32.mrb[0].mxu0
      %v794 = vadd.f32 %v299, %v793
      %v795 = vpop.f32.mrb[0].mxu0
      %v796 = vpop.f32.mrb[0].mxu0
      %v797 = vadd.f32 %v299, %v796
      %v798 = vpop.f32.mrb[0].mxu0
      %799 = vmatprep.mubr.bf16.mxu0 0
      %800 = vmatmul.mubr.bf16.gmra.mrb[0].mxu0 %v671
      %v801 = vpop.f32.mrb[0].mxu0
      %v802 = vadd.f32 %v299, %v801
      %v803 = vpop.f32.mrb[0].mxu0
      %v804 = vpop.f32.mrb[0].mxu0
      %v805 = vadd.f32 %v299, %v804
      %v806 = vpop.f32.mrb[0].mxu0
      %807 = vmatprep.mubr.bf16.mxu0 0
      %808 = vmatmul.mubr.bf16.gmra.mrb[0].mxu0 %v672
      %v809 = vpop.f32.mrb[0].mxu0
      %v810 = vadd.f32 %v299, %v809
      %v811 = vpop.f32.mrb[0].mxu0
      %v812 = vpop.f32.mrb[0].mxu0
      %v813 = vadd.f32 %v299, %v812
      %v814 = vpop.f32.mrb[0].mxu0
      %815 = vmatprep.mubr.bf16.mxu0 0
      %816 = vmatmul.mubr.bf16.gmra.mrb[0].mxu0 %v673
      %v817 = vpop.f32.mrb[0].mxu0
      %v818 = vadd.f32 %v299, %v817
      %v819 = vpop.f32.mrb[0].mxu0
      %v820 = vpop.f32.mrb[0].mxu0
      %v821 = vpop.f32.mrb[0].mxu0
      %822 = vdwg.mxu0
      %v823 = vmax.f32 %v722, 0.0
      %v824 = vmax.f32 %v725, 0.0
      %v825 = vmax.f32 %v730, 0.0
      %v826 = vmax.f32 %v733, 0.0
      %v827 = vmax.f32 %v738, 0.0
      %v828 = vmax.f32 %v741, 0.0
      %v829 = vmax.f32 %v746, 0.0
      %v830 = vmax.f32 %v749, 0.0
      %v831 = vmax.f32 %v754, 0.0
      %v832 = vmax.f32 %v757, 0.0
      %v833 = vmax.f32 %v762, 0.0
      %v834 = vmax.f32 %v765, 0.0
      %v835 = vmax.f32 %v770, 0.0
      %v836 = vmax.f32 %v773, 0.0
      %v837 = vmax.f32 %v778, 0.0
      %v838 = vmax.f32 %v781, 0.0
      %v839 = vmax.f32 %v786, 0.0
      %v840 = vmax.f32 %v789, 0.0
      %v841 = vmax.f32 %v794, 0.0
      %v842 = vmax.f32 %v797, 0.0
      %v843 = vmax.f32 %v802, 0.0
      %v844 = vmax.f32 %v805, 0.0
      %v845 = vmax.f32 %v810, 0.0
      %v846 = vmax.f32 %v813, 0.0
      %v847 = vmax.f32 %v818, 0.0
      %v848 = vmax.f32 %v561, %v823
      %v849 = vmax.f32 %v562, %v824
      %v850 = vmax.f32 %v563, %v825
      %v851 = vmax.f32 %v564, %v826
      %v852 = vmax.f32 %v565, %v827
      %v853 = vmax.f32 %v566, %v828
      %v854 = vmax.f32 %v567, %v829
      %v855 = vmax.f32 %v568, %v830
      %v856 = vmax.f32 %v569, %v831
      %v857 = vmax.f32 %v570, %v832
      %v858 = vmax.f32 %v571, %v833
      %v859 = vmax.f32 %v572, %v834
      %v860 = vmax.f32 %v573, %v835
      %v861 = vmax.f32 %v574, %v836
      %v862 = vmax.f32 %v575, %v837
      %v863 = vmax.f32 %v576, %v838
      %v864 = vmax.f32 %v577, %v839
      %v865 = vmax.f32 %v578, %v840
      %v866 = vmax.f32 %v579, %v841
      %v867 = vmax.f32 %v580, %v842
      %v868 = vmax.f32 %v581, %v843
      %v869 = vmax.f32 %v582, %v844
      %v870 = vmax.f32 %v583, %v845
      %v871 = vmax.f32 %v584, %v846
      %v872 = vmax.f32 %v585, %v847
      %v873 = vld [vmem:[%s246 + $0xc8] sm:$0xf]
      %v874 = vld [vmem:[%s246 + $0xcc] sm:$0xf]
      %v875 = vld [vmem:[%s246 + $0xd0] sm:$0xf]
      %v876 = vld [vmem:[%s246 + $0xd4] sm:$0xf]
      %v877 = vld [vmem:[%s246 + $0xd8] sm:$0xf]
      %v878 = vld [vmem:[%s246 + $0xdc] sm:$0xf]
      %v879 = vld [vmem:[%s246 + $0xe0] sm:$0xf]
      %v880 = vld [vmem:[%s246 + $0xe4] sm:$0xf]
      %v881 = vld [vmem:[%s246 + $0xe8] sm:$0xf]
      %v882 = vld [vmem:[%s246 + $0xec] sm:$0xf]
      %v883 = vld [vmem:[%s246 + $0xf0] sm:$0xf]
      %v884 = vld [vmem:[%s246 + $0xf4] sm:$0xf]
      %v885 = vld [vmem:[%s246 + $0xf8] sm:$0xf]
      %v886 = vld [vmem:[%s246 + $0xfc] sm:$0xf]
      %v887 = vld [vmem:[%s246 + $0x100] sm:$0xf]
      %v888 = vld [vmem:[%s246 + $0x104] sm:$0xf]
      %v889 = vld [vmem:[%s246 + $0x108] sm:$0xf]
      %v890 = vld [vmem:[%s246 + $0x10c] sm:$0xf]
      %v891 = vld [vmem:[%s246 + $0x110] sm:$0xf]
      %v892 = vld [vmem:[%s246 + $0x114] sm:$0xf]
      %v893 = vld [vmem:[%s246 + $0x118] sm:$0xf]
      %v894 = vld [vmem:[%s246 + $0x11c] sm:$0xf]
      %v895 = vld [vmem:[%s246 + $0x120] sm:$0xf]
      %v896 = vld [vmem:[%s246 + $0x124] sm:$0xf]
      %v897 = vld [vmem:[%s246 + $0x128] sm:$0xf]
      %v923 = vunpack.c.l.b16 %v873
      %v924 = vunpack.c.l.b16 %v874
      %v925 = vunpack.c.l.b16 %v875
      %v926 = vunpack.c.l.b16 %v876
      %v927 = vunpack.c.l.b16 %v877
      %v928 = vunpack.c.l.b16 %v878
      %v929 = vunpack.c.l.b16 %v879
      %v930 = vunpack.c.l.b16 %v880
      %v931 = vunpack.c.l.b16 %v881
      %v932 = vunpack.c.l.b16 %v882
      %v933 = vunpack.c.l.b16 %v883
      %v934 = vunpack.c.l.b16 %v884
      %v935 = vunpack.c.l.b16 %v885
      %v936 = vunpack.c.l.b16 %v886
      %v937 = vunpack.c.l.b16 %v887
      %v938 = vunpack.c.l.b16 %v888
      %v939 = vunpack.c.l.b16 %v889
      %v940 = vunpack.c.l.b16 %v890
      %v941 = vunpack.c.l.b16 %v891
      %v942 = vunpack.c.l.b16 %v892
      %v943 = vunpack.c.l.b16 %v893
      %v944 = vunpack.c.l.b16 %v894
      %v945 = vunpack.c.l.b16 %v895
      %v946 = vunpack.c.l.b16 %v896
      %v947 = vunpack.c.l.b16 %v897
      %v948 = vpack.c.b16 %v924, %v923
      %v949 = vpack.c.b16 %v926, %v925
      %v950 = vpack.c.b16 %v928, %v927
      %v951 = vpack.c.b16 %v930, %v929
      %v952 = vpack.c.b16 %v932, %v931
      %v953 = vpack.c.b16 %v934, %v933
      %v954 = vpack.c.b16 %v936, %v935
      %v955 = vpack.c.b16 %v938, %v937
      %v956 = vpack.c.b16 %v940, %v939
      %v957 = vpack.c.b16 %v942, %v941
      %v958 = vpack.c.b16 %v944, %v943
      %v959 = vpack.c.b16 %v946, %v945
      %v960 = vpack.c.b16 %v947, %v947
      %974 = vmatprep.subr.bf16.mxu0 0
      %975 = vmatpush1.bf16.msra.mxu0 %v409
      %976 = vmatprep.subr.bf16.mxu0 0
      %977 = vmatpush1.bf16.msra.mxu0 %v410
      %978 = vmatprep.subr.bf16.mxu0 0
      %979 = vmatpush1.bf16.msra.mxu0 %v411
      %980 = vmatprep.subr.bf16.mxu0 0
      %981 = vmatpush1.bf16.msra.mxu0 %v412
      %982 = vmatprep.subr.bf16.mxu0 0
      %983 = vmatpush1.bf16.msra.mxu0 %v413
      %984 = vmatprep.subr.bf16.mxu0 0
      %985 = vmatpush1.bf16.msra.mxu0 %v414
      %986 = vmatprep.subr.bf16.mxu0 0
      %987 = vmatpush1.bf16.msra.mxu0 %v415
      %988 = vmatprep.subr.bf16.mxu0 0
      %989 = vmatpush1.bf16.msra.mxu0 %v416
      %990 = vmatprep.subr.bf16.mxu0 0
      %991 = vmatpush1.bf16.msra.mxu0 0
      %992 = vmatprep.subr.bf16.mxu0 0
      %993 = vmatpush1.bf16.msra.mxu0 0
      %994 = vmatprep.subr.bf16.mxu0 0
      %995 = vmatpush1.bf16.msra.mxu0 0
      %996 = vmatprep.subr.bf16.mxu0 0
      %997 = vmatpush1.bf16.msra.mxu0 0
      %998 = vmatprep.subr.bf16.mxu0 0
      %999 = vmatpush1.bf16.msra.mxu0 0
      %1000 = vmatprep.subr.bf16.mxu0 0
      %1001 = vmatpush1.bf16.msra.mxu0 0
      %1002 = vmatprep.subr.bf16.mxu0 0
      %1003 = vmatpush1.bf16.msra.mxu0 0
      %1004 = vmatprep.subr.bf16.mxu0 0
      %1005 = vmatpush1.bf16.msra.mxu0 0
      %1006 = vmatprep.mubr.bf16.mxu0 0
      %1007 = vmatmul.mubr.bf16.gmra.mrb[0].mxu0 %v948
      %v1008 = vpop.f32.mrb[0].mxu0
      %v1009 = vadd.f32 %v299, %v1008
      %v1010 = vpop.f32.mrb[0].mxu0
      %v1011 = vpop.f32.mrb[0].mxu0
      %v1012 = vadd.f32 %v299, %v1011
      %v1013 = vpop.f32.mrb[0].mxu0
      %1014 = vmatprep.mubr.bf16.mxu0 0
      %1015 = vmatmul.mubr.bf16.gmra.mrb[0].mxu0 %v949
      %v1016 = vpop.f32.mrb[0].mxu0
      %v1017 = vadd.f32 %v299, %v1016
      %v1018 = vpop.f32.mrb[0].mxu0
      %v1019 = vpop.f32.mrb[0].mxu0
      %v1020 = vadd.f32 %v299, %v1019
      %v1021 = vpop.f32.mrb[0].mxu0
      %1022 = vmatprep.mubr.bf16.mxu0 0
      %1023 = vmatmul.mubr.bf16.gmra.mrb[0].mxu0 %v950
      %v1024 = vpop.f32.mrb[0].mxu0
      %v1025 = vadd.f32 %v299, %v1024
      %v1026 = vpop.f32.mrb[0].mxu0
      %v1027 = vpop.f32.mrb[0].mxu0
      %v1028 = vadd.f32 %v299, %v1027
      %v1029 = vpop.f32.mrb[0].mxu0
      %1030 = vmatprep.mubr.bf16.mxu0 0
      %1031 = vmatmul.mubr.bf16.gmra.mrb[0].mxu0 %v951
      %v1032 = vpop.f32.mrb[0].mxu0
      %v1033 = vadd.f32 %v299, %v1032
      %v1034 = vpop.f32.mrb[0].mxu0
      %v1035 = vpop.f32.mrb[0].mxu0
      %v1036 = vadd.f32 %v299, %v1035
      %v1037 = vpop.f32.mrb[0].mxu0
      %1038 = vmatprep.mubr.bf16.mxu0 0
      %1039 = vmatmul.mubr.bf16.gmra.mrb[0].mxu0 %v952
      %v1040 = vpop.f32.mrb[0].mxu0
      %v1041 = vadd.f32 %v299, %v1040
      %v1042 = vpop.f32.mrb[0].mxu0
      %v1043 = vpop.f32.mrb[0].mxu0
      %v1044 = vadd.f32 %v299, %v1043
      %v1045 = vpop.f32.mrb[0].mxu0
      %1046 = vmatprep.mubr.bf16.mxu0 0
      %1047 = vmatmul.mubr.bf16.gmra.mrb[0].mxu0 %v953
      %v1048 = vpop.f32.mrb[0].mxu0
      %v1049 = vadd.f32 %v299, %v1048
      %v1050 = vpop.f32.mrb[0].mxu0
      %v1051 = vpop.f32.mrb[0].mxu0
      %v1052 = vadd.f32 %v299, %v1051
      %v1053 = vpop.f32.mrb[0].mxu0
      %1054 = vmatprep.mubr.bf16.mxu0 0
      %1055 = vmatmul.mubr.bf16.gmra.mrb[0].mxu0 %v954
      %v1056 = vpop.f32.mrb[0].mxu0
      %v1057 = vadd.f32 %v299, %v1056
      %v1058 = vpop.f32.mrb[0].mxu0
      %v1059 = vpop.f32.mrb[0].mxu0
      %v1060 = vadd.f32 %v299, %v1059
      %v1061 = vpop.f32.mrb[0].mxu0
      %1062 = vmatprep.mubr.bf16.mxu0 0
      %1063 = vmatmul.mubr.bf16.gmra.mrb[0].mxu0 %v955
      %v1064 = vpop.f32.mrb[0].mxu0
      %v1065 = vadd.f32 %v299, %v1064
      %v1066 = vpop.f32.mrb[0].mxu0
      %v1067 = vpop.f32.mrb[0].mxu0
      %v1068 = vadd.f32 %v299, %v1067
      %v1069 = vpop.f32.mrb[0].mxu0
      %1070 = vmatprep.mubr.bf16.mxu0 0
      %1071 = vmatmul.mubr.bf16.gmra.mrb[0].mxu0 %v956
      %v1072 = vpop.f32.mrb[0].mxu0
      %v1073 = vadd.f32 %v299, %v1072
      %v1074 = vpop.f32.mrb[0].mxu0
      %v1075 = vpop.f32.mrb[0].mxu0
      %v1076 = vadd.f32 %v299, %v1075
      %v1077 = vpop.f32.mrb[0].mxu0
      %1078 = vmatprep.mubr.bf16.mxu0 0
      %1079 = vmatmul.mubr.bf16.gmra.mrb[0].mxu0 %v957
      %v1080 = vpop.f32.mrb[0].mxu0
      %v1081 = vadd.f32 %v299, %v1080
      %v1082 = vpop.f32.mrb[0].mxu0
      %v1083 = vpop.f32.mrb[0].mxu0
      %v1084 = vadd.f32 %v299, %v1083
      %v1085 = vpop.f32.mrb[0].mxu0
      %1086 = vmatprep.mubr.bf16.mxu0 0
      %1087 = vmatmul.mubr.bf16.gmra.mrb[0].mxu0 %v958
      %v1088 = vpop.f32.mrb[0].mxu0
      %v1089 = vadd.f32 %v299, %v1088
      %v1090 = vpop.f32.mrb[0].mxu0
      %v1091 = vpop.f32.mrb[0].mxu0
      %v1092 = vadd.f32 %v299, %v1091
      %v1093 = vpop.f32.mrb[0].mxu0
      %1094 = vmatprep.mubr.bf16.mxu0 0
      %1095 = vmatmul.mubr.bf16.gmra.mrb[0].mxu0 %v959
      %v1096 = vpop.f32.mrb[0].mxu0
      %v1097 = vadd.f32 %v299, %v1096
      %v1098 = vpop.f32.mrb[0].mxu0
      %v1099 = vpop.f32.mrb[0].mxu0
      %v1100 = vadd.f32 %v299, %v1099
      %v1101 = vpop.f32.mrb[0].mxu0
      %1102 = vmatprep.mubr.bf16.mxu0 0
      %1103 = vmatmul.mubr.bf16.gmra.mrb[0].mxu0 %v960
      %v1104 = vpop.f32.mrb[0].mxu0
      %v1105 = vadd.f32 %v299, %v1104
      %v1106 = vpop.f32.mrb[0].mxu0
      %v1107 = vpop.f32.mrb[0].mxu0
      %v1108 = vpop.f32.mrb[0].mxu0
      %1109 = vdwg.mxu0
      %v1110 = vmax.f32 %v1009, 0.0
      %v1111 = vmax.f32 %v1012, 0.0
      %v1112 = vmax.f32 %v1017, 0.0
      %v1113 = vmax.f32 %v1020, 0.0
      %v1114 = vmax.f32 %v1025, 0.0
      %v1115 = vmax.f32 %v1028, 0.0
      %v1116 = vmax.f32 %v1033, 0.0
      %v1117 = vmax.f32 %v1036, 0.0
      %v1118 = vmax.f32 %v1041, 0.0
      %v1119 = vmax.f32 %v1044, 0.0
      %v1120 = vmax.f32 %v1049, 0.0
      %v1121 = vmax.f32 %v1052, 0.0
      %v1122 = vmax.f32 %v1057, 0.0
      %v1123 = vmax.f32 %v1060, 0.0
      %v1124 = vmax.f32 %v1065, 0.0
      %v1125 = vmax.f32 %v1068, 0.0
      %v1126 = vmax.f32 %v1073, 0.0
      %v1127 = vmax.f32 %v1076, 0.0
      %v1128 = vmax.f32 %v1081, 0.0
      %v1129 = vmax.f32 %v1084, 0.0
      %v1130 = vmax.f32 %v1089, 0.0
      %v1131 = vmax.f32 %v1092, 0.0
      %v1132 = vmax.f32 %v1097, 0.0
      %v1133 = vmax.f32 %v1100, 0.0
      %v1134 = vmax.f32 %v1105, 0.0
      %v1135 = vmax.f32 %v848, %v1110
      %v1136 = vmax.f32 %v849, %v1111
      %v1137 = vmax.f32 %v850, %v1112
      %v1138 = vmax.f32 %v851, %v1113
      %v1139 = vmax.f32 %v852, %v1114
      %v1140 = vmax.f32 %v853, %v1115
      %v1141 = vmax.f32 %v854, %v1116
      %v1142 = vmax.f32 %v855, %v1117
      %v1143 = vmax.f32 %v856, %v1118
      %v1144 = vmax.f32 %v857, %v1119
      %v1145 = vmax.f32 %v858, %v1120
      %v1146 = vmax.f32 %v859, %v1121
      %v1147 = vmax.f32 %v860, %v1122
      %v1148 = vmax.f32 %v861, %v1123
      %v1149 = vmax.f32 %v862, %v1124
      %v1150 = vmax.f32 %v863, %v1125
      %v1151 = vmax.f32 %v864, %v1126
      %v1152 = vmax.f32 %v865, %v1127
      %v1153 = vmax.f32 %v866, %v1128
      %v1154 = vmax.f32 %v867, %v1129
      %v1155 = vmax.f32 %v868, %v1130
      %v1156 = vmax.f32 %v869, %v1131
      %v1157 = vmax.f32 %v870, %v1132
      %v1158 = vmax.f32 %v871, %v1133
      %v1159 = vmax.f32 %v872, %v1134
      %v1160 = vld [vmem:[%s246 + $0x12c] sm:$0xf]
      %v1161 = vld [vmem:[%s246 + $0x130] sm:$0xf]
      %v1162 = vld [vmem:[%s246 + $0x134] sm:$0xf]
      %v1163 = vld [vmem:[%s246 + $0x138] sm:$0xf]
      %v1164 = vld [vmem:[%s246 + $0x13c] sm:$0xf]
      %v1165 = vld [vmem:[%s246 + $0x140] sm:$0xf]
      %v1166 = vld [vmem:[%s246 + $0x144] sm:$0xf]
      %v1167 = vld [vmem:[%s246 + $0x148] sm:$0xf]
      %v1168 = vld [vmem:[%s246 + $0x14c] sm:$0xf]
      %v1169 = vld [vmem:[%s246 + $0x150] sm:$0xf]
      %v1170 = vld [vmem:[%s246 + $0x154] sm:$0xf]
      %v1171 = vld [vmem:[%s246 + $0x158] sm:$0xf]
      %v1172 = vld [vmem:[%s246 + $0x15c] sm:$0xf]
      %v1173 = vld [vmem:[%s246 + $0x160] sm:$0xf]
      %v1174 = vld [vmem:[%s246 + $0x164] sm:$0xf]
      %v1175 = vld [vmem:[%s246 + $0x168] sm:$0xf]
      %v1176 = vld [vmem:[%s246 + $0x16c] sm:$0xf]
      %v1177 = vld [vmem:[%s246 + $0x170] sm:$0xf]
      %v1178 = vld [vmem:[%s246 + $0x174] sm:$0xf]
      %v1179 = vld [vmem:[%s246 + $0x178] sm:$0xf]
      %v1180 = vld [vmem:[%s246 + $0x17c] sm:$0xf]
      %v1181 = vld [vmem:[%s246 + $0x180] sm:$0xf]
      %v1182 = vld [vmem:[%s246 + $0x184] sm:$0xf]
      %v1183 = vld [vmem:[%s246 + $0x188] sm:$0xf]
      %v1184 = vld [vmem:[%s246 + $0x18c] sm:$0xf]
      %v1210 = vunpack.c.l.b16 %v1160
      %v1211 = vunpack.c.l.b16 %v1161
      %v1212 = vunpack.c.l.b16 %v1162
      %v1213 = vunpack.c.l.b16 %v1163
      %v1214 = vunpack.c.l.b16 %v1164
      %v1215 = vunpack.c.l.b16 %v1165
      %v1216 = vunpack.c.l.b16 %v1166
      %v1217 = vunpack.c.l.b16 %v1167
      %v1218 = vunpack.c.l.b16 %v1168
      %v1219 = vunpack.c.l.b16 %v1169
      %v1220 = vunpack.c.l.b16 %v1170
      %v1221 = vunpack.c.l.b16 %v1171
      %v1222 = vunpack.c.l.b16 %v1172
      %v1223 = vunpack.c.l.b16 %v1173
      %v1224 = vunpack.c.l.b16 %v1174
      %v1225 = vunpack.c.l.b16 %v1175
      %v1226 = vunpack.c.l.b16 %v1176
      %v1227 = vunpack.c.l.b16 %v1177
      %v1228 = vunpack.c.l.b16 %v1178
      %v1229 = vunpack.c.l.b16 %v1179
      %v1230 = vunpack.c.l.b16 %v1180
      %v1231 = vunpack.c.l.b16 %v1181
      %v1232 = vunpack.c.l.b16 %v1182
      %v1233 = vunpack.c.l.b16 %v1183
      %v1234 = vunpack.c.l.b16 %v1184
      %v1235 = vpack.c.b16 %v1211, %v1210
      %v1236 = vpack.c.b16 %v1213, %v1212
      %v1237 = vpack.c.b16 %v1215, %v1214
      %v1238 = vpack.c.b16 %v1217, %v1216
      %v1239 = vpack.c.b16 %v1219, %v1218
      %v1240 = vpack.c.b16 %v1221, %v1220
      %v1241 = vpack.c.b16 %v1223, %v1222
      %v1242 = vpack.c.b16 %v1225, %v1224
      %v1243 = vpack.c.b16 %v1227, %v1226
      %v1244 = vpack.c.b16 %v1229, %v1228
      %v1245 = vpack.c.b16 %v1231, %v1230
      %v1246 = vpack.c.b16 %v1233, %v1232
      %v1247 = vpack.c.b16 %v1234, %v1234
      %1261 = vmatprep.subr.bf16.mxu0 0
      %1262 = vmatpush1.bf16.msra.mxu0 %v409
      %1263 = vmatprep.subr.bf16.mxu0 0
      %1264 = vmatpush1.bf16.msra.mxu0 %v410
      %1265 = vmatprep.subr.bf16.mxu0 0
      %1266 = vmatpush1.bf16.msra.mxu0 %v411
      %1267 = vmatprep.subr.bf16.mxu0 0
      %1268 = vmatpush1.bf16.msra.mxu0 %v412
      %1269 = vmatprep.subr.bf16.mxu0 0
      %1270 = vmatpush1.bf16.msra.mxu0 %v413
      %1271 = vmatprep.subr.bf16.mxu0 0
      %1272 = vmatpush1.bf16.msra.mxu0 %v414
      %1273 = vmatprep.subr.bf16.mxu0 0
      %1274 = vmatpush1.bf16.msra.mxu0 %v415
      %1275 = vmatprep.subr.bf16.mxu0 0
      %1276 = vmatpush1.bf16.msra.mxu0 %v416
      %1277 = vmatprep.subr.bf16.mxu0 0
      %1278 = vmatpush1.bf16.msra.mxu0 0
      %1279 = vmatprep.subr.bf16.mxu0 0
      %1280 = vmatpush1.bf16.msra.mxu0 0
      %1281 = vmatprep.subr.bf16.mxu0 0
      %1282 = vmatpush1.bf16.msra.mxu0 0
      %1283 = vmatprep.subr.bf16.mxu0 0
      %1284 = vmatpush1.bf16.msra.mxu0 0
      %1285 = vmatprep.subr.bf16.mxu0 0
      %1286 = vmatpush1.bf16.msra.mxu0 0
      %1287 = vmatprep.subr.bf16.mxu0 0
      %1288 = vmatpush1.bf16.msra.mxu0 0
      %1289 = vmatprep.subr.bf16.mxu0 0
      %1290 = vmatpush1.bf16.msra.mxu0 0
      %1291 = vmatprep.subr.bf16.mxu0 0
      %1292 = vmatpush1.bf16.msra.mxu0 0
      %1293 = vmatprep.mubr.bf16.mxu0 0
      %1294 = vmatmul.mubr.bf16.gmra.mrb[0].mxu0 %v1235
      %v1295 = vpop.f32.mrb[0].mxu0
      %v1296 = vadd.f32 %v299, %v1295
      %v1297 = vpop.f32.mrb[0].mxu0
      %v1298 = vpop.f32.mrb[0].mxu0
      %v1299 = vadd.f32 %v299, %v1298
      %v1300 = vpop.f32.mrb[0].mxu0
      %1301 = vmatprep.mubr.bf16.mxu0 0
      %1302 = vmatmul.mubr.bf16.gmra.mrb[0].mxu0 %v1236
      %v1303 = vpop.f32.mrb[0].mxu0
      %v1304 = vadd.f32 %v299, %v1303
      %v1305 = vpop.f32.mrb[0].mxu0
      %v1306 = vpop.f32.mrb[0].mxu0
      %v1307 = vadd.f32 %v299, %v1306
      %v1308 = vpop.f32.mrb[0].mxu0
      %1309 = vmatprep.mubr.bf16.mxu0 0
      %1310 = vmatmul.mubr.bf16.gmra.mrb[0].mxu0 %v1237
      %v1311 = vpop.f32.mrb[0].mxu0
      %v1312 = vadd.f32 %v299, %v1311
      %v1313 = vpop.f32.mrb[0].mxu0
      %v1314 = vpop.f32.mrb[0].mxu0
      %v1315 = vadd.f32 %v299, %v1314
      %v1316 = vpop.f32.mrb[0].mxu0
      %1317 = vmatprep.mubr.bf16.mxu0 0
      %1318 = vmatmul.mubr.bf16.gmra.mrb[0].mxu0 %v1238
      %v1319 = vpop.f32.mrb[0].mxu0
      %v1320 = vadd.f32 %v299, %v1319
      %v1321 = vpop.f32.mrb[0].mxu0
      %v1322 = vpop.f32.mrb[0].mxu0
      %v1323 = vadd.f32 %v299, %v1322
      %v1324 = vpop.f32.mrb[0].mxu0
      %1325 = vmatprep.mubr.bf16.mxu0 0
      %1326 = vmatmul.mubr.bf16.gmra.mrb[0].mxu0 %v1239
      %v1327 = vpop.f32.mrb[0].mxu0
      %v1328 = vadd.f32 %v299, %v1327
      %v1329 = vpop.f32.mrb[0].mxu0
      %v1330 = vpop.f32.mrb[0].mxu0
      %v1331 = vadd.f32 %v299, %v1330
      %v1332 = vpop.f32.mrb[0].mxu0
      %1333 = vmatprep.mubr.bf16.mxu0 0
      %1334 = vmatmul.mubr.bf16.gmra.mrb[0].mxu0 %v1240
      %v1335 = vpop.f32.mrb[0].mxu0
      %v1336 = vadd.f32 %v299, %v1335
      %v1337 = vpop.f32.mrb[0].mxu0
      %v1338 = vpop.f32.mrb[0].mxu0
      %v1339 = vadd.f32 %v299, %v1338
      %v1340 = vpop.f32.mrb[0].mxu0
      %1341 = vmatprep.mubr.bf16.mxu0 0
      %1342 = vmatmul.mubr.bf16.gmra.mrb[0].mxu0 %v1241
      %v1343 = vpop.f32.mrb[0].mxu0
      %v1344 = vadd.f32 %v299, %v1343
      %v1345 = vpop.f32.mrb[0].mxu0
      %v1346 = vpop.f32.mrb[0].mxu0
      %v1347 = vadd.f32 %v299, %v1346
      %v1348 = vpop.f32.mrb[0].mxu0
      %1349 = vmatprep.mubr.bf16.mxu0 0
      %1350 = vmatmul.mubr.bf16.gmra.mrb[0].mxu0 %v1242
      %v1351 = vpop.f32.mrb[0].mxu0
      %v1352 = vadd.f32 %v299, %v1351
      %v1353 = vpop.f32.mrb[0].mxu0
      %v1354 = vpop.f32.mrb[0].mxu0
      %v1355 = vadd.f32 %v299, %v1354
      %v1356 = vpop.f32.mrb[0].mxu0
      %1357 = vmatprep.mubr.bf16.mxu0 0
      %1358 = vmatmul.mubr.bf16.gmra.mrb[0].mxu0 %v1243
      %v1359 = vpop.f32.mrb[0].mxu0
      %v1360 = vadd.f32 %v299, %v1359
      %v1361 = vpop.f32.mrb[0].mxu0
      %v1362 = vpop.f32.mrb[0].mxu0
      %v1363 = vadd.f32 %v299, %v1362
      %v1364 = vpop.f32.mrb[0].mxu0
      %1365 = vmatprep.mubr.bf16.mxu0 0
      %1366 = vmatmul.mubr.bf16.gmra.mrb[0].mxu0 %v1244
      %v1367 = vpop.f32.mrb[0].mxu0
      %v1368 = vadd.f32 %v299, %v1367
      %v1369 = vpop.f32.mrb[0].mxu0
      %v1370 = vpop.f32.mrb[0].mxu0
      %v1371 = vadd.f32 %v299, %v1370
      %v1372 = vpop.f32.mrb[0].mxu0
      %1373 = vmatprep.mubr.bf16.mxu0 0
      %1374 = vmatmul.mubr.bf16.gmra.mrb[0].mxu0 %v1245
      %v1375 = vpop.f32.mrb[0].mxu0
      %v1376 = vadd.f32 %v299, %v1375
      %v1377 = vpop.f32.mrb[0].mxu0
      %v1378 = vpop.f32.mrb[0].mxu0
      %v1379 = vadd.f32 %v299, %v1378
      %v1380 = vpop.f32.mrb[0].mxu0
      %1381 = vmatprep.mubr.bf16.mxu0 0
      %1382 = vmatmul.mubr.bf16.gmra.mrb[0].mxu0 %v1246
      %v1383 = vpop.f32.mrb[0].mxu0
      %v1384 = vadd.f32 %v299, %v1383
      %v1385 = vpop.f32.mrb[0].mxu0
      %v1386 = vpop.f32.mrb[0].mxu0
      %v1387 = vadd.f32 %v299, %v1386
      %v1388 = vpop.f32.mrb[0].mxu0
      %1389 = vmatprep.mubr.bf16.mxu0 0
      %1390 = vmatmul.mubr.bf16.gmra.mrb[0].mxu0 %v1247
      %v1391 = vpop.f32.mrb[0].mxu0
      %v1392 = vadd.f32 %v299, %v1391
      %v1393 = vpop.f32.mrb[0].mxu0
      %v1394 = vpop.f32.mrb[0].mxu0
      %v1395 = vpop.f32.mrb[0].mxu0
      %1396 = vdwg.mxu0
      %v1397 = vmax.f32 %v1296, 0.0
      %v1398 = vmax.f32 %v1299, 0.0
      %v1399 = vmax.f32 %v1304, 0.0
      %v1400 = vmax.f32 %v1307, 0.0
      %v1401 = vmax.f32 %v1312, 0.0
      %v1402 = vmax.f32 %v1315, 0.0
      %v1403 = vmax.f32 %v1320, 0.0
      %v1404 = vmax.f32 %v1323, 0.0
      %v1405 = vmax.f32 %v1328, 0.0
      %v1406 = vmax.f32 %v1331, 0.0
      %v1407 = vmax.f32 %v1336, 0.0
      %v1408 = vmax.f32 %v1339, 0.0
      %v1409 = vmax.f32 %v1344, 0.0
      %v1410 = vmax.f32 %v1347, 0.0
      %v1411 = vmax.f32 %v1352, 0.0
      %v1412 = vmax.f32 %v1355, 0.0
      %v1413 = vmax.f32 %v1360, 0.0
      %v1414 = vmax.f32 %v1363, 0.0
      %v1415 = vmax.f32 %v1368, 0.0
      %v1416 = vmax.f32 %v1371, 0.0
      %v1417 = vmax.f32 %v1376, 0.0
      %v1418 = vmax.f32 %v1379, 0.0
      %v1419 = vmax.f32 %v1384, 0.0
      %v1420 = vmax.f32 %v1387, 0.0
      %v1421 = vmax.f32 %v1392, 0.0
      %v1422 = vmax.f32 %v1135, %v1397
      %v1423 = vmax.f32 %v1136, %v1398
      %v1424 = vmax.f32 %v1137, %v1399
      %v1425 = vmax.f32 %v1138, %v1400
      %v1426 = vmax.f32 %v1139, %v1401
      %v1427 = vmax.f32 %v1140, %v1402
      %v1428 = vmax.f32 %v1141, %v1403
      %v1429 = vmax.f32 %v1142, %v1404
      %v1430 = vmax.f32 %v1143, %v1405
      %v1431 = vmax.f32 %v1144, %v1406
      %v1432 = vmax.f32 %v1145, %v1407
      %v1433 = vmax.f32 %v1146, %v1408
      %v1434 = vmax.f32 %v1147, %v1409
      %v1435 = vmax.f32 %v1148, %v1410
      %v1436 = vmax.f32 %v1149, %v1411
      %v1437 = vmax.f32 %v1150, %v1412
      %v1438 = vmax.f32 %v1151, %v1413
      %v1439 = vmax.f32 %v1152, %v1414
      %v1440 = vmax.f32 %v1153, %v1415
      %v1441 = vmax.f32 %v1154, %v1416
      %v1442 = vmax.f32 %v1155, %v1417
      %v1443 = vmax.f32 %v1156, %v1418
      %v1444 = vmax.f32 %v1157, %v1419
      %v1445 = vmax.f32 %v1158, %v1420
      %v1446 = vmax.f32 %v1159, %v1421
      %v1447 = vpack.c.bf16 %v1423, %v1422
      %v1448 = vpack.c.bf16 %v1425, %v1424
      %v1449 = vpack.c.bf16 %v1427, %v1426
      %v1450 = vpack.c.bf16 %v1429, %v1428
      %v1451 = vpack.c.bf16 %v1431, %v1430
      %v1452 = vpack.c.bf16 %v1433, %v1432
      %v1453 = vpack.c.bf16 %v1435, %v1434
      %v1454 = vpack.c.bf16 %v1437, %v1436
      %v1455 = vpack.c.bf16 %v1439, %v1438
      %v1456 = vpack.c.bf16 %v1441, %v1440
      %v1457 = vpack.c.bf16 %v1443, %v1442
      %v1458 = vpack.c.bf16 %v1445, %v1444
      %v1459 = vpack.c.bf16 %v1446, %v1446
      %v1473 = vunpack.c.l.b16 %v1447
      %v1474 = vunpack.c.h.b16 %v1447
      %v1475 = vunpack.c.l.b16 %v1448
      %v1476 = vunpack.c.h.b16 %v1448
      %v1477 = vunpack.c.l.b16 %v1449
      %v1478 = vunpack.c.h.b16 %v1449
      %v1479 = vunpack.c.l.b16 %v1450
      %v1480 = vunpack.c.h.b16 %v1450
      %v1481 = vunpack.c.l.b16 %v1451
      %v1482 = vunpack.c.h.b16 %v1451
      %v1483 = vunpack.c.l.b16 %v1452
      %v1484 = vunpack.c.h.b16 %v1452
      %v1485 = vunpack.c.l.b16 %v1453
      %v1486 = vunpack.c.h.b16 %v1453
      %v1487 = vunpack.c.l.b16 %v1454
      %v1488 = vunpack.c.h.b16 %v1454
      %v1489 = vunpack.c.l.b16 %v1455
      %v1490 = vunpack.c.h.b16 %v1455
      %v1491 = vunpack.c.l.b16 %v1456
      %v1492 = vunpack.c.h.b16 %v1456
      %v1493 = vunpack.c.l.b16 %v1457
      %v1494 = vunpack.c.h.b16 %v1457
      %v1495 = vunpack.c.l.b16 %v1458
      %v1496 = vunpack.c.h.b16 %v1458
      %v1497 = vunpack.c.l.b16 %v1459
      %v1498 = vpack.c.b16 %v1473, %v1473
      %v1499 = vpack.c.b16 %v1474, %v1474
      %v1500 = vpack.c.b16 %v1475, %v1475
      %v1501 = vpack.c.b16 %v1476, %v1476
      %v1502 = vpack.c.b16 %v1477, %v1477
      %v1503 = vpack.c.b16 %v1478, %v1478
      %v1504 = vpack.c.b16 %v1479, %v1479
      %v1505 = vpack.c.b16 %v1480, %v1480
      %v1506 = vpack.c.b16 %v1481, %v1481
      %v1507 = vpack.c.b16 %v1482, %v1482
      %v1508 = vpack.c.b16 %v1483, %v1483
      %v1509 = vpack.c.b16 %v1484, %v1484
      %v1510 = vpack.c.b16 %v1485, %v1485
      %v1511 = vpack.c.b16 %v1486, %v1486
      %v1512 = vpack.c.b16 %v1487, %v1487
      %v1513 = vpack.c.b16 %v1488, %v1488
      %v1514 = vpack.c.b16 %v1489, %v1489
      %v1515 = vpack.c.b16 %v1490, %v1490
      %v1516 = vpack.c.b16 %v1491, %v1491
      %v1517 = vpack.c.b16 %v1492, %v1492
      %v1518 = vpack.c.b16 %v1493, %v1493
      %v1519 = vpack.c.b16 %v1494, %v1494
      %v1520 = vpack.c.b16 %v1495, %v1495
      %v1521 = vpack.c.b16 %v1496, %v1496
      %v1522 = vpack.c.b16 %v1497, %v1497
      %vm1548 = vcmask 519168
      %1549 = vst.msk [vmem:[#allocation2] sm:$0xf] %vm1548, %v1498
      %1550 = vst.msk [vmem:[#allocation2 + $0x4] sm:$0xf] %vm1548, %v1499
      %1551 = vst.msk [vmem:[#allocation2 + $0x8] sm:$0xf] %vm1548, %v1500
      %1552 = vst.msk [vmem:[#allocation2 + $0xc] sm:$0xf] %vm1548, %v1501
      %1553 = vst.msk [vmem:[#allocation2 + $0x10] sm:$0xf] %vm1548, %v1502
      %1554 = vst.msk [vmem:[#allocation2 + $0x14] sm:$0xf] %vm1548, %v1503
      %1555 = vst.msk [vmem:[#allocation2 + $0x18] sm:$0xf] %vm1548, %v1504
      %1556 = vst.msk [vmem:[#allocation2 + $0x1c] sm:$0xf] %vm1548, %v1505
      %1557 = vst.msk [vmem:[#allocation2 + $0x20] sm:$0xf] %vm1548, %v1506
      %1558 = vst.msk [vmem:[#allocation2 + $0x24] sm:$0xf] %vm1548, %v1507
      %1559 = vst.msk [vmem:[#allocation2 + $0x28] sm:$0xf] %vm1548, %v1508
      %1560 = vst.msk [vmem:[#allocation2 + $0x2c] sm:$0xf] %vm1548, %v1509
      %1561 = vst.msk [vmem:[#allocation2 + $0x30] sm:$0xf] %vm1548, %v1510
      %1562 = vst.msk [vmem:[#allocation2 + $0x34] sm:$0xf] %vm1548, %v1511
      %1563 = vst.msk [vmem:[#allocation2 + $0x38] sm:$0xf] %vm1548, %v1512
      %1564 = vst.msk [vmem:[#allocation2 + $0x3c] sm:$0xf] %vm1548, %v1513
      %1565 = vst.msk [vmem:[#allocation2 + $0x40] sm:$0xf] %vm1548, %v1514
      %1566 = vst.msk [vmem:[#allocation2 + $0x44] sm:$0xf] %vm1548, %v1515
      %1567 = vst.msk [vmem:[#allocation2 + $0x48] sm:$0xf] %vm1548, %v1516
      %1568 = vst.msk [vmem:[#allocation2 + $0x4c] sm:$0xf] %vm1548, %v1517
      %1569 = vst.msk [vmem:[#allocation2 + $0x50] sm:$0xf] %vm1548, %v1518
      %1570 = vst.msk [vmem:[#allocation2 + $0x54] sm:$0xf] %vm1548, %v1519
      %1571 = vst.msk [vmem:[#allocation2 + $0x58] sm:$0xf] %vm1548, %v1520
      %1572 = vst.msk [vmem:[#allocation2 + $0x5c] sm:$0xf] %vm1548, %v1521
      %1573 = vst.msk [vmem:[#allocation2 + $0x60] sm:$0xf] %vm1548, %v1522
      %v1574 = vld [vmem:[#allocation2] sm:$0xf]
      %v1575 = vld [vmem:[#allocation2 + $0x4] sm:$0xf]
      %v1576 = vld [vmem:[#allocation2 + $0x8] sm:$0xf]
      %v1577 = vld [vmem:[#allocation2 + $0xc] sm:$0xf]
      %v1578 = vld [vmem:[#allocation2 + $0x10] sm:$0xf]
      %v1579 = vld [vmem:[#allocation2 + $0x14] sm:$0xf]
      %v1580 = vld [vmem:[#allocation2 + $0x18] sm:$0xf]
      %v1581 = vld [vmem:[#allocation2 + $0x1c] sm:$0xf]
      %v1582 = vld [vmem:[#allocation2 + $0x20] sm:$0xf]
      %v1583 = vld [vmem:[#allocation2 + $0x24] sm:$0xf]
      %v1584 = vld [vmem:[#allocation2 + $0x28] sm:$0xf]
      %v1585 = vld [vmem:[#allocation2 + $0x2c] sm:$0xf]
      %v1586 = vld [vmem:[#allocation2 + $0x30] sm:$0xf]
      %v1587 = vld [vmem:[#allocation2 + $0x34] sm:$0xf]
      %v1588 = vld [vmem:[#allocation2 + $0x38] sm:$0xf]
      %v1589 = vld [vmem:[#allocation2 + $0x3c] sm:$0xf]
      %v1590 = vld [vmem:[#allocation2 + $0x40] sm:$0xf]
      %v1591 = vld [vmem:[%s3] sm:$0xf]
      %v1592 = vld [vmem:[%s3 + $0x4] sm:$0xf]
      %v1593 = vld [vmem:[%s3 + $0x8] sm:$0xf]
      %v1594 = vld [vmem:[%s3 + $0xc] sm:$0xf]
      %v1595 = vld [vmem:[%s3 + $0x10] sm:$0xf]
      %v1596 = vld [vmem:[%s3 + $0x14] sm:$0xf]
      %v1597 = vld [vmem:[%s3 + $0x18] sm:$0xf]
      %v1598 = vld [vmem:[%s3 + $0x1c] sm:$0xf]
      %v1599 = vld [vmem:[#allocation2 + $0x44] sm:$0x1]
      %s1600 = scalar_lea.vmem %s3, 32
      %v1601 = vld [vmem:[%s1600] sm:$0xf]
      %v1602 = vld [vmem:[%s1600 + $0x4] sm:$0xf]
      %v1603 = vld [vmem:[%s1600 + $0x8] sm:$0xf]
      %v1604 = vld [vmem:[%s1600 + $0xc] sm:$0xf]
      %v1605 = vld [vmem:[%s1600 + $0x10] sm:$0xf]
      %v1606 = vld [vmem:[%s1600 + $0x14] sm:$0xf]
      %v1607 = vld [vmem:[%s1600 + $0x18] sm:$0xf]
      %v1608 = vld [vmem:[%s1600 + $0x1c] sm:$0xf]
      %v1627 = vunpack.c.l.b16 %v1574
      %v1628 = vunpack.c.l.b16 %v1575
      %v1629 = vunpack.c.l.b16 %v1576
      %v1630 = vunpack.c.l.b16 %v1577
      %v1631 = vunpack.c.l.b16 %v1578
      %v1632 = vunpack.c.l.b16 %v1579
      %v1633 = vunpack.c.l.b16 %v1580
      %v1634 = vunpack.c.l.b16 %v1581
      %v1635 = vunpack.c.l.b16 %v1582
      %v1636 = vunpack.c.l.b16 %v1583
      %v1637 = vunpack.c.l.b16 %v1584
      %v1638 = vunpack.c.l.b16 %v1585
      %v1639 = vunpack.c.l.b16 %v1586
      %v1640 = vunpack.c.l.b16 %v1587
      %v1641 = vunpack.c.l.b16 %v1588
      %v1642 = vunpack.c.l.b16 %v1589
      %v1643 = vunpack.c.l.b16 %v1590
      %v1644 = vunpack.c.l.b16 %v1599
      %v1645 = vpack.c.b16 %v1628, %v1627
      %v1646 = vpack.c.b16 %v1630, %v1629
      %v1647 = vpack.c.b16 %v1632, %v1631
      %v1648 = vpack.c.b16 %v1634, %v1633
      %v1649 = vpack.c.b16 %v1636, %v1635
      %v1650 = vpack.c.b16 %v1638, %v1637
      %v1651 = vpack.c.b16 %v1640, %v1639
      %v1652 = vpack.c.b16 %v1642, %v1641
      %v1653 = vpack.c.b16 %v1644, %v1643
      %vm1654 = vsmask.f32 7424
      %v1656 = vshrl.u32 %v1645, 16
      %v1658 = vshll.u32 %v1645, 16
      %v1660 = vrot.slane %v1658, 1
      %v1661 = vor.u32 %v1656, %v1660
      %v1663 = vshll.u32 %v1646, 16
      %v1665 = vrot.slane %v1663, 1
      %v1666 = vsel %vm1654, %v1661, %v1665
      %v1667 = vshrl.u32 %v1646, 16
      %v1669 = vor.u32 %v1667, %v1665
      %v1671 = vshll.u32 %v1647, 16
      %v1673 = vrot.slane %v1671, 1
      %v1674 = vsel %vm1654, %v1669, %v1673
      %v1675 = vshrl.u32 %v1647, 16
      %v1677 = vor.u32 %v1675, %v1673
      %v1679 = vshll.u32 %v1648, 16
      %v1681 = vrot.slane %v1679, 1
      %v1682 = vsel %vm1654, %v1677, %v1681
      %v1683 = vshrl.u32 %v1648, 16
      %v1685 = vor.u32 %v1683, %v1681
      %v1687 = vshll.u32 %v1649, 16
      %v1689 = vrot.slane %v1687, 1
      %v1690 = vsel %vm1654, %v1685, %v1689
      %v1691 = vshrl.u32 %v1649, 16
      %v1693 = vor.u32 %v1691, %v1689
      %v1695 = vshll.u32 %v1650, 16
      %v1697 = vrot.slane %v1695, 1
      %v1698 = vsel %vm1654, %v1693, %v1697
      %v1699 = vshrl.u32 %v1650, 16
      %v1701 = vor.u32 %v1699, %v1697
      %v1703 = vshll.u32 %v1651, 16
      %v1705 = vrot.slane %v1703, 1
      %v1706 = vsel %vm1654, %v1701, %v1705
      %v1707 = vshrl.u32 %v1651, 16
      %v1709 = vor.u32 %v1707, %v1705
      %v1711 = vshll.u32 %v1652, 16
      %v1713 = vrot.slane %v1711, 1
      %v1714 = vsel %vm1654, %v1709, %v1713
      %v1715 = vshrl.u32 %v1652, 16
      %v1717 = vor.u32 %v1715, %v1713
      %v1719 = vshll.u32 %v1653, 16
      %v1721 = vrot.slane %v1719, 1
      %v1722 = vsel %vm1654, %v1717, %v1721
      %v1723 = vshrl.u32 %v1653, 16
      %v1725 = vor.u32 %v1723, %v1721
      %v1734 = vunpack.c.l.b16 %v1601
      %v1735 = vunpack.c.l.b16 %v1602
      %v1736 = vunpack.c.l.b16 %v1603
      %v1737 = vunpack.c.l.b16 %v1604
      %v1738 = vunpack.c.l.b16 %v1605
      %v1739 = vunpack.c.l.b16 %v1606
      %v1740 = vunpack.c.l.b16 %v1607
      %v1741 = vunpack.c.l.b16 %v1608
      %v1742 = vpack.c.b16 %v1735, %v1734
      %v1743 = vpack.c.b16 %v1737, %v1736
      %v1744 = vpack.c.b16 %v1739, %v1738
      %v1745 = vpack.c.b16 %v1741, %v1740
      %vm1750 = vcmask 523264
      %v1752 = vsel %vm1750, %v1666, 0
      %v1755 = vsel %vm1750, %v1674, 0
      %v1758 = vsel %vm1750, %v1682, 0
      %v1761 = vsel %vm1750, %v1690, 0
      %v1764 = vsel %vm1750, %v1698, 0
      %v1767 = vsel %vm1750, %v1706, 0
      %v1770 = vsel %vm1750, %v1714, 0
      %v1773 = vsel %vm1750, %v1722, 0
      %v1776 = vsel %vm1750, %v1725, 0
      %1778 = vmatprep.subr.bf16.mxu0 0
      %1779 = vmatpush1.bf16.msra.mxu0 %v1742
      %1780 = vmatprep.subr.bf16.mxu0 0
      %1781 = vmatpush1.bf16.msra.mxu0 %v1743
      %1782 = vmatprep.subr.bf16.mxu0 0
      %1783 = vmatpush1.bf16.msra.mxu0 %v1744
      %1784 = vmatprep.subr.bf16.mxu0 0
      %1785 = vmatpush1.bf16.msra.mxu0 %v1745
      %1786 = vmatprep.subr.bf16.mxu0 0
      %1787 = vmatpush1.bf16.msra.mxu0 0
      %1788 = vmatprep.subr.bf16.mxu0 0
      %1789 = vmatpush1.bf16.msra.mxu0 0
      %1790 = vmatprep.subr.bf16.mxu0 0
      %1791 = vmatpush1.bf16.msra.mxu0 0
      %1792 = vmatprep.subr.bf16.mxu0 0
      %1793 = vmatpush1.bf16.msra.mxu0 0
      %1794 = vmatprep.subr.bf16.mxu0 0
      %1795 = vmatpush1.bf16.msra.mxu0 0
      %1796 = vmatprep.subr.bf16.mxu0 0
      %1797 = vmatpush1.bf16.msra.mxu0 0
      %1798 = vmatprep.subr.bf16.mxu0 0
      %1799 = vmatpush1.bf16.msra.mxu0 0
      %1800 = vmatprep.subr.bf16.mxu0 0
      %1801 = vmatpush1.bf16.msra.mxu0 0
      %1802 = vmatprep.subr.bf16.mxu0 0
      %1803 = vmatpush1.bf16.msra.mxu0 0
      %1804 = vmatprep.subr.bf16.mxu0 0
      %1805 = vmatpush1.bf16.msra.mxu0 0
      %1806 = vmatprep.subr.bf16.mxu0 0
      %1807 = vmatpush1.bf16.msra.mxu0 0
      %1808 = vmatprep.subr.bf16.mxu0 0
      %1809 = vmatpush1.bf16.msra.mxu0 0
      %1810 = vmatprep.mubr.bf16.mxu0 0
      %1811 = vmatmul.mubr.bf16.gmra.mrb[0].mxu0 %v1752
      %v1812 = vpop.f32.mrb[0].mxu0
      %v1813 = vadd.f32 0.0, %v1812
      %v1814 = vpop.f32.mrb[0].mxu0
      %v1815 = vpop.f32.mrb[0].mxu0
      %v1816 = vadd.f32 0.0, %v1815
      %v1817 = vpop.f32.mrb[0].mxu0
      %1818 = vmatprep.mubr.bf16.mxu0 0
      %1819 = vmatmul.mubr.bf16.gmra.mrb[0].mxu0 %v1755
      %v1820 = vpop.f32.mrb[0].mxu0
      %v1821 = vadd.f32 0.0, %v1820
      %v1822 = vpop.f32.mrb[0].mxu0
      %v1823 = vpop.f32.mrb[0].mxu0
      %v1824 = vadd.f32 0.0, %v1823
      %v1825 = vpop.f32.mrb[0].mxu0
      %1826 = vmatprep.mubr.bf16.mxu0 0
      %1827 = vmatmul.mubr.bf16.gmra.mrb[0].mxu0 %v1758
      %v1828 = vpop.f32.mrb[0].mxu0
      %v1829 = vadd.f32 0.0, %v1828
      %v1830 = vpop.f32.mrb[0].mxu0
      %v1831 = vpop.f32.mrb[0].mxu0
      %v1832 = vadd.f32 0.0, %v1831
      %v1833 = vpop.f32.mrb[0].mxu0
      %1834 = vmatprep.mubr.bf16.mxu0 0
      %1835 = vmatmul.mubr.bf16.gmra.mrb[0].mxu0 %v1761
      %v1836 = vpop.f32.mrb[0].mxu0
      %v1837 = vadd.f32 0.0, %v1836
      %v1838 = vpop.f32.mrb[0].mxu0
      %v1839 = vpop.f32.mrb[0].mxu0
      %v1840 = vadd.f32 0.0, %v1839
      %v1841 = vpop.f32.mrb[0].mxu0
      %1842 = vmatprep.mubr.bf16.mxu0 0
      %1843 = vmatmul.mubr.bf16.gmra.mrb[0].mxu0 %v1764
      %v1844 = vpop.f32.mrb[0].mxu0
      %v1845 = vadd.f32 0.0, %v1844
      %v1846 = vpop.f32.mrb[0].mxu0
      %v1847 = vpop.f32.mrb[0].mxu0
      %v1848 = vadd.f32 0.0, %v1847
      %v1849 = vpop.f32.mrb[0].mxu0
      %1850 = vmatprep.mubr.bf16.mxu0 0
      %1851 = vmatmul.mubr.bf16.gmra.mrb[0].mxu0 %v1767
      %v1852 = vpop.f32.mrb[0].mxu0
      %v1853 = vadd.f32 0.0, %v1852
      %v1854 = vpop.f32.mrb[0].mxu0
      %v1855 = vpop.f32.mrb[0].mxu0
      %v1856 = vadd.f32 0.0, %v1855
      %v1857 = vpop.f32.mrb[0].mxu0
      %1858 = vmatprep.mubr.bf16.mxu0 0
      %1859 = vmatmul.mubr.bf16.gmra.mrb[0].mxu0 %v1770
      %v1860 = vpop.f32.mrb[0].mxu0
      %v1861 = vadd.f32 0.0, %v1860
      %v1862 = vpop.f32.mrb[0].mxu0
      %v1863 = vpop.f32.mrb[0].mxu0
      %v1864 = vadd.f32 0.0, %v1863
      %v1865 = vpop.f32.mrb[0].mxu0
      %1866 = vmatprep.mubr.bf16.mxu0 0
      %1867 = vmatmul.mubr.bf16.gmra.mrb[0].mxu0 %v1773
      %v1868 = vpop.f32.mrb[0].mxu0
      %v1869 = vadd.f32 0.0, %v1868
      %v1870 = vpop.f32.mrb[0].mxu0
      %v1871 = vpop.f32.mrb[0].mxu0
      %v1872 = vadd.f32 0.0, %v1871
      %v1873 = vpop.f32.mrb[0].mxu0
      %1874 = vmatprep.mubr.bf16.mxu0 0
      %1875 = vmatmul.mubr.bf16.gmra.mrb[0].mxu0 %v1776
      %v1876 = vpop.f32.mrb[0].mxu0
      %v1877 = vadd.f32 0.0, %v1876
      %v1878 = vpop.f32.mrb[0].mxu0
      %v1879 = vpop.f32.mrb[0].mxu0
      %v1880 = vpop.f32.mrb[0].mxu0
      %1881 = vdwg.mxu0
      %v1882 = vpack.c.b16 %v1643, %v1643
      %v1891 = vunpack.c.l.b16 %v1591
      %v1892 = vunpack.c.l.b16 %v1592
      %v1893 = vunpack.c.l.b16 %v1593
      %v1894 = vunpack.c.l.b16 %v1594
      %v1895 = vunpack.c.l.b16 %v1595
      %v1896 = vunpack.c.l.b16 %v1596
      %v1897 = vunpack.c.l.b16 %v1597
      %v1898 = vunpack.c.l.b16 %v1598
      %v1899 = vpack.c.b16 %v1892, %v1891
      %v1900 = vpack.c.b16 %v1894, %v1893
      %v1901 = vpack.c.b16 %v1896, %v1895
      %v1902 = vpack.c.b16 %v1898, %v1897
      %v1907 = vsel %vm1750, %v1645, 0
      %v1909 = vsel %vm1750, %v1646, 0
      %v1911 = vsel %vm1750, %v1647, 0
      %v1913 = vsel %vm1750, %v1648, 0
      %v1915 = vsel %vm1750, %v1649, 0
      %v1917 = vsel %vm1750, %v1650, 0
      %v1919 = vsel %vm1750, %v1651, 0
      %v1921 = vsel %vm1750, %v1652, 0
      %v1924 = vsel %vm1750, %v1882, 0
      %1926 = vmatprep.subr.bf16.mxu0 0
      %1927 = vmatpush1.bf16.msra.mxu0 %v1899
      %1928 = vmatprep.subr.bf16.mxu0 0
      %1929 = vmatpush1.bf16.msra.mxu0 %v1900
      %1930 = vmatprep.subr.bf16.mxu0 0
      %1931 = vmatpush1.bf16.msra.mxu0 %v1901
      %1932 = vmatprep.subr.bf16.mxu0 0
      %1933 = vmatpush1.bf16.msra.mxu0 %v1902
      %1934 = vmatprep.subr.bf16.mxu0 0
      %1935 = vmatpush1.bf16.msra.mxu0 0
      %1936 = vmatprep.subr.bf16.mxu0 0
      %1937 = vmatpush1.bf16.msra.mxu0 0
      %1938 = vmatprep.subr.bf16.mxu0 0
      %1939 = vmatpush1.bf16.msra.mxu0 0
      %1940 = vmatprep.subr.bf16.mxu0 0
      %1941 = vmatpush1.bf16.msra.mxu0 0
      %1942 = vmatprep.subr.bf16.mxu0 0
      %1943 = vmatpush1.bf16.msra.mxu0 0
      %1944 = vmatprep.subr.bf16.mxu0 0
      %1945 = vmatpush1.bf16.msra.mxu0 0
      %1946 = vmatprep.subr.bf16.mxu0 0
      %1947 = vmatpush1.bf16.msra.mxu0 0
      %1948 = vmatprep.subr.bf16.mxu0 0
      %1949 = vmatpush1.bf16.msra.mxu0 0
      %1950 = vmatprep.subr.bf16.mxu0 0
      %1951 = vmatpush1.bf16.msra.mxu0 0
      %1952 = vmatprep.subr.bf16.mxu0 0
      %1953 = vmatpush1.bf16.msra.mxu0 0
      %1954 = vmatprep.subr.bf16.mxu0 0
      %1955 = vmatpush1.bf16.msra.mxu0 0
      %1956 = vmatprep.subr.bf16.mxu0 0
      %1957 = vmatpush1.bf16.msra.mxu0 0
      %1958 = vmatprep.mubr.bf16.mxu0 0
      %1959 = vmatmul.mubr.bf16.gmra.mrb[0].mxu0 %v1907
      %v1960 = vpop.f32.mrb[0].mxu0
      %v1961 = vadd.f32 %v1813, %v1960
      %v1962 = vpop.f32.mrb[0].mxu0
      %v1963 = vpop.f32.mrb[0].mxu0
      %v1964 = vadd.f32 %v1816, %v1963
      %v1965 = vpop.f32.mrb[0].mxu0
      %1966 = vmatprep.mubr.bf16.mxu0 0
      %1967 = vmatmul.mubr.bf16.gmra.mrb[0].mxu0 %v1909
      %v1968 = vpop.f32.mrb[0].mxu0
      %v1969 = vadd.f32 %v1821, %v1968
      %v1970 = vpop.f32.mrb[0].mxu0
      %v1971 = vpop.f32.mrb[0].mxu0
      %v1972 = vadd.f32 %v1824, %v1971
      %v1973 = vpop.f32.mrb[0].mxu0
      %1974 = vmatprep.mubr.bf16.mxu0 0
      %1975 = vmatmul.mubr.bf16.gmra.mrb[0].mxu0 %v1911
      %v1976 = vpop.f32.mrb[0].mxu0
      %v1977 = vadd.f32 %v1829, %v1976
      %v1978 = vpop.f32.mrb[0].mxu0
      %v1979 = vpop.f32.mrb[0].mxu0
      %v1980 = vadd.f32 %v1832, %v1979
      %v1981 = vpop.f32.mrb[0].mxu0
      %1982 = vmatprep.mubr.bf16.mxu0 0
      %1983 = vmatmul.mubr.bf16.gmra.mrb[0].mxu0 %v1913
      %v1984 = vpop.f32.mrb[0].mxu0
      %v1985 = vadd.f32 %v1837, %v1984
      %v1986 = vpop.f32.mrb[0].mxu0
      %v1987 = vpop.f32.mrb[0].mxu0
      %v1988 = vadd.f32 %v1840, %v1987
      %v1989 = vpop.f32.mrb[0].mxu0
      %1990 = vmatprep.mubr.bf16.mxu0 0
      %1991 = vmatmul.mubr.bf16.gmra.mrb[0].mxu0 %v1915
      %v1992 = vpop.f32.mrb[0].mxu0
      %v1993 = vadd.f32 %v1845, %v1992
      %v1994 = vpop.f32.mrb[0].mxu0
      %v1995 = vpop.f32.mrb[0].mxu0
      %v1996 = vadd.f32 %v1848, %v1995
      %v1997 = vpop.f32.mrb[0].mxu0
      %1998 = vmatprep.mubr.bf16.mxu0 0
      %1999 = vmatmul.mubr.bf16.gmra.mrb[0].mxu0 %v1917
      %v2000 = vpop.f32.mrb[0].mxu0
      %v2001 = vadd.f32 %v1853, %v2000
      %v2002 = vpop.f32.mrb[0].mxu0
      %v2003 = vpop.f32.mrb[0].mxu0
      %v2004 = vadd.f32 %v1856, %v2003
      %v2005 = vpop.f32.mrb[0].mxu0
      %2006 = vmatprep.mubr.bf16.mxu0 0
      %2007 = vmatmul.mubr.bf16.gmra.mrb[0].mxu0 %v1919
      %v2008 = vpop.f32.mrb[0].mxu0
      %v2009 = vadd.f32 %v1861, %v2008
      %v2010 = vpop.f32.mrb[0].mxu0
      %v2011 = vpop.f32.mrb[0].mxu0
      %v2012 = vadd.f32 %v1864, %v2011
      %v2013 = vpop.f32.mrb[0].mxu0
      %2014 = vmatprep.mubr.bf16.mxu0 0
      %2015 = vmatmul.mubr.bf16.gmra.mrb[0].mxu0 %v1921
      %v2016 = vpop.f32.mrb[0].mxu0
      %v2017 = vadd.f32 %v1869, %v2016
      %v2018 = vpop.f32.mrb[0].mxu0
      %v2019 = vpop.f32.mrb[0].mxu0
      %v2020 = vadd.f32 %v1872, %v2019
      %v2021 = vpop.f32.mrb[0].mxu0
      %2022 = vmatprep.mubr.bf16.mxu0 0
      %2023 = vmatmul.mubr.bf16.gmra.mrb[0].mxu0 %v1924
      %v2024 = vpop.f32.mrb[0].mxu0
      %v2025 = vadd.f32 %v1877, %v2024
      %v2026 = vpop.f32.mrb[0].mxu0
      %v2027 = vpop.f32.mrb[0].mxu0
      %v2028 = vpop.f32.mrb[0].mxu0
      %2029 = vdwg.mxu0
      %v2030 = vld [vmem:[#allocation2] sm:$0xe]
      %s2031 = scalar_lea.vmem %s3, 64
      %v2032 = vld [vmem:[%s2031] sm:$0xf]
      %v2033 = vld [vmem:[%s2031 + $0x4] sm:$0xf]
      %v2034 = vld [vmem:[%s2031 + $0x8] sm:$0xf]
      %v2035 = vld [vmem:[%s2031 + $0xc] sm:$0xf]
      %v2036 = vld [vmem:[%s2031 + $0x10] sm:$0xf]
      %v2037 = vld [vmem:[%s2031 + $0x14] sm:$0xf]
      %v2038 = vld [vmem:[%s2031 + $0x18] sm:$0xf]
      %v2039 = vld [vmem:[%s2031 + $0x1c] sm:$0xf]
      %v2041 = vunpack.c.l.b16 %v2030
      %v2042 = vpack.c.b16 %v1628, %v2041
      %vm2043 = vcmask 1046528
      %v2044 = vrot.slane %v2042, 1
      %v2045 = vrot.slane %v1646, 1
      %v2046 = vsel %vm2043, %v2044, %v2045
      %v2047 = vrot.slane %v1647, 1
      %v2048 = vsel %vm2043, %v2045, %v2047
      %v2049 = vrot.slane %v1648, 1
      %v2050 = vsel %vm2043, %v2047, %v2049
      %v2051 = vrot.slane %v1649, 1
      %v2052 = vsel %vm2043, %v2049, %v2051
      %v2053 = vrot.slane %v1650, 1
      %v2054 = vsel %vm2043, %v2051, %v2053
      %v2055 = vrot.slane %v1651, 1
      %v2056 = vsel %vm2043, %v2053, %v2055
      %v2057 = vrot.slane %v1652, 1
      %v2058 = vsel %vm2043, %v2055, %v2057
      %v2059 = vrot.slane %v1653, 1
      %v2060 = vsel %vm2043, %v2057, %v2059
      %v2069 = vunpack.c.l.b16 %v2032
      %v2070 = vunpack.c.l.b16 %v2033
      %v2071 = vunpack.c.l.b16 %v2034
      %v2072 = vunpack.c.l.b16 %v2035
      %v2073 = vunpack.c.l.b16 %v2036
      %v2074 = vunpack.c.l.b16 %v2037
      %v2075 = vunpack.c.l.b16 %v2038
      %v2076 = vunpack.c.l.b16 %v2039
      %v2077 = vpack.c.b16 %v2070, %v2069
      %v2078 = vpack.c.b16 %v2072, %v2071
      %v2079 = vpack.c.b16 %v2074, %v2073
      %v2080 = vpack.c.b16 %v2076, %v2075
      %v2086 = vsel %vm1750, %v2046, 0
      %v2089 = vsel %vm1750, %v2048, 0
      %v2092 = vsel %vm1750, %v2050, 0
      %v2095 = vsel %vm1750, %v2052, 0
      %v2098 = vsel %vm1750, %v2054, 0
      %v2101 = vsel %vm1750, %v2056, 0
      %v2104 = vsel %vm1750, %v2058, 0
      %v2107 = vsel %vm1750, %v2060, 0
      %v2110 = vsel %vm1750, %v2059, 0
      %2112 = vmatprep.subr.bf16.mxu0 0
      %2113 = vmatpush1.bf16.msra.mxu0 %v2077
      %2114 = vmatprep.subr.bf16.mxu0 0
      %2115 = vmatpush1.bf16.msra.mxu0 %v2078
      %2116 = vmatprep.subr.bf16.mxu0 0
      %2117 = vmatpush1.bf16.msra.mxu0 %v2079
      %2118 = vmatprep.subr.bf16.mxu0 0
      %2119 = vmatpush1.bf16.msra.mxu0 %v2080
      %2120 = vmatprep.subr.bf16.mxu0 0
      %2121 = vmatpush1.bf16.msra.mxu0 0
      %2122 = vmatprep.subr.bf16.mxu0 0
      %2123 = vmatpush1.bf16.msra.mxu0 0
      %2124 = vmatprep.subr.bf16.mxu0 0
      %2125 = vmatpush1.bf16.msra.mxu0 0
      %2126 = vmatprep.subr.bf16.mxu0 0
      %2127 = vmatpush1.bf16.msra.mxu0 0
      %2128 = vmatprep.subr.bf16.mxu0 0
      %2129 = vmatpush1.bf16.msra.mxu0 0
      %2130 = vmatprep.subr.bf16.mxu0 0
      %2131 = vmatpush1.bf16.msra.mxu0 0
      %2132 = vmatprep.subr.bf16.mxu0 0
      %2133 = vmatpush1.bf16.msra.mxu0 0
      %2134 = vmatprep.subr.bf16.mxu0 0
      %2135 = vmatpush1.bf16.msra.mxu0 0
      %2136 = vmatprep.subr.bf16.mxu0 0
      %2137 = vmatpush1.bf16.msra.mxu0 0
      %2138 = vmatprep.subr.bf16.mxu0 0
      %2139 = vmatpush1.bf16.msra.mxu0 0
      %2140 = vmatprep.subr.bf16.mxu0 0
      %2141 = vmatpush1.bf16.msra.mxu0 0
      %2142 = vmatprep.subr.bf16.mxu0 0
      %2143 = vmatpush1.bf16.msra.mxu0 0
      %2144 = vmatprep.mubr.bf16.mxu0 0
      %2145 = vmatmul.mubr.bf16.gmra.mrb[0].mxu0 %v2086
      %v2146 = vpop.f32.mrb[0].mxu0
      %v2147 = vadd.f32 0.0, %v2146
      %v2148 = vpop.f32.mrb[0].mxu0
      %v2149 = vpop.f32.mrb[0].mxu0
      %v2150 = vadd.f32 0.0, %v2149
      %v2151 = vpop.f32.mrb[0].mxu0
      %2152 = vmatprep.mubr.bf16.mxu0 0
      %2153 = vmatmul.mubr.bf16.gmra.mrb[0].mxu0 %v2089
      %v2154 = vpop.f32.mrb[0].mxu0
      %v2155 = vadd.f32 0.0, %v2154
      %v2156 = vpop.f32.mrb[0].mxu0
      %v2157 = vpop.f32.mrb[0].mxu0
      %v2158 = vadd.f32 0.0, %v2157
      %v2159 = vpop.f32.mrb[0].mxu0
      %2160 = vmatprep.mubr.bf16.mxu0 0
      %2161 = vmatmul.mubr.bf16.gmra.mrb[0].mxu0 %v2092
      %v2162 = vpop.f32.mrb[0].mxu0
      %v2163 = vadd.f32 0.0, %v2162
      %v2164 = vpop.f32.mrb[0].mxu0
      %v2165 = vpop.f32.mrb[0].mxu0
      %v2166 = vadd.f32 0.0, %v2165
      %v2167 = vpop.f32.mrb[0].mxu0
      %2168 = vmatprep.mubr.bf16.mxu0 0
      %2169 = vmatmul.mubr.bf16.gmra.mrb[0].mxu0 %v2095
      %v2170 = vpop.f32.mrb[0].mxu0
      %v2171 = vadd.f32 0.0, %v2170
      %v2172 = vpop.f32.mrb[0].mxu0
      %v2173 = vpop.f32.mrb[0].mxu0
      %v2174 = vadd.f32 0.0, %v2173
      %v2175 = vpop.f32.mrb[0].mxu0
      %2176 = vmatprep.mubr.bf16.mxu0 0
      %2177 = vmatmul.mubr.bf16.gmra.mrb[0].mxu0 %v2098
      %v2178 = vpop.f32.mrb[0].mxu0
      %v2179 = vadd.f32 0.0, %v2178
      %v2180 = vpop.f32.mrb[0].mxu0
      %v2181 = vpop.f32.mrb[0].mxu0
      %v2182 = vadd.f32 0.0, %v2181
      %v2183 = vpop.f32.mrb[0].mxu0
      %2184 = vmatprep.mubr.bf16.mxu0 0
      %2185 = vmatmul.mubr.bf16.gmra.mrb[0].mxu0 %v2101
      %v2186 = vpop.f32.mrb[0].mxu0
      %v2187 = vadd.f32 0.0, %v2186
      %v2188 = vpop.f32.mrb[0].mxu0
      %v2189 = vpop.f32.mrb[0].mxu0
      %v2190 = vadd.f32 0.0, %v2189
      %v2191 = vpop.f32.mrb[0].mxu0
      %2192 = vmatprep.mubr.bf16.mxu0 0
      %2193 = vmatmul.mubr.bf16.gmra.mrb[0].mxu0 %v2104
      %v2194 = vpop.f32.mrb[0].mxu0
      %v2195 = vadd.f32 0.0, %v2194
      %v2196 = vpop.f32.mrb[0].mxu0
      %v2197 = vpop.f32.mrb[0].mxu0
      %v2198 = vadd.f32 0.0, %v2197
      %v2199 = vpop.f32.mrb[0].mxu0
      %2200 = vmatprep.mubr.bf16.mxu0 0
      %2201 = vmatmul.mubr.bf16.gmra.mrb[0].mxu0 %v2107
      %v2202 = vpop.f32.mrb[0].mxu0
      %v2203 = vadd.f32 0.0, %v2202
      %v2204 = vpop.f32.mrb[0].mxu0
      %v2205 = vpop.f32.mrb[0].mxu0
      %v2206 = vadd.f32 0.0, %v2205
      %v2207 = vpop.f32.mrb[0].mxu0
      %2208 = vmatprep.mubr.bf16.mxu0 0
      %2209 = vmatmul.mubr.bf16.gmra.mrb[0].mxu0 %v2110
      %v2210 = vpop.f32.mrb[0].mxu0
      %v2211 = vadd.f32 0.0, %v2210
      %v2212 = vpop.f32.mrb[0].mxu0
      %v2213 = vpop.f32.mrb[0].mxu0
      %v2214 = vpop.f32.mrb[0].mxu0
      %2215 = vdwg.mxu0
      %v2216 = vadd.f32 %v1961, %v2147
      %v2217 = vadd.f32 %v1964, %v2150
      %v2218 = vadd.f32 %v1969, %v2155
      %v2219 = vadd.f32 %v1972, %v2158
      %v2220 = vadd.f32 %v1977, %v2163
      %v2221 = vadd.f32 %v1980, %v2166
      %v2222 = vadd.f32 %v1985, %v2171
      %v2223 = vadd.f32 %v1988, %v2174
      %v2224 = vadd.f32 %v1993, %v2179
      %v2225 = vadd.f32 %v1996, %v2182
      %v2226 = vadd.f32 %v2001, %v2187
      %v2227 = vadd.f32 %v2004, %v2190
      %v2228 = vadd.f32 %v2009, %v2195
      %v2229 = vadd.f32 %v2012, %v2198
      %v2230 = vadd.f32 %v2017, %v2203
      %v2231 = vadd.f32 %v2020, %v2206
      %v2232 = vadd.f32 %v2025, %v2211
      %v2233 = vld [vmem:[#allocation2 + $0x44] sm:$0x3]
      %s2234 = scalar_lea.vmem %s3, 96
      %v2235 = vld [vmem:[%s2234] sm:$0xf]
      %v2236 = vld [vmem:[%s2234 + $0x4] sm:$0xf]
      %v2237 = vld [vmem:[%s2234 + $0x8] sm:$0xf]
      %v2238 = vld [vmem:[%s2234 + $0xc] sm:$0xf]
      %v2239 = vld [vmem:[%s2234 + $0x10] sm:$0xf]
      %v2240 = vld [vmem:[%s2234 + $0x14] sm:$0xf]
      %v2241 = vld [vmem:[%s2234 + $0x18] sm:$0xf]
      %v2242 = vld [vmem:[%s2234 + $0x1c] sm:$0xf]
      %v2244 = vunpack.c.l.b16 %v2233
      %v2245 = vpack.c.b16 %v2244, %v1643
      %vm2246 = vsmask.f32 6400
      %v2248 = vshrl.u32 %v2042, 16
      %v2250 = vrot.slane %v2248, 1
      %v2251 = vshll.u32 %v2042, 16
      %v2253 = vrot.slane %v2251, 2
      %v2254 = vor.u32 %v2250, %v2253
      %v2255 = vrot.slane %v1667, 1
      %v2256 = vrot.slane %v1663, 2
      %v2257 = vor.u32 %v2255, %v2256
      %v2258 = vsel %vm2246, %v2254, %v2257
      %v2259 = vrot.slane %v1675, 1
      %v2260 = vrot.slane %v1671, 2
      %v2261 = vor.u32 %v2259, %v2260
      %v2262 = vsel %vm2246, %v2257, %v2261
      %v2263 = vrot.slane %v1683, 1
      %v2264 = vrot.slane %v1679, 2
      %v2265 = vor.u32 %v2263, %v2264
      %v2266 = vsel %vm2246, %v2261, %v2265
      %v2267 = vrot.slane %v1691, 1
      %v2268 = vrot.slane %v1687, 2
      %v2269 = vor.u32 %v2267, %v2268
      %v2270 = vsel %vm2246, %v2265, %v2269
      %v2271 = vrot.slane %v1699, 1
      %v2272 = vrot.slane %v1695, 2
      %v2273 = vor.u32 %v2271, %v2272
      %v2274 = vsel %vm2246, %v2269, %v2273
      %v2275 = vrot.slane %v1707, 1
      %v2276 = vrot.slane %v1703, 2
      %v2277 = vor.u32 %v2275, %v2276
      %v2278 = vsel %vm2246, %v2273, %v2277
      %v2279 = vrot.slane %v1715, 1
      %v2280 = vrot.slane %v1711, 2
      %v2281 = vor.u32 %v2279, %v2280
      %v2282 = vsel %vm2246, %v2277, %v2281
      %v2284 = vshrl.u32 %v2245, 16
      %v2286 = vrot.slane %v2284, 1
      %v2287 = vshll.u32 %v2245, 16
      %v2289 = vrot.slane %v2287, 2
      %v2290 = vor.u32 %v2286, %v2289
      %v2291 = vsel %vm2246, %v2281, %v2290
      %v2300 = vunpack.c.l.b16 %v2235
      %v2301 = vunpack.c.l.b16 %v2236
      %v2302 = vunpack.c.l.b16 %v2237
      %v2303 = vunpack.c.l.b16 %v2238
      %v2304 = vunpack.c.l.b16 %v2239
      %v2305 = vunpack.c.l.b16 %v2240
      %v2306 = vunpack.c.l.b16 %v2241
      %v2307 = vunpack.c.l.b16 %v2242
      %v2308 = vpack.c.b16 %v2301, %v2300
      %v2309 = vpack.c.b16 %v2303, %v2302
      %v2310 = vpack.c.b16 %v2305, %v2304
      %v2311 = vpack.c.b16 %v2307, %v2306
      %v2317 = vsel %vm1750, %v2258, 0
      %v2320 = vsel %vm1750, %v2262, 0
      %v2323 = vsel %vm1750, %v2266, 0
      %v2326 = vsel %vm1750, %v2270, 0
      %v2329 = vsel %vm1750, %v2274, 0
      %v2332 = vsel %vm1750, %v2278, 0
      %v2335 = vsel %vm1750, %v2282, 0
      %v2338 = vsel %vm1750, %v2291, 0
      %v2341 = vsel %vm1750, %v2290, 0
      %2343 = vmatprep.subr.bf16.mxu0 0
      %2344 = vmatpush1.bf16.msra.mxu0 %v2308
      %2345 = vmatprep.subr.bf16.mxu0 0
      %2346 = vmatpush1.bf16.msra.mxu0 %v2309
      %2347 = vmatprep.subr.bf16.mxu0 0
      %2348 = vmatpush1.bf16.msra.mxu0 %v2310
      %2349 = vmatprep.subr.bf16.mxu0 0
      %2350 = vmatpush1.bf16.msra.mxu0 %v2311
      %2351 = vmatprep.subr.bf16.mxu0 0
      %2352 = vmatpush1.bf16.msra.mxu0 0
      %2353 = vmatprep.subr.bf16.mxu0 0
      %2354 = vmatpush1.bf16.msra.mxu0 0
      %2355 = vmatprep.subr.bf16.mxu0 0
      %2356 = vmatpush1.bf16.msra.mxu0 0
      %2357 = vmatprep.subr.bf16.mxu0 0
      %2358 = vmatpush1.bf16.msra.mxu0 0
      %2359 = vmatprep.subr.bf16.mxu0 0
      %2360 = vmatpush1.bf16.msra.mxu0 0
      %2361 = vmatprep.subr.bf16.mxu0 0
      %2362 = vmatpush1.bf16.msra.mxu0 0
      %2363 = vmatprep.subr.bf16.mxu0 0
      %2364 = vmatpush1.bf16.msra.mxu0 0
      %2365 = vmatprep.subr.bf16.mxu0 0
      %2366 = vmatpush1.bf16.msra.mxu0 0
      %2367 = vmatprep.subr.bf16.mxu0 0
      %2368 = vmatpush1.bf16.msra.mxu0 0
      %2369 = vmatprep.subr.bf16.mxu0 0
      %2370 = vmatpush1.bf16.msra.mxu0 0
      %2371 = vmatprep.subr.bf16.mxu0 0
      %2372 = vmatpush1.bf16.msra.mxu0 0
      %2373 = vmatprep.subr.bf16.mxu0 0
      %2374 = vmatpush1.bf16.msra.mxu0 0
      %2375 = vmatprep.mubr.bf16.mxu0 0
      %2376 = vmatmul.mubr.bf16.gmra.mrb[0].mxu0 %v2317
      %v2377 = vpop.f32.mrb[0].mxu0
      %v2378 = vadd.f32 0.0, %v2377
      %v2379 = vpop.f32.mrb[0].mxu0
      %v2380 = vpop.f32.mrb[0].mxu0
      %v2381 = vadd.f32 0.0, %v2380
      %v2382 = vpop.f32.mrb[0].mxu0
      %2383 = vmatprep.mubr.bf16.mxu0 0
      %2384 = vmatmul.mubr.bf16.gmra.mrb[0].mxu0 %v2320
      %v2385 = vpop.f32.mrb[0].mxu0
      %v2386 = vadd.f32 0.0, %v2385
      %v2387 = vpop.f32.mrb[0].mxu0
      %v2388 = vpop.f32.mrb[0].mxu0
      %v2389 = vadd.f32 0.0, %v2388
      %v2390 = vpop.f32.mrb[0].mxu0
      %2391 = vmatprep.mubr.bf16.mxu0 0
      %2392 = vmatmul.mubr.bf16.gmra.mrb[0].mxu0 %v2323
      %v2393 = vpop.f32.mrb[0].mxu0
      %v2394 = vadd.f32 0.0, %v2393
      %v2395 = vpop.f32.mrb[0].mxu0
      %v2396 = vpop.f32.mrb[0].mxu0
      %v2397 = vadd.f32 0.0, %v2396
      %v2398 = vpop.f32.mrb[0].mxu0
      %2399 = vmatprep.mubr.bf16.mxu0 0
      %2400 = vmatmul.mubr.bf16.gmra.mrb[0].mxu0 %v2326
      %v2401 = vpop.f32.mrb[0].mxu0
      %v2402 = vadd.f32 0.0, %v2401
      %v2403 = vpop.f32.mrb[0].mxu0
      %v2404 = vpop.f32.mrb[0].mxu0
      %v2405 = vadd.f32 0.0, %v2404
      %v2406 = vpop.f32.mrb[0].mxu0
      %2407 = vmatprep.mubr.bf16.mxu0 0
      %2408 = vmatmul.mubr.bf16.gmra.mrb[0].mxu0 %v2329
      %v2409 = vpop.f32.mrb[0].mxu0
      %v2410 = vadd.f32 0.0, %v2409
      %v2411 = vpop.f32.mrb[0].mxu0
      %v2412 = vpop.f32.mrb[0].mxu0
      %v2413 = vadd.f32 0.0, %v2412
      %v2414 = vpop.f32.mrb[0].mxu0
      %2415 = vmatprep.mubr.bf16.mxu0 0
      %2416 = vmatmul.mubr.bf16.gmra.mrb[0].mxu0 %v2332
      %v2417 = vpop.f32.mrb[0].mxu0
      %v2418 = vadd.f32 0.0, %v2417
      %v2419 = vpop.f32.mrb[0].mxu0
      %v2420 = vpop.f32.mrb[0].mxu0
      %v2421 = vadd.f32 0.0, %v2420
      %v2422 = vpop.f32.mrb[0].mxu0
      %2423 = vmatprep.mubr.bf16.mxu0 0
      %2424 = vmatmul.mubr.bf16.gmra.mrb[0].mxu0 %v2335
      %v2425 = vpop.f32.mrb[0].mxu0
      %v2426 = vadd.f32 0.0, %v2425
      %v2427 = vpop.f32.mrb[0].mxu0
      %v2428 = vpop.f32.mrb[0].mxu0
      %v2429 = vadd.f32 0.0, %v2428
      %v2430 = vpop.f32.mrb[0].mxu0
      %2431 = vmatprep.mubr.bf16.mxu0 0
      %2432 = vmatmul.mubr.bf16.gmra.mrb[0].mxu0 %v2338
      %v2433 = vpop.f32.mrb[0].mxu0
      %v2434 = vadd.f32 0.0, %v2433
      %v2435 = vpop.f32.mrb[0].mxu0
      %v2436 = vpop.f32.mrb[0].mxu0
      %v2437 = vadd.f32 0.0, %v2436
      %v2438 = vpop.f32.mrb[0].mxu0
      %2439 = vmatprep.mubr.bf16.mxu0 0
      %2440 = vmatmul.mubr.bf16.gmra.mrb[0].mxu0 %v2341
      %v2441 = vpop.f32.mrb[0].mxu0
      %v2442 = vadd.f32 0.0, %v2441
      %v2443 = vpop.f32.mrb[0].mxu0
      %v2444 = vpop.f32.mrb[0].mxu0
      %v2445 = vpop.f32.mrb[0].mxu0
      %2446 = vdwg.mxu0
      %v2447 = vadd.f32 %v2216, %v2378
      %v2448 = vadd.f32 %v2217, %v2381
      %v2449 = vadd.f32 %v2218, %v2386
      %v2450 = vadd.f32 %v2219, %v2389
      %v2451 = vadd.f32 %v2220, %v2394
      %v2452 = vadd.f32 %v2221, %v2397
      %v2453 = vadd.f32 %v2222, %v2402
      %v2454 = vadd.f32 %v2223, %v2405
      %v2455 = vadd.f32 %v2224, %v2410
      %v2456 = vadd.f32 %v2225, %v2413
      %v2457 = vadd.f32 %v2226, %v2418
      %v2458 = vadd.f32 %v2227, %v2421
      %v2459 = vadd.f32 %v2228, %v2426
      %v2460 = vadd.f32 %v2229, %v2429
      %v2461 = vadd.f32 %v2230, %v2434
      %v2462 = vadd.f32 %v2231, %v2437
      %v2463 = vadd.f32 %v2232, %v2442
      %v2464 = vld [vmem:[#allocation2] sm:$0xc]
      %s2465 = scalar_lea.vmem %s3, 128
      %v2466 = vld [vmem:[%s2465] sm:$0xf]
      %v2467 = vld [vmem:[%s2465 + $0x4] sm:$0xf]
      %v2468 = vld [vmem:[%s2465 + $0x8] sm:$0xf]
      %v2469 = vld [vmem:[%s2465 + $0xc] sm:$0xf]
      %v2470 = vld [vmem:[%s2465 + $0x10] sm:$0xf]
      %v2471 = vld [vmem:[%s2465 + $0x14] sm:$0xf]
      %v2472 = vld [vmem:[%s2465 + $0x18] sm:$0xf]
      %v2473 = vld [vmem:[%s2465 + $0x1c] sm:$0xf]
      %v2475 = vunpack.c.l.b16 %v2464
      %v2476 = vpack.c.b16 %v1628, %v2475
      %vm2477 = vcmask 1045504
      %v2478 = vrot.slane %v2476, 2
      %v2479 = vrot.slane %v1646, 2
      %v2480 = vsel %vm2477, %v2478, %v2479
      %v2481 = vrot.slane %v1647, 2
      %v2482 = vsel %vm2477, %v2479, %v2481
      %v2483 = vrot.slane %v1648, 2
      %v2484 = vsel %vm2477, %v2481, %v2483
      %v2485 = vrot.slane %v1649, 2
      %v2486 = vsel %vm2477, %v2483, %v2485
      %v2487 = vrot.slane %v1650, 2
      %v2488 = vsel %vm2477, %v2485, %v2487
      %v2489 = vrot.slane %v1651, 2
      %v2490 = vsel %vm2477, %v2487, %v2489
      %v2491 = vrot.slane %v1652, 2
      %v2492 = vsel %vm2477, %v2489, %v2491
      %v2493 = vrot.slane %v2245, 2
      %v2494 = vsel %vm2477, %v2491, %v2493
      %v2503 = vunpack.c.l.b16 %v2466
      %v2504 = vunpack.c.l.b16 %v2467
      %v2505 = vunpack.c.l.b16 %v2468
      %v2506 = vunpack.c.l.b16 %v2469
      %v2507 = vunpack.c.l.b16 %v2470
      %v2508 = vunpack.c.l.b16 %v2471
      %v2509 = vunpack.c.l.b16 %v2472
      %v2510 = vunpack.c.l.b16 %v2473
      %v2511 = vpack.c.b16 %v2504, %v2503
      %v2512 = vpack.c.b16 %v2506, %v2505
      %v2513 = vpack.c.b16 %v2508, %v2507
      %v2514 = vpack.c.b16 %v2510, %v2509
      %v2520 = vsel %vm1750, %v2480, 0
      %v2523 = vsel %vm1750, %v2482, 0
      %v2526 = vsel %vm1750, %v2484, 0
      %v2529 = vsel %vm1750, %v2486, 0
      %v2532 = vsel %vm1750, %v2488, 0
      %v2535 = vsel %vm1750, %v2490, 0
      %v2538 = vsel %vm1750, %v2492, 0
      %v2541 = vsel %vm1750, %v2494, 0
      %v2544 = vsel %vm1750, %v2493, 0
      %2546 = vmatprep.subr.bf16.mxu0 0
      %2547 = vmatpush1.bf16.msra.mxu0 %v2511
      %2548 = vmatprep.subr.bf16.mxu0 0
      %2549 = vmatpush1.bf16.msra.mxu0 %v2512
      %2550 = vmatprep.subr.bf16.mxu0 0
      %2551 = vmatpush1.bf16.msra.mxu0 %v2513
      %2552 = vmatprep.subr.bf16.mxu0 0
      %2553 = vmatpush1.bf16.msra.mxu0 %v2514
      %2554 = vmatprep.subr.bf16.mxu0 0
      %2555 = vmatpush1.bf16.msra.mxu0 0
      %2556 = vmatprep.subr.bf16.mxu0 0
      %2557 = vmatpush1.bf16.msra.mxu0 0
      %2558 = vmatprep.subr.bf16.mxu0 0
      %2559 = vmatpush1.bf16.msra.mxu0 0
      %2560 = vmatprep.subr.bf16.mxu0 0
      %2561 = vmatpush1.bf16.msra.mxu0 0
      %2562 = vmatprep.subr.bf16.mxu0 0
      %2563 = vmatpush1.bf16.msra.mxu0 0
      %2564 = vmatprep.subr.bf16.mxu0 0
      %2565 = vmatpush1.bf16.msra.mxu0 0
      %2566 = vmatprep.subr.bf16.mxu0 0
      %2567 = vmatpush1.bf16.msra.mxu0 0
      %2568 = vmatprep.subr.bf16.mxu0 0
      %2569 = vmatpush1.bf16.msra.mxu0 0
      %2570 = vmatprep.subr.bf16.mxu0 0
      %2571 = vmatpush1.bf16.msra.mxu0 0
      %2572 = vmatprep.subr.bf16.mxu0 0
      %2573 = vmatpush1.bf16.msra.mxu0 0
      %2574 = vmatprep.subr.bf16.mxu0 0
      %2575 = vmatpush1.bf16.msra.mxu0 0
      %2576 = vmatprep.subr.bf16.mxu0 0
      %2577 = vmatpush1.bf16.msra.mxu0 0
      %2578 = vmatprep.mubr.bf16.mxu0 0
      %2579 = vmatmul.mubr.bf16.gmra.mrb[0].mxu0 %v2520
      %v2580 = vpop.f32.mrb[0].mxu0
      %v2581 = vadd.f32 0.0, %v2580
      %v2582 = vpop.f32.mrb[0].mxu0
      %v2583 = vpop.f32.mrb[0].mxu0
      %v2584 = vadd.f32 0.0, %v2583
      %v2585 = vpop.f32.mrb[0].mxu0
      %2586 = vmatprep.mubr.bf16.mxu0 0
      %2587 = vmatmul.mubr.bf16.gmra.mrb[0].mxu0 %v2523
      %v2588 = vpop.f32.mrb[0].mxu0
      %v2589 = vadd.f32 0.0, %v2588
      %v2590 = vpop.f32.mrb[0].mxu0
      %v2591 = vpop.f32.mrb[0].mxu0
      %v2592 = vadd.f32 0.0, %v2591
      %v2593 = vpop.f32.mrb[0].mxu0
      %2594 = vmatprep.mubr.bf16.mxu0 0
      %2595 = vmatmul.mubr.bf16.gmra.mrb[0].mxu0 %v2526
      %v2596 = vpop.f32.mrb[0].mxu0
      %v2597 = vadd.f32 0.0, %v2596
      %v2598 = vpop.f32.mrb[0].mxu0
      %v2599 = vpop.f32.mrb[0].mxu0
      %v2600 = vadd.f32 0.0, %v2599
      %v2601 = vpop.f32.mrb[0].mxu0
      %2602 = vmatprep.mubr.bf16.mxu0 0
      %2603 = vmatmul.mubr.bf16.gmra.mrb[0].mxu0 %v2529
      %v2604 = vpop.f32.mrb[0].mxu0
      %v2605 = vadd.f32 0.0, %v2604
      %v2606 = vpop.f32.mrb[0].mxu0
      %v2607 = vpop.f32.mrb[0].mxu0
      %v2608 = vadd.f32 0.0, %v2607
      %v2609 = vpop.f32.mrb[0].mxu0
      %2610 = vmatprep.mubr.bf16.mxu0 0
      %2611 = vmatmul.mubr.bf16.gmra.mrb[0].mxu0 %v2532
      %v2612 = vpop.f32.mrb[0].mxu0
      %v2613 = vadd.f32 0.0, %v2612
      %v2614 = vpop.f32.mrb[0].mxu0
      %v2615 = vpop.f32.mrb[0].mxu0
      %v2616 = vadd.f32 0.0, %v2615
      %v2617 = vpop.f32.mrb[0].mxu0
      %2618 = vmatprep.mubr.bf16.mxu0 0
      %2619 = vmatmul.mubr.bf16.gmra.mrb[0].mxu0 %v2535
      %v2620 = vpop.f32.mrb[0].mxu0
      %v2621 = vadd.f32 0.0, %v2620
      %v2622 = vpop.f32.mrb[0].mxu0
      %v2623 = vpop.f32.mrb[0].mxu0
      %v2624 = vadd.f32 0.0, %v2623
      %v2625 = vpop.f32.mrb[0].mxu0
      %2626 = vmatprep.mubr.bf16.mxu0 0
      %2627 = vmatmul.mubr.bf16.gmra.mrb[0].mxu0 %v2538
      %v2628 = vpop.f32.mrb[0].mxu0
      %v2629 = vadd.f32 0.0, %v2628
      %v2630 = vpop.f32.mrb[0].mxu0
      %v2631 = vpop.f32.mrb[0].mxu0
      %v2632 = vadd.f32 0.0, %v2631
      %v2633 = vpop.f32.mrb[0].mxu0
      %2634 = vmatprep.mubr.bf16.mxu0 0
      %2635 = vmatmul.mubr.bf16.gmra.mrb[0].mxu0 %v2541
      %v2636 = vpop.f32.mrb[0].mxu0
      %v2637 = vadd.f32 0.0, %v2636
      %v2638 = vpop.f32.mrb[0].mxu0
      %v2639 = vpop.f32.mrb[0].mxu0
      %v2640 = vadd.f32 0.0, %v2639
      %v2641 = vpop.f32.mrb[0].mxu0
      %2642 = vmatprep.mubr.bf16.mxu0 0
      %2643 = vmatmul.mubr.bf16.gmra.mrb[0].mxu0 %v2544
      %v2644 = vpop.f32.mrb[0].mxu0
      %v2645 = vadd.f32 0.0, %v2644
      %v2646 = vpop.f32.mrb[0].mxu0
      %v2647 = vpop.f32.mrb[0].mxu0
      %v2648 = vpop.f32.mrb[0].mxu0
      %2649 = vdwg.mxu0
      %v2650 = vadd.f32 %v2447, %v2581
      %v2651 = vadd.f32 %v2448, %v2584
      %v2652 = vadd.f32 %v2449, %v2589
      %v2653 = vadd.f32 %v2450, %v2592
      %v2654 = vadd.f32 %v2451, %v2597
      %v2655 = vadd.f32 %v2452, %v2600
      %v2656 = vadd.f32 %v2453, %v2605
      %v2657 = vadd.f32 %v2454, %v2608
      %v2658 = vadd.f32 %v2455, %v2613
      %v2659 = vadd.f32 %v2456, %v2616
      %v2660 = vadd.f32 %v2457, %v2621
      %v2661 = vadd.f32 %v2458, %v2624
      %v2662 = vadd.f32 %v2459, %v2629
      %v2663 = vadd.f32 %v2460, %v2632
      %v2664 = vadd.f32 %v2461, %v2637
      %v2665 = vadd.f32 %v2462, %v2640
      %v2666 = vadd.f32 %v2463, %v2645
      %v2667 = vld [vmem:[#allocation2 + $0x4] sm:$0x8]
      %v2668 = vld [vmem:[#allocation2 + $0x8] sm:$0xf]
      %v2669 = vld [vmem:[#allocation2 + $0xc] sm:$0xf]
      %v2670 = vld [vmem:[#allocation2 + $0x10] sm:$0xf]
      %v2671 = vld [vmem:[#allocation2 + $0x14] sm:$0xf]
      %v2672 = vld [vmem:[#allocation2 + $0x18] sm:$0xf]
      %v2673 = vld [vmem:[#allocation2 + $0x1c] sm:$0xf]
      %v2674 = vld [vmem:[#allocation2 + $0x20] sm:$0xf]
      %v2675 = vld [vmem:[#allocation2 + $0x24] sm:$0xf]
      %v2676 = vld [vmem:[#allocation2 + $0x28] sm:$0xf]
      %v2677 = vld [vmem:[#allocation2 + $0x2c] sm:$0xf]
      %v2678 = vld [vmem:[#allocation2 + $0x30] sm:$0xf]
      %v2679 = vld [vmem:[#allocation2 + $0x34] sm:$0xf]
      %v2680 = vld [vmem:[#allocation2 + $0x38] sm:$0xf]
      %v2681 = vld [vmem:[#allocation2 + $0x3c] sm:$0xf]
      %v2682 = vld [vmem:[#allocation2 + $0x40] sm:$0xf]
      %v2683 = vld [vmem:[#allocation2 + $0x44] sm:$0xf]
      %v2684 = vld [vmem:[#allocation2 + $0x48] sm:$0x7]
      %s2685 = scalar_lea.vmem %s3, 160
      %v2686 = vld [vmem:[%s2685] sm:$0xf]
      %v2687 = vld [vmem:[%s2685 + $0x4] sm:$0xf]
      %v2688 = vld [vmem:[%s2685 + $0x8] sm:$0xf]
      %v2689 = vld [vmem:[%s2685 + $0xc] sm:$0xf]
      %v2690 = vld [vmem:[%s2685 + $0x10] sm:$0xf]
      %v2691 = vld [vmem:[%s2685 + $0x14] sm:$0xf]
      %v2692 = vld [vmem:[%s2685 + $0x18] sm:$0xf]
      %v2693 = vld [vmem:[%s2685 + $0x1c] sm:$0xf]
      %v2712 = vunpack.c.l.b16 %v2667
      %v2713 = vunpack.c.l.b16 %v2668
      %v2714 = vunpack.c.l.b16 %v2669
      %v2715 = vunpack.c.l.b16 %v2670
      %v2716 = vunpack.c.l.b16 %v2671
      %v2717 = vunpack.c.l.b16 %v2672
      %v2718 = vunpack.c.l.b16 %v2673
      %v2719 = vunpack.c.l.b16 %v2674
      %v2720 = vunpack.c.l.b16 %v2675
      %v2721 = vunpack.c.l.b16 %v2676
      %v2722 = vunpack.c.l.b16 %v2677
      %v2723 = vunpack.c.l.b16 %v2678
      %v2724 = vunpack.c.l.b16 %v2679
      %v2725 = vunpack.c.l.b16 %v2680
      %v2726 = vunpack.c.l.b16 %v2681
      %v2727 = vunpack.c.l.b16 %v2682
      %v2728 = vunpack.c.l.b16 %v2683
      %v2729 = vunpack.c.l.b16 %v2684
      %v2730 = vpack.c.b16 %v2713, %v2712
      %v2731 = vpack.c.b16 %v2715, %v2714
      %v2732 = vpack.c.b16 %v2717, %v2716
      %v2733 = vpack.c.b16 %v2719, %v2718
      %v2734 = vpack.c.b16 %v2721, %v2720
      %v2735 = vpack.c.b16 %v2723, %v2722
      %v2736 = vpack.c.b16 %v2725, %v2724
      %v2737 = vpack.c.b16 %v2727, %v2726
      %v2738 = vpack.c.b16 %v2729, %v2728
      %vm2739 = vcmask 1044480
      %v2740 = vrot.slane %v2730, 3
      %v2741 = vrot.slane %v2731, 3
      %v2742 = vsel %vm2739, %v2740, %v2741
      %v2743 = vrot.slane %v2732, 3
      %v2744 = vsel %vm2739, %v2741, %v2743
      %v2745 = vrot.slane %v2733, 3
      %v2746 = vsel %vm2739, %v2743, %v2745
      %v2747 = vrot.slane %v2734, 3
      %v2748 = vsel %vm2739, %v2745, %v2747
      %v2749 = vrot.slane %v2735, 3
      %v2750 = vsel %vm2739, %v2747, %v2749
      %v2751 = vrot.slane %v2736, 3
      %v2752 = vsel %vm2739, %v2749, %v2751
      %v2753 = vrot.slane %v2737, 3
      %v2754 = vsel %vm2739, %v2751, %v2753
      %v2755 = vrot.slane %v2738, 3
      %v2756 = vsel %vm2739, %v2753, %v2755
      %v2765 = vunpack.c.l.b16 %v2686
      %v2766 = vunpack.c.l.b16 %v2687
      %v2767 = vunpack.c.l.b16 %v2688
      %v2768 = vunpack.c.l.b16 %v2689
      %v2769 = vunpack.c.l.b16 %v2690
      %v2770 = vunpack.c.l.b16 %v2691
      %v2771 = vunpack.c.l.b16 %v2692
      %v2772 = vunpack.c.l.b16 %v2693
      %v2773 = vpack.c.b16 %v2766, %v2765
      %v2774 = vpack.c.b16 %v2768, %v2767
      %v2775 = vpack.c.b16 %v2770, %v2769
      %v2776 = vpack.c.b16 %v2772, %v2771
      %v2782 = vsel %vm1750, %v2742, 0
      %v2785 = vsel %vm1750, %v2744, 0
      %v2788 = vsel %vm1750, %v2746, 0
      %v2791 = vsel %vm1750, %v2748, 0
      %v2794 = vsel %vm1750, %v2750, 0
      %v2797 = vsel %vm1750, %v2752, 0
      %v2800 = vsel %vm1750, %v2754, 0
      %v2803 = vsel %vm1750, %v2756, 0
      %v2806 = vsel %vm1750, %v2755, 0
      %2808 = vmatprep.subr.bf16.mxu0 0
      %2809 = vmatpush1.bf16.msra.mxu0 %v2773
      %2810 = vmatprep.subr.bf16.mxu0 0
      %2811 = vmatpush1.bf16.msra.mxu0 %v2774
      %2812 = vmatprep.subr.bf16.mxu0 0
      %2813 = vmatpush1.bf16.msra.mxu0 %v2775
      %2814 = vmatprep.subr.bf16.mxu0 0
      %2815 = vmatpush1.bf16.msra.mxu0 %v2776
      %2816 = vmatprep.subr.bf16.mxu0 0
      %2817 = vmatpush1.bf16.msra.mxu0 0
      %2818 = vmatprep.subr.bf16.mxu0 0
      %2819 = vmatpush1.bf16.msra.mxu0 0
      %2820 = vmatprep.subr.bf16.mxu0 0
      %2821 = vmatpush1.bf16.msra.mxu0 0
      %2822 = vmatprep.subr.bf16.mxu0 0
      %2823 = vmatpush1.bf16.msra.mxu0 0
      %2824 = vmatprep.subr.bf16.mxu0 0
      %2825 = vmatpush1.bf16.msra.mxu0 0
      %2826 = vmatprep.subr.bf16.mxu0 0
      %2827 = vmatpush1.bf16.msra.mxu0 0
      %2828 = vmatprep.subr.bf16.mxu0 0
      %2829 = vmatpush1.bf16.msra.mxu0 0
      %2830 = vmatprep.subr.bf16.mxu0 0
      %2831 = vmatpush1.bf16.msra.mxu0 0
      %2832 = vmatprep.subr.bf16.mxu0 0
      %2833 = vmatpush1.bf16.msra.mxu0 0
      %2834 = vmatprep.subr.bf16.mxu0 0
      %2835 = vmatpush1.bf16.msra.mxu0 0
      %2836 = vmatprep.subr.bf16.mxu0 0
      %2837 = vmatpush1.bf16.msra.mxu0 0
      %2838 = vmatprep.subr.bf16.mxu0 0
      %2839 = vmatpush1.bf16.msra.mxu0 0
      %2840 = vmatprep.mubr.bf16.mxu0 0
      %2841 = vmatmul.mubr.bf16.gmra.mrb[0].mxu0 %v2782
      %v2842 = vpop.f32.mrb[0].mxu0
      %v2843 = vadd.f32 0.0, %v2842
      %v2844 = vpop.f32.mrb[0].mxu0
      %v2845 = vpop.f32.mrb[0].mxu0
      %v2846 = vadd.f32 0.0, %v2845
      %v2847 = vpop.f32.mrb[0].mxu0
      %2848 = vmatprep.mubr.bf16.mxu0 0
      %2849 = vmatmul.mubr.bf16.gmra.mrb[0].mxu0 %v2785
      %v2850 = vpop.f32.mrb[0].mxu0
      %v2851 = vadd.f32 0.0, %v2850
      %v2852 = vpop.f32.mrb[0].mxu0
      %v2853 = vpop.f32.mrb[0].mxu0
      %v2854 = vadd.f32 0.0, %v2853
      %v2855 = vpop.f32.mrb[0].mxu0
      %2856 = vmatprep.mubr.bf16.mxu0 0
      %2857 = vmatmul.mubr.bf16.gmra.mrb[0].mxu0 %v2788
      %v2858 = vpop.f32.mrb[0].mxu0
      %v2859 = vadd.f32 0.0, %v2858
      %v2860 = vpop.f32.mrb[0].mxu0
      %v2861 = vpop.f32.mrb[0].mxu0
      %v2862 = vadd.f32 0.0, %v2861
      %v2863 = vpop.f32.mrb[0].mxu0
      %2864 = vmatprep.mubr.bf16.mxu0 0
      %2865 = vmatmul.mubr.bf16.gmra.mrb[0].mxu0 %v2791
      %v2866 = vpop.f32.mrb[0].mxu0
      %v2867 = vadd.f32 0.0, %v2866
      %v2868 = vpop.f32.mrb[0].mxu0
      %v2869 = vpop.f32.mrb[0].mxu0
      %v2870 = vadd.f32 0.0, %v2869
      %v2871 = vpop.f32.mrb[0].mxu0
      %2872 = vmatprep.mubr.bf16.mxu0 0
      %2873 = vmatmul.mubr.bf16.gmra.mrb[0].mxu0 %v2794
      %v2874 = vpop.f32.mrb[0].mxu0
      %v2875 = vadd.f32 0.0, %v2874
      %v2876 = vpop.f32.mrb[0].mxu0
      %v2877 = vpop.f32.mrb[0].mxu0
      %v2878 = vadd.f32 0.0, %v2877
      %v2879 = vpop.f32.mrb[0].mxu0
      %2880 = vmatprep.mubr.bf16.mxu0 0
      %2881 = vmatmul.mubr.bf16.gmra.mrb[0].mxu0 %v2797
      %v2882 = vpop.f32.mrb[0].mxu0
      %v2883 = vadd.f32 0.0, %v2882
      %v2884 = vpop.f32.mrb[0].mxu0
      %v2885 = vpop.f32.mrb[0].mxu0
      %v2886 = vadd.f32 0.0, %v2885
      %v2887 = vpop.f32.mrb[0].mxu0
      %2888 = vmatprep.mubr.bf16.mxu0 0
      %2889 = vmatmul.mubr.bf16.gmra.mrb[0].mxu0 %v2800
      %v2890 = vpop.f32.mrb[0].mxu0
      %v2891 = vadd.f32 0.0, %v2890
      %v2892 = vpop.f32.mrb[0].mxu0
      %v2893 = vpop.f32.mrb[0].mxu0
      %v2894 = vadd.f32 0.0, %v2893
      %v2895 = vpop.f32.mrb[0].mxu0
      %2896 = vmatprep.mubr.bf16.mxu0 0
      %2897 = vmatmul.mubr.bf16.gmra.mrb[0].mxu0 %v2803
      %v2898 = vpop.f32.mrb[0].mxu0
      %v2899 = vadd.f32 0.0, %v2898
      %v2900 = vpop.f32.mrb[0].mxu0
      %v2901 = vpop.f32.mrb[0].mxu0
      %v2902 = vadd.f32 0.0, %v2901
      %v2903 = vpop.f32.mrb[0].mxu0
      %2904 = vmatprep.mubr.bf16.mxu0 0
      %2905 = vmatmul.mubr.bf16.gmra.mrb[0].mxu0 %v2806
      %v2906 = vpop.f32.mrb[0].mxu0
      %v2907 = vadd.f32 0.0, %v2906
      %v2908 = vpop.f32.mrb[0].mxu0
      %v2909 = vpop.f32.mrb[0].mxu0
      %v2910 = vpop.f32.mrb[0].mxu0
      %2911 = vdwg.mxu0
      %v2912 = vadd.f32 %v2650, %v2843
      %v2913 = vadd.f32 %v2651, %v2846
      %v2914 = vadd.f32 %v2652, %v2851
      %v2915 = vadd.f32 %v2653, %v2854
      %v2916 = vadd.f32 %v2654, %v2859
      %v2917 = vadd.f32 %v2655, %v2862
      %v2918 = vadd.f32 %v2656, %v2867
      %v2919 = vadd.f32 %v2657, %v2870
      %v2920 = vadd.f32 %v2658, %v2875
      %v2921 = vadd.f32 %v2659, %v2878
      %v2922 = vadd.f32 %v2660, %v2883
      %v2923 = vadd.f32 %v2661, %v2886
      %v2924 = vadd.f32 %v2662, %v2891
      %v2925 = vadd.f32 %v2663, %v2894
      %v2926 = vadd.f32 %v2664, %v2899
      %v2927 = vadd.f32 %v2665, %v2902
      %v2928 = vadd.f32 %v2666, %v2907
      %v2929 = vld [vmem:[#allocation2 + $0x48] sm:$0xf]
      %s2930 = scalar_lea.vmem %s3, 192
      %v2931 = vld [vmem:[%s2930] sm:$0xf]
      %v2932 = vld [vmem:[%s2930 + $0x4] sm:$0xf]
      %v2933 = vld [vmem:[%s2930 + $0x8] sm:$0xf]
      %v2934 = vld [vmem:[%s2930 + $0xc] sm:$0xf]
      %v2935 = vld [vmem:[%s2930 + $0x10] sm:$0xf]
      %v2936 = vld [vmem:[%s2930 + $0x14] sm:$0xf]
      %v2937 = vld [vmem:[%s2930 + $0x18] sm:$0xf]
      %v2938 = vld [vmem:[%s2930 + $0x1c] sm:$0xf]
      %v2940 = vunpack.c.l.b16 %v2929
      %v2941 = vpack.c.b16 %v2940, %v2728
      %vm2942 = vsmask.f32 4352
      %v2944 = vshrl.u32 %v2730, 16
      %v2946 = vrot.slane %v2944, 3
      %v2947 = vshll.u32 %v2730, 16
      %v2949 = vrot.slane %v2947, 4
      %v2950 = vor.u32 %v2946, %v2949
      %v2952 = vshrl.u32 %v2731, 16
      %v2954 = vrot.slane %v2952, 3
      %v2955 = vshll.u32 %v2731, 16
      %v2957 = vrot.slane %v2955, 4
      %v2958 = vor.u32 %v2954, %v2957
      %v2959 = vsel %vm2942, %v2950, %v2958
      %v2961 = vshrl.u32 %v2732, 16
      %v2963 = vrot.slane %v2961, 3
      %v2964 = vshll.u32 %v2732, 16
      %v2966 = vrot.slane %v2964, 4
      %v2967 = vor.u32 %v2963, %v2966
      %v2968 = vsel %vm2942, %v2958, %v2967
      %v2970 = vshrl.u32 %v2733, 16
      %v2972 = vrot.slane %v2970, 3
      %v2973 = vshll.u32 %v2733, 16
      %v2975 = vrot.slane %v2973, 4
      %v2976 = vor.u32 %v2972, %v2975
      %v2977 = vsel %vm2942, %v2967, %v2976
      %v2979 = vshrl.u32 %v2734, 16
      %v2981 = vrot.slane %v2979, 3
      %v2982 = vshll.u32 %v2734, 16
      %v2984 = vrot.slane %v2982, 4
      %v2985 = vor.u32 %v2981, %v2984
      %v2986 = vsel %vm2942, %v2976, %v2985
      %v2988 = vshrl.u32 %v2735, 16
      %v2990 = vrot.slane %v2988, 3
      %v2991 = vshll.u32 %v2735, 16
      %v2993 = vrot.slane %v2991, 4
      %v2994 = vor.u32 %v2990, %v2993
      %v2995 = vsel %vm2942, %v2985, %v2994
      %v2997 = vshrl.u32 %v2736, 16
      %v2999 = vrot.slane %v2997, 3
      %v3000 = vshll.u32 %v2736, 16
      %v3002 = vrot.slane %v3000, 4
      %v3003 = vor.u32 %v2999, %v3002
      %v3004 = vsel %vm2942, %v2994, %v3003
      %v3006 = vshrl.u32 %v2737, 16
      %v3008 = vrot.slane %v3006, 3
      %v3009 = vshll.u32 %v2737, 16
      %v3011 = vrot.slane %v3009, 4
      %v3012 = vor.u32 %v3008, %v3011
      %v3013 = vsel %vm2942, %v3003, %v3012
      %v3015 = vshrl.u32 %v2941, 16
      %v3017 = vrot.slane %v3015, 3
      %v3018 = vshll.u32 %v2941, 16
      %v3020 = vrot.slane %v3018, 4
      %v3021 = vor.u32 %v3017, %v3020
      %v3022 = vsel %vm2942, %v3012, %v3021
      %v3031 = vunpack.c.l.b16 %v2931
      %v3032 = vunpack.c.l.b16 %v2932
      %v3033 = vunpack.c.l.b16 %v2933
      %v3034 = vunpack.c.l.b16 %v2934
      %v3035 = vunpack.c.l.b16 %v2935
      %v3036 = vunpack.c.l.b16 %v2936
      %v3037 = vunpack.c.l.b16 %v2937
      %v3038 = vunpack.c.l.b16 %v2938
      %v3039 = vpack.c.b16 %v3032, %v3031
      %v3040 = vpack.c.b16 %v3034, %v3033
      %v3041 = vpack.c.b16 %v3036, %v3035
      %v3042 = vpack.c.b16 %v3038, %v3037
      %v3048 = vsel %vm1750, %v2959, 0
      %v3051 = vsel %vm1750, %v2968, 0
      %v3054 = vsel %vm1750, %v2977, 0
      %v3057 = vsel %vm1750, %v2986, 0
      %v3060 = vsel %vm1750, %v2995, 0
      %v3063 = vsel %vm1750, %v3004, 0
      %v3066 = vsel %vm1750, %v3013, 0
      %v3069 = vsel %vm1750, %v3022, 0
      %v3072 = vsel %vm1750, %v3021, 0
      %3074 = vmatprep.subr.bf16.mxu0 0
      %3075 = vmatpush1.bf16.msra.mxu0 %v3039
      %3076 = vmatprep.subr.bf16.mxu0 0
      %3077 = vmatpush1.bf16.msra.mxu0 %v3040
      %3078 = vmatprep.subr.bf16.mxu0 0
      %3079 = vmatpush1.bf16.msra.mxu0 %v3041
      %3080 = vmatprep.subr.bf16.mxu0 0
      %3081 = vmatpush1.bf16.msra.mxu0 %v3042
      %3082 = vmatprep.subr.bf16.mxu0 0
      %3083 = vmatpush1.bf16.msra.mxu0 0
      %3084 = vmatprep.subr.bf16.mxu0 0
      %3085 = vmatpush1.bf16.msra.mxu0 0
      %3086 = vmatprep.subr.bf16.mxu0 0
      %3087 = vmatpush1.bf16.msra.mxu0 0
      %3088 = vmatprep.subr.bf16.mxu0 0
      %3089 = vmatpush1.bf16.msra.mxu0 0
      %3090 = vmatprep.subr.bf16.mxu0 0
      %3091 = vmatpush1.bf16.msra.mxu0 0
      %3092 = vmatprep.subr.bf16.mxu0 0
      %3093 = vmatpush1.bf16.msra.mxu0 0
      %3094 = vmatprep.subr.bf16.mxu0 0
      %3095 = vmatpush1.bf16.msra.mxu0 0
      %3096 = vmatprep.subr.bf16.mxu0 0
      %3097 = vmatpush1.bf16.msra.mxu0 0
      %3098 = vmatprep.subr.bf16.mxu0 0
      %3099 = vmatpush1.bf16.msra.mxu0 0
      %3100 = vmatprep.subr.bf16.mxu0 0
      %3101 = vmatpush1.bf16.msra.mxu0 0
      %3102 = vmatprep.subr.bf16.mxu0 0
      %3103 = vmatpush1.bf16.msra.mxu0 0
      %3104 = vmatprep.subr.bf16.mxu0 0
      %3105 = vmatpush1.bf16.msra.mxu0 0
      %3106 = vmatprep.mubr.bf16.mxu0 0
      %3107 = vmatmul.mubr.bf16.gmra.mrb[0].mxu0 %v3048
      %v3108 = vpop.f32.mrb[0].mxu0
      %v3109 = vadd.f32 0.0, %v3108
      %v3110 = vpop.f32.mrb[0].mxu0
      %v3111 = vpop.f32.mrb[0].mxu0
      %v3112 = vadd.f32 0.0, %v3111
      %v3113 = vpop.f32.mrb[0].mxu0
      %3114 = vmatprep.mubr.bf16.mxu0 0
      %3115 = vmatmul.mubr.bf16.gmra.mrb[0].mxu0 %v3051
      %v3116 = vpop.f32.mrb[0].mxu0
      %v3117 = vadd.f32 0.0, %v3116
      %v3118 = vpop.f32.mrb[0].mxu0
      %v3119 = vpop.f32.mrb[0].mxu0
      %v3120 = vadd.f32 0.0, %v3119
      %v3121 = vpop.f32.mrb[0].mxu0
      %3122 = vmatprep.mubr.bf16.mxu0 0
      %3123 = vmatmul.mubr.bf16.gmra.mrb[0].mxu0 %v3054
      %v3124 = vpop.f32.mrb[0].mxu0
      %v3125 = vadd.f32 0.0, %v3124
      %v3126 = vpop.f32.mrb[0].mxu0
      %v3127 = vpop.f32.mrb[0].mxu0
      %v3128 = vadd.f32 0.0, %v3127
      %v3129 = vpop.f32.mrb[0].mxu0
      %3130 = vmatprep.mubr.bf16.mxu0 0
      %3131 = vmatmul.mubr.bf16.gmra.mrb[0].mxu0 %v3057
      %v3132 = vpop.f32.mrb[0].mxu0
      %v3133 = vadd.f32 0.0, %v3132
      %v3134 = vpop.f32.mrb[0].mxu0
      %v3135 = vpop.f32.mrb[0].mxu0
      %v3136 = vadd.f32 0.0, %v3135
      %v3137 = vpop.f32.mrb[0].mxu0
      %3138 = vmatprep.mubr.bf16.mxu0 0
      %3139 = vmatmul.mubr.bf16.gmra.mrb[0].mxu0 %v3060
      %v3140 = vpop.f32.mrb[0].mxu0
      %v3141 = vadd.f32 0.0, %v3140
      %v3142 = vpop.f32.mrb[0].mxu0
      %v3143 = vpop.f32.mrb[0].mxu0
      %v3144 = vadd.f32 0.0, %v3143
      %v3145 = vpop.f32.mrb[0].mxu0
      %3146 = vmatprep.mubr.bf16.mxu0 0
      %3147 = vmatmul.mubr.bf16.gmra.mrb[0].mxu0 %v3063
      %v3148 = vpop.f32.mrb[0].mxu0
      %v3149 = vadd.f32 0.0, %v3148
      %v3150 = vpop.f32.mrb[0].mxu0
      %v3151 = vpop.f32.mrb[0].mxu0
      %v3152 = vadd.f32 0.0, %v3151
      %v3153 = vpop.f32.mrb[0].mxu0
      %3154 = vmatprep.mubr.bf16.mxu0 0
      %3155 = vmatmul.mubr.bf16.gmra.mrb[0].mxu0 %v3066
      %v3156 = vpop.f32.mrb[0].mxu0
      %v3157 = vadd.f32 0.0, %v3156
      %v3158 = vpop.f32.mrb[0].mxu0
      %v3159 = vpop.f32.mrb[0].mxu0
      %v3160 = vadd.f32 0.0, %v3159
      %v3161 = vpop.f32.mrb[0].mxu0
      %3162 = vmatprep.mubr.bf16.mxu0 0
      %3163 = vmatmul.mubr.bf16.gmra.mrb[0].mxu0 %v3069
      %v3164 = vpop.f32.mrb[0].mxu0
      %v3165 = vadd.f32 0.0, %v3164
      %v3166 = vpop.f32.mrb[0].mxu0
      %v3167 = vpop.f32.mrb[0].mxu0
      %v3168 = vadd.f32 0.0, %v3167
      %v3169 = vpop.f32.mrb[0].mxu0
      %3170 = vmatprep.mubr.bf16.mxu0 0
      %3171 = vmatmul.mubr.bf16.gmra.mrb[0].mxu0 %v3072
      %v3172 = vpop.f32.mrb[0].mxu0
      %v3173 = vadd.f32 0.0, %v3172
      %v3174 = vpop.f32.mrb[0].mxu0
      %v3175 = vpop.f32.mrb[0].mxu0
      %v3176 = vpop.f32.mrb[0].mxu0
      %3177 = vdwg.mxu0
      %v3178 = vadd.f32 %v2912, %v3109
      %v3179 = vadd.f32 %v2913, %v3112
      %v3180 = vadd.f32 %v2914, %v3117
      %v3181 = vadd.f32 %v2915, %v3120
      %v3182 = vadd.f32 %v2916, %v3125
      %v3183 = vadd.f32 %v2917, %v3128
      %v3184 = vadd.f32 %v2918, %v3133
      %v3185 = vadd.f32 %v2919, %v3136
      %v3186 = vadd.f32 %v2920, %v3141
      %v3187 = vadd.f32 %v2921, %v3144
      %v3188 = vadd.f32 %v2922, %v3149
      %v3189 = vadd.f32 %v2923, %v3152
      %v3190 = vadd.f32 %v2924, %v3157
      %v3191 = vadd.f32 %v2925, %v3160
      %v3192 = vadd.f32 %v2926, %v3165
      %v3193 = vadd.f32 %v2927, %v3168
      %v3194 = vadd.f32 %v2928, %v3173
      %s3195 = scalar_lea.vmem %s3, 224
      %v3196 = vld [vmem:[%s3195] sm:$0xf]
      %v3197 = vld [vmem:[%s3195 + $0x4] sm:$0xf]
      %v3198 = vld [vmem:[%s3195 + $0x8] sm:$0xf]
      %v3199 = vld [vmem:[%s3195 + $0xc] sm:$0xf]
      %v3200 = vld [vmem:[%s3195 + $0x10] sm:$0xf]
      %v3201 = vld [vmem:[%s3195 + $0x14] sm:$0xf]
      %v3202 = vld [vmem:[%s3195 + $0x18] sm:$0xf]
      %v3203 = vld [vmem:[%s3195 + $0x1c] sm:$0xf]
      %v3204 = vpack.c.b16 %v2714, %v2713
      %v3205 = vpack.c.b16 %v2716, %v2715
      %v3206 = vpack.c.b16 %v2718, %v2717
      %v3207 = vpack.c.b16 %v2720, %v2719
      %v3208 = vpack.c.b16 %v2722, %v2721
      %v3209 = vpack.c.b16 %v2724, %v2723
      %v3210 = vpack.c.b16 %v2726, %v2725
      %v3211 = vpack.c.b16 %v2728, %v2727
      %v3212 = vpack.c.b16 %v2940, %v2940
      %v3221 = vunpack.c.l.b16 %v3196
      %v3222 = vunpack.c.l.b16 %v3197
      %v3223 = vunpack.c.l.b16 %v3198
      %v3224 = vunpack.c.l.b16 %v3199
      %v3225 = vunpack.c.l.b16 %v3200
      %v3226 = vunpack.c.l.b16 %v3201
      %v3227 = vunpack.c.l.b16 %v3202
      %v3228 = vunpack.c.l.b16 %v3203
      %v3229 = vpack.c.b16 %v3222, %v3221
      %v3230 = vpack.c.b16 %v3224, %v3223
      %v3231 = vpack.c.b16 %v3226, %v3225
      %v3232 = vpack.c.b16 %v3228, %v3227
      %v3238 = vsel %vm1750, %v3204, 0
      %v3241 = vsel %vm1750, %v3205, 0
      %v3244 = vsel %vm1750, %v3206, 0
      %v3247 = vsel %vm1750, %v3207, 0
      %v3250 = vsel %vm1750, %v3208, 0
      %v3253 = vsel %vm1750, %v3209, 0
      %v3256 = vsel %vm1750, %v3210, 0
      %v3259 = vsel %vm1750, %v3211, 0
      %v3262 = vsel %vm1750, %v3212, 0
      %3264 = vmatprep.subr.bf16.mxu0 0
      %3265 = vmatpush1.bf16.msra.mxu0 %v3229
      %3266 = vmatprep.subr.bf16.mxu0 0
      %3267 = vmatpush1.bf16.msra.mxu0 %v3230
      %3268 = vmatprep.subr.bf16.mxu0 0
      %3269 = vmatpush1.bf16.msra.mxu0 %v3231
      %3270 = vmatprep.subr.bf16.mxu0 0
      %3271 = vmatpush1.bf16.msra.mxu0 %v3232
      %3272 = vmatprep.subr.bf16.mxu0 0
      %3273 = vmatpush1.bf16.msra.mxu0 0
      %3274 = vmatprep.subr.bf16.mxu0 0
      %3275 = vmatpush1.bf16.msra.mxu0 0
      %3276 = vmatprep.subr.bf16.mxu0 0
      %3277 = vmatpush1.bf16.msra.mxu0 0
      %3278 = vmatprep.subr.bf16.mxu0 0
      %3279 = vmatpush1.bf16.msra.mxu0 0
      %3280 = vmatprep.subr.bf16.mxu0 0
      %3281 = vmatpush1.bf16.msra.mxu0 0
      %3282 = vmatprep.subr.bf16.mxu0 0
      %3283 = vmatpush1.bf16.msra.mxu0 0
      %3284 = vmatprep.subr.bf16.mxu0 0
      %3285 = vmatpush1.bf16.msra.mxu0 0
      %3286 = vmatprep.subr.bf16.mxu0 0
      %3287 = vmatpush1.bf16.msra.mxu0 0
      %3288 = vmatprep.subr.bf16.mxu0 0
      %3289 = vmatpush1.bf16.msra.mxu0 0
      %3290 = vmatprep.subr.bf16.mxu0 0
      %3291 = vmatpush1.bf16.msra.mxu0 0
      %3292 = vmatprep.subr.bf16.mxu0 0
      %3293 = vmatpush1.bf16.msra.mxu0 0
      %3294 = vmatprep.subr.bf16.mxu0 0
      %3295 = vmatpush1.bf16.msra.mxu0 0
      %3296 = vmatprep.mubr.bf16.mxu0 0
      %3297 = vmatmul.mubr.bf16.gmra.mrb[0].mxu0 %v3238
      %v3298 = vpop.f32.mrb[0].mxu0
      %v3299 = vadd.f32 0.0, %v3298
      %v3300 = vpop.f32.mrb[0].mxu0
      %v3301 = vpop.f32.mrb[0].mxu0
      %v3302 = vadd.f32 0.0, %v3301
      %v3303 = vpop.f32.mrb[0].mxu0
      %3304 = vmatprep.mubr.bf16.mxu0 0
      %3305 = vmatmul.mubr.bf16.gmra.mrb[0].mxu0 %v3241
      %v3306 = vpop.f32.mrb[0].mxu0
      %v3307 = vadd.f32 0.0, %v3306
      %v3308 = vpop.f32.mrb[0].mxu0
      %v3309 = vpop.f32.mrb[0].mxu0
      %v3310 = vadd.f32 0.0, %v3309
      %v3311 = vpop.f32.mrb[0].mxu0
      %3312 = vmatprep.mubr.bf16.mxu0 0
      %3313 = vmatmul.mubr.bf16.gmra.mrb[0].mxu0 %v3244
      %v3314 = vpop.f32.mrb[0].mxu0
      %v3315 = vadd.f32 0.0, %v3314
      %v3316 = vpop.f32.mrb[0].mxu0
      %v3317 = vpop.f32.mrb[0].mxu0
      %v3318 = vadd.f32 0.0, %v3317
      %v3319 = vpop.f32.mrb[0].mxu0
      %3320 = vmatprep.mubr.bf16.mxu0 0
      %3321 = vmatmul.mubr.bf16.gmra.mrb[0].mxu0 %v3247
      %v3322 = vpop.f32.mrb[0].mxu0
      %v3323 = vadd.f32 0.0, %v3322
      %v3324 = vpop.f32.mrb[0].mxu0
      %v3325 = vpop.f32.mrb[0].mxu0
      %v3326 = vadd.f32 0.0, %v3325
      %v3327 = vpop.f32.mrb[0].mxu0
      %3328 = vmatprep.mubr.bf16.mxu0 0
      %3329 = vmatmul.mubr.bf16.gmra.mrb[0].mxu0 %v3250
      %v3330 = vpop.f32.mrb[0].mxu0
      %v3331 = vadd.f32 0.0, %v3330
      %v3332 = vpop.f32.mrb[0].mxu0
      %v3333 = vpop.f32.mrb[0].mxu0
      %v3334 = vadd.f32 0.0, %v3333
      %v3335 = vpop.f32.mrb[0].mxu0
      %3336 = vmatprep.mubr.bf16.mxu0 0
      %3337 = vmatmul.mubr.bf16.gmra.mrb[0].mxu0 %v3253
      %v3338 = vpop.f32.mrb[0].mxu0
      %v3339 = vadd.f32 0.0, %v3338
      %v3340 = vpop.f32.mrb[0].mxu0
      %v3341 = vpop.f32.mrb[0].mxu0
      %v3342 = vadd.f32 0.0, %v3341
      %v3343 = vpop.f32.mrb[0].mxu0
      %3344 = vmatprep.mubr.bf16.mxu0 0
      %3345 = vmatmul.mubr.bf16.gmra.mrb[0].mxu0 %v3256
      %v3346 = vpop.f32.mrb[0].mxu0
      %v3347 = vadd.f32 0.0, %v3346
      %v3348 = vpop.f32.mrb[0].mxu0
      %v3349 = vpop.f32.mrb[0].mxu0
      %v3350 = vadd.f32 0.0, %v3349
      %v3351 = vpop.f32.mrb[0].mxu0
      %3352 = vmatprep.mubr.bf16.mxu0 0
      %3353 = vmatmul.mubr.bf16.gmra.mrb[0].mxu0 %v3259
      %v3354 = vpop.f32.mrb[0].mxu0
      %v3355 = vadd.f32 0.0, %v3354
      %v3356 = vpop.f32.mrb[0].mxu0
      %v3357 = vpop.f32.mrb[0].mxu0
      %v3358 = vadd.f32 0.0, %v3357
      %v3359 = vpop.f32.mrb[0].mxu0
      %3360 = vmatprep.mubr.bf16.mxu0 0
      %3361 = vmatmul.mubr.bf16.gmra.mrb[0].mxu0 %v3262
      %v3362 = vpop.f32.mrb[0].mxu0
      %v3363 = vadd.f32 0.0, %v3362
      %v3364 = vpop.f32.mrb[0].mxu0
      %v3365 = vpop.f32.mrb[0].mxu0
      %v3366 = vpop.f32.mrb[0].mxu0
      %3367 = vdwg.mxu0
      %v3368 = vadd.f32 %v3178, %v3299
      %v3369 = vadd.f32 %v3179, %v3302
      %v3370 = vadd.f32 %v3180, %v3307
      %v3371 = vadd.f32 %v3181, %v3310
      %v3372 = vadd.f32 %v3182, %v3315
      %v3373 = vadd.f32 %v3183, %v3318
      %v3374 = vadd.f32 %v3184, %v3323
      %v3375 = vadd.f32 %v3185, %v3326
      %v3376 = vadd.f32 %v3186, %v3331
      %v3377 = vadd.f32 %v3187, %v3334
      %v3378 = vadd.f32 %v3188, %v3339
      %v3379 = vadd.f32 %v3189, %v3342
      %v3380 = vadd.f32 %v3190, %v3347
      %v3381 = vadd.f32 %v3191, %v3350
      %v3382 = vadd.f32 %v3192, %v3355
      %v3383 = vadd.f32 %v3193, %v3358
      %v3384 = vadd.f32 %v3194, %v3363
      %v3385 = vld [vmem:[#allocation2 + $0x8] sm:$0xf]
      %v3386 = vld [vmem:[#allocation2 + $0xc] sm:$0xf]
      %v3387 = vld [vmem:[#allocation2 + $0x10] sm:$0xf]
      %v3388 = vld [vmem:[#allocation2 + $0x14] sm:$0xf]
      %v3389 = vld [vmem:[#allocation2 + $0x18] sm:$0xf]
      %v3390 = vld [vmem:[#allocation2 + $0x1c] sm:$0xf]
      %v3391 = vld [vmem:[#allocation2 + $0x20] sm:$0xf]
      %v3392 = vld [vmem:[#allocation2 + $0x24] sm:$0xf]
      %v3393 = vld [vmem:[#allocation2 + $0x28] sm:$0xf]
      %v3394 = vld [vmem:[#allocation2 + $0x2c] sm:$0xf]
      %v3395 = vld [vmem:[#allocation2 + $0x30] sm:$0xf]
      %v3396 = vld [vmem:[#allocation2 + $0x34] sm:$0xf]
      %v3397 = vld [vmem:[#allocation2 + $0x38] sm:$0xf]
      %v3398 = vld [vmem:[#allocation2 + $0x3c] sm:$0xf]
      %v3399 = vld [vmem:[#allocation2 + $0x40] sm:$0xf]
      %v3400 = vld [vmem:[#allocation2 + $0x44] sm:$0xf]
      %v3401 = vld [vmem:[#allocation2 + $0x48] sm:$0xf]
      %v3402 = vld [vmem:[#allocation2 + $0x4c] sm:$0x1]
      %s3403 = scalar_lea.vmem %s3, 256
      %v3404 = vld [vmem:[%s3403] sm:$0xf]
      %v3405 = vld [vmem:[%s3403 + $0x4] sm:$0xf]
      %v3406 = vld [vmem:[%s3403 + $0x8] sm:$0xf]
      %v3407 = vld [vmem:[%s3403 + $0xc] sm:$0xf]
      %v3408 = vld [vmem:[%s3403 + $0x10] sm:$0xf]
      %v3409 = vld [vmem:[%s3403 + $0x14] sm:$0xf]
      %v3410 = vld [vmem:[%s3403 + $0x18] sm:$0xf]
      %v3411 = vld [vmem:[%s3403 + $0x1c] sm:$0xf]
      %v3430 = vunpack.c.l.b16 %v3385
      %v3431 = vunpack.c.l.b16 %v3386
      %v3432 = vunpack.c.l.b16 %v3387
      %v3433 = vunpack.c.l.b16 %v3388
      %v3434 = vunpack.c.l.b16 %v3389
      %v3435 = vunpack.c.l.b16 %v3390
      %v3436 = vunpack.c.l.b16 %v3391
      %v3437 = vunpack.c.l.b16 %v3392
      %v3438 = vunpack.c.l.b16 %v3393
      %v3439 = vunpack.c.l.b16 %v3394
      %v3440 = vunpack.c.l.b16 %v3395
      %v3441 = vunpack.c.l.b16 %v3396
      %v3442 = vunpack.c.l.b16 %v3397
      %v3443 = vunpack.c.l.b16 %v3398
      %v3444 = vunpack.c.l.b16 %v3399
      %v3445 = vunpack.c.l.b16 %v3400
      %v3446 = vunpack.c.l.b16 %v3401
      %v3447 = vunpack.c.l.b16 %v3402
      %v3448 = vpack.c.b16 %v3431, %v3430
      %v3449 = vpack.c.b16 %v3433, %v3432
      %v3450 = vpack.c.b16 %v3435, %v3434
      %v3451 = vpack.c.b16 %v3437, %v3436
      %v3452 = vpack.c.b16 %v3439, %v3438
      %v3453 = vpack.c.b16 %v3441, %v3440
      %v3454 = vpack.c.b16 %v3443, %v3442
      %v3455 = vpack.c.b16 %v3445, %v3444
      %v3456 = vpack.c.b16 %v3447, %v3446
      %v3458 = vshrl.u32 %v3448, 16
      %v3460 = vshll.u32 %v3448, 16
      %v3462 = vrot.slane %v3460, 1
      %v3463 = vor.u32 %v3458, %v3462
      %v3465 = vshll.u32 %v3449, 16
      %v3467 = vrot.slane %v3465, 1
      %v3468 = vsel %vm1654, %v3463, %v3467
      %v3469 = vshrl.u32 %v3449, 16
      %v3471 = vor.u32 %v3469, %v3467
      %v3473 = vshll.u32 %v3450, 16
      %v3475 = vrot.slane %v3473, 1
      %v3476 = vsel %vm1654, %v3471, %v3475
      %v3477 = vshrl.u32 %v3450, 16
      %v3479 = vor.u32 %v3477, %v3475
      %v3481 = vshll.u32 %v3451, 16
      %v3483 = vrot.slane %v3481, 1
      %v3484 = vsel %vm1654, %v3479, %v3483
      %v3485 = vshrl.u32 %v3451, 16
      %v3487 = vor.u32 %v3485, %v3483
      %v3489 = vshll.u32 %v3452, 16
      %v3491 = vrot.slane %v3489, 1
      %v3492 = vsel %vm1654, %v3487, %v3491
      %v3493 = vshrl.u32 %v3452, 16
      %v3495 = vor.u32 %v3493, %v3491
      %v3497 = vshll.u32 %v3453, 16
      %v3499 = vrot.slane %v3497, 1
      %v3500 = vsel %vm1654, %v3495, %v3499
      %v3501 = vshrl.u32 %v3453, 16
      %v3503 = vor.u32 %v3501, %v3499
      %v3505 = vshll.u32 %v3454, 16
      %v3507 = vrot.slane %v3505, 1
      %v3508 = vsel %vm1654, %v3503, %v3507
      %v3509 = vshrl.u32 %v3454, 16
      %v3511 = vor.u32 %v3509, %v3507
      %v3513 = vshll.u32 %v3455, 16
      %v3515 = vrot.slane %v3513, 1
      %v3516 = vsel %vm1654, %v3511, %v3515
      %v3517 = vshrl.u32 %v3455, 16
      %v3519 = vor.u32 %v3517, %v3515
      %v3521 = vshll.u32 %v3456, 16
      %v3523 = vrot.slane %v3521, 1
      %v3524 = vsel %vm1654, %v3519, %v3523
      %v3525 = vshrl.u32 %v3456, 16
      %v3527 = vor.u32 %v3525, %v3523
      %v3536 = vunpack.c.l.b16 %v3404
      %v3537 = vunpack.c.l.b16 %v3405
      %v3538 = vunpack.c.l.b16 %v3406
      %v3539 = vunpack.c.l.b16 %v3407
      %v3540 = vunpack.c.l.b16 %v3408
      %v3541 = vunpack.c.l.b16 %v3409
      %v3542 = vunpack.c.l.b16 %v3410
      %v3543 = vunpack.c.l.b16 %v3411
      %v3544 = vpack.c.b16 %v3537, %v3536
      %v3545 = vpack.c.b16 %v3539, %v3538
      %v3546 = vpack.c.b16 %v3541, %v3540
      %v3547 = vpack.c.b16 %v3543, %v3542
      %v3553 = vsel %vm1750, %v3468, 0
      %v3556 = vsel %vm1750, %v3476, 0
      %v3559 = vsel %vm1750, %v3484, 0
      %v3562 = vsel %vm1750, %v3492, 0
      %v3565 = vsel %vm1750, %v3500, 0
      %v3568 = vsel %vm1750, %v3508, 0
      %v3571 = vsel %vm1750, %v3516, 0
      %v3574 = vsel %vm1750, %v3524, 0
      %v3577 = vsel %vm1750, %v3527, 0
      %3579 = vmatprep.subr.bf16.mxu0 0
      %3580 = vmatpush1.bf16.msra.mxu0 %v3544
      %3581 = vmatprep.subr.bf16.mxu0 0
      %3582 = vmatpush1.bf16.msra.mxu0 %v3545
      %3583 = vmatprep.subr.bf16.mxu0 0
      %3584 = vmatpush1.bf16.msra.mxu0 %v3546
      %3585 = vmatprep.subr.bf16.mxu0 0
      %3586 = vmatpush1.bf16.msra.mxu0 %v3547
      %3587 = vmatprep.subr.bf16.mxu0 0
      %3588 = vmatpush1.bf16.msra.mxu0 0
      %3589 = vmatprep.subr.bf16.mxu0 0
      %3590 = vmatpush1.bf16.msra.mxu0 0
      %3591 = vmatprep.subr.bf16.mxu0 0
      %3592 = vmatpush1.bf16.msra.mxu0 0
      %3593 = vmatprep.subr.bf16.mxu0 0
      %3594 = vmatpush1.bf16.msra.mxu0 0
      %3595 = vmatprep.subr.bf16.mxu0 0
      %3596 = vmatpush1.bf16.msra.mxu0 0
      %3597 = vmatprep.subr.bf16.mxu0 0
      %3598 = vmatpush1.bf16.msra.mxu0 0
      %3599 = vmatprep.subr.bf16.mxu0 0
      %3600 = vmatpush1.bf16.msra.mxu0 0
      %3601 = vmatprep.subr.bf16.mxu0 0
      %3602 = vmatpush1.bf16.msra.mxu0 0
      %3603 = vmatprep.subr.bf16.mxu0 0
      %3604 = vmatpush1.bf16.msra.mxu0 0
      %3605 = vmatprep.subr.bf16.mxu0 0
      %3606 = vmatpush1.bf16.msra.mxu0 0
      %3607 = vmatprep.subr.bf16.mxu0 0
      %3608 = vmatpush1.bf16.msra.mxu0 0
      %3609 = vmatprep.subr.bf16.mxu0 0
      %3610 = vmatpush1.bf16.msra.mxu0 0
      %3611 = vmatprep.mubr.bf16.mxu0 0
      %3612 = vmatmul.mubr.bf16.gmra.mrb[0].mxu0 %v3553
      %v3613 = vpop.f32.mrb[0].mxu0
      %v3614 = vadd.f32 0.0, %v3613
      %v3615 = vpop.f32.mrb[0].mxu0
      %v3616 = vpop.f32.mrb[0].mxu0
      %v3617 = vadd.f32 0.0, %v3616
      %v3618 = vpop.f32.mrb[0].mxu0
      %3619 = vmatprep.mubr.bf16.mxu0 0
      %3620 = vmatmul.mubr.bf16.gmra.mrb[0].mxu0 %v3556
      %v3621 = vpop.f32.mrb[0].mxu0
      %v3622 = vadd.f32 0.0, %v3621
      %v3623 = vpop.f32.mrb[0].mxu0
      %v3624 = vpop.f32.mrb[0].mxu0
      %v3625 = vadd.f32 0.0, %v3624
      %v3626 = vpop.f32.mrb[0].mxu0
      %3627 = vmatprep.mubr.bf16.mxu0 0
      %3628 = vmatmul.mubr.bf16.gmra.mrb[0].mxu0 %v3559
      %v3629 = vpop.f32.mrb[0].mxu0
      %v3630 = vadd.f32 0.0, %v3629
      %v3631 = vpop.f32.mrb[0].mxu0
      %v3632 = vpop.f32.mrb[0].mxu0
      %v3633 = vadd.f32 0.0, %v3632
      %v3634 = vpop.f32.mrb[0].mxu0
      %3635 = vmatprep.mubr.bf16.mxu0 0
      %3636 = vmatmul.mubr.bf16.gmra.mrb[0].mxu0 %v3562
      %v3637 = vpop.f32.mrb[0].mxu0
      %v3638 = vadd.f32 0.0, %v3637
      %v3639 = vpop.f32.mrb[0].mxu0
      %v3640 = vpop.f32.mrb[0].mxu0
      %v3641 = vadd.f32 0.0, %v3640
      %v3642 = vpop.f32.mrb[0].mxu0
      %3643 = vmatprep.mubr.bf16.mxu0 0
      %3644 = vmatmul.mubr.bf16.gmra.mrb[0].mxu0 %v3565
      %v3645 = vpop.f32.mrb[0].mxu0
      %v3646 = vadd.f32 0.0, %v3645
      %v3647 = vpop.f32.mrb[0].mxu0
      %v3648 = vpop.f32.mrb[0].mxu0
      %v3649 = vadd.f32 0.0, %v3648
      %v3650 = vpop.f32.mrb[0].mxu0
      %3651 = vmatprep.mubr.bf16.mxu0 0
      %3652 = vmatmul.mubr.bf16.gmra.mrb[0].mxu0 %v3568
      %v3653 = vpop.f32.mrb[0].mxu0
      %v3654 = vadd.f32 0.0, %v3653
      %v3655 = vpop.f32.mrb[0].mxu0
      %v3656 = vpop.f32.mrb[0].mxu0
      %v3657 = vadd.f32 0.0, %v3656
      %v3658 = vpop.f32.mrb[0].mxu0
      %3659 = vmatprep.mubr.bf16.mxu0 0
      %3660 = vmatmul.mubr.bf16.gmra.mrb[0].mxu0 %v3571
      %v3661 = vpop.f32.mrb[0].mxu0
      %v3662 = vadd.f32 0.0, %v3661
      %v3663 = vpop.f32.mrb[0].mxu0
      %v3664 = vpop.f32.mrb[0].mxu0
      %v3665 = vadd.f32 0.0, %v3664
      %v3666 = vpop.f32.mrb[0].mxu0
      %3667 = vmatprep.mubr.bf16.mxu0 0
      %3668 = vmatmul.mubr.bf16.gmra.mrb[0].mxu0 %v3574
      %v3669 = vpop.f32.mrb[0].mxu0
      %v3670 = vadd.f32 0.0, %v3669
      %v3671 = vpop.f32.mrb[0].mxu0
      %v3672 = vpop.f32.mrb[0].mxu0
      %v3673 = vadd.f32 0.0, %v3672
      %v3674 = vpop.f32.mrb[0].mxu0
      %3675 = vmatprep.mubr.bf16.mxu0 0
      %3676 = vmatmul.mubr.bf16.gmra.mrb[0].mxu0 %v3577
      %v3677 = vpop.f32.mrb[0].mxu0
      %v3678 = vadd.f32 0.0, %v3677
      %v3679 = vpop.f32.mrb[0].mxu0
      %v3680 = vpop.f32.mrb[0].mxu0
      %v3681 = vpop.f32.mrb[0].mxu0
      %3682 = vdwg.mxu0
      %v3683 = vadd.f32 %v3368, %v3614
      %v3684 = vadd.f32 %v3369, %v3617
      %v3685 = vadd.f32 %v3370, %v3622
      %v3686 = vadd.f32 %v3371, %v3625
      %v3687 = vadd.f32 %v3372, %v3630
      %v3688 = vadd.f32 %v3373, %v3633
      %v3689 = vadd.f32 %v3374, %v3638
      %v3690 = vadd.f32 %v3375, %v3641
      %v3691 = vadd.f32 %v3376, %v3646
      %v3692 = vadd.f32 %v3377, %v3649
      %v3693 = vadd.f32 %v3378, %v3654
      %v3694 = vadd.f32 %v3379, %v3657
      %v3695 = vadd.f32 %v3380, %v3662
      %v3696 = vadd.f32 %v3381, %v3665
      %v3697 = vadd.f32 %v3382, %v3670
      %v3698 = vadd.f32 %v3383, %v3673
      %v3699 = vadd.f32 %v3384, %v3678
      %v3700 = vld [vmem:[#allocation2 + $0x8] sm:$0xe]
      %s3701 = scalar_lea.vmem %s3, 288
      %v3702 = vld [vmem:[%s3701] sm:$0xf]
      %v3703 = vld [vmem:[%s3701 + $0x4] sm:$0xf]
      %v3704 = vld [vmem:[%s3701 + $0x8] sm:$0xf]
      %v3705 = vld [vmem:[%s3701 + $0xc] sm:$0xf]
      %v3706 = vld [vmem:[%s3701 + $0x10] sm:$0xf]
      %v3707 = vld [vmem:[%s3701 + $0x14] sm:$0xf]
      %v3708 = vld [vmem:[%s3701 + $0x18] sm:$0xf]
      %v3709 = vld [vmem:[%s3701 + $0x1c] sm:$0xf]
      %v3711 = vunpack.c.l.b16 %v3700
      %v3712 = vpack.c.b16 %v3431, %v3711
      %v3713 = vrot.slane %v3712, 1
      %v3714 = vrot.slane %v3449, 1
      %v3715 = vsel %vm2043, %v3713, %v3714
      %v3716 = vrot.slane %v3450, 1
      %v3717 = vsel %vm2043, %v3714, %v3716
      %v3718 = vrot.slane %v3451, 1
      %v3719 = vsel %vm2043, %v3716, %v3718
      %v3720 = vrot.slane %v3452, 1
      %v3721 = vsel %vm2043, %v3718, %v3720
      %v3722 = vrot.slane %v3453, 1
      %v3723 = vsel %vm2043, %v3720, %v3722
      %v3724 = vrot.slane %v3454, 1
      %v3725 = vsel %vm2043, %v3722, %v3724
      %v3726 = vrot.slane %v3455, 1
      %v3727 = vsel %vm2043, %v3724, %v3726
      %v3728 = vrot.slane %v3456, 1
      %v3729 = vsel %vm2043, %v3726, %v3728
      %v3738 = vunpack.c.l.b16 %v3702
      %v3739 = vunpack.c.l.b16 %v3703
      %v3740 = vunpack.c.l.b16 %v3704
      %v3741 = vunpack.c.l.b16 %v3705
      %v3742 = vunpack.c.l.b16 %v3706
      %v3743 = vunpack.c.l.b16 %v3707
      %v3744 = vunpack.c.l.b16 %v3708
      %v3745 = vunpack.c.l.b16 %v3709
      %v3746 = vpack.c.b16 %v3739, %v3738
      %v3747 = vpack.c.b16 %v3741, %v3740
      %v3748 = vpack.c.b16 %v3743, %v3742
      %v3749 = vpack.c.b16 %v3745, %v3744
      %v3755 = vsel %vm1750, %v3715, 0
      %v3758 = vsel %vm1750, %v3717, 0
      %v3761 = vsel %vm1750, %v3719, 0
      %v3764 = vsel %vm1750, %v3721, 0
      %v3767 = vsel %vm1750, %v3723, 0
      %v3770 = vsel %vm1750, %v3725, 0
      %v3773 = vsel %vm1750, %v3727, 0
      %v3776 = vsel %vm1750, %v3729, 0
      %v3779 = vsel %vm1750, %v3728, 0
      %3781 = vmatprep.subr.bf16.mxu0 0
      %3782 = vmatpush1.bf16.msra.mxu0 %v3746
      %3783 = vmatprep.subr.bf16.mxu0 0
      %3784 = vmatpush1.bf16.msra.mxu0 %v3747
      %3785 = vmatprep.subr.bf16.mxu0 0
      %3786 = vmatpush1.bf16.msra.mxu0 %v3748
      %3787 = vmatprep.subr.bf16.mxu0 0
      %3788 = vmatpush1.bf16.msra.mxu0 %v3749
      %3789 = vmatprep.subr.bf16.mxu0 0
      %3790 = vmatpush1.bf16.msra.mxu0 0
      %3791 = vmatprep.subr.bf16.mxu0 0
      %3792 = vmatpush1.bf16.msra.mxu0 0
      %3793 = vmatprep.subr.bf16.mxu0 0
      %3794 = vmatpush1.bf16.msra.mxu0 0
      %3795 = vmatprep.subr.bf16.mxu0 0
      %3796 = vmatpush1.bf16.msra.mxu0 0
      %3797 = vmatprep.subr.bf16.mxu0 0
      %3798 = vmatpush1.bf16.msra.mxu0 0
      %3799 = vmatprep.subr.bf16.mxu0 0
      %3800 = vmatpush1.bf16.msra.mxu0 0
      %3801 = vmatprep.subr.bf16.mxu0 0
      %3802 = vmatpush1.bf16.msra.mxu0 0
      %3803 = vmatprep.subr.bf16.mxu0 0
      %3804 = vmatpush1.bf16.msra.mxu0 0
      %3805 = vmatprep.subr.bf16.mxu0 0
      %3806 = vmatpush1.bf16.msra.mxu0 0
      %3807 = vmatprep.subr.bf16.mxu0 0
      %3808 = vmatpush1.bf16.msra.mxu0 0
      %3809 = vmatprep.subr.bf16.mxu0 0
      %3810 = vmatpush1.bf16.msra.mxu0 0
      %3811 = vmatprep.subr.bf16.mxu0 0
      %3812 = vmatpush1.bf16.msra.mxu0 0
      %3813 = vmatprep.mubr.bf16.mxu0 0
      %3814 = vmatmul.mubr.bf16.gmra.mrb[0].mxu0 %v3755
      %v3815 = vpop.f32.mrb[0].mxu0
      %v3816 = vadd.f32 0.0, %v3815
      %v3817 = vpop.f32.mrb[0].mxu0
      %v3818 = vpop.f32.mrb[0].mxu0
      %v3819 = vadd.f32 0.0, %v3818
      %v3820 = vpop.f32.mrb[0].mxu0
      %3821 = vmatprep.mubr.bf16.mxu0 0
      %3822 = vmatmul.mubr.bf16.gmra.mrb[0].mxu0 %v3758
      %v3823 = vpop.f32.mrb[0].mxu0
      %v3824 = vadd.f32 0.0, %v3823
      %v3825 = vpop.f32.mrb[0].mxu0
      %v3826 = vpop.f32.mrb[0].mxu0
      %v3827 = vadd.f32 0.0, %v3826
      %v3828 = vpop.f32.mrb[0].mxu0
      %3829 = vmatprep.mubr.bf16.mxu0 0
      %3830 = vmatmul.mubr.bf16.gmra.mrb[0].mxu0 %v3761
      %v3831 = vpop.f32.mrb[0].mxu0
      %v3832 = vadd.f32 0.0, %v3831
      %v3833 = vpop.f32.mrb[0].mxu0
      %v3834 = vpop.f32.mrb[0].mxu0
      %v3835 = vadd.f32 0.0, %v3834
      %v3836 = vpop.f32.mrb[0].mxu0
      %3837 = vmatprep.mubr.bf16.mxu0 0
      %3838 = vmatmul.mubr.bf16.gmra.mrb[0].mxu0 %v3764
      %v3839 = vpop.f32.mrb[0].mxu0
      %v3840 = vadd.f32 0.0, %v3839
      %v3841 = vpop.f32.mrb[0].mxu0
      %v3842 = vpop.f32.mrb[0].mxu0
      %v3843 = vadd.f32 0.0, %v3842
      %v3844 = vpop.f32.mrb[0].mxu0
      %3845 = vmatprep.mubr.bf16.mxu0 0
      %3846 = vmatmul.mubr.bf16.gmra.mrb[0].mxu0 %v3767
      %v3847 = vpop.f32.mrb[0].mxu0
      %v3848 = vadd.f32 0.0, %v3847
      %v3849 = vpop.f32.mrb[0].mxu0
      %v3850 = vpop.f32.mrb[0].mxu0
      %v3851 = vadd.f32 0.0, %v3850
      %v3852 = vpop.f32.mrb[0].mxu0
      %3853 = vmatprep.mubr.bf16.mxu0 0
      %3854 = vmatmul.mubr.bf16.gmra.mrb[0].mxu0 %v3770
      %v3855 = vpop.f32.mrb[0].mxu0
      %v3856 = vadd.f32 0.0, %v3855
      %v3857 = vpop.f32.mrb[0].mxu0
      %v3858 = vpop.f32.mrb[0].mxu0
      %v3859 = vadd.f32 0.0, %v3858
      %v3860 = vpop.f32.mrb[0].mxu0
      %3861 = vmatprep.mubr.bf16.mxu0 0
      %3862 = vmatmul.mubr.bf16.gmra.mrb[0].mxu0 %v3773
      %v3863 = vpop.f32.mrb[0].mxu0
      %v3864 = vadd.f32 0.0, %v3863
      %v3865 = vpop.f32.mrb[0].mxu0
      %v3866 = vpop.f32.mrb[0].mxu0
      %v3867 = vadd.f32 0.0, %v3866
      %v3868 = vpop.f32.mrb[0].mxu0
      %3869 = vmatprep.mubr.bf16.mxu0 0
      %3870 = vmatmul.mubr.bf16.gmra.mrb[0].mxu0 %v3776
      %v3871 = vpop.f32.mrb[0].mxu0
      %v3872 = vadd.f32 0.0, %v3871
      %v3873 = vpop.f32.mrb[0].mxu0
      %v3874 = vpop.f32.mrb[0].mxu0
      %v3875 = vadd.f32 0.0, %v3874
      %v3876 = vpop.f32.mrb[0].mxu0
      %3877 = vmatprep.mubr.bf16.mxu0 0
      %3878 = vmatmul.mubr.bf16.gmra.mrb[0].mxu0 %v3779
      %v3879 = vpop.f32.mrb[0].mxu0
      %v3880 = vadd.f32 0.0, %v3879
      %v3881 = vpop.f32.mrb[0].mxu0
      %v3882 = vpop.f32.mrb[0].mxu0
      %v3883 = vpop.f32.mrb[0].mxu0
      %3884 = vdwg.mxu0
      %v3885 = vadd.f32 %v3683, %v3816
      %v3886 = vadd.f32 %v3684, %v3819
      %v3887 = vadd.f32 %v3685, %v3824
      %v3888 = vadd.f32 %v3686, %v3827
      %v3889 = vadd.f32 %v3687, %v3832
      %v3890 = vadd.f32 %v3688, %v3835
      %v3891 = vadd.f32 %v3689, %v3840
      %v3892 = vadd.f32 %v3690, %v3843
      %v3893 = vadd.f32 %v3691, %v3848
      %v3894 = vadd.f32 %v3692, %v3851
      %v3895 = vadd.f32 %v3693, %v3856
      %v3896 = vadd.f32 %v3694, %v3859
      %v3897 = vadd.f32 %v3695, %v3864
      %v3898 = vadd.f32 %v3696, %v3867
      %v3899 = vadd.f32 %v3697, %v3872
      %v3900 = vadd.f32 %v3698, %v3875
      %v3901 = vadd.f32 %v3699, %v3880
      %v3902 = vld [vmem:[#allocation2 + $0xc] sm:$0xc]
      %v3903 = vld [vmem:[#allocation2 + $0x10] sm:$0xf]
      %v3904 = vld [vmem:[#allocation2 + $0x14] sm:$0xf]
      %v3905 = vld [vmem:[#allocation2 + $0x18] sm:$0xf]
      %v3906 = vld [vmem:[#allocation2 + $0x1c] sm:$0xf]
      %v3907 = vld [vmem:[#allocation2 + $0x20] sm:$0xf]
      %v3908 = vld [vmem:[#allocation2 + $0x24] sm:$0xf]
      %v3909 = vld [vmem:[#allocation2 + $0x28] sm:$0xf]
      %v3910 = vld [vmem:[#allocation2 + $0x2c] sm:$0xf]
      %v3911 = vld [vmem:[#allocation2 + $0x30] sm:$0xf]
      %v3912 = vld [vmem:[#allocation2 + $0x34] sm:$0xf]
      %v3913 = vld [vmem:[#allocation2 + $0x38] sm:$0xf]
      %v3914 = vld [vmem:[#allocation2 + $0x3c] sm:$0xf]
      %v3915 = vld [vmem:[#allocation2 + $0x40] sm:$0xf]
      %v3916 = vld [vmem:[#allocation2 + $0x44] sm:$0xf]
      %v3917 = vld [vmem:[#allocation2 + $0x48] sm:$0xf]
      %v3918 = vld [vmem:[#allocation2 + $0x4c] sm:$0xf]
      %v3919 = vld [vmem:[#allocation2 + $0x50] sm:$0x3]
      %s3920 = scalar_lea.vmem %s3, 320
      %v3921 = vld [vmem:[%s3920] sm:$0xf]
      %v3922 = vld [vmem:[%s3920 + $0x4] sm:$0xf]
      %v3923 = vld [vmem:[%s3920 + $0x8] sm:$0xf]
      %v3924 = vld [vmem:[%s3920 + $0xc] sm:$0xf]
      %v3925 = vld [vmem:[%s3920 + $0x10] sm:$0xf]
      %v3926 = vld [vmem:[%s3920 + $0x14] sm:$0xf]
      %v3927 = vld [vmem:[%s3920 + $0x18] sm:$0xf]
      %v3928 = vld [vmem:[%s3920 + $0x1c] sm:$0xf]
      %v3947 = vunpack.c.l.b16 %v3902
      %v3948 = vunpack.c.l.b16 %v3903
      %v3949 = vunpack.c.l.b16 %v3904
      %v3950 = vunpack.c.l.b16 %v3905
      %v3951 = vunpack.c.l.b16 %v3906
      %v3952 = vunpack.c.l.b16 %v3907
      %v3953 = vunpack.c.l.b16 %v3908
      %v3954 = vunpack.c.l.b16 %v3909
      %v3955 = vunpack.c.l.b16 %v3910
      %v3956 = vunpack.c.l.b16 %v3911
      %v3957 = vunpack.c.l.b16 %v3912
      %v3958 = vunpack.c.l.b16 %v3913
      %v3959 = vunpack.c.l.b16 %v3914
      %v3960 = vunpack.c.l.b16 %v3915
      %v3961 = vunpack.c.l.b16 %v3916
      %v3962 = vunpack.c.l.b16 %v3917
      %v3963 = vunpack.c.l.b16 %v3918
      %v3964 = vunpack.c.l.b16 %v3919
      %v3965 = vpack.c.b16 %v3948, %v3947
      %v3966 = vpack.c.b16 %v3950, %v3949
      %v3967 = vpack.c.b16 %v3952, %v3951
      %v3968 = vpack.c.b16 %v3954, %v3953
      %v3969 = vpack.c.b16 %v3956, %v3955
      %v3970 = vpack.c.b16 %v3958, %v3957
      %v3971 = vpack.c.b16 %v3960, %v3959
      %v3972 = vpack.c.b16 %v3962, %v3961
      %v3973 = vpack.c.b16 %v3964, %v3963
      %v3974 = vrot.slane %v3965, 2
      %v3975 = vrot.slane %v3966, 2
      %v3976 = vsel %vm2477, %v3974, %v3975
      %v3977 = vrot.slane %v3967, 2
      %v3978 = vsel %vm2477, %v3975, %v3977
      %v3979 = vrot.slane %v3968, 2
      %v3980 = vsel %vm2477, %v3977, %v3979
      %v3981 = vrot.slane %v3969, 2
      %v3982 = vsel %vm2477, %v3979, %v3981
      %v3983 = vrot.slane %v3970, 2
      %v3984 = vsel %vm2477, %v3981, %v3983
      %v3985 = vrot.slane %v3971, 2
      %v3986 = vsel %vm2477, %v3983, %v3985
      %v3987 = vrot.slane %v3972, 2
      %v3988 = vsel %vm2477, %v3985, %v3987
      %v3989 = vrot.slane %v3973, 2
      %v3990 = vsel %vm2477, %v3987, %v3989
      %v3999 = vunpack.c.l.b16 %v3921
      %v4000 = vunpack.c.l.b16 %v3922
      %v4001 = vunpack.c.l.b16 %v3923
      %v4002 = vunpack.c.l.b16 %v3924
      %v4003 = vunpack.c.l.b16 %v3925
      %v4004 = vunpack.c.l.b16 %v3926
      %v4005 = vunpack.c.l.b16 %v3927
      %v4006 = vunpack.c.l.b16 %v3928
      %v4007 = vpack.c.b16 %v4000, %v3999
      %v4008 = vpack.c.b16 %v4002, %v4001
      %v4009 = vpack.c.b16 %v4004, %v4003
      %v4010 = vpack.c.b16 %v4006, %v4005
      %v4016 = vsel %vm1750, %v3976, 0
      %v4019 = vsel %vm1750, %v3978, 0
      %v4022 = vsel %vm1750, %v3980, 0
      %v4025 = vsel %vm1750, %v3982, 0
      %v4028 = vsel %vm1750, %v3984, 0
      %v4031 = vsel %vm1750, %v3986, 0
      %v4034 = vsel %vm1750, %v3988, 0
      %v4037 = vsel %vm1750, %v3990, 0
      %v4040 = vsel %vm1750, %v3989, 0
      %4042 = vmatprep.subr.bf16.mxu0 0
      %4043 = vmatpush1.bf16.msra.mxu0 %v4007
      %4044 = vmatprep.subr.bf16.mxu0 0
      %4045 = vmatpush1.bf16.msra.mxu0 %v4008
      %4046 = vmatprep.subr.bf16.mxu0 0
      %4047 = vmatpush1.bf16.msra.mxu0 %v4009
      %4048 = vmatprep.subr.bf16.mxu0 0
      %4049 = vmatpush1.bf16.msra.mxu0 %v4010
      %4050 = vmatprep.subr.bf16.mxu0 0
      %4051 = vmatpush1.bf16.msra.mxu0 0
      %4052 = vmatprep.subr.bf16.mxu0 0
      %4053 = vmatpush1.bf16.msra.mxu0 0
      %4054 = vmatprep.subr.bf16.mxu0 0
      %4055 = vmatpush1.bf16.msra.mxu0 0
      %4056 = vmatprep.subr.bf16.mxu0 0
      %4057 = vmatpush1.bf16.msra.mxu0 0
      %4058 = vmatprep.subr.bf16.mxu0 0
      %4059 = vmatpush1.bf16.msra.mxu0 0
      %4060 = vmatprep.subr.bf16.mxu0 0
      %4061 = vmatpush1.bf16.msra.mxu0 0
      %4062 = vmatprep.subr.bf16.mxu0 0
      %4063 = vmatpush1.bf16.msra.mxu0 0
      %4064 = vmatprep.subr.bf16.mxu0 0
      %4065 = vmatpush1.bf16.msra.mxu0 0
      %4066 = vmatprep.subr.bf16.mxu0 0
      %4067 = vmatpush1.bf16.msra.mxu0 0
      %4068 = vmatprep.subr.bf16.mxu0 0
      %4069 = vmatpush1.bf16.msra.mxu0 0
      %4070 = vmatprep.subr.bf16.mxu0 0
      %4071 = vmatpush1.bf16.msra.mxu0 0
      %4072 = vmatprep.subr.bf16.mxu0 0
      %4073 = vmatpush1.bf16.msra.mxu0 0
      %4074 = vmatprep.mubr.bf16.mxu0 0
      %4075 = vmatmul.mubr.bf16.gmra.mrb[0].mxu0 %v4016
      %v4076 = vpop.f32.mrb[0].mxu0
      %v4077 = vadd.f32 0.0, %v4076
      %v4078 = vpop.f32.mrb[0].mxu0
      %v4079 = vpop.f32.mrb[0].mxu0
      %v4080 = vadd.f32 0.0, %v4079
      %v4081 = vpop.f32.mrb[0].mxu0
      %4082 = vmatprep.mubr.bf16.mxu0 0
      %4083 = vmatmul.mubr.bf16.gmra.mrb[0].mxu0 %v4019
      %v4084 = vpop.f32.mrb[0].mxu0
      %v4085 = vadd.f32 0.0, %v4084
      %v4086 = vpop.f32.mrb[0].mxu0
      %v4087 = vpop.f32.mrb[0].mxu0
      %v4088 = vadd.f32 0.0, %v4087
      %v4089 = vpop.f32.mrb[0].mxu0
      %4090 = vmatprep.mubr.bf16.mxu0 0
      %4091 = vmatmul.mubr.bf16.gmra.mrb[0].mxu0 %v4022
      %v4092 = vpop.f32.mrb[0].mxu0
      %v4093 = vadd.f32 0.0, %v4092
      %v4094 = vpop.f32.mrb[0].mxu0
      %v4095 = vpop.f32.mrb[0].mxu0
      %v4096 = vadd.f32 0.0, %v4095
      %v4097 = vpop.f32.mrb[0].mxu0
      %4098 = vmatprep.mubr.bf16.mxu0 0
      %4099 = vmatmul.mubr.bf16.gmra.mrb[0].mxu0 %v4025
      %v4100 = vpop.f32.mrb[0].mxu0
      %v4101 = vadd.f32 0.0, %v4100
      %v4102 = vpop.f32.mrb[0].mxu0
      %v4103 = vpop.f32.mrb[0].mxu0
      %v4104 = vadd.f32 0.0, %v4103
      %v4105 = vpop.f32.mrb[0].mxu0
      %4106 = vmatprep.mubr.bf16.mxu0 0
      %4107 = vmatmul.mubr.bf16.gmra.mrb[0].mxu0 %v4028
      %v4108 = vpop.f32.mrb[0].mxu0
      %v4109 = vadd.f32 0.0, %v4108
      %v4110 = vpop.f32.mrb[0].mxu0
      %v4111 = vpop.f32.mrb[0].mxu0
      %v4112 = vadd.f32 0.0, %v4111
      %v4113 = vpop.f32.mrb[0].mxu0
      %4114 = vmatprep.mubr.bf16.mxu0 0
      %4115 = vmatmul.mubr.bf16.gmra.mrb[0].mxu0 %v4031
      %v4116 = vpop.f32.mrb[0].mxu0
      %v4117 = vadd.f32 0.0, %v4116
      %v4118 = vpop.f32.mrb[0].mxu0
      %v4119 = vpop.f32.mrb[0].mxu0
      %v4120 = vadd.f32 0.0, %v4119
      %v4121 = vpop.f32.mrb[0].mxu0
      %4122 = vmatprep.mubr.bf16.mxu0 0
      %4123 = vmatmul.mubr.bf16.gmra.mrb[0].mxu0 %v4034
      %v4124 = vpop.f32.mrb[0].mxu0
      %v4125 = vadd.f32 0.0, %v4124
      %v4126 = vpop.f32.mrb[0].mxu0
      %v4127 = vpop.f32.mrb[0].mxu0
      %v4128 = vadd.f32 0.0, %v4127
      %v4129 = vpop.f32.mrb[0].mxu0
      %4130 = vmatprep.mubr.bf16.mxu0 0
      %4131 = vmatmul.mubr.bf16.gmra.mrb[0].mxu0 %v4037
      %v4132 = vpop.f32.mrb[0].mxu0
      %v4133 = vadd.f32 0.0, %v4132
      %v4134 = vpop.f32.mrb[0].mxu0
      %v4135 = vpop.f32.mrb[0].mxu0
      %v4136 = vadd.f32 0.0, %v4135
      %v4137 = vpop.f32.mrb[0].mxu0
      %4138 = vmatprep.mubr.bf16.mxu0 0
      %4139 = vmatmul.mubr.bf16.gmra.mrb[0].mxu0 %v4040
      %v4140 = vpop.f32.mrb[0].mxu0
      %v4141 = vadd.f32 0.0, %v4140
      %v4142 = vpop.f32.mrb[0].mxu0
      %v4143 = vpop.f32.mrb[0].mxu0
      %v4144 = vpop.f32.mrb[0].mxu0
      %4145 = vdwg.mxu0
      %v4146 = vadd.f32 %v3885, %v4077
      %v4147 = vadd.f32 %v3886, %v4080
      %v4148 = vadd.f32 %v3887, %v4085
      %v4149 = vadd.f32 %v3888, %v4088
      %v4150 = vadd.f32 %v3889, %v4093
      %v4151 = vadd.f32 %v3890, %v4096
      %v4152 = vadd.f32 %v3891, %v4101
      %v4153 = vadd.f32 %v3892, %v4104
      %v4154 = vadd.f32 %v3893, %v4109
      %v4155 = vadd.f32 %v3894, %v4112
      %v4156 = vadd.f32 %v3895, %v4117
      %v4157 = vadd.f32 %v3896, %v4120
      %v4158 = vadd.f32 %v3897, %v4125
      %v4159 = vadd.f32 %v3898, %v4128
      %v4160 = vadd.f32 %v3899, %v4133
      %v4161 = vadd.f32 %v3900, %v4136
      %v4162 = vadd.f32 %v3901, %v4141
      %v4163 = vld [vmem:[#allocation2 + $0x50] sm:$0x7]
      %s4164 = scalar_lea.vmem %s3, 352
      %v4165 = vld [vmem:[%s4164] sm:$0xf]
      %v4166 = vld [vmem:[%s4164 + $0x4] sm:$0xf]
      %v4167 = vld [vmem:[%s4164 + $0x8] sm:$0xf]
      %v4168 = vld [vmem:[%s4164 + $0xc] sm:$0xf]
      %v4169 = vld [vmem:[%s4164 + $0x10] sm:$0xf]
      %v4170 = vld [vmem:[%s4164 + $0x14] sm:$0xf]
      %v4171 = vld [vmem:[%s4164 + $0x18] sm:$0xf]
      %v4172 = vld [vmem:[%s4164 + $0x1c] sm:$0xf]
      %v4174 = vunpack.c.l.b16 %v4163
      %v4175 = vpack.c.b16 %v4174, %v3963
      %vm4176 = vsmask.f32 5376
      %v4178 = vshrl.u32 %v3965, 16
      %v4180 = vrot.slane %v4178, 2
      %v4181 = vshll.u32 %v3965, 16
      %v4183 = vrot.slane %v4181, 3
      %v4184 = vor.u32 %v4180, %v4183
      %v4186 = vshrl.u32 %v3966, 16
      %v4188 = vrot.slane %v4186, 2
      %v4189 = vshll.u32 %v3966, 16
      %v4191 = vrot.slane %v4189, 3
      %v4192 = vor.u32 %v4188, %v4191
      %v4193 = vsel %vm4176, %v4184, %v4192
      %v4195 = vshrl.u32 %v3967, 16
      %v4197 = vrot.slane %v4195, 2
      %v4198 = vshll.u32 %v3967, 16
      %v4200 = vrot.slane %v4198, 3
      %v4201 = vor.u32 %v4197, %v4200
      %v4202 = vsel %vm4176, %v4192, %v4201
      %v4204 = vshrl.u32 %v3968, 16
      %v4206 = vrot.slane %v4204, 2
      %v4207 = vshll.u32 %v3968, 16
      %v4209 = vrot.slane %v4207, 3
      %v4210 = vor.u32 %v4206, %v4209
      %v4211 = vsel %vm4176, %v4201, %v4210
      %v4213 = vshrl.u32 %v3969, 16
      %v4215 = vrot.slane %v4213, 2
      %v4216 = vshll.u32 %v3969, 16
      %v4218 = vrot.slane %v4216, 3
      %v4219 = vor.u32 %v4215, %v4218
      %v4220 = vsel %vm4176, %v4210, %v4219
      %v4222 = vshrl.u32 %v3970, 16
      %v4224 = vrot.slane %v4222, 2
      %v4225 = vshll.u32 %v3970, 16
      %v4227 = vrot.slane %v4225, 3
      %v4228 = vor.u32 %v4224, %v4227
      %v4229 = vsel %vm4176, %v4219, %v4228
      %v4231 = vshrl.u32 %v3971, 16
      %v4233 = vrot.slane %v4231, 2
      %v4234 = vshll.u32 %v3971, 16
      %v4236 = vrot.slane %v4234, 3
      %v4237 = vor.u32 %v4233, %v4236
      %v4238 = vsel %vm4176, %v4228, %v4237
      %v4240 = vshrl.u32 %v3972, 16
      %v4242 = vrot.slane %v4240, 2
      %v4243 = vshll.u32 %v3972, 16
      %v4245 = vrot.slane %v4243, 3
      %v4246 = vor.u32 %v4242, %v4245
      %v4247 = vsel %vm4176, %v4237, %v4246
      %v4249 = vshrl.u32 %v4175, 16
      %v4251 = vrot.slane %v4249, 2
      %v4252 = vshll.u32 %v4175, 16
      %v4254 = vrot.slane %v4252, 3
      %v4255 = vor.u32 %v4251, %v4254
      %v4256 = vsel %vm4176, %v4246, %v4255
      %v4265 = vunpack.c.l.b16 %v4165
      %v4266 = vunpack.c.l.b16 %v4166
      %v4267 = vunpack.c.l.b16 %v4167
      %v4268 = vunpack.c.l.b16 %v4168
      %v4269 = vunpack.c.l.b16 %v4169
      %v4270 = vunpack.c.l.b16 %v4170
      %v4271 = vunpack.c.l.b16 %v4171
      %v4272 = vunpack.c.l.b16 %v4172
      %v4273 = vpack.c.b16 %v4266, %v4265
      %v4274 = vpack.c.b16 %v4268, %v4267
      %v4275 = vpack.c.b16 %v4270, %v4269
      %v4276 = vpack.c.b16 %v4272, %v4271
      %v4282 = vsel %vm1750, %v4193, 0
      %v4285 = vsel %vm1750, %v4202, 0
      %v4288 = vsel %vm1750, %v4211, 0
      %v4291 = vsel %vm1750, %v4220, 0
      %v4294 = vsel %vm1750, %v4229, 0
      %v4297 = vsel %vm1750, %v4238, 0
      %v4300 = vsel %vm1750, %v4247, 0
      %v4303 = vsel %vm1750, %v4256, 0
      %v4306 = vsel %vm1750, %v4255, 0
      %4308 = vmatprep.subr.bf16.mxu0 0
      %4309 = vmatpush1.bf16.msra.mxu0 %v4273
      %4310 = vmatprep.subr.bf16.mxu0 0
      %4311 = vmatpush1.bf16.msra.mxu0 %v4274
      %4312 = vmatprep.subr.bf16.mxu0 0
      %4313 = vmatpush1.bf16.msra.mxu0 %v4275
      %4314 = vmatprep.subr.bf16.mxu0 0
      %4315 = vmatpush1.bf16.msra.mxu0 %v4276
      %4316 = vmatprep.subr.bf16.mxu0 0
      %4317 = vmatpush1.bf16.msra.mxu0 0
      %4318 = vmatprep.subr.bf16.mxu0 0
      %4319 = vmatpush1.bf16.msra.mxu0 0
      %4320 = vmatprep.subr.bf16.mxu0 0
      %4321 = vmatpush1.bf16.msra.mxu0 0
      %4322 = vmatprep.subr.bf16.mxu0 0
      %4323 = vmatpush1.bf16.msra.mxu0 0
      %4324 = vmatprep.subr.bf16.mxu0 0
      %4325 = vmatpush1.bf16.msra.mxu0 0
      %4326 = vmatprep.subr.bf16.mxu0 0
      %4327 = vmatpush1.bf16.msra.mxu0 0
      %4328 = vmatprep.subr.bf16.mxu0 0
      %4329 = vmatpush1.bf16.msra.mxu0 0
      %4330 = vmatprep.subr.bf16.mxu0 0
      %4331 = vmatpush1.bf16.msra.mxu0 0
      %4332 = vmatprep.subr.bf16.mxu0 0
      %4333 = vmatpush1.bf16.msra.mxu0 0
      %4334 = vmatprep.subr.bf16.mxu0 0
      %4335 = vmatpush1.bf16.msra.mxu0 0
      %4336 = vmatprep.subr.bf16.mxu0 0
      %4337 = vmatpush1.bf16.msra.mxu0 0
      %4338 = vmatprep.subr.bf16.mxu0 0
      %4339 = vmatpush1.bf16.msra.mxu0 0
      %4340 = vmatprep.mubr.bf16.mxu0 0
      %4341 = vmatmul.mubr.bf16.gmra.mrb[0].mxu0 %v4282
      %v4342 = vpop.f32.mrb[0].mxu0
      %v4343 = vadd.f32 0.0, %v4342
      %v4344 = vpop.f32.mrb[0].mxu0
      %v4345 = vpop.f32.mrb[0].mxu0
      %v4346 = vadd.f32 0.0, %v4345
      %v4347 = vpop.f32.mrb[0].mxu0
      %4348 = vmatprep.mubr.bf16.mxu0 0
      %4349 = vmatmul.mubr.bf16.gmra.mrb[0].mxu0 %v4285
      %v4350 = vpop.f32.mrb[0].mxu0
      %v4351 = vadd.f32 0.0, %v4350
      %v4352 = vpop.f32.mrb[0].mxu0
      %v4353 = vpop.f32.mrb[0].mxu0
      %v4354 = vadd.f32 0.0, %v4353
      %v4355 = vpop.f32.mrb[0].mxu0
      %4356 = vmatprep.mubr.bf16.mxu0 0
      %4357 = vmatmul.mubr.bf16.gmra.mrb[0].mxu0 %v4288
      %v4358 = vpop.f32.mrb[0].mxu0
      %v4359 = vadd.f32 0.0, %v4358
      %v4360 = vpop.f32.mrb[0].mxu0
      %v4361 = vpop.f32.mrb[0].mxu0
      %v4362 = vadd.f32 0.0, %v4361
      %v4363 = vpop.f32.mrb[0].mxu0
      %4364 = vmatprep.mubr.bf16.mxu0 0
      %4365 = vmatmul.mubr.bf16.gmra.mrb[0].mxu0 %v4291
      %v4366 = vpop.f32.mrb[0].mxu0
      %v4367 = vadd.f32 0.0, %v4366
      %v4368 = vpop.f32.mrb[0].mxu0
      %v4369 = vpop.f32.mrb[0].mxu0
      %v4370 = vadd.f32 0.0, %v4369
      %v4371 = vpop.f32.mrb[0].mxu0
      %4372 = vmatprep.mubr.bf16.mxu0 0
      %4373 = vmatmul.mubr.bf16.gmra.mrb[0].mxu0 %v4294
      %v4374 = vpop.f32.mrb[0].mxu0
      %v4375 = vadd.f32 0.0, %v4374
      %v4376 = vpop.f32.mrb[0].mxu0
      %v4377 = vpop.f32.mrb[0].mxu0
      %v4378 = vadd.f32 0.0, %v4377
      %v4379 = vpop.f32.mrb[0].mxu0
      %4380 = vmatprep.mubr.bf16.mxu0 0
      %4381 = vmatmul.mubr.bf16.gmra.mrb[0].mxu0 %v4297
      %v4382 = vpop.f32.mrb[0].mxu0
      %v4383 = vadd.f32 0.0, %v4382
      %v4384 = vpop.f32.mrb[0].mxu0
      %v4385 = vpop.f32.mrb[0].mxu0
      %v4386 = vadd.f32 0.0, %v4385
      %v4387 = vpop.f32.mrb[0].mxu0
      %4388 = vmatprep.mubr.bf16.mxu0 0
      %4389 = vmatmul.mubr.bf16.gmra.mrb[0].mxu0 %v4300
      %v4390 = vpop.f32.mrb[0].mxu0
      %v4391 = vadd.f32 0.0, %v4390
      %v4392 = vpop.f32.mrb[0].mxu0
      %v4393 = vpop.f32.mrb[0].mxu0
      %v4394 = vadd.f32 0.0, %v4393
      %v4395 = vpop.f32.mrb[0].mxu0
      %4396 = vmatprep.mubr.bf16.mxu0 0
      %4397 = vmatmul.mubr.bf16.gmra.mrb[0].mxu0 %v4303
      %v4398 = vpop.f32.mrb[0].mxu0
      %v4399 = vadd.f32 0.0, %v4398
      %v4400 = vpop.f32.mrb[0].mxu0
      %v4401 = vpop.f32.mrb[0].mxu0
      %v4402 = vadd.f32 0.0, %v4401
      %v4403 = vpop.f32.mrb[0].mxu0
      %4404 = vmatprep.mubr.bf16.mxu0 0
      %4405 = vmatmul.mubr.bf16.gmra.mrb[0].mxu0 %v4306
      %v4406 = vpop.f32.mrb[0].mxu0
      %v4407 = vadd.f32 0.0, %v4406
      %v4408 = vpop.f32.mrb[0].mxu0
      %v4409 = vpop.f32.mrb[0].mxu0
      %v4410 = vpop.f32.mrb[0].mxu0
      %4411 = vdwg.mxu0
      %v4412 = vadd.f32 %v4146, %v4343
      %v4413 = vadd.f32 %v4147, %v4346
      %v4414 = vadd.f32 %v4148, %v4351
      %v4415 = vadd.f32 %v4149, %v4354
      %v4416 = vadd.f32 %v4150, %v4359
      %v4417 = vadd.f32 %v4151, %v4362
      %v4418 = vadd.f32 %v4152, %v4367
      %v4419 = vadd.f32 %v4153, %v4370
      %v4420 = vadd.f32 %v4154, %v4375
      %v4421 = vadd.f32 %v4155, %v4378
      %v4422 = vadd.f32 %v4156, %v4383
      %v4423 = vadd.f32 %v4157, %v4386
      %v4424 = vadd.f32 %v4158, %v4391
      %v4425 = vadd.f32 %v4159, %v4394
      %v4426 = vadd.f32 %v4160, %v4399
      %v4427 = vadd.f32 %v4161, %v4402
      %v4428 = vadd.f32 %v4162, %v4407
      %v4429 = vld [vmem:[#allocation2 + $0xc] sm:$0x8]
      %s4430 = scalar_lea.vmem %s3, 384
      %v4431 = vld [vmem:[%s4430] sm:$0xf]
      %v4432 = vld [vmem:[%s4430 + $0x4] sm:$0xf]
      %v4433 = vld [vmem:[%s4430 + $0x8] sm:$0xf]
      %v4434 = vld [vmem:[%s4430 + $0xc] sm:$0xf]
      %v4435 = vld [vmem:[%s4430 + $0x10] sm:$0xf]
      %v4436 = vld [vmem:[%s4430 + $0x14] sm:$0xf]
      %v4437 = vld [vmem:[%s4430 + $0x18] sm:$0xf]
      %v4438 = vld [vmem:[%s4430 + $0x1c] sm:$0xf]
      %v4440 = vunpack.c.l.b16 %v4429
      %v4441 = vpack.c.b16 %v3948, %v4440
      %v4442 = vrot.slane %v4441, 3
      %v4443 = vrot.slane %v3966, 3
      %v4444 = vsel %vm2739, %v4442, %v4443
      %v4445 = vrot.slane %v3967, 3
      %v4446 = vsel %vm2739, %v4443, %v4445
      %v4447 = vrot.slane %v3968, 3
      %v4448 = vsel %vm2739, %v4445, %v4447
      %v4449 = vrot.slane %v3969, 3
      %v4450 = vsel %vm2739, %v4447, %v4449
      %v4451 = vrot.slane %v3970, 3
      %v4452 = vsel %vm2739, %v4449, %v4451
      %v4453 = vrot.slane %v3971, 3
      %v4454 = vsel %vm2739, %v4451, %v4453
      %v4455 = vrot.slane %v3972, 3
      %v4456 = vsel %vm2739, %v4453, %v4455
      %v4457 = vrot.slane %v4175, 3
      %v4458 = vsel %vm2739, %v4455, %v4457
      %v4467 = vunpack.c.l.b16 %v4431
      %v4468 = vunpack.c.l.b16 %v4432
      %v4469 = vunpack.c.l.b16 %v4433
      %v4470 = vunpack.c.l.b16 %v4434
      %v4471 = vunpack.c.l.b16 %v4435
      %v4472 = vunpack.c.l.b16 %v4436
      %v4473 = vunpack.c.l.b16 %v4437
      %v4474 = vunpack.c.l.b16 %v4438
      %v4475 = vpack.c.b16 %v4468, %v4467
      %v4476 = vpack.c.b16 %v4470, %v4469
      %v4477 = vpack.c.b16 %v4472, %v4471
      %v4478 = vpack.c.b16 %v4474, %v4473
      %v4484 = vsel %vm1750, %v4444, 0
      %v4487 = vsel %vm1750, %v4446, 0
      %v4490 = vsel %vm1750, %v4448, 0
      %v4493 = vsel %vm1750, %v4450, 0
      %v4496 = vsel %vm1750, %v4452, 0
      %v4499 = vsel %vm1750, %v4454, 0
      %v4502 = vsel %vm1750, %v4456, 0
      %v4505 = vsel %vm1750, %v4458, 0
      %v4508 = vsel %vm1750, %v4457, 0
      %4510 = vmatprep.subr.bf16.mxu0 0
      %4511 = vmatpush1.bf16.msra.mxu0 %v4475
      %4512 = vmatprep.subr.bf16.mxu0 0
      %4513 = vmatpush1.bf16.msra.mxu0 %v4476
      %4514 = vmatprep.subr.bf16.mxu0 0
      %4515 = vmatpush1.bf16.msra.mxu0 %v4477
      %4516 = vmatprep.subr.bf16.mxu0 0
      %4517 = vmatpush1.bf16.msra.mxu0 %v4478
      %4518 = vmatprep.subr.bf16.mxu0 0
      %4519 = vmatpush1.bf16.msra.mxu0 0
      %4520 = vmatprep.subr.bf16.mxu0 0
      %4521 = vmatpush1.bf16.msra.mxu0 0
      %4522 = vmatprep.subr.bf16.mxu0 0
      %4523 = vmatpush1.bf16.msra.mxu0 0
      %4524 = vmatprep.subr.bf16.mxu0 0
      %4525 = vmatpush1.bf16.msra.mxu0 0
      %4526 = vmatprep.subr.bf16.mxu0 0
      %4527 = vmatpush1.bf16.msra.mxu0 0
      %4528 = vmatprep.subr.bf16.mxu0 0
      %4529 = vmatpush1.bf16.msra.mxu0 0
      %4530 = vmatprep.subr.bf16.mxu0 0
      %4531 = vmatpush1.bf16.msra.mxu0 0
      %4532 = vmatprep.subr.bf16.mxu0 0
      %4533 = vmatpush1.bf16.msra.mxu0 0
      %4534 = vmatprep.subr.bf16.mxu0 0
      %4535 = vmatpush1.bf16.msra.mxu0 0
      %4536 = vmatprep.subr.bf16.mxu0 0
      %4537 = vmatpush1.bf16.msra.mxu0 0
      %4538 = vmatprep.subr.bf16.mxu0 0
      %4539 = vmatpush1.bf16.msra.mxu0 0
      %4540 = vmatprep.subr.bf16.mxu0 0
      %4541 = vmatpush1.bf16.msra.mxu0 0
      %4542 = vmatprep.mubr.bf16.mxu0 0
      %4543 = vmatmul.mubr.bf16.gmra.mrb[0].mxu0 %v4484
      %v4544 = vpop.f32.mrb[0].mxu0
      %v4545 = vadd.f32 0.0, %v4544
      %v4546 = vpop.f32.mrb[0].mxu0
      %v4547 = vpop.f32.mrb[0].mxu0
      %v4548 = vadd.f32 0.0, %v4547
      %v4549 = vpop.f32.mrb[0].mxu0
      %4550 = vmatprep.mubr.bf16.mxu0 0
      %4551 = vmatmul.mubr.bf16.gmra.mrb[0].mxu0 %v4487
      %v4552 = vpop.f32.mrb[0].mxu0
      %v4553 = vadd.f32 0.0, %v4552
      %v4554 = vpop.f32.mrb[0].mxu0
      %v4555 = vpop.f32.mrb[0].mxu0
      %v4556 = vadd.f32 0.0, %v4555
      %v4557 = vpop.f32.mrb[0].mxu0
      %4558 = vmatprep.mubr.bf16.mxu0 0
      %4559 = vmatmul.mubr.bf16.gmra.mrb[0].mxu0 %v4490
      %v4560 = vpop.f32.mrb[0].mxu0
      %v4561 = vadd.f32 0.0, %v4560
      %v4562 = vpop.f32.mrb[0].mxu0
      %v4563 = vpop.f32.mrb[0].mxu0
      %v4564 = vadd.f32 0.0, %v4563
      %v4565 = vpop.f32.mrb[0].mxu0
      %4566 = vmatprep.mubr.bf16.mxu0 0
      %4567 = vmatmul.mubr.bf16.gmra.mrb[0].mxu0 %v4493
      %v4568 = vpop.f32.mrb[0].mxu0
      %v4569 = vadd.f32 0.0, %v4568
      %v4570 = vpop.f32.mrb[0].mxu0
      %v4571 = vpop.f32.mrb[0].mxu0
      %v4572 = vadd.f32 0.0, %v4571
      %v4573 = vpop.f32.mrb[0].mxu0
      %4574 = vmatprep.mubr.bf16.mxu0 0
      %4575 = vmatmul.mubr.bf16.gmra.mrb[0].mxu0 %v4496
      %v4576 = vpop.f32.mrb[0].mxu0
      %v4577 = vadd.f32 0.0, %v4576
      %v4578 = vpop.f32.mrb[0].mxu0
      %v4579 = vpop.f32.mrb[0].mxu0
      %v4580 = vadd.f32 0.0, %v4579
      %v4581 = vpop.f32.mrb[0].mxu0
      %4582 = vmatprep.mubr.bf16.mxu0 0
      %4583 = vmatmul.mubr.bf16.gmra.mrb[0].mxu0 %v4499
      %v4584 = vpop.f32.mrb[0].mxu0
      %v4585 = vadd.f32 0.0, %v4584
      %v4586 = vpop.f32.mrb[0].mxu0
      %v4587 = vpop.f32.mrb[0].mxu0
      %v4588 = vadd.f32 0.0, %v4587
      %v4589 = vpop.f32.mrb[0].mxu0
      %4590 = vmatprep.mubr.bf16.mxu0 0
      %4591 = vmatmul.mubr.bf16.gmra.mrb[0].mxu0 %v4502
      %v4592 = vpop.f32.mrb[0].mxu0
      %v4593 = vadd.f32 0.0, %v4592
      %v4594 = vpop.f32.mrb[0].mxu0
      %v4595 = vpop.f32.mrb[0].mxu0
      %v4596 = vadd.f32 0.0, %v4595
      %v4597 = vpop.f32.mrb[0].mxu0
      %4598 = vmatprep.mubr.bf16.mxu0 0
      %4599 = vmatmul.mubr.bf16.gmra.mrb[0].mxu0 %v4505
      %v4600 = vpop.f32.mrb[0].mxu0
      %v4601 = vadd.f32 0.0, %v4600
      %v4602 = vpop.f32.mrb[0].mxu0
      %v4603 = vpop.f32.mrb[0].mxu0
      %v4604 = vadd.f32 0.0, %v4603
      %v4605 = vpop.f32.mrb[0].mxu0
      %4606 = vmatprep.mubr.bf16.mxu0 0
      %4607 = vmatmul.mubr.bf16.gmra.mrb[0].mxu0 %v4508
      %v4608 = vpop.f32.mrb[0].mxu0
      %v4609 = vadd.f32 0.0, %v4608
      %v4610 = vpop.f32.mrb[0].mxu0
      %v4611 = vpop.f32.mrb[0].mxu0
      %v4612 = vpop.f32.mrb[0].mxu0
      %4613 = vdwg.mxu0
      %v4614 = vadd.f32 %v4412, %v4545
      %v4615 = vadd.f32 %v4413, %v4548
      %v4616 = vadd.f32 %v4414, %v4553
      %v4617 = vadd.f32 %v4415, %v4556
      %v4618 = vadd.f32 %v4416, %v4561
      %v4619 = vadd.f32 %v4417, %v4564
      %v4620 = vadd.f32 %v4418, %v4569
      %v4621 = vadd.f32 %v4419, %v4572
      %v4622 = vadd.f32 %v4420, %v4577
      %v4623 = vadd.f32 %v4421, %v4580
      %v4624 = vadd.f32 %v4422, %v4585
      %v4625 = vadd.f32 %v4423, %v4588
      %v4626 = vadd.f32 %v4424, %v4593
      %v4627 = vadd.f32 %v4425, %v4596
      %v4628 = vadd.f32 %v4426, %v4601
      %v4629 = vadd.f32 %v4427, %v4604
      %v4630 = vadd.f32 %v4428, %v4609
      %v4631 = vld [vmem:[#allocation2 + $0x50] sm:$0xf]
      %s4632 = scalar_lea.vmem %s3, 416
      %v4633 = vld [vmem:[%s4632] sm:$0xf]
      %v4634 = vld [vmem:[%s4632 + $0x4] sm:$0xf]
      %v4635 = vld [vmem:[%s4632 + $0x8] sm:$0xf]
      %v4636 = vld [vmem:[%s4632 + $0xc] sm:$0xf]
      %v4637 = vld [vmem:[%s4632 + $0x10] sm:$0xf]
      %v4638 = vld [vmem:[%s4632 + $0x14] sm:$0xf]
      %v4639 = vld [vmem:[%s4632 + $0x18] sm:$0xf]
      %v4640 = vld [vmem:[%s4632 + $0x1c] sm:$0xf]
      %v4642 = vunpack.c.l.b16 %v4631
      %v4643 = vpack.c.b16 %v4642, %v3963
      %v4645 = vshrl.u32 %v4441, 16
      %v4647 = vrot.slane %v4645, 3
      %v4648 = vshll.u32 %v4441, 16
      %v4650 = vrot.slane %v4648, 4
      %v4651 = vor.u32 %v4647, %v4650
      %v4652 = vrot.slane %v4186, 3
      %v4653 = vrot.slane %v4189, 4
      %v4654 = vor.u32 %v4652, %v4653
      %v4655 = vsel %vm2942, %v4651, %v4654
      %v4656 = vrot.slane %v4195, 3
      %v4657 = vrot.slane %v4198, 4
      %v4658 = vor.u32 %v4656, %v4657
      %v4659 = vsel %vm2942, %v4654, %v4658
      %v4660 = vrot.slane %v4204, 3
      %v4661 = vrot.slane %v4207, 4
      %v4662 = vor.u32 %v4660, %v4661
      %v4663 = vsel %vm2942, %v4658, %v4662
      %v4664 = vrot.slane %v4213, 3
      %v4665 = vrot.slane %v4216, 4
      %v4666 = vor.u32 %v4664, %v4665
      %v4667 = vsel %vm2942, %v4662, %v4666
      %v4668 = vrot.slane %v4222, 3
      %v4669 = vrot.slane %v4225, 4
      %v4670 = vor.u32 %v4668, %v4669
      %v4671 = vsel %vm2942, %v4666, %v4670
      %v4672 = vrot.slane %v4231, 3
      %v4673 = vrot.slane %v4234, 4
      %v4674 = vor.u32 %v4672, %v4673
      %v4675 = vsel %vm2942, %v4670, %v4674
      %v4676 = vrot.slane %v4240, 3
      %v4677 = vrot.slane %v4243, 4
      %v4678 = vor.u32 %v4676, %v4677
      %v4679 = vsel %vm2942, %v4674, %v4678
      %v4681 = vshrl.u32 %v4643, 16
      %v4683 = vrot.slane %v4681, 3
      %v4684 = vshll.u32 %v4643, 16
      %v4686 = vrot.slane %v4684, 4
      %v4687 = vor.u32 %v4683, %v4686
      %v4688 = vsel %vm2942, %v4678, %v4687
      %v4697 = vunpack.c.l.b16 %v4633
      %v4698 = vunpack.c.l.b16 %v4634
      %v4699 = vunpack.c.l.b16 %v4635
      %v4700 = vunpack.c.l.b16 %v4636
      %v4701 = vunpack.c.l.b16 %v4637
      %v4702 = vunpack.c.l.b16 %v4638
      %v4703 = vunpack.c.l.b16 %v4639
      %v4704 = vunpack.c.l.b16 %v4640
      %v4705 = vpack.c.b16 %v4698, %v4697
      %v4706 = vpack.c.b16 %v4700, %v4699
      %v4707 = vpack.c.b16 %v4702, %v4701
      %v4708 = vpack.c.b16 %v4704, %v4703
      %v4714 = vsel %vm1750, %v4655, 0
      %v4717 = vsel %vm1750, %v4659, 0
      %v4720 = vsel %vm1750, %v4663, 0
      %v4723 = vsel %vm1750, %v4667, 0
      %v4726 = vsel %vm1750, %v4671, 0
      %v4729 = vsel %vm1750, %v4675, 0
      %v4732 = vsel %vm1750, %v4679, 0
      %v4735 = vsel %vm1750, %v4688, 0
      %v4738 = vsel %vm1750, %v4687, 0
      %4740 = vmatprep.subr.bf16.mxu0 0
      %4741 = vmatpush1.bf16.msra.mxu0 %v4705
      %4742 = vmatprep.subr.bf16.mxu0 0
      %4743 = vmatpush1.bf16.msra.mxu0 %v4706
      %4744 = vmatprep.subr.bf16.mxu0 0
      %4745 = vmatpush1.bf16.msra.mxu0 %v4707
      %4746 = vmatprep.subr.bf16.mxu0 0
      %4747 = vmatpush1.bf16.msra.mxu0 %v4708
      %4748 = vmatprep.subr.bf16.mxu0 0
      %4749 = vmatpush1.bf16.msra.mxu0 0
      %4750 = vmatprep.subr.bf16.mxu0 0
      %4751 = vmatpush1.bf16.msra.mxu0 0
      %4752 = vmatprep.subr.bf16.mxu0 0
      %4753 = vmatpush1.bf16.msra.mxu0 0
      %4754 = vmatprep.subr.bf16.mxu0 0
      %4755 = vmatpush1.bf16.msra.mxu0 0
      %4756 = vmatprep.subr.bf16.mxu0 0
      %4757 = vmatpush1.bf16.msra.mxu0 0
      %4758 = vmatprep.subr.bf16.mxu0 0
      %4759 = vmatpush1.bf16.msra.mxu0 0
      %4760 = vmatprep.subr.bf16.mxu0 0
      %4761 = vmatpush1.bf16.msra.mxu0 0
      %4762 = vmatprep.subr.bf16.mxu0 0
      %4763 = vmatpush1.bf16.msra.mxu0 0
      %4764 = vmatprep.subr.bf16.mxu0 0
      %4765 = vmatpush1.bf16.msra.mxu0 0
      %4766 = vmatprep.subr.bf16.mxu0 0
      %4767 = vmatpush1.bf16.msra.mxu0 0
      %4768 = vmatprep.subr.bf16.mxu0 0
      %4769 = vmatpush1.bf16.msra.mxu0 0
      %4770 = vmatprep.subr.bf16.mxu0 0
      %4771 = vmatpush1.bf16.msra.mxu0 0
      %4772 = vmatprep.mubr.bf16.mxu0 0
      %4773 = vmatmul.mubr.bf16.gmra.mrb[0].mxu0 %v4714
      %v4774 = vpop.f32.mrb[0].mxu0
      %v4775 = vadd.f32 0.0, %v4774
      %v4776 = vpop.f32.mrb[0].mxu0
      %v4777 = vpop.f32.mrb[0].mxu0
      %v4778 = vadd.f32 0.0, %v4777
      %v4779 = vpop.f32.mrb[0].mxu0
      %4780 = vmatprep.mubr.bf16.mxu0 0
      %4781 = vmatmul.mubr.bf16.gmra.mrb[0].mxu0 %v4717
      %v4782 = vpop.f32.mrb[0].mxu0
      %v4783 = vadd.f32 0.0, %v4782
      %v4784 = vpop.f32.mrb[0].mxu0
      %v4785 = vpop.f32.mrb[0].mxu0
      %v4786 = vadd.f32 0.0, %v4785
      %v4787 = vpop.f32.mrb[0].mxu0
      %4788 = vmatprep.mubr.bf16.mxu0 0
      %4789 = vmatmul.mubr.bf16.gmra.mrb[0].mxu0 %v4720
      %v4790 = vpop.f32.mrb[0].mxu0
      %v4791 = vadd.f32 0.0, %v4790
      %v4792 = vpop.f32.mrb[0].mxu0
      %v4793 = vpop.f32.mrb[0].mxu0
      %v4794 = vadd.f32 0.0, %v4793
      %v4795 = vpop.f32.mrb[0].mxu0
      %4796 = vmatprep.mubr.bf16.mxu0 0
      %4797 = vmatmul.mubr.bf16.gmra.mrb[0].mxu0 %v4723
      %v4798 = vpop.f32.mrb[0].mxu0
      %v4799 = vadd.f32 0.0, %v4798
      %v4800 = vpop.f32.mrb[0].mxu0
      %v4801 = vpop.f32.mrb[0].mxu0
      %v4802 = vadd.f32 0.0, %v4801
      %v4803 = vpop.f32.mrb[0].mxu0
      %4804 = vmatprep.mubr.bf16.mxu0 0
      %4805 = vmatmul.mubr.bf16.gmra.mrb[0].mxu0 %v4726
      %v4806 = vpop.f32.mrb[0].mxu0
      %v4807 = vadd.f32 0.0, %v4806
      %v4808 = vpop.f32.mrb[0].mxu0
      %v4809 = vpop.f32.mrb[0].mxu0
      %v4810 = vadd.f32 0.0, %v4809
      %v4811 = vpop.f32.mrb[0].mxu0
      %4812 = vmatprep.mubr.bf16.mxu0 0
      %4813 = vmatmul.mubr.bf16.gmra.mrb[0].mxu0 %v4729
      %v4814 = vpop.f32.mrb[0].mxu0
      %v4815 = vadd.f32 0.0, %v4814
      %v4816 = vpop.f32.mrb[0].mxu0
      %v4817 = vpop.f32.mrb[0].mxu0
      %v4818 = vadd.f32 0.0, %v4817
      %v4819 = vpop.f32.mrb[0].mxu0
      %4820 = vmatprep.mubr.bf16.mxu0 0
      %4821 = vmatmul.mubr.bf16.gmra.mrb[0].mxu0 %v4732
      %v4822 = vpop.f32.mrb[0].mxu0
      %v4823 = vadd.f32 0.0, %v4822
      %v4824 = vpop.f32.mrb[0].mxu0
      %v4825 = vpop.f32.mrb[0].mxu0
      %v4826 = vadd.f32 0.0, %v4825
      %v4827 = vpop.f32.mrb[0].mxu0
      %4828 = vmatprep.mubr.bf16.mxu0 0
      %4829 = vmatmul.mubr.bf16.gmra.mrb[0].mxu0 %v4735
      %v4830 = vpop.f32.mrb[0].mxu0
      %v4831 = vadd.f32 0.0, %v4830
      %v4832 = vpop.f32.mrb[0].mxu0
      %v4833 = vpop.f32.mrb[0].mxu0
      %v4834 = vadd.f32 0.0, %v4833
      %v4835 = vpop.f32.mrb[0].mxu0
      %4836 = vmatprep.mubr.bf16.mxu0 0
      %4837 = vmatmul.mubr.bf16.gmra.mrb[0].mxu0 %v4738
      %v4838 = vpop.f32.mrb[0].mxu0
      %v4839 = vadd.f32 0.0, %v4838
      %v4840 = vpop.f32.mrb[0].mxu0
      %v4841 = vpop.f32.mrb[0].mxu0
      %v4842 = vpop.f32.mrb[0].mxu0
      %4843 = vdwg.mxu0
      %v4844 = vadd.f32 %v4614, %v4775
      %v4845 = vadd.f32 %v4615, %v4778
      %v4846 = vadd.f32 %v4616, %v4783
      %v4847 = vadd.f32 %v4617, %v4786
      %v4848 = vadd.f32 %v4618, %v4791
      %v4849 = vadd.f32 %v4619, %v4794
      %v4850 = vadd.f32 %v4620, %v4799
      %v4851 = vadd.f32 %v4621, %v4802
      %v4852 = vadd.f32 %v4622, %v4807
      %v4853 = vadd.f32 %v4623, %v4810
      %v4854 = vadd.f32 %v4624, %v4815
      %v4855 = vadd.f32 %v4625, %v4818
      %v4856 = vadd.f32 %v4626, %v4823
      %v4857 = vadd.f32 %v4627, %v4826
      %v4858 = vadd.f32 %v4628, %v4831
      %v4859 = vadd.f32 %v4629, %v4834
      %v4860 = vadd.f32 %v4630, %v4839
      %s4861 = scalar_lea.vmem %s3, 448
      %v4862 = vld [vmem:[%s4861] sm:$0xf]
      %v4863 = vld [vmem:[%s4861 + $0x4] sm:$0xf]
      %v4864 = vld [vmem:[%s4861 + $0x8] sm:$0xf]
      %v4865 = vld [vmem:[%s4861 + $0xc] sm:$0xf]
      %v4866 = vld [vmem:[%s4861 + $0x10] sm:$0xf]
      %v4867 = vld [vmem:[%s4861 + $0x14] sm:$0xf]
      %v4868 = vld [vmem:[%s4861 + $0x18] sm:$0xf]
      %v4869 = vld [vmem:[%s4861 + $0x1c] sm:$0xf]
      %v4870 = vpack.c.b16 %v3949, %v3948
      %v4871 = vpack.c.b16 %v3951, %v3950
      %v4872 = vpack.c.b16 %v3953, %v3952
      %v4873 = vpack.c.b16 %v3955, %v3954
      %v4874 = vpack.c.b16 %v3957, %v3956
      %v4875 = vpack.c.b16 %v3959, %v3958
      %v4876 = vpack.c.b16 %v3961, %v3960
      %v4877 = vpack.c.b16 %v3963, %v3962
      %v4878 = vpack.c.b16 %v4642, %v4642
      %v4887 = vunpack.c.l.b16 %v4862
      %v4888 = vunpack.c.l.b16 %v4863
      %v4889 = vunpack.c.l.b16 %v4864
      %v4890 = vunpack.c.l.b16 %v4865
      %v4891 = vunpack.c.l.b16 %v4866
      %v4892 = vunpack.c.l.b16 %v4867
      %v4893 = vunpack.c.l.b16 %v4868
      %v4894 = vunpack.c.l.b16 %v4869
      %v4895 = vpack.c.b16 %v4888, %v4887
      %v4896 = vpack.c.b16 %v4890, %v4889
      %v4897 = vpack.c.b16 %v4892, %v4891
      %v4898 = vpack.c.b16 %v4894, %v4893
      %v4904 = vsel %vm1750, %v4870, 0
      %v4907 = vsel %vm1750, %v4871, 0
      %v4910 = vsel %vm1750, %v4872, 0
      %v4913 = vsel %vm1750, %v4873, 0
      %v4916 = vsel %vm1750, %v4874, 0
      %v4919 = vsel %vm1750, %v4875, 0
      %v4922 = vsel %vm1750, %v4876, 0
      %v4925 = vsel %vm1750, %v4877, 0
      %v4928 = vsel %vm1750, %v4878, 0
      %4930 = vmatprep.subr.bf16.mxu0 0
      %4931 = vmatpush1.bf16.msra.mxu0 %v4895
      %4932 = vmatprep.subr.bf16.mxu0 0
      %4933 = vmatpush1.bf16.msra.mxu0 %v4896
      %4934 = vmatprep.subr.bf16.mxu0 0
      %4935 = vmatpush1.bf16.msra.mxu0 %v4897
      %4936 = vmatprep.subr.bf16.mxu0 0
      %4937 = vmatpush1.bf16.msra.mxu0 %v4898
      %4938 = vmatprep.subr.bf16.mxu0 0
      %4939 = vmatpush1.bf16.msra.mxu0 0
      %4940 = vmatprep.subr.bf16.mxu0 0
      %4941 = vmatpush1.bf16.msra.mxu0 0
      %4942 = vmatprep.subr.bf16.mxu0 0
      %4943 = vmatpush1.bf16.msra.mxu0 0
      %4944 = vmatprep.subr.bf16.mxu0 0
      %4945 = vmatpush1.bf16.msra.mxu0 0
      %4946 = vmatprep.subr.bf16.mxu0 0
      %4947 = vmatpush1.bf16.msra.mxu0 0
      %4948 = vmatprep.subr.bf16.mxu0 0
      %4949 = vmatpush1.bf16.msra.mxu0 0
      %4950 = vmatprep.subr.bf16.mxu0 0
      %4951 = vmatpush1.bf16.msra.mxu0 0
      %4952 = vmatprep.subr.bf16.mxu0 0
      %4953 = vmatpush1.bf16.msra.mxu0 0
      %4954 = vmatprep.subr.bf16.mxu0 0
      %4955 = vmatpush1.bf16.msra.mxu0 0
      %4956 = vmatprep.subr.bf16.mxu0 0
      %4957 = vmatpush1.bf16.msra.mxu0 0
      %4958 = vmatprep.subr.bf16.mxu0 0
      %4959 = vmatpush1.bf16.msra.mxu0 0
      %4960 = vmatprep.subr.bf16.mxu0 0
      %4961 = vmatpush1.bf16.msra.mxu0 0
      %4962 = vmatprep.mubr.bf16.mxu0 0
      %4963 = vmatmul.mubr.bf16.gmra.mrb[0].mxu0 %v4904
      %v4964 = vpop.f32.mrb[0].mxu0
      %v4965 = vadd.f32 0.0, %v4964
      %v4966 = vpop.f32.mrb[0].mxu0
      %v4967 = vpop.f32.mrb[0].mxu0
      %v4968 = vadd.f32 0.0, %v4967
      %v4969 = vpop.f32.mrb[0].mxu0
      %4970 = vmatprep.mubr.bf16.mxu0 0
      %4971 = vmatmul.mubr.bf16.gmra.mrb[0].mxu0 %v4907
      %v4972 = vpop.f32.mrb[0].mxu0
      %v4973 = vadd.f32 0.0, %v4972
      %v4974 = vpop.f32.mrb[0].mxu0
      %v4975 = vpop.f32.mrb[0].mxu0
      %v4976 = vadd.f32 0.0, %v4975
      %v4977 = vpop.f32.mrb[0].mxu0
      %4978 = vmatprep.mubr.bf16.mxu0 0
      %4979 = vmatmul.mubr.bf16.gmra.mrb[0].mxu0 %v4910
      %v4980 = vpop.f32.mrb[0].mxu0
      %v4981 = vadd.f32 0.0, %v4980
      %v4982 = vpop.f32.mrb[0].mxu0
      %v4983 = vpop.f32.mrb[0].mxu0
      %v4984 = vadd.f32 0.0, %v4983
      %v4985 = vpop.f32.mrb[0].mxu0
      %4986 = vmatprep.mubr.bf16.mxu0 0
      %4987 = vmatmul.mubr.bf16.gmra.mrb[0].mxu0 %v4913
      %v4988 = vpop.f32.mrb[0].mxu0
      %v4989 = vadd.f32 0.0, %v4988
      %v4990 = vpop.f32.mrb[0].mxu0
      %v4991 = vpop.f32.mrb[0].mxu0
      %v4992 = vadd.f32 0.0, %v4991
      %v4993 = vpop.f32.mrb[0].mxu0
      %4994 = vmatprep.mubr.bf16.mxu0 0
      %4995 = vmatmul.mubr.bf16.gmra.mrb[0].mxu0 %v4916
      %v4996 = vpop.f32.mrb[0].mxu0
      %v4997 = vadd.f32 0.0, %v4996
      %v4998 = vpop.f32.mrb[0].mxu0
      %v4999 = vpop.f32.mrb[0].mxu0
      %v5000 = vadd.f32 0.0, %v4999
      %v5001 = vpop.f32.mrb[0].mxu0
      %5002 = vmatprep.mubr.bf16.mxu0 0
      %5003 = vmatmul.mubr.bf16.gmra.mrb[0].mxu0 %v4919
      %v5004 = vpop.f32.mrb[0].mxu0
      %v5005 = vadd.f32 0.0, %v5004
      %v5006 = vpop.f32.mrb[0].mxu0
      %v5007 = vpop.f32.mrb[0].mxu0
      %v5008 = vadd.f32 0.0, %v5007
      %v5009 = vpop.f32.mrb[0].mxu0
      %5010 = vmatprep.mubr.bf16.mxu0 0
      %5011 = vmatmul.mubr.bf16.gmra.mrb[0].mxu0 %v4922
      %v5012 = vpop.f32.mrb[0].mxu0
      %v5013 = vadd.f32 0.0, %v5012
      %v5014 = vpop.f32.mrb[0].mxu0
      %v5015 = vpop.f32.mrb[0].mxu0
      %v5016 = vadd.f32 0.0, %v5015
      %v5017 = vpop.f32.mrb[0].mxu0
      %5018 = vmatprep.mubr.bf16.mxu0 0
      %5019 = vmatmul.mubr.bf16.gmra.mrb[0].mxu0 %v4925
      %v5020 = vpop.f32.mrb[0].mxu0
      %v5021 = vadd.f32 0.0, %v5020
      %v5022 = vpop.f32.mrb[0].mxu0
      %v5023 = vpop.f32.mrb[0].mxu0
      %v5024 = vadd.f32 0.0, %v5023
      %v5025 = vpop.f32.mrb[0].mxu0
      %5026 = vmatprep.mubr.bf16.mxu0 0
      %5027 = vmatmul.mubr.bf16.gmra.mrb[0].mxu0 %v4928
      %v5028 = vpop.f32.mrb[0].mxu0
      %v5029 = vadd.f32 0.0, %v5028
      %v5030 = vpop.f32.mrb[0].mxu0
      %v5031 = vpop.f32.mrb[0].mxu0
      %v5032 = vpop.f32.mrb[0].mxu0
      %5033 = vdwg.mxu0
      %v5034 = vadd.f32 %v4844, %v4965
      %v5035 = vadd.f32 %v4845, %v4968
      %v5036 = vadd.f32 %v4846, %v4973
      %v5037 = vadd.f32 %v4847, %v4976
      %v5038 = vadd.f32 %v4848, %v4981
      %v5039 = vadd.f32 %v4849, %v4984
      %v5040 = vadd.f32 %v4850, %v4989
      %v5041 = vadd.f32 %v4851, %v4992
      %v5042 = vadd.f32 %v4852, %v4997
      %v5043 = vadd.f32 %v4853, %v5000
      %v5044 = vadd.f32 %v4854, %v5005
      %v5045 = vadd.f32 %v4855, %v5008
      %v5046 = vadd.f32 %v4856, %v5013
      %v5047 = vadd.f32 %v4857, %v5016
      %v5048 = vadd.f32 %v4858, %v5021
      %v5049 = vadd.f32 %v4859, %v5024
      %v5050 = vadd.f32 %v4860, %v5029
      %v5051 = vld [vmem:[#allocation2 + $0x14] sm:$0xe]
      %v5052 = vld [vmem:[#allocation2 + $0x18] sm:$0xf]
      %v5053 = vld [vmem:[#allocation2 + $0x1c] sm:$0xf]
      %v5054 = vld [vmem:[#allocation2 + $0x20] sm:$0xf]
      %v5055 = vld [vmem:[#allocation2 + $0x24] sm:$0xf]
      %v5056 = vld [vmem:[#allocation2 + $0x28] sm:$0xf]
      %v5057 = vld [vmem:[#allocation2 + $0x2c] sm:$0xf]
      %v5058 = vld [vmem:[#allocation2 + $0x30] sm:$0xf]
      %v5059 = vld [vmem:[#allocation2 + $0x34] sm:$0xf]
      %v5060 = vld [vmem:[#allocation2 + $0x38] sm:$0xf]
      %v5061 = vld [vmem:[#allocation2 + $0x3c] sm:$0xf]
      %v5062 = vld [vmem:[#allocation2 + $0x40] sm:$0xf]
      %v5063 = vld [vmem:[#allocation2 + $0x44] sm:$0xf]
      %v5064 = vld [vmem:[#allocation2 + $0x48] sm:$0xf]
      %v5065 = vld [vmem:[#allocation2 + $0x4c] sm:$0xf]
      %v5066 = vld [vmem:[#allocation2 + $0x50] sm:$0xf]
      %v5067 = vld [vmem:[#allocation2 + $0x54] sm:$0xf]
      %v5068 = vld [vmem:[#allocation2 + $0x58] sm:$0x1]
      %s5069 = scalar_lea.vmem %s3, 480
      %v5070 = vld [vmem:[%s5069] sm:$0xf]
      %v5071 = vld [vmem:[%s5069 + $0x4] sm:$0xf]
      %v5072 = vld [vmem:[%s5069 + $0x8] sm:$0xf]
      %v5073 = vld [vmem:[%s5069 + $0xc] sm:$0xf]
      %v5074 = vld [vmem:[%s5069 + $0x10] sm:$0xf]
      %v5075 = vld [vmem:[%s5069 + $0x14] sm:$0xf]
      %v5076 = vld [vmem:[%s5069 + $0x18] sm:$0xf]
      %v5077 = vld [vmem:[%s5069 + $0x1c] sm:$0xf]
      %v5096 = vunpack.c.l.b16 %v5051
      %v5097 = vunpack.c.l.b16 %v5052
      %v5098 = vunpack.c.l.b16 %v5053
      %v5099 = vunpack.c.l.b16 %v5054
      %v5100 = vunpack.c.l.b16 %v5055
      %v5101 = vunpack.c.l.b16 %v5056
      %v5102 = vunpack.c.l.b16 %v5057
      %v5103 = vunpack.c.l.b16 %v5058
      %v5104 = vunpack.c.l.b16 %v5059
      %v5105 = vunpack.c.l.b16 %v5060
      %v5106 = vunpack.c.l.b16 %v5061
      %v5107 = vunpack.c.l.b16 %v5062
      %v5108 = vunpack.c.l.b16 %v5063
      %v5109 = vunpack.c.l.b16 %v5064
      %v5110 = vunpack.c.l.b16 %v5065
      %v5111 = vunpack.c.l.b16 %v5066
      %v5112 = vunpack.c.l.b16 %v5067
      %v5113 = vunpack.c.l.b16 %v5068
      %v5114 = vpack.c.b16 %v5097, %v5096
      %v5115 = vpack.c.b16 %v5099, %v5098
      %v5116 = vpack.c.b16 %v5101, %v5100
      %v5117 = vpack.c.b16 %v5103, %v5102
      %v5118 = vpack.c.b16 %v5105, %v5104
      %v5119 = vpack.c.b16 %v5107, %v5106
      %v5120 = vpack.c.b16 %v5109, %v5108
      %v5121 = vpack.c.b16 %v5111, %v5110
      %v5122 = vpack.c.b16 %v5113, %v5112
      %v5123 = vrot.slane %v5114, 1
      %v5124 = vrot.slane %v5115, 1
      %v5125 = vsel %vm2043, %v5123, %v5124
      %v5126 = vrot.slane %v5116, 1
      %v5127 = vsel %vm2043, %v5124, %v5126
      %v5128 = vrot.slane %v5117, 1
      %v5129 = vsel %vm2043, %v5126, %v5128
      %v5130 = vrot.slane %v5118, 1
      %v5131 = vsel %vm2043, %v5128, %v5130
      %v5132 = vrot.slane %v5119, 1
      %v5133 = vsel %vm2043, %v5130, %v5132
      %v5134 = vrot.slane %v5120, 1
      %v5135 = vsel %vm2043, %v5132, %v5134
      %v5136 = vrot.slane %v5121, 1
      %v5137 = vsel %vm2043, %v5134, %v5136
      %v5138 = vrot.slane %v5122, 1
      %v5139 = vsel %vm2043, %v5136, %v5138
      %v5148 = vunpack.c.l.b16 %v5070
      %v5149 = vunpack.c.l.b16 %v5071
      %v5150 = vunpack.c.l.b16 %v5072
      %v5151 = vunpack.c.l.b16 %v5073
      %v5152 = vunpack.c.l.b16 %v5074
      %v5153 = vunpack.c.l.b16 %v5075
      %v5154 = vunpack.c.l.b16 %v5076
      %v5155 = vunpack.c.l.b16 %v5077
      %v5156 = vpack.c.b16 %v5149, %v5148
      %v5157 = vpack.c.b16 %v5151, %v5150
      %v5158 = vpack.c.b16 %v5153, %v5152
      %v5159 = vpack.c.b16 %v5155, %v5154
      %v5165 = vsel %vm1750, %v5125, 0
      %v5168 = vsel %vm1750, %v5127, 0
      %v5171 = vsel %vm1750, %v5129, 0
      %v5174 = vsel %vm1750, %v5131, 0
      %v5177 = vsel %vm1750, %v5133, 0
      %v5180 = vsel %vm1750, %v5135, 0
      %v5183 = vsel %vm1750, %v5137, 0
      %v5186 = vsel %vm1750, %v5139, 0
      %v5189 = vsel %vm1750, %v5138, 0
      %5191 = vmatprep.subr.bf16.mxu0 0
      %5192 = vmatpush1.bf16.msra.mxu0 %v5156
      %5193 = vmatprep.subr.bf16.mxu0 0
      %5194 = vmatpush1.bf16.msra.mxu0 %v5157
      %5195 = vmatprep.subr.bf16.mxu0 0
      %5196 = vmatpush1.bf16.msra.mxu0 %v5158
      %5197 = vmatprep.subr.bf16.mxu0 0
      %5198 = vmatpush1.bf16.msra.mxu0 %v5159
      %5199 = vmatprep.subr.bf16.mxu0 0
      %5200 = vmatpush1.bf16.msra.mxu0 0
      %5201 = vmatprep.subr.bf16.mxu0 0
      %5202 = vmatpush1.bf16.msra.mxu0 0
      %5203 = vmatprep.subr.bf16.mxu0 0
      %5204 = vmatpush1.bf16.msra.mxu0 0
      %5205 = vmatprep.subr.bf16.mxu0 0
      %5206 = vmatpush1.bf16.msra.mxu0 0
      %5207 = vmatprep.subr.bf16.mxu0 0
      %5208 = vmatpush1.bf16.msra.mxu0 0
      %5209 = vmatprep.subr.bf16.mxu0 0
      %5210 = vmatpush1.bf16.msra.mxu0 0
      %5211 = vmatprep.subr.bf16.mxu0 0
      %5212 = vmatpush1.bf16.msra.mxu0 0
      %5213 = vmatprep.subr.bf16.mxu0 0
      %5214 = vmatpush1.bf16.msra.mxu0 0
      %5215 = vmatprep.subr.bf16.mxu0 0
      %5216 = vmatpush1.bf16.msra.mxu0 0
      %5217 = vmatprep.subr.bf16.mxu0 0
      %5218 = vmatpush1.bf16.msra.mxu0 0
      %5219 = vmatprep.subr.bf16.mxu0 0
      %5220 = vmatpush1.bf16.msra.mxu0 0
      %5221 = vmatprep.subr.bf16.mxu0 0
      %5222 = vmatpush1.bf16.msra.mxu0 0
      %5223 = vmatprep.mubr.bf16.mxu0 0
      %5224 = vmatmul.mubr.bf16.gmra.mrb[0].mxu0 %v5165
      %v5225 = vpop.f32.mrb[0].mxu0
      %v5226 = vadd.f32 0.0, %v5225
      %v5227 = vpop.f32.mrb[0].mxu0
      %v5228 = vpop.f32.mrb[0].mxu0
      %v5229 = vadd.f32 0.0, %v5228
      %v5230 = vpop.f32.mrb[0].mxu0
      %5231 = vmatprep.mubr.bf16.mxu0 0
      %5232 = vmatmul.mubr.bf16.gmra.mrb[0].mxu0 %v5168
      %v5233 = vpop.f32.mrb[0].mxu0
      %v5234 = vadd.f32 0.0, %v5233
      %v5235 = vpop.f32.mrb[0].mxu0
      %v5236 = vpop.f32.mrb[0].mxu0
      %v5237 = vadd.f32 0.0, %v5236
      %v5238 = vpop.f32.mrb[0].mxu0
      %5239 = vmatprep.mubr.bf16.mxu0 0
      %5240 = vmatmul.mubr.bf16.gmra.mrb[0].mxu0 %v5171
      %v5241 = vpop.f32.mrb[0].mxu0
      %v5242 = vadd.f32 0.0, %v5241
      %v5243 = vpop.f32.mrb[0].mxu0
      %v5244 = vpop.f32.mrb[0].mxu0
      %v5245 = vadd.f32 0.0, %v5244
      %v5246 = vpop.f32.mrb[0].mxu0
      %5247 = vmatprep.mubr.bf16.mxu0 0
      %5248 = vmatmul.mubr.bf16.gmra.mrb[0].mxu0 %v5174
      %v5249 = vpop.f32.mrb[0].mxu0
      %v5250 = vadd.f32 0.0, %v5249
      %v5251 = vpop.f32.mrb[0].mxu0
      %v5252 = vpop.f32.mrb[0].mxu0
      %v5253 = vadd.f32 0.0, %v5252
      %v5254 = vpop.f32.mrb[0].mxu0
      %5255 = vmatprep.mubr.bf16.mxu0 0
      %5256 = vmatmul.mubr.bf16.gmra.mrb[0].mxu0 %v5177
      %v5257 = vpop.f32.mrb[0].mxu0
      %v5258 = vadd.f32 0.0, %v5257
      %v5259 = vpop.f32.mrb[0].mxu0
      %v5260 = vpop.f32.mrb[0].mxu0
      %v5261 = vadd.f32 0.0, %v5260
      %v5262 = vpop.f32.mrb[0].mxu0
      %5263 = vmatprep.mubr.bf16.mxu0 0
      %5264 = vmatmul.mubr.bf16.gmra.mrb[0].mxu0 %v5180
      %v5265 = vpop.f32.mrb[0].mxu0
      %v5266 = vadd.f32 0.0, %v5265
      %v5267 = vpop.f32.mrb[0].mxu0
      %v5268 = vpop.f32.mrb[0].mxu0
      %v5269 = vadd.f32 0.0, %v5268
      %v5270 = vpop.f32.mrb[0].mxu0
      %5271 = vmatprep.mubr.bf16.mxu0 0
      %5272 = vmatmul.mubr.bf16.gmra.mrb[0].mxu0 %v5183
      %v5273 = vpop.f32.mrb[0].mxu0
      %v5274 = vadd.f32 0.0, %v5273
      %v5275 = vpop.f32.mrb[0].mxu0
      %v5276 = vpop.f32.mrb[0].mxu0
      %v5277 = vadd.f32 0.0, %v5276
      %v5278 = vpop.f32.mrb[0].mxu0
      %5279 = vmatprep.mubr.bf16.mxu0 0
      %5280 = vmatmul.mubr.bf16.gmra.mrb[0].mxu0 %v5186
      %v5281 = vpop.f32.mrb[0].mxu0
      %v5282 = vadd.f32 0.0, %v5281
      %v5283 = vpop.f32.mrb[0].mxu0
      %v5284 = vpop.f32.mrb[0].mxu0
      %v5285 = vadd.f32 0.0, %v5284
      %v5286 = vpop.f32.mrb[0].mxu0
      %5287 = vmatprep.mubr.bf16.mxu0 0
      %5288 = vmatmul.mubr.bf16.gmra.mrb[0].mxu0 %v5189
      %v5289 = vpop.f32.mrb[0].mxu0
      %v5290 = vadd.f32 0.0, %v5289
      %v5291 = vpop.f32.mrb[0].mxu0
      %v5292 = vpop.f32.mrb[0].mxu0
      %v5293 = vpop.f32.mrb[0].mxu0
      %5294 = vdwg.mxu0
      %v5295 = vadd.f32 %v5034, %v5226
      %v5296 = vadd.f32 %v5035, %v5229
      %v5297 = vadd.f32 %v5036, %v5234
      %v5298 = vadd.f32 %v5037, %v5237
      %v5299 = vadd.f32 %v5038, %v5242
      %v5300 = vadd.f32 %v5039, %v5245
      %v5301 = vadd.f32 %v5040, %v5250
      %v5302 = vadd.f32 %v5041, %v5253
      %v5303 = vadd.f32 %v5042, %v5258
      %v5304 = vadd.f32 %v5043, %v5261
      %v5305 = vadd.f32 %v5044, %v5266
      %v5306 = vadd.f32 %v5045, %v5269
      %v5307 = vadd.f32 %v5046, %v5274
      %v5308 = vadd.f32 %v5047, %v5277
      %v5309 = vadd.f32 %v5048, %v5282
      %v5310 = vadd.f32 %v5049, %v5285
      %v5311 = vadd.f32 %v5050, %v5290
      %v5312 = vld [vmem:[#allocation2 + $0x58] sm:$0x3]
      %s5313 = scalar_lea.vmem %s3, 512
      %v5314 = vld [vmem:[%s5313] sm:$0xf]
      %v5315 = vld [vmem:[%s5313 + $0x4] sm:$0xf]
      %v5316 = vld [vmem:[%s5313 + $0x8] sm:$0xf]
      %v5317 = vld [vmem:[%s5313 + $0xc] sm:$0xf]
      %v5318 = vld [vmem:[%s5313 + $0x10] sm:$0xf]
      %v5319 = vld [vmem:[%s5313 + $0x14] sm:$0xf]
      %v5320 = vld [vmem:[%s5313 + $0x18] sm:$0xf]
      %v5321 = vld [vmem:[%s5313 + $0x1c] sm:$0xf]
      %v5323 = vunpack.c.l.b16 %v5312
      %v5324 = vpack.c.b16 %v5323, %v5112
      %v5326 = vshrl.u32 %v5114, 16
      %v5328 = vrot.slane %v5326, 1
      %v5329 = vshll.u32 %v5114, 16
      %v5331 = vrot.slane %v5329, 2
      %v5332 = vor.u32 %v5328, %v5331
      %v5334 = vshrl.u32 %v5115, 16
      %v5336 = vrot.slane %v5334, 1
      %v5337 = vshll.u32 %v5115, 16
      %v5339 = vrot.slane %v5337, 2
      %v5340 = vor.u32 %v5336, %v5339
      %v5341 = vsel %vm2246, %v5332, %v5340
      %v5343 = vshrl.u32 %v5116, 16
      %v5345 = vrot.slane %v5343, 1
      %v5346 = vshll.u32 %v5116, 16
      %v5348 = vrot.slane %v5346, 2
      %v5349 = vor.u32 %v5345, %v5348
      %v5350 = vsel %vm2246, %v5340, %v5349
      %v5352 = vshrl.u32 %v5117, 16
      %v5354 = vrot.slane %v5352, 1
      %v5355 = vshll.u32 %v5117, 16
      %v5357 = vrot.slane %v5355, 2
      %v5358 = vor.u32 %v5354, %v5357
      %v5359 = vsel %vm2246, %v5349, %v5358
      %v5361 = vshrl.u32 %v5118, 16
      %v5363 = vrot.slane %v5361, 1
      %v5364 = vshll.u32 %v5118, 16
      %v5366 = vrot.slane %v5364, 2
      %v5367 = vor.u32 %v5363, %v5366
      %v5368 = vsel %vm2246, %v5358, %v5367
      %v5370 = vshrl.u32 %v5119, 16
      %v5372 = vrot.slane %v5370, 1
      %v5373 = vshll.u32 %v5119, 16
      %v5375 = vrot.slane %v5373, 2
      %v5376 = vor.u32 %v5372, %v5375
      %v5377 = vsel %vm2246, %v5367, %v5376
      %v5379 = vshrl.u32 %v5120, 16
      %v5381 = vrot.slane %v5379, 1
      %v5382 = vshll.u32 %v5120, 16
      %v5384 = vrot.slane %v5382, 2
      %v5385 = vor.u32 %v5381, %v5384
      %v5386 = vsel %vm2246, %v5376, %v5385
      %v5388 = vshrl.u32 %v5121, 16
      %v5390 = vrot.slane %v5388, 1
      %v5391 = vshll.u32 %v5121, 16
      %v5393 = vrot.slane %v5391, 2
      %v5394 = vor.u32 %v5390, %v5393
      %v5395 = vsel %vm2246, %v5385, %v5394
      %v5397 = vshrl.u32 %v5324, 16
      %v5399 = vrot.slane %v5397, 1
      %v5400 = vshll.u32 %v5324, 16
      %v5402 = vrot.slane %v5400, 2
      %v5403 = vor.u32 %v5399, %v5402
      %v5404 = vsel %vm2246, %v5394, %v5403
      %v5413 = vunpack.c.l.b16 %v5314
      %v5414 = vunpack.c.l.b16 %v5315
      %v5415 = vunpack.c.l.b16 %v5316
      %v5416 = vunpack.c.l.b16 %v5317
      %v5417 = vunpack.c.l.b16 %v5318
      %v5418 = vunpack.c.l.b16 %v5319
      %v5419 = vunpack.c.l.b16 %v5320
      %v5420 = vunpack.c.l.b16 %v5321
      %v5421 = vpack.c.b16 %v5414, %v5413
      %v5422 = vpack.c.b16 %v5416, %v5415
      %v5423 = vpack.c.b16 %v5418, %v5417
      %v5424 = vpack.c.b16 %v5420, %v5419
      %v5430 = vsel %vm1750, %v5341, 0
      %v5433 = vsel %vm1750, %v5350, 0
      %v5436 = vsel %vm1750, %v5359, 0
      %v5439 = vsel %vm1750, %v5368, 0
      %v5442 = vsel %vm1750, %v5377, 0
      %v5445 = vsel %vm1750, %v5386, 0
      %v5448 = vsel %vm1750, %v5395, 0
      %v5451 = vsel %vm1750, %v5404, 0
      %v5454 = vsel %vm1750, %v5403, 0
      %5456 = vmatprep.subr.bf16.mxu0 0
      %5457 = vmatpush1.bf16.msra.mxu0 %v5421
      %5458 = vmatprep.subr.bf16.mxu0 0
      %5459 = vmatpush1.bf16.msra.mxu0 %v5422
      %5460 = vmatprep.subr.bf16.mxu0 0
      %5461 = vmatpush1.bf16.msra.mxu0 %v5423
      %5462 = vmatprep.subr.bf16.mxu0 0
      %5463 = vmatpush1.bf16.msra.mxu0 %v5424
      %5464 = vmatprep.subr.bf16.mxu0 0
      %5465 = vmatpush1.bf16.msra.mxu0 0
      %5466 = vmatprep.subr.bf16.mxu0 0
      %5467 = vmatpush1.bf16.msra.mxu0 0
      %5468 = vmatprep.subr.bf16.mxu0 0
      %5469 = vmatpush1.bf16.msra.mxu0 0
      %5470 = vmatprep.subr.bf16.mxu0 0
      %5471 = vmatpush1.bf16.msra.mxu0 0
      %5472 = vmatprep.subr.bf16.mxu0 0
      %5473 = vmatpush1.bf16.msra.mxu0 0
      %5474 = vmatprep.subr.bf16.mxu0 0
      %5475 = vmatpush1.bf16.msra.mxu0 0
      %5476 = vmatprep.subr.bf16.mxu0 0
      %5477 = vmatpush1.bf16.msra.mxu0 0
      %5478 = vmatprep.subr.bf16.mxu0 0
      %5479 = vmatpush1.bf16.msra.mxu0 0
      %5480 = vmatprep.subr.bf16.mxu0 0
      %5481 = vmatpush1.bf16.msra.mxu0 0
      %5482 = vmatprep.subr.bf16.mxu0 0
      %5483 = vmatpush1.bf16.msra.mxu0 0
      %5484 = vmatprep.subr.bf16.mxu0 0
      %5485 = vmatpush1.bf16.msra.mxu0 0
      %5486 = vmatprep.subr.bf16.mxu0 0
      %5487 = vmatpush1.bf16.msra.mxu0 0
      %5488 = vmatprep.mubr.bf16.mxu0 0
      %5489 = vmatmul.mubr.bf16.gmra.mrb[0].mxu0 %v5430
      %v5490 = vpop.f32.mrb[0].mxu0
      %v5491 = vadd.f32 0.0, %v5490
      %v5492 = vpop.f32.mrb[0].mxu0
      %v5493 = vpop.f32.mrb[0].mxu0
      %v5494 = vadd.f32 0.0, %v5493
      %v5495 = vpop.f32.mrb[0].mxu0
      %5496 = vmatprep.mubr.bf16.mxu0 0
      %5497 = vmatmul.mubr.bf16.gmra.mrb[0].mxu0 %v5433
      %v5498 = vpop.f32.mrb[0].mxu0
      %v5499 = vadd.f32 0.0, %v5498
      %v5500 = vpop.f32.mrb[0].mxu0
      %v5501 = vpop.f32.mrb[0].mxu0
      %v5502 = vadd.f32 0.0, %v5501
      %v5503 = vpop.f32.mrb[0].mxu0
      %5504 = vmatprep.mubr.bf16.mxu0 0
      %5505 = vmatmul.mubr.bf16.gmra.mrb[0].mxu0 %v5436
      %v5506 = vpop.f32.mrb[0].mxu0
      %v5507 = vadd.f32 0.0, %v5506
      %v5508 = vpop.f32.mrb[0].mxu0
      %v5509 = vpop.f32.mrb[0].mxu0
      %v5510 = vadd.f32 0.0, %v5509
      %v5511 = vpop.f32.mrb[0].mxu0
      %5512 = vmatprep.mubr.bf16.mxu0 0
      %5513 = vmatmul.mubr.bf16.gmra.mrb[0].mxu0 %v5439
      %v5514 = vpop.f32.mrb[0].mxu0
      %v5515 = vadd.f32 0.0, %v5514
      %v5516 = vpop.f32.mrb[0].mxu0
      %v5517 = vpop.f32.mrb[0].mxu0
      %v5518 = vadd.f32 0.0, %v5517
      %v5519 = vpop.f32.mrb[0].mxu0
      %5520 = vmatprep.mubr.bf16.mxu0 0
      %5521 = vmatmul.mubr.bf16.gmra.mrb[0].mxu0 %v5442
      %v5522 = vpop.f32.mrb[0].mxu0
      %v5523 = vadd.f32 0.0, %v5522
      %v5524 = vpop.f32.mrb[0].mxu0
      %v5525 = vpop.f32.mrb[0].mxu0
      %v5526 = vadd.f32 0.0, %v5525
      %v5527 = vpop.f32.mrb[0].mxu0
      %5528 = vmatprep.mubr.bf16.mxu0 0
      %5529 = vmatmul.mubr.bf16.gmra.mrb[0].mxu0 %v5445
      %v5530 = vpop.f32.mrb[0].mxu0
      %v5531 = vadd.f32 0.0, %v5530
      %v5532 = vpop.f32.mrb[0].mxu0
      %v5533 = vpop.f32.mrb[0].mxu0
      %v5534 = vadd.f32 0.0, %v5533
      %v5535 = vpop.f32.mrb[0].mxu0
      %5536 = vmatprep.mubr.bf16.mxu0 0
      %5537 = vmatmul.mubr.bf16.gmra.mrb[0].mxu0 %v5448
      %v5538 = vpop.f32.mrb[0].mxu0
      %v5539 = vadd.f32 0.0, %v5538
      %v5540 = vpop.f32.mrb[0].mxu0
      %v5541 = vpop.f32.mrb[0].mxu0
      %v5542 = vadd.f32 0.0, %v5541
      %v5543 = vpop.f32.mrb[0].mxu0
      %5544 = vmatprep.mubr.bf16.mxu0 0
      %5545 = vmatmul.mubr.bf16.gmra.mrb[0].mxu0 %v5451
      %v5546 = vpop.f32.mrb[0].mxu0
      %v5547 = vadd.f32 0.0, %v5546
      %v5548 = vpop.f32.mrb[0].mxu0
      %v5549 = vpop.f32.mrb[0].mxu0
      %v5550 = vadd.f32 0.0, %v5549
      %v5551 = vpop.f32.mrb[0].mxu0
      %5552 = vmatprep.mubr.bf16.mxu0 0
      %5553 = vmatmul.mubr.bf16.gmra.mrb[0].mxu0 %v5454
      %v5554 = vpop.f32.mrb[0].mxu0
      %v5555 = vadd.f32 0.0, %v5554
      %v5556 = vpop.f32.mrb[0].mxu0
      %v5557 = vpop.f32.mrb[0].mxu0
      %v5558 = vpop.f32.mrb[0].mxu0
      %5559 = vdwg.mxu0
      %v5560 = vadd.f32 %v5295, %v5491
      %v5561 = vadd.f32 %v5296, %v5494
      %v5562 = vadd.f32 %v5297, %v5499
      %v5563 = vadd.f32 %v5298, %v5502
      %v5564 = vadd.f32 %v5299, %v5507
      %v5565 = vadd.f32 %v5300, %v5510
      %v5566 = vadd.f32 %v5301, %v5515
      %v5567 = vadd.f32 %v5302, %v5518
      %v5568 = vadd.f32 %v5303, %v5523
      %v5569 = vadd.f32 %v5304, %v5526
      %v5570 = vadd.f32 %v5305, %v5531
      %v5571 = vadd.f32 %v5306, %v5534
      %v5572 = vadd.f32 %v5307, %v5539
      %v5573 = vadd.f32 %v5308, %v5542
      %v5574 = vadd.f32 %v5309, %v5547
      %v5575 = vadd.f32 %v5310, %v5550
      %v5576 = vadd.f32 %v5311, %v5555
      %v5577 = vld [vmem:[#allocation2 + $0x14] sm:$0xc]
      %s5578 = scalar_lea.vmem %s3, 544
      %v5579 = vld [vmem:[%s5578] sm:$0xf]
      %v5580 = vld [vmem:[%s5578 + $0x4] sm:$0xf]
      %v5581 = vld [vmem:[%s5578 + $0x8] sm:$0xf]
      %v5582 = vld [vmem:[%s5578 + $0xc] sm:$0xf]
      %v5583 = vld [vmem:[%s5578 + $0x10] sm:$0xf]
      %v5584 = vld [vmem:[%s5578 + $0x14] sm:$0xf]
      %v5585 = vld [vmem:[%s5578 + $0x18] sm:$0xf]
      %v5586 = vld [vmem:[%s5578 + $0x1c] sm:$0xf]
      %v5588 = vunpack.c.l.b16 %v5577
      %v5589 = vpack.c.b16 %v5097, %v5588
      %v5590 = vrot.slane %v5589, 2
      %v5591 = vrot.slane %v5115, 2
      %v5592 = vsel %vm2477, %v5590, %v5591
      %v5593 = vrot.slane %v5116, 2
      %v5594 = vsel %vm2477, %v5591, %v5593
      %v5595 = vrot.slane %v5117, 2
      %v5596 = vsel %vm2477, %v5593, %v5595
      %v5597 = vrot.slane %v5118, 2
      %v5598 = vsel %vm2477, %v5595, %v5597
      %v5599 = vrot.slane %v5119, 2
      %v5600 = vsel %vm2477, %v5597, %v5599
      %v5601 = vrot.slane %v5120, 2
      %v5602 = vsel %vm2477, %v5599, %v5601
      %v5603 = vrot.slane %v5121, 2
      %v5604 = vsel %vm2477, %v5601, %v5603
      %v5605 = vrot.slane %v5324, 2
      %v5606 = vsel %vm2477, %v5603, %v5605
      %v5615 = vunpack.c.l.b16 %v5579
      %v5616 = vunpack.c.l.b16 %v5580
      %v5617 = vunpack.c.l.b16 %v5581
      %v5618 = vunpack.c.l.b16 %v5582
      %v5619 = vunpack.c.l.b16 %v5583
      %v5620 = vunpack.c.l.b16 %v5584
      %v5621 = vunpack.c.l.b16 %v5585
      %v5622 = vunpack.c.l.b16 %v5586
      %v5623 = vpack.c.b16 %v5616, %v5615
      %v5624 = vpack.c.b16 %v5618, %v5617
      %v5625 = vpack.c.b16 %v5620, %v5619
      %v5626 = vpack.c.b16 %v5622, %v5621
      %v5632 = vsel %vm1750, %v5592, 0
      %v5635 = vsel %vm1750, %v5594, 0
      %v5638 = vsel %vm1750, %v5596, 0
      %v5641 = vsel %vm1750, %v5598, 0
      %v5644 = vsel %vm1750, %v5600, 0
      %v5647 = vsel %vm1750, %v5602, 0
      %v5650 = vsel %vm1750, %v5604, 0
      %v5653 = vsel %vm1750, %v5606, 0
      %v5656 = vsel %vm1750, %v5605, 0
      %5658 = vmatprep.subr.bf16.mxu0 0
      %5659 = vmatpush1.bf16.msra.mxu0 %v5623
      %5660 = vmatprep.subr.bf16.mxu0 0
      %5661 = vmatpush1.bf16.msra.mxu0 %v5624
      %5662 = vmatprep.subr.bf16.mxu0 0
      %5663 = vmatpush1.bf16.msra.mxu0 %v5625
      %5664 = vmatprep.subr.bf16.mxu0 0
      %5665 = vmatpush1.bf16.msra.mxu0 %v5626
      %5666 = vmatprep.subr.bf16.mxu0 0
      %5667 = vmatpush1.bf16.msra.mxu0 0
      %5668 = vmatprep.subr.bf16.mxu0 0
      %5669 = vmatpush1.bf16.msra.mxu0 0
      %5670 = vmatprep.subr.bf16.mxu0 0
      %5671 = vmatpush1.bf16.msra.mxu0 0
      %5672 = vmatprep.subr.bf16.mxu0 0
      %5673 = vmatpush1.bf16.msra.mxu0 0
      %5674 = vmatprep.subr.bf16.mxu0 0
      %5675 = vmatpush1.bf16.msra.mxu0 0
      %5676 = vmatprep.subr.bf16.mxu0 0
      %5677 = vmatpush1.bf16.msra.mxu0 0
      %5678 = vmatprep.subr.bf16.mxu0 0
      %5679 = vmatpush1.bf16.msra.mxu0 0
      %5680 = vmatprep.subr.bf16.mxu0 0
      %5681 = vmatpush1.bf16.msra.mxu0 0
      %5682 = vmatprep.subr.bf16.mxu0 0
      %5683 = vmatpush1.bf16.msra.mxu0 0
      %5684 = vmatprep.subr.bf16.mxu0 0
      %5685 = vmatpush1.bf16.msra.mxu0 0
      %5686 = vmatprep.subr.bf16.mxu0 0
      %5687 = vmatpush1.bf16.msra.mxu0 0
      %5688 = vmatprep.subr.bf16.mxu0 0
      %5689 = vmatpush1.bf16.msra.mxu0 0
      %5690 = vmatprep.mubr.bf16.mxu0 0
      %5691 = vmatmul.mubr.bf16.gmra.mrb[0].mxu0 %v5632
      %v5692 = vpop.f32.mrb[0].mxu0
      %v5693 = vadd.f32 0.0, %v5692
      %v5694 = vpop.f32.mrb[0].mxu0
      %v5695 = vpop.f32.mrb[0].mxu0
      %v5696 = vadd.f32 0.0, %v5695
      %v5697 = vpop.f32.mrb[0].mxu0
      %5698 = vmatprep.mubr.bf16.mxu0 0
      %5699 = vmatmul.mubr.bf16.gmra.mrb[0].mxu0 %v5635
      %v5700 = vpop.f32.mrb[0].mxu0
      %v5701 = vadd.f32 0.0, %v5700
      %v5702 = vpop.f32.mrb[0].mxu0
      %v5703 = vpop.f32.mrb[0].mxu0
      %v5704 = vadd.f32 0.0, %v5703
      %v5705 = vpop.f32.mrb[0].mxu0
      %5706 = vmatprep.mubr.bf16.mxu0 0
      %5707 = vmatmul.mubr.bf16.gmra.mrb[0].mxu0 %v5638
      %v5708 = vpop.f32.mrb[0].mxu0
      %v5709 = vadd.f32 0.0, %v5708
      %v5710 = vpop.f32.mrb[0].mxu0
      %v5711 = vpop.f32.mrb[0].mxu0
      %v5712 = vadd.f32 0.0, %v5711
      %v5713 = vpop.f32.mrb[0].mxu0
      %5714 = vmatprep.mubr.bf16.mxu0 0
      %5715 = vmatmul.mubr.bf16.gmra.mrb[0].mxu0 %v5641
      %v5716 = vpop.f32.mrb[0].mxu0
      %v5717 = vadd.f32 0.0, %v5716
      %v5718 = vpop.f32.mrb[0].mxu0
      %v5719 = vpop.f32.mrb[0].mxu0
      %v5720 = vadd.f32 0.0, %v5719
      %v5721 = vpop.f32.mrb[0].mxu0
      %5722 = vmatprep.mubr.bf16.mxu0 0
      %5723 = vmatmul.mubr.bf16.gmra.mrb[0].mxu0 %v5644
      %v5724 = vpop.f32.mrb[0].mxu0
      %v5725 = vadd.f32 0.0, %v5724
      %v5726 = vpop.f32.mrb[0].mxu0
      %v5727 = vpop.f32.mrb[0].mxu0
      %v5728 = vadd.f32 0.0, %v5727
      %v5729 = vpop.f32.mrb[0].mxu0
      %5730 = vmatprep.mubr.bf16.mxu0 0
      %5731 = vmatmul.mubr.bf16.gmra.mrb[0].mxu0 %v5647
      %v5732 = vpop.f32.mrb[0].mxu0
      %v5733 = vadd.f32 0.0, %v5732
      %v5734 = vpop.f32.mrb[0].mxu0
      %v5735 = vpop.f32.mrb[0].mxu0
      %v5736 = vadd.f32 0.0, %v5735
      %v5737 = vpop.f32.mrb[0].mxu0
      %5738 = vmatprep.mubr.bf16.mxu0 0
      %5739 = vmatmul.mubr.bf16.gmra.mrb[0].mxu0 %v5650
      %v5740 = vpop.f32.mrb[0].mxu0
      %v5741 = vadd.f32 0.0, %v5740
      %v5742 = vpop.f32.mrb[0].mxu0
      %v5743 = vpop.f32.mrb[0].mxu0
      %v5744 = vadd.f32 0.0, %v5743
      %v5745 = vpop.f32.mrb[0].mxu0
      %5746 = vmatprep.mubr.bf16.mxu0 0
      %5747 = vmatmul.mubr.bf16.gmra.mrb[0].mxu0 %v5653
      %v5748 = vpop.f32.mrb[0].mxu0
      %v5749 = vadd.f32 0.0, %v5748
      %v5750 = vpop.f32.mrb[0].mxu0
      %v5751 = vpop.f32.mrb[0].mxu0
      %v5752 = vadd.f32 0.0, %v5751
      %v5753 = vpop.f32.mrb[0].mxu0
      %5754 = vmatprep.mubr.bf16.mxu0 0
      %5755 = vmatmul.mubr.bf16.gmra.mrb[0].mxu0 %v5656
      %v5756 = vpop.f32.mrb[0].mxu0
      %v5757 = vadd.f32 0.0, %v5756
      %v5758 = vpop.f32.mrb[0].mxu0
      %v5759 = vpop.f32.mrb[0].mxu0
      %v5760 = vpop.f32.mrb[0].mxu0
      %5761 = vdwg.mxu0
      %v5762 = vadd.f32 %v5560, %v5693
      %v5763 = vadd.f32 %v5561, %v5696
      %v5764 = vadd.f32 %v5562, %v5701
      %v5765 = vadd.f32 %v5563, %v5704
      %v5766 = vadd.f32 %v5564, %v5709
      %v5767 = vadd.f32 %v5565, %v5712
      %v5768 = vadd.f32 %v5566, %v5717
      %v5769 = vadd.f32 %v5567, %v5720
      %v5770 = vadd.f32 %v5568, %v5725
      %v5771 = vadd.f32 %v5569, %v5728
      %v5772 = vadd.f32 %v5570, %v5733
      %v5773 = vadd.f32 %v5571, %v5736
      %v5774 = vadd.f32 %v5572, %v5741
      %v5775 = vadd.f32 %v5573, %v5744
      %v5776 = vadd.f32 %v5574, %v5749
      %v5777 = vadd.f32 %v5575, %v5752
      %v5778 = vadd.f32 %v5576, %v5757
      %v5779 = vld [vmem:[#allocation2 + $0x58] sm:$0x7]
      %s5780 = scalar_lea.vmem %s3, 576
      %v5781 = vld [vmem:[%s5780] sm:$0xf]
      %v5782 = vld [vmem:[%s5780 + $0x4] sm:$0xf]
      %v5783 = vld [vmem:[%s5780 + $0x8] sm:$0xf]
      %v5784 = vld [vmem:[%s5780 + $0xc] sm:$0xf]
      %v5785 = vld [vmem:[%s5780 + $0x10] sm:$0xf]
      %v5786 = vld [vmem:[%s5780 + $0x14] sm:$0xf]
      %v5787 = vld [vmem:[%s5780 + $0x18] sm:$0xf]
      %v5788 = vld [vmem:[%s5780 + $0x1c] sm:$0xf]
      %v5790 = vunpack.c.l.b16 %v5779
      %v5791 = vpack.c.b16 %v5790, %v5112
      %v5793 = vshrl.u32 %v5589, 16
      %v5795 = vrot.slane %v5793, 2
      %v5796 = vshll.u32 %v5589, 16
      %v5798 = vrot.slane %v5796, 3
      %v5799 = vor.u32 %v5795, %v5798
      %v5800 = vrot.slane %v5334, 2
      %v5801 = vrot.slane %v5337, 3
      %v5802 = vor.u32 %v5800, %v5801
      %v5803 = vsel %vm4176, %v5799, %v5802
      %v5804 = vrot.slane %v5343, 2
      %v5805 = vrot.slane %v5346, 3
      %v5806 = vor.u32 %v5804, %v5805
      %v5807 = vsel %vm4176, %v5802, %v5806
      %v5808 = vrot.slane %v5352, 2
      %v5809 = vrot.slane %v5355, 3
      %v5810 = vor.u32 %v5808, %v5809
      %v5811 = vsel %vm4176, %v5806, %v5810
      %v5812 = vrot.slane %v5361, 2
      %v5813 = vrot.slane %v5364, 3
      %v5814 = vor.u32 %v5812, %v5813
      %v5815 = vsel %vm4176, %v5810, %v5814
      %v5816 = vrot.slane %v5370, 2
      %v5817 = vrot.slane %v5373, 3
      %v5818 = vor.u32 %v5816, %v5817
      %v5819 = vsel %vm4176, %v5814, %v5818
      %v5820 = vrot.slane %v5379, 2
      %v5821 = vrot.slane %v5382, 3
      %v5822 = vor.u32 %v5820, %v5821
      %v5823 = vsel %vm4176, %v5818, %v5822
      %v5824 = vrot.slane %v5388, 2
      %v5825 = vrot.slane %v5391, 3
      %v5826 = vor.u32 %v5824, %v5825
      %v5827 = vsel %vm4176, %v5822, %v5826
      %v5829 = vshrl.u32 %v5791, 16
      %v5831 = vrot.slane %v5829, 2
      %v5832 = vshll.u32 %v5791, 16
      %v5834 = vrot.slane %v5832, 3
      %v5835 = vor.u32 %v5831, %v5834
      %v5836 = vsel %vm4176, %v5826, %v5835
      %v5845 = vunpack.c.l.b16 %v5781
      %v5846 = vunpack.c.l.b16 %v5782
      %v5847 = vunpack.c.l.b16 %v5783
      %v5848 = vunpack.c.l.b16 %v5784
      %v5849 = vunpack.c.l.b16 %v5785
      %v5850 = vunpack.c.l.b16 %v5786
      %v5851 = vunpack.c.l.b16 %v5787
      %v5852 = vunpack.c.l.b16 %v5788
      %v5853 = vpack.c.b16 %v5846, %v5845
      %v5854 = vpack.c.b16 %v5848, %v5847
      %v5855 = vpack.c.b16 %v5850, %v5849
      %v5856 = vpack.c.b16 %v5852, %v5851
      %v5862 = vsel %vm1750, %v5803, 0
      %v5865 = vsel %vm1750, %v5807, 0
      %v5868 = vsel %vm1750, %v5811, 0
      %v5871 = vsel %vm1750, %v5815, 0
      %v5874 = vsel %vm1750, %v5819, 0
      %v5877 = vsel %vm1750, %v5823, 0
      %v5880 = vsel %vm1750, %v5827, 0
      %v5883 = vsel %vm1750, %v5836, 0
      %v5886 = vsel %vm1750, %v5835, 0
      %5888 = vmatprep.subr.bf16.mxu0 0
      %5889 = vmatpush1.bf16.msra.mxu0 %v5853
      %5890 = vmatprep.subr.bf16.mxu0 0
      %5891 = vmatpush1.bf16.msra.mxu0 %v5854
      %5892 = vmatprep.subr.bf16.mxu0 0
      %5893 = vmatpush1.bf16.msra.mxu0 %v5855
      %5894 = vmatprep.subr.bf16.mxu0 0
      %5895 = vmatpush1.bf16.msra.mxu0 %v5856
      %5896 = vmatprep.subr.bf16.mxu0 0
      %5897 = vmatpush1.bf16.msra.mxu0 0
      %5898 = vmatprep.subr.bf16.mxu0 0
      %5899 = vmatpush1.bf16.msra.mxu0 0
      %5900 = vmatprep.subr.bf16.mxu0 0
      %5901 = vmatpush1.bf16.msra.mxu0 0
      %5902 = vmatprep.subr.bf16.mxu0 0
      %5903 = vmatpush1.bf16.msra.mxu0 0
      %5904 = vmatprep.subr.bf16.mxu0 0
      %5905 = vmatpush1.bf16.msra.mxu0 0
      %5906 = vmatprep.subr.bf16.mxu0 0
      %5907 = vmatpush1.bf16.msra.mxu0 0
      %5908 = vmatprep.subr.bf16.mxu0 0
      %5909 = vmatpush1.bf16.msra.mxu0 0
      %5910 = vmatprep.subr.bf16.mxu0 0
      %5911 = vmatpush1.bf16.msra.mxu0 0
      %5912 = vmatprep.subr.bf16.mxu0 0
      %5913 = vmatpush1.bf16.msra.mxu0 0
      %5914 = vmatprep.subr.bf16.mxu0 0
      %5915 = vmatpush1.bf16.msra.mxu0 0
      %5916 = vmatprep.subr.bf16.mxu0 0
      %5917 = vmatpush1.bf16.msra.mxu0 0
      %5918 = vmatprep.subr.bf16.mxu0 0
      %5919 = vmatpush1.bf16.msra.mxu0 0
      %5920 = vmatprep.mubr.bf16.mxu0 0
      %5921 = vmatmul.mubr.bf16.gmra.mrb[0].mxu0 %v5862
      %v5922 = vpop.f32.mrb[0].mxu0
      %v5923 = vadd.f32 0.0, %v5922
      %v5924 = vpop.f32.mrb[0].mxu0
      %v5925 = vpop.f32.mrb[0].mxu0
      %v5926 = vadd.f32 0.0, %v5925
      %v5927 = vpop.f32.mrb[0].mxu0
      %5928 = vmatprep.mubr.bf16.mxu0 0
      %5929 = vmatmul.mubr.bf16.gmra.mrb[0].mxu0 %v5865
      %v5930 = vpop.f32.mrb[0].mxu0
      %v5931 = vadd.f32 0.0, %v5930
      %v5932 = vpop.f32.mrb[0].mxu0
      %v5933 = vpop.f32.mrb[0].mxu0
      %v5934 = vadd.f32 0.0, %v5933
      %v5935 = vpop.f32.mrb[0].mxu0
      %5936 = vmatprep.mubr.bf16.mxu0 0
      %5937 = vmatmul.mubr.bf16.gmra.mrb[0].mxu0 %v5868
      %v5938 = vpop.f32.mrb[0].mxu0
      %v5939 = vadd.f32 0.0, %v5938
      %v5940 = vpop.f32.mrb[0].mxu0
      %v5941 = vpop.f32.mrb[0].mxu0
      %v5942 = vadd.f32 0.0, %v5941
      %v5943 = vpop.f32.mrb[0].mxu0
      %5944 = vmatprep.mubr.bf16.mxu0 0
      %5945 = vmatmul.mubr.bf16.gmra.mrb[0].mxu0 %v5871
      %v5946 = vpop.f32.mrb[0].mxu0
      %v5947 = vadd.f32 0.0, %v5946
      %v5948 = vpop.f32.mrb[0].mxu0
      %v5949 = vpop.f32.mrb[0].mxu0
      %v5950 = vadd.f32 0.0, %v5949
      %v5951 = vpop.f32.mrb[0].mxu0
      %5952 = vmatprep.mubr.bf16.mxu0 0
      %5953 = vmatmul.mubr.bf16.gmra.mrb[0].mxu0 %v5874
      %v5954 = vpop.f32.mrb[0].mxu0
      %v5955 = vadd.f32 0.0, %v5954
      %v5956 = vpop.f32.mrb[0].mxu0
      %v5957 = vpop.f32.mrb[0].mxu0
      %v5958 = vadd.f32 0.0, %v5957
      %v5959 = vpop.f32.mrb[0].mxu0
      %5960 = vmatprep.mubr.bf16.mxu0 0
      %5961 = vmatmul.mubr.bf16.gmra.mrb[0].mxu0 %v5877
      %v5962 = vpop.f32.mrb[0].mxu0
      %v5963 = vadd.f32 0.0, %v5962
      %v5964 = vpop.f32.mrb[0].mxu0
      %v5965 = vpop.f32.mrb[0].mxu0
      %v5966 = vadd.f32 0.0, %v5965
      %v5967 = vpop.f32.mrb[0].mxu0
      %5968 = vmatprep.mubr.bf16.mxu0 0
      %5969 = vmatmul.mubr.bf16.gmra.mrb[0].mxu0 %v5880
      %v5970 = vpop.f32.mrb[0].mxu0
      %v5971 = vadd.f32 0.0, %v5970
      %v5972 = vpop.f32.mrb[0].mxu0
      %v5973 = vpop.f32.mrb[0].mxu0
      %v5974 = vadd.f32 0.0, %v5973
      %v5975 = vpop.f32.mrb[0].mxu0
      %5976 = vmatprep.mubr.bf16.mxu0 0
      %5977 = vmatmul.mubr.bf16.gmra.mrb[0].mxu0 %v5883
      %v5978 = vpop.f32.mrb[0].mxu0
      %v5979 = vadd.f32 0.0, %v5978
      %v5980 = vpop.f32.mrb[0].mxu0
      %v5981 = vpop.f32.mrb[0].mxu0
      %v5982 = vadd.f32 0.0, %v5981
      %v5983 = vpop.f32.mrb[0].mxu0
      %5984 = vmatprep.mubr.bf16.mxu0 0
      %5985 = vmatmul.mubr.bf16.gmra.mrb[0].mxu0 %v5886
      %v5986 = vpop.f32.mrb[0].mxu0
      %v5987 = vadd.f32 0.0, %v5986
      %v5988 = vpop.f32.mrb[0].mxu0
      %v5989 = vpop.f32.mrb[0].mxu0
      %v5990 = vpop.f32.mrb[0].mxu0
      %5991 = vdwg.mxu0
      %v5992 = vadd.f32 %v5762, %v5923
      %v5993 = vadd.f32 %v5763, %v5926
      %v5994 = vadd.f32 %v5764, %v5931
      %v5995 = vadd.f32 %v5765, %v5934
      %v5996 = vadd.f32 %v5766, %v5939
      %v5997 = vadd.f32 %v5767, %v5942
      %v5998 = vadd.f32 %v5768, %v5947
      %v5999 = vadd.f32 %v5769, %v5950
      %v6000 = vadd.f32 %v5770, %v5955
      %v6001 = vadd.f32 %v5771, %v5958
      %v6002 = vadd.f32 %v5772, %v5963
      %v6003 = vadd.f32 %v5773, %v5966
      %v6004 = vadd.f32 %v5774, %v5971
      %v6005 = vadd.f32 %v5775, %v5974
      %v6006 = vadd.f32 %v5776, %v5979
      %v6007 = vadd.f32 %v5777, %v5982
      %v6008 = vadd.f32 %v5778, %v5987
      %v6009 = vld [vmem:[#allocation2 + $0x14] sm:$0x8]
      %s6010 = scalar_lea.vmem %s3, 608
      %v6011 = vld [vmem:[%s6010] sm:$0xf]
      %v6012 = vld [vmem:[%s6010 + $0x4] sm:$0xf]
      %v6013 = vld [vmem:[%s6010 + $0x8] sm:$0xf]
      %v6014 = vld [vmem:[%s6010 + $0xc] sm:$0xf]
      %v6015 = vld [vmem:[%s6010 + $0x10] sm:$0xf]
      %v6016 = vld [vmem:[%s6010 + $0x14] sm:$0xf]
      %v6017 = vld [vmem:[%s6010 + $0x18] sm:$0xf]
      %v6018 = vld [vmem:[%s6010 + $0x1c] sm:$0xf]
      %v6020 = vunpack.c.l.b16 %v6009
      %v6021 = vpack.c.b16 %v5097, %v6020
      %v6022 = vrot.slane %v6021, 3
      %v6023 = vrot.slane %v5115, 3
      %v6024 = vsel %vm2739, %v6022, %v6023
      %v6025 = vrot.slane %v5116, 3
      %v6026 = vsel %vm2739, %v6023, %v6025
      %v6027 = vrot.slane %v5117, 3
      %v6028 = vsel %vm2739, %v6025, %v6027
      %v6029 = vrot.slane %v5118, 3
      %v6030 = vsel %vm2739, %v6027, %v6029
      %v6031 = vrot.slane %v5119, 3
      %v6032 = vsel %vm2739, %v6029, %v6031
      %v6033 = vrot.slane %v5120, 3
      %v6034 = vsel %vm2739, %v6031, %v6033
      %v6035 = vrot.slane %v5121, 3
      %v6036 = vsel %vm2739, %v6033, %v6035
      %v6037 = vrot.slane %v5791, 3
      %v6038 = vsel %vm2739, %v6035, %v6037
      %v6047 = vunpack.c.l.b16 %v6011
      %v6048 = vunpack.c.l.b16 %v6012
      %v6049 = vunpack.c.l.b16 %v6013
      %v6050 = vunpack.c.l.b16 %v6014
      %v6051 = vunpack.c.l.b16 %v6015
      %v6052 = vunpack.c.l.b16 %v6016
      %v6053 = vunpack.c.l.b16 %v6017
      %v6054 = vunpack.c.l.b16 %v6018
      %v6055 = vpack.c.b16 %v6048, %v6047
      %v6056 = vpack.c.b16 %v6050, %v6049
      %v6057 = vpack.c.b16 %v6052, %v6051
      %v6058 = vpack.c.b16 %v6054, %v6053
      %v6064 = vsel %vm1750, %v6024, 0
      %v6067 = vsel %vm1750, %v6026, 0
      %v6070 = vsel %vm1750, %v6028, 0
      %v6073 = vsel %vm1750, %v6030, 0
      %v6076 = vsel %vm1750, %v6032, 0
      %v6079 = vsel %vm1750, %v6034, 0
      %v6082 = vsel %vm1750, %v6036, 0
      %v6085 = vsel %vm1750, %v6038, 0
      %v6088 = vsel %vm1750, %v6037, 0
      %6090 = vmatprep.subr.bf16.mxu0 0
      %6091 = vmatpush1.bf16.msra.mxu0 %v6055
      %6092 = vmatprep.subr.bf16.mxu0 0
      %6093 = vmatpush1.bf16.msra.mxu0 %v6056
      %6094 = vmatprep.subr.bf16.mxu0 0
      %6095 = vmatpush1.bf16.msra.mxu0 %v6057
      %6096 = vmatprep.subr.bf16.mxu0 0
      %6097 = vmatpush1.bf16.msra.mxu0 %v6058
      %6098 = vmatprep.subr.bf16.mxu0 0
      %6099 = vmatpush1.bf16.msra.mxu0 0
      %6100 = vmatprep.subr.bf16.mxu0 0
      %6101 = vmatpush1.bf16.msra.mxu0 0
      %6102 = vmatprep.subr.bf16.mxu0 0
      %6103 = vmatpush1.bf16.msra.mxu0 0
      %6104 = vmatprep.subr.bf16.mxu0 0
      %6105 = vmatpush1.bf16.msra.mxu0 0
      %6106 = vmatprep.subr.bf16.mxu0 0
      %6107 = vmatpush1.bf16.msra.mxu0 0
      %6108 = vmatprep.subr.bf16.mxu0 0
      %6109 = vmatpush1.bf16.msra.mxu0 0
      %6110 = vmatprep.subr.bf16.mxu0 0
      %6111 = vmatpush1.bf16.msra.mxu0 0
      %6112 = vmatprep.subr.bf16.mxu0 0
      %6113 = vmatpush1.bf16.msra.mxu0 0
      %6114 = vmatprep.subr.bf16.mxu0 0
      %6115 = vmatpush1.bf16.msra.mxu0 0
      %6116 = vmatprep.subr.bf16.mxu0 0
      %6117 = vmatpush1.bf16.msra.mxu0 0
      %6118 = vmatprep.subr.bf16.mxu0 0
      %6119 = vmatpush1.bf16.msra.mxu0 0
      %6120 = vmatprep.subr.bf16.mxu0 0
      %6121 = vmatpush1.bf16.msra.mxu0 0
      %6122 = vmatprep.mubr.bf16.mxu0 0
      %6123 = vmatmul.mubr.bf16.gmra.mrb[0].mxu0 %v6064
      %v6124 = vpop.f32.mrb[0].mxu0
      %v6125 = vadd.f32 0.0, %v6124
      %v6126 = vpop.f32.mrb[0].mxu0
      %v6127 = vpop.f32.mrb[0].mxu0
      %v6128 = vadd.f32 0.0, %v6127
      %v6129 = vpop.f32.mrb[0].mxu0
      %6130 = vmatprep.mubr.bf16.mxu0 0
      %6131 = vmatmul.mubr.bf16.gmra.mrb[0].mxu0 %v6067
      %v6132 = vpop.f32.mrb[0].mxu0
      %v6133 = vadd.f32 0.0, %v6132
      %v6134 = vpop.f32.mrb[0].mxu0
      %v6135 = vpop.f32.mrb[0].mxu0
      %v6136 = vadd.f32 0.0, %v6135
      %v6137 = vpop.f32.mrb[0].mxu0
      %6138 = vmatprep.mubr.bf16.mxu0 0
      %6139 = vmatmul.mubr.bf16.gmra.mrb[0].mxu0 %v6070
      %v6140 = vpop.f32.mrb[0].mxu0
      %v6141 = vadd.f32 0.0, %v6140
      %v6142 = vpop.f32.mrb[0].mxu0
      %v6143 = vpop.f32.mrb[0].mxu0
      %v6144 = vadd.f32 0.0, %v6143
      %v6145 = vpop.f32.mrb[0].mxu0
      %6146 = vmatprep.mubr.bf16.mxu0 0
      %6147 = vmatmul.mubr.bf16.gmra.mrb[0].mxu0 %v6073
      %v6148 = vpop.f32.mrb[0].mxu0
      %v6149 = vadd.f32 0.0, %v6148
      %v6150 = vpop.f32.mrb[0].mxu0
      %v6151 = vpop.f32.mrb[0].mxu0
      %v6152 = vadd.f32 0.0, %v6151
      %v6153 = vpop.f32.mrb[0].mxu0
      %6154 = vmatprep.mubr.bf16.mxu0 0
      %6155 = vmatmul.mubr.bf16.gmra.mrb[0].mxu0 %v6076
      %v6156 = vpop.f32.mrb[0].mxu0
      %v6157 = vadd.f32 0.0, %v6156
      %v6158 = vpop.f32.mrb[0].mxu0
      %v6159 = vpop.f32.mrb[0].mxu0
      %v6160 = vadd.f32 0.0, %v6159
      %v6161 = vpop.f32.mrb[0].mxu0
      %6162 = vmatprep.mubr.bf16.mxu0 0
      %6163 = vmatmul.mubr.bf16.gmra.mrb[0].mxu0 %v6079
      %v6164 = vpop.f32.mrb[0].mxu0
      %v6165 = vadd.f32 0.0, %v6164
      %v6166 = vpop.f32.mrb[0].mxu0
      %v6167 = vpop.f32.mrb[0].mxu0
      %v6168 = vadd.f32 0.0, %v6167
      %v6169 = vpop.f32.mrb[0].mxu0
      %6170 = vmatprep.mubr.bf16.mxu0 0
      %6171 = vmatmul.mubr.bf16.gmra.mrb[0].mxu0 %v6082
      %v6172 = vpop.f32.mrb[0].mxu0
      %v6173 = vadd.f32 0.0, %v6172
      %v6174 = vpop.f32.mrb[0].mxu0
      %v6175 = vpop.f32.mrb[0].mxu0
      %v6176 = vadd.f32 0.0, %v6175
      %v6177 = vpop.f32.mrb[0].mxu0
      %6178 = vmatprep.mubr.bf16.mxu0 0
      %6179 = vmatmul.mubr.bf16.gmra.mrb[0].mxu0 %v6085
      %v6180 = vpop.f32.mrb[0].mxu0
      %v6181 = vadd.f32 0.0, %v6180
      %v6182 = vpop.f32.mrb[0].mxu0
      %v6183 = vpop.f32.mrb[0].mxu0
      %v6184 = vadd.f32 0.0, %v6183
      %v6185 = vpop.f32.mrb[0].mxu0
      %6186 = vmatprep.mubr.bf16.mxu0 0
      %6187 = vmatmul.mubr.bf16.gmra.mrb[0].mxu0 %v6088
      %v6188 = vpop.f32.mrb[0].mxu0
      %v6189 = vadd.f32 0.0, %v6188
      %v6190 = vpop.f32.mrb[0].mxu0
      %v6191 = vpop.f32.mrb[0].mxu0
      %v6192 = vpop.f32.mrb[0].mxu0
      %6193 = vdwg.mxu0
      %v6194 = vadd.f32 %v5992, %v6125
      %v6195 = vadd.f32 %v5993, %v6128
      %v6196 = vadd.f32 %v5994, %v6133
      %v6197 = vadd.f32 %v5995, %v6136
      %v6198 = vadd.f32 %v5996, %v6141
      %v6199 = vadd.f32 %v5997, %v6144
      %v6200 = vadd.f32 %v5998, %v6149
      %v6201 = vadd.f32 %v5999, %v6152
      %v6202 = vadd.f32 %v6000, %v6157
      %v6203 = vadd.f32 %v6001, %v6160
      %v6204 = vadd.f32 %v6002, %v6165
      %v6205 = vadd.f32 %v6003, %v6168
      %v6206 = vadd.f32 %v6004, %v6173
      %v6207 = vadd.f32 %v6005, %v6176
      %v6208 = vadd.f32 %v6006, %v6181
      %v6209 = vadd.f32 %v6007, %v6184
      %v6210 = vadd.f32 %v6008, %v6189
      %v6211 = vld [vmem:[#allocation2 + $0x1c] sm:$0xf]
      %v6212 = vld [vmem:[#allocation2 + $0x20] sm:$0xf]
      %v6213 = vld [vmem:[#allocation2 + $0x24] sm:$0xf]
      %v6214 = vld [vmem:[#allocation2 + $0x28] sm:$0xf]
      %v6215 = vld [vmem:[#allocation2 + $0x2c] sm:$0xf]
      %v6216 = vld [vmem:[#allocation2 + $0x30] sm:$0xf]
      %v6217 = vld [vmem:[#allocation2 + $0x34] sm:$0xf]
      %v6218 = vld [vmem:[#allocation2 + $0x38] sm:$0xf]
      %v6219 = vld [vmem:[#allocation2 + $0x3c] sm:$0xf]
      %v6220 = vld [vmem:[#allocation2 + $0x40] sm:$0xf]
      %v6221 = vld [vmem:[#allocation2 + $0x44] sm:$0xf]
      %v6222 = vld [vmem:[#allocation2 + $0x48] sm:$0xf]
      %v6223 = vld [vmem:[#allocation2 + $0x4c] sm:$0xf]
      %v6224 = vld [vmem:[#allocation2 + $0x50] sm:$0xf]
      %v6225 = vld [vmem:[#allocation2 + $0x54] sm:$0xf]
      %v6226 = vld [vmem:[#allocation2 + $0x58] sm:$0xf]
      %v6227 = vld [vmem:[#allocation2 + $0x5c] sm:$0xf]
      %s6228 = scalar_lea.vmem %s3, 640
      %v6229 = vld [vmem:[%s6228] sm:$0xf]
      %v6230 = vld [vmem:[%s6228 + $0x4] sm:$0xf]
      %v6231 = vld [vmem:[%s6228 + $0x8] sm:$0xf]
      %v6232 = vld [vmem:[%s6228 + $0xc] sm:$0xf]
      %v6233 = vld [vmem:[%s6228 + $0x10] sm:$0xf]
      %v6234 = vld [vmem:[%s6228 + $0x14] sm:$0xf]
      %v6235 = vld [vmem:[%s6228 + $0x18] sm:$0xf]
      %v6236 = vld [vmem:[%s6228 + $0x1c] sm:$0xf]
      %v6254 = vunpack.c.l.b16 %v6211
      %v6255 = vunpack.c.l.b16 %v6212
      %v6256 = vunpack.c.l.b16 %v6213
      %v6257 = vunpack.c.l.b16 %v6214
      %v6258 = vunpack.c.l.b16 %v6215
      %v6259 = vunpack.c.l.b16 %v6216
      %v6260 = vunpack.c.l.b16 %v6217
      %v6261 = vunpack.c.l.b16 %v6218
      %v6262 = vunpack.c.l.b16 %v6219
      %v6263 = vunpack.c.l.b16 %v6220
      %v6264 = vunpack.c.l.b16 %v6221
      %v6265 = vunpack.c.l.b16 %v6222
      %v6266 = vunpack.c.l.b16 %v6223
      %v6267 = vunpack.c.l.b16 %v6224
      %v6268 = vunpack.c.l.b16 %v6225
      %v6269 = vunpack.c.l.b16 %v6226
      %v6270 = vunpack.c.l.b16 %v6227
      %v6271 = vpack.c.b16 %v6255, %v6254
      %v6272 = vpack.c.b16 %v6257, %v6256
      %v6273 = vpack.c.b16 %v6259, %v6258
      %v6274 = vpack.c.b16 %v6261, %v6260
      %v6275 = vpack.c.b16 %v6263, %v6262
      %v6276 = vpack.c.b16 %v6265, %v6264
      %v6277 = vpack.c.b16 %v6267, %v6266
      %v6278 = vpack.c.b16 %v6269, %v6268
      %v6279 = vpack.c.b16 %v6270, %v6270
      %v6288 = vunpack.c.l.b16 %v6229
      %v6289 = vunpack.c.l.b16 %v6230
      %v6290 = vunpack.c.l.b16 %v6231
      %v6291 = vunpack.c.l.b16 %v6232
      %v6292 = vunpack.c.l.b16 %v6233
      %v6293 = vunpack.c.l.b16 %v6234
      %v6294 = vunpack.c.l.b16 %v6235
      %v6295 = vunpack.c.l.b16 %v6236
      %v6296 = vpack.c.b16 %v6289, %v6288
      %v6297 = vpack.c.b16 %v6291, %v6290
      %v6298 = vpack.c.b16 %v6293, %v6292
      %v6299 = vpack.c.b16 %v6295, %v6294
      %v6305 = vsel %vm1750, %v6271, 0
      %v6308 = vsel %vm1750, %v6272, 0
      %v6311 = vsel %vm1750, %v6273, 0
      %v6314 = vsel %vm1750, %v6274, 0
      %v6317 = vsel %vm1750, %v6275, 0
      %v6320 = vsel %vm1750, %v6276, 0
      %v6323 = vsel %vm1750, %v6277, 0
      %v6326 = vsel %vm1750, %v6278, 0
      %v6329 = vsel %vm1750, %v6279, 0
      %6331 = vmatprep.subr.bf16.mxu0 0
      %6332 = vmatpush1.bf16.msra.mxu0 %v6296
      %6333 = vmatprep.subr.bf16.mxu0 0
      %6334 = vmatpush1.bf16.msra.mxu0 %v6297
      %6335 = vmatprep.subr.bf16.mxu0 0
      %6336 = vmatpush1.bf16.msra.mxu0 %v6298
      %6337 = vmatprep.subr.bf16.mxu0 0
      %6338 = vmatpush1.bf16.msra.mxu0 %v6299
      %6339 = vmatprep.subr.bf16.mxu0 0
      %6340 = vmatpush1.bf16.msra.mxu0 0
      %6341 = vmatprep.subr.bf16.mxu0 0
      %6342 = vmatpush1.bf16.msra.mxu0 0
      %6343 = vmatprep.subr.bf16.mxu0 0
      %6344 = vmatpush1.bf16.msra.mxu0 0
      %6345 = vmatprep.subr.bf16.mxu0 0
      %6346 = vmatpush1.bf16.msra.mxu0 0
      %6347 = vmatprep.subr.bf16.mxu0 0
      %6348 = vmatpush1.bf16.msra.mxu0 0
      %6349 = vmatprep.subr.bf16.mxu0 0
      %6350 = vmatpush1.bf16.msra.mxu0 0
      %6351 = vmatprep.subr.bf16.mxu0 0
      %6352 = vmatpush1.bf16.msra.mxu0 0
      %6353 = vmatprep.subr.bf16.mxu0 0
      %6354 = vmatpush1.bf16.msra.mxu0 0
      %6355 = vmatprep.subr.bf16.mxu0 0
      %6356 = vmatpush1.bf16.msra.mxu0 0
      %6357 = vmatprep.subr.bf16.mxu0 0
      %6358 = vmatpush1.bf16.msra.mxu0 0
      %6359 = vmatprep.subr.bf16.mxu0 0
      %6360 = vmatpush1.bf16.msra.mxu0 0
      %6361 = vmatprep.subr.bf16.mxu0 0
      %6362 = vmatpush1.bf16.msra.mxu0 0
      %6363 = vmatprep.mubr.bf16.mxu0 0
      %6364 = vmatmul.mubr.bf16.gmra.mrb[0].mxu0 %v6305
      %v6365 = vpop.f32.mrb[0].mxu0
      %v6366 = vadd.f32 0.0, %v6365
      %v6367 = vpop.f32.mrb[0].mxu0
      %v6368 = vpop.f32.mrb[0].mxu0
      %v6369 = vadd.f32 0.0, %v6368
      %v6370 = vpop.f32.mrb[0].mxu0
      %6371 = vmatprep.mubr.bf16.mxu0 0
      %6372 = vmatmul.mubr.bf16.gmra.mrb[0].mxu0 %v6308
      %v6373 = vpop.f32.mrb[0].mxu0
      %v6374 = vadd.f32 0.0, %v6373
      %v6375 = vpop.f32.mrb[0].mxu0
      %v6376 = vpop.f32.mrb[0].mxu0
      %v6377 = vadd.f32 0.0, %v6376
      %v6378 = vpop.f32.mrb[0].mxu0
      %6379 = vmatprep.mubr.bf16.mxu0 0
      %6380 = vmatmul.mubr.bf16.gmra.mrb[0].mxu0 %v6311
      %v6381 = vpop.f32.mrb[0].mxu0
      %v6382 = vadd.f32 0.0, %v6381
      %v6383 = vpop.f32.mrb[0].mxu0
      %v6384 = vpop.f32.mrb[0].mxu0
      %v6385 = vadd.f32 0.0, %v6384
      %v6386 = vpop.f32.mrb[0].mxu0
      %6387 = vmatprep.mubr.bf16.mxu0 0
      %6388 = vmatmul.mubr.bf16.gmra.mrb[0].mxu0 %v6314
      %v6389 = vpop.f32.mrb[0].mxu0
      %v6390 = vadd.f32 0.0, %v6389
      %v6391 = vpop.f32.mrb[0].mxu0
      %v6392 = vpop.f32.mrb[0].mxu0
      %v6393 = vadd.f32 0.0, %v6392
      %v6394 = vpop.f32.mrb[0].mxu0
      %6395 = vmatprep.mubr.bf16.mxu0 0
      %6396 = vmatmul.mubr.bf16.gmra.mrb[0].mxu0 %v6317
      %v6397 = vpop.f32.mrb[0].mxu0
      %v6398 = vadd.f32 0.0, %v6397
      %v6399 = vpop.f32.mrb[0].mxu0
      %v6400 = vpop.f32.mrb[0].mxu0
      %v6401 = vadd.f32 0.0, %v6400
      %v6402 = vpop.f32.mrb[0].mxu0
      %6403 = vmatprep.mubr.bf16.mxu0 0
      %6404 = vmatmul.mubr.bf16.gmra.mrb[0].mxu0 %v6320
      %v6405 = vpop.f32.mrb[0].mxu0
      %v6406 = vadd.f32 0.0, %v6405
      %v6407 = vpop.f32.mrb[0].mxu0
      %v6408 = vpop.f32.mrb[0].mxu0
      %v6409 = vadd.f32 0.0, %v6408
      %v6410 = vpop.f32.mrb[0].mxu0
      %6411 = vmatprep.mubr.bf16.mxu0 0
      %6412 = vmatmul.mubr.bf16.gmra.mrb[0].mxu0 %v6323
      %v6413 = vpop.f32.mrb[0].mxu0
      %v6414 = vadd.f32 0.0, %v6413
      %v6415 = vpop.f32.mrb[0].mxu0
      %v6416 = vpop.f32.mrb[0].mxu0
      %v6417 = vadd.f32 0.0, %v6416
      %v6418 = vpop.f32.mrb[0].mxu0
      %6419 = vmatprep.mubr.bf16.mxu0 0
      %6420 = vmatmul.mubr.bf16.gmra.mrb[0].mxu0 %v6326
      %v6421 = vpop.f32.mrb[0].mxu0
      %v6422 = vadd.f32 0.0, %v6421
      %v6423 = vpop.f32.mrb[0].mxu0
      %v6424 = vpop.f32.mrb[0].mxu0
      %v6425 = vadd.f32 0.0, %v6424
      %v6426 = vpop.f32.mrb[0].mxu0
      %6427 = vmatprep.mubr.bf16.mxu0 0
      %6428 = vmatmul.mubr.bf16.gmra.mrb[0].mxu0 %v6329
      %v6429 = vpop.f32.mrb[0].mxu0
      %v6430 = vadd.f32 0.0, %v6429
      %v6431 = vpop.f32.mrb[0].mxu0
      %v6432 = vpop.f32.mrb[0].mxu0
      %v6433 = vpop.f32.mrb[0].mxu0
      %6434 = vdwg.mxu0
      %v6435 = vadd.f32 %v6194, %v6366
      %v6436 = vadd.f32 %v6195, %v6369
      %v6437 = vadd.f32 %v6196, %v6374
      %v6438 = vadd.f32 %v6197, %v6377
      %v6439 = vadd.f32 %v6198, %v6382
      %v6440 = vadd.f32 %v6199, %v6385
      %v6441 = vadd.f32 %v6200, %v6390
      %v6442 = vadd.f32 %v6201, %v6393
      %v6443 = vadd.f32 %v6202, %v6398
      %v6444 = vadd.f32 %v6203, %v6401
      %v6445 = vadd.f32 %v6204, %v6406
      %v6446 = vadd.f32 %v6205, %v6409
      %v6447 = vadd.f32 %v6206, %v6414
      %v6448 = vadd.f32 %v6207, %v6417
      %v6449 = vadd.f32 %v6208, %v6422
      %v6450 = vadd.f32 %v6209, %v6425
      %v6451 = vadd.f32 %v6210, %v6430
      %v6452 = vld [vmem:[#allocation2 + $0x1c] sm:$0xf]
      %v6453 = vld [vmem:[#allocation2 + $0x20] sm:$0xf]
      %v6454 = vld [vmem:[#allocation2 + $0x24] sm:$0xf]
      %v6455 = vld [vmem:[#allocation2 + $0x28] sm:$0xf]
      %v6456 = vld [vmem:[#allocation2 + $0x2c] sm:$0xf]
      %v6457 = vld [vmem:[#allocation2 + $0x30] sm:$0xf]
      %v6458 = vld [vmem:[#allocation2 + $0x34] sm:$0xf]
      %v6459 = vld [vmem:[#allocation2 + $0x38] sm:$0xf]
      %v6460 = vld [vmem:[#allocation2 + $0x3c] sm:$0xf]
      %v6461 = vld [vmem:[#allocation2 + $0x40] sm:$0xf]
      %v6462 = vld [vmem:[#allocation2 + $0x44] sm:$0xf]
      %v6463 = vld [vmem:[#allocation2 + $0x48] sm:$0xf]
      %v6464 = vld [vmem:[#allocation2 + $0x4c] sm:$0xf]
      %v6465 = vld [vmem:[#allocation2 + $0x50] sm:$0xf]
      %v6466 = vld [vmem:[#allocation2 + $0x54] sm:$0xf]
      %v6467 = vld [vmem:[#allocation2 + $0x58] sm:$0xf]
      %v6468 = vld [vmem:[#allocation2 + $0x5c] sm:$0xf]
      %v6469 = vld [vmem:[#allocation2 + $0x60] sm:$0x1]
      %s6470 = scalar_lea.vmem %s3, 672
      %v6471 = vld [vmem:[%s6470] sm:$0xf]
      %v6472 = vld [vmem:[%s6470 + $0x4] sm:$0xf]
      %v6473 = vld [vmem:[%s6470 + $0x8] sm:$0xf]
      %v6474 = vld [vmem:[%s6470 + $0xc] sm:$0xf]
      %v6475 = vld [vmem:[%s6470 + $0x10] sm:$0xf]
      %v6476 = vld [vmem:[%s6470 + $0x14] sm:$0xf]
      %v6477 = vld [vmem:[%s6470 + $0x18] sm:$0xf]
      %v6478 = vld [vmem:[%s6470 + $0x1c] sm:$0xf]
      %v6497 = vunpack.c.l.b16 %v6452
      %v6498 = vunpack.c.l.b16 %v6453
      %v6499 = vunpack.c.l.b16 %v6454
      %v6500 = vunpack.c.l.b16 %v6455
      %v6501 = vunpack.c.l.b16 %v6456
      %v6502 = vunpack.c.l.b16 %v6457
      %v6503 = vunpack.c.l.b16 %v6458
      %v6504 = vunpack.c.l.b16 %v6459
      %v6505 = vunpack.c.l.b16 %v6460
      %v6506 = vunpack.c.l.b16 %v6461
      %v6507 = vunpack.c.l.b16 %v6462
      %v6508 = vunpack.c.l.b16 %v6463
      %v6509 = vunpack.c.l.b16 %v6464
      %v6510 = vunpack.c.l.b16 %v6465
      %v6511 = vunpack.c.l.b16 %v6466
      %v6512 = vunpack.c.l.b16 %v6467
      %v6513 = vunpack.c.l.b16 %v6468
      %v6514 = vunpack.c.l.b16 %v6469
      %v6515 = vpack.c.b16 %v6498, %v6497
      %v6516 = vpack.c.b16 %v6500, %v6499
      %v6517 = vpack.c.b16 %v6502, %v6501
      %v6518 = vpack.c.b16 %v6504, %v6503
      %v6519 = vpack.c.b16 %v6506, %v6505
      %v6520 = vpack.c.b16 %v6508, %v6507
      %v6521 = vpack.c.b16 %v6510, %v6509
      %v6522 = vpack.c.b16 %v6512, %v6511
      %v6523 = vpack.c.b16 %v6514, %v6513
      %v6525 = vshrl.u32 %v6515, 16
      %v6527 = vshll.u32 %v6515, 16
      %v6529 = vrot.slane %v6527, 1
      %v6530 = vor.u32 %v6525, %v6529
      %v6532 = vshll.u32 %v6516, 16
      %v6534 = vrot.slane %v6532, 1
      %v6535 = vsel %vm1654, %v6530, %v6534
      %v6536 = vshrl.u32 %v6516, 16
      %v6538 = vor.u32 %v6536, %v6534
      %v6540 = vshll.u32 %v6517, 16
      %v6542 = vrot.slane %v6540, 1
      %v6543 = vsel %vm1654, %v6538, %v6542
      %v6544 = vshrl.u32 %v6517, 16
      %v6546 = vor.u32 %v6544, %v6542
      %v6548 = vshll.u32 %v6518, 16
      %v6550 = vrot.slane %v6548, 1
      %v6551 = vsel %vm1654, %v6546, %v6550
      %v6552 = vshrl.u32 %v6518, 16
      %v6554 = vor.u32 %v6552, %v6550
      %v6556 = vshll.u32 %v6519, 16
      %v6558 = vrot.slane %v6556, 1
      %v6559 = vsel %vm1654, %v6554, %v6558
      %v6560 = vshrl.u32 %v6519, 16
      %v6562 = vor.u32 %v6560, %v6558
      %v6564 = vshll.u32 %v6520, 16
      %v6566 = vrot.slane %v6564, 1
      %v6567 = vsel %vm1654, %v6562, %v6566
      %v6568 = vshrl.u32 %v6520, 16
      %v6570 = vor.u32 %v6568, %v6566
      %v6572 = vshll.u32 %v6521, 16
      %v6574 = vrot.slane %v6572, 1
      %v6575 = vsel %vm1654, %v6570, %v6574
      %v6576 = vshrl.u32 %v6521, 16
      %v6578 = vor.u32 %v6576, %v6574
      %v6580 = vshll.u32 %v6522, 16
      %v6582 = vrot.slane %v6580, 1
      %v6583 = vsel %vm1654, %v6578, %v6582
      %v6584 = vshrl.u32 %v6522, 16
      %v6586 = vor.u32 %v6584, %v6582
      %v6588 = vshll.u32 %v6523, 16
      %v6590 = vrot.slane %v6588, 1
      %v6591 = vsel %vm1654, %v6586, %v6590
      %v6592 = vshrl.u32 %v6523, 16
      %v6594 = vor.u32 %v6592, %v6590
      %v6603 = vunpack.c.l.b16 %v6471
      %v6604 = vunpack.c.l.b16 %v6472
      %v6605 = vunpack.c.l.b16 %v6473
      %v6606 = vunpack.c.l.b16 %v6474
      %v6607 = vunpack.c.l.b16 %v6475
      %v6608 = vunpack.c.l.b16 %v6476
      %v6609 = vunpack.c.l.b16 %v6477
      %v6610 = vunpack.c.l.b16 %v6478
      %v6611 = vpack.c.b16 %v6604, %v6603
      %v6612 = vpack.c.b16 %v6606, %v6605
      %v6613 = vpack.c.b16 %v6608, %v6607
      %v6614 = vpack.c.b16 %v6610, %v6609
      %v6620 = vsel %vm1750, %v6535, 0
      %v6623 = vsel %vm1750, %v6543, 0
      %v6626 = vsel %vm1750, %v6551, 0
      %v6629 = vsel %vm1750, %v6559, 0
      %v6632 = vsel %vm1750, %v6567, 0
      %v6635 = vsel %vm1750, %v6575, 0
      %v6638 = vsel %vm1750, %v6583, 0
      %v6641 = vsel %vm1750, %v6591, 0
      %v6644 = vsel %vm1750, %v6594, 0
      %6646 = vmatprep.subr.bf16.mxu0 0
      %6647 = vmatpush1.bf16.msra.mxu0 %v6611
      %6648 = vmatprep.subr.bf16.mxu0 0
      %6649 = vmatpush1.bf16.msra.mxu0 %v6612
      %6650 = vmatprep.subr.bf16.mxu0 0
      %6651 = vmatpush1.bf16.msra.mxu0 %v6613
      %6652 = vmatprep.subr.bf16.mxu0 0
      %6653 = vmatpush1.bf16.msra.mxu0 %v6614
      %6654 = vmatprep.subr.bf16.mxu0 0
      %6655 = vmatpush1.bf16.msra.mxu0 0
      %6656 = vmatprep.subr.bf16.mxu0 0
      %6657 = vmatpush1.bf16.msra.mxu0 0
      %6658 = vmatprep.subr.bf16.mxu0 0
      %6659 = vmatpush1.bf16.msra.mxu0 0
      %6660 = vmatprep.subr.bf16.mxu0 0
      %6661 = vmatpush1.bf16.msra.mxu0 0
      %6662 = vmatprep.subr.bf16.mxu0 0
      %6663 = vmatpush1.bf16.msra.mxu0 0
      %6664 = vmatprep.subr.bf16.mxu0 0
      %6665 = vmatpush1.bf16.msra.mxu0 0
      %6666 = vmatprep.subr.bf16.mxu0 0
      %6667 = vmatpush1.bf16.msra.mxu0 0
      %6668 = vmatprep.subr.bf16.mxu0 0
      %6669 = vmatpush1.bf16.msra.mxu0 0
      %6670 = vmatprep.subr.bf16.mxu0 0
      %6671 = vmatpush1.bf16.msra.mxu0 0
      %6672 = vmatprep.subr.bf16.mxu0 0
      %6673 = vmatpush1.bf16.msra.mxu0 0
      %6674 = vmatprep.subr.bf16.mxu0 0
      %6675 = vmatpush1.bf16.msra.mxu0 0
      %6676 = vmatprep.subr.bf16.mxu0 0
      %6677 = vmatpush1.bf16.msra.mxu0 0
      %6678 = vmatprep.mubr.bf16.mxu0 0
      %6679 = vmatmul.mubr.bf16.gmra.mrb[0].mxu0 %v6620
      %v6680 = vpop.f32.mrb[0].mxu0
      %v6681 = vadd.f32 0.0, %v6680
      %v6682 = vpop.f32.mrb[0].mxu0
      %v6683 = vpop.f32.mrb[0].mxu0
      %v6684 = vadd.f32 0.0, %v6683
      %v6685 = vpop.f32.mrb[0].mxu0
      %6686 = vmatprep.mubr.bf16.mxu0 0
      %6687 = vmatmul.mubr.bf16.gmra.mrb[0].mxu0 %v6623
      %v6688 = vpop.f32.mrb[0].mxu0
      %v6689 = vadd.f32 0.0, %v6688
      %v6690 = vpop.f32.mrb[0].mxu0
      %v6691 = vpop.f32.mrb[0].mxu0
      %v6692 = vadd.f32 0.0, %v6691
      %v6693 = vpop.f32.mrb[0].mxu0
      %6694 = vmatprep.mubr.bf16.mxu0 0
      %6695 = vmatmul.mubr.bf16.gmra.mrb[0].mxu0 %v6626
      %v6696 = vpop.f32.mrb[0].mxu0
      %v6697 = vadd.f32 0.0, %v6696
      %v6698 = vpop.f32.mrb[0].mxu0
      %v6699 = vpop.f32.mrb[0].mxu0
      %v6700 = vadd.f32 0.0, %v6699
      %v6701 = vpop.f32.mrb[0].mxu0
      %6702 = vmatprep.mubr.bf16.mxu0 0
      %6703 = vmatmul.mubr.bf16.gmra.mrb[0].mxu0 %v6629
      %v6704 = vpop.f32.mrb[0].mxu0
      %v6705 = vadd.f32 0.0, %v6704
      %v6706 = vpop.f32.mrb[0].mxu0
      %v6707 = vpop.f32.mrb[0].mxu0
      %v6708 = vadd.f32 0.0, %v6707
      %v6709 = vpop.f32.mrb[0].mxu0
      %6710 = vmatprep.mubr.bf16.mxu0 0
      %6711 = vmatmul.mubr.bf16.gmra.mrb[0].mxu0 %v6632
      %v6712 = vpop.f32.mrb[0].mxu0
      %v6713 = vadd.f32 0.0, %v6712
      %v6714 = vpop.f32.mrb[0].mxu0
      %v6715 = vpop.f32.mrb[0].mxu0
      %v6716 = vadd.f32 0.0, %v6715
      %v6717 = vpop.f32.mrb[0].mxu0
      %6718 = vmatprep.mubr.bf16.mxu0 0
      %6719 = vmatmul.mubr.bf16.gmra.mrb[0].mxu0 %v6635
      %v6720 = vpop.f32.mrb[0].mxu0
      %v6721 = vadd.f32 0.0, %v6720
      %v6722 = vpop.f32.mrb[0].mxu0
      %v6723 = vpop.f32.mrb[0].mxu0
      %v6724 = vadd.f32 0.0, %v6723
      %v6725 = vpop.f32.mrb[0].mxu0
      %6726 = vmatprep.mubr.bf16.mxu0 0
      %6727 = vmatmul.mubr.bf16.gmra.mrb[0].mxu0 %v6638
      %v6728 = vpop.f32.mrb[0].mxu0
      %v6729 = vadd.f32 0.0, %v6728
      %v6730 = vpop.f32.mrb[0].mxu0
      %v6731 = vpop.f32.mrb[0].mxu0
      %v6732 = vadd.f32 0.0, %v6731
      %v6733 = vpop.f32.mrb[0].mxu0
      %6734 = vmatprep.mubr.bf16.mxu0 0
      %6735 = vmatmul.mubr.bf16.gmra.mrb[0].mxu0 %v6641
      %v6736 = vpop.f32.mrb[0].mxu0
      %v6737 = vadd.f32 0.0, %v6736
      %v6738 = vpop.f32.mrb[0].mxu0
      %v6739 = vpop.f32.mrb[0].mxu0
      %v6740 = vadd.f32 0.0, %v6739
      %v6741 = vpop.f32.mrb[0].mxu0
      %6742 = vmatprep.mubr.bf16.mxu0 0
      %6743 = vmatmul.mubr.bf16.gmra.mrb[0].mxu0 %v6644
      %v6744 = vpop.f32.mrb[0].mxu0
      %v6745 = vadd.f32 0.0, %v6744
      %v6746 = vpop.f32.mrb[0].mxu0
      %v6747 = vpop.f32.mrb[0].mxu0
      %v6748 = vpop.f32.mrb[0].mxu0
      %6749 = vdwg.mxu0
      %v6750 = vadd.f32 %v6435, %v6681
      %v6751 = vadd.f32 %v6436, %v6684
      %v6752 = vadd.f32 %v6437, %v6689
      %v6753 = vadd.f32 %v6438, %v6692
      %v6754 = vadd.f32 %v6439, %v6697
      %v6755 = vadd.f32 %v6440, %v6700
      %v6756 = vadd.f32 %v6441, %v6705
      %v6757 = vadd.f32 %v6442, %v6708
      %v6758 = vadd.f32 %v6443, %v6713
      %v6759 = vadd.f32 %v6444, %v6716
      %v6760 = vadd.f32 %v6445, %v6721
      %v6761 = vadd.f32 %v6446, %v6724
      %v6762 = vadd.f32 %v6447, %v6729
      %v6763 = vadd.f32 %v6448, %v6732
      %v6764 = vadd.f32 %v6449, %v6737
      %v6765 = vadd.f32 %v6450, %v6740
      %v6766 = vadd.f32 %v6451, %v6745
      %v6767 = vld [vmem:[#allocation2 + $0x1c] sm:$0xe]
      %s6768 = scalar_lea.vmem %s3, 704
      %v6769 = vld [vmem:[%s6768] sm:$0xf]
      %v6770 = vld [vmem:[%s6768 + $0x4] sm:$0xf]
      %v6771 = vld [vmem:[%s6768 + $0x8] sm:$0xf]
      %v6772 = vld [vmem:[%s6768 + $0xc] sm:$0xf]
      %v6773 = vld [vmem:[%s6768 + $0x10] sm:$0xf]
      %v6774 = vld [vmem:[%s6768 + $0x14] sm:$0xf]
      %v6775 = vld [vmem:[%s6768 + $0x18] sm:$0xf]
      %v6776 = vld [vmem:[%s6768 + $0x1c] sm:$0xf]
      %v6778 = vunpack.c.l.b16 %v6767
      %v6779 = vpack.c.b16 %v6498, %v6778
      %v6780 = vrot.slane %v6779, 1
      %v6781 = vrot.slane %v6516, 1
      %v6782 = vsel %vm2043, %v6780, %v6781
      %v6783 = vrot.slane %v6517, 1
      %v6784 = vsel %vm2043, %v6781, %v6783
      %v6785 = vrot.slane %v6518, 1
      %v6786 = vsel %vm2043, %v6783, %v6785
      %v6787 = vrot.slane %v6519, 1
      %v6788 = vsel %vm2043, %v6785, %v6787
      %v6789 = vrot.slane %v6520, 1
      %v6790 = vsel %vm2043, %v6787, %v6789
      %v6791 = vrot.slane %v6521, 1
      %v6792 = vsel %vm2043, %v6789, %v6791
      %v6793 = vrot.slane %v6522, 1
      %v6794 = vsel %vm2043, %v6791, %v6793
      %v6795 = vrot.slane %v6523, 1
      %v6796 = vsel %vm2043, %v6793, %v6795
      %v6805 = vunpack.c.l.b16 %v6769
      %v6806 = vunpack.c.l.b16 %v6770
      %v6807 = vunpack.c.l.b16 %v6771
      %v6808 = vunpack.c.l.b16 %v6772
      %v6809 = vunpack.c.l.b16 %v6773
      %v6810 = vunpack.c.l.b16 %v6774
      %v6811 = vunpack.c.l.b16 %v6775
      %v6812 = vunpack.c.l.b16 %v6776
      %v6813 = vpack.c.b16 %v6806, %v6805
      %v6814 = vpack.c.b16 %v6808, %v6807
      %v6815 = vpack.c.b16 %v6810, %v6809
      %v6816 = vpack.c.b16 %v6812, %v6811
      %v6822 = vsel %vm1750, %v6782, 0
      %v6825 = vsel %vm1750, %v6784, 0
      %v6828 = vsel %vm1750, %v6786, 0
      %v6831 = vsel %vm1750, %v6788, 0
      %v6834 = vsel %vm1750, %v6790, 0
      %v6837 = vsel %vm1750, %v6792, 0
      %v6840 = vsel %vm1750, %v6794, 0
      %v6843 = vsel %vm1750, %v6796, 0
      %v6846 = vsel %vm1750, %v6795, 0
      %6848 = vmatprep.subr.bf16.mxu0 0
      %6849 = vmatpush1.bf16.msra.mxu0 %v6813
      %6850 = vmatprep.subr.bf16.mxu0 0
      %6851 = vmatpush1.bf16.msra.mxu0 %v6814
      %6852 = vmatprep.subr.bf16.mxu0 0
      %6853 = vmatpush1.bf16.msra.mxu0 %v6815
      %6854 = vmatprep.subr.bf16.mxu0 0
      %6855 = vmatpush1.bf16.msra.mxu0 %v6816
      %6856 = vmatprep.subr.bf16.mxu0 0
      %6857 = vmatpush1.bf16.msra.mxu0 0
      %6858 = vmatprep.subr.bf16.mxu0 0
      %6859 = vmatpush1.bf16.msra.mxu0 0
      %6860 = vmatprep.subr.bf16.mxu0 0
      %6861 = vmatpush1.bf16.msra.mxu0 0
      %6862 = vmatprep.subr.bf16.mxu0 0
      %6863 = vmatpush1.bf16.msra.mxu0 0
      %6864 = vmatprep.subr.bf16.mxu0 0
      %6865 = vmatpush1.bf16.msra.mxu0 0
      %6866 = vmatprep.subr.bf16.mxu0 0
      %6867 = vmatpush1.bf16.msra.mxu0 0
      %6868 = vmatprep.subr.bf16.mxu0 0
      %6869 = vmatpush1.bf16.msra.mxu0 0
      %6870 = vmatprep.subr.bf16.mxu0 0
      %6871 = vmatpush1.bf16.msra.mxu0 0
      %6872 = vmatprep.subr.bf16.mxu0 0
      %6873 = vmatpush1.bf16.msra.mxu0 0
      %6874 = vmatprep.subr.bf16.mxu0 0
      %6875 = vmatpush1.bf16.msra.mxu0 0
      %6876 = vmatprep.subr.bf16.mxu0 0
      %6877 = vmatpush1.bf16.msra.mxu0 0
      %6878 = vmatprep.subr.bf16.mxu0 0
      %6879 = vmatpush1.bf16.msra.mxu0 0
      %6880 = vmatprep.mubr.bf16.mxu0 0
      %6881 = vmatmul.mubr.bf16.gmra.mrb[0].mxu0 %v6822
      %v6882 = vpop.f32.mrb[0].mxu0
      %v6883 = vadd.f32 0.0, %v6882
      %v6884 = vpop.f32.mrb[0].mxu0
      %v6885 = vpop.f32.mrb[0].mxu0
      %v6886 = vadd.f32 0.0, %v6885
      %v6887 = vpop.f32.mrb[0].mxu0
      %6888 = vmatprep.mubr.bf16.mxu0 0
      %6889 = vmatmul.mubr.bf16.gmra.mrb[0].mxu0 %v6825
      %v6890 = vpop.f32.mrb[0].mxu0
      %v6891 = vadd.f32 0.0, %v6890
      %v6892 = vpop.f32.mrb[0].mxu0
      %v6893 = vpop.f32.mrb[0].mxu0
      %v6894 = vadd.f32 0.0, %v6893
      %v6895 = vpop.f32.mrb[0].mxu0
      %6896 = vmatprep.mubr.bf16.mxu0 0
      %6897 = vmatmul.mubr.bf16.gmra.mrb[0].mxu0 %v6828
      %v6898 = vpop.f32.mrb[0].mxu0
      %v6899 = vadd.f32 0.0, %v6898
      %v6900 = vpop.f32.mrb[0].mxu0
      %v6901 = vpop.f32.mrb[0].mxu0
      %v6902 = vadd.f32 0.0, %v6901
      %v6903 = vpop.f32.mrb[0].mxu0
      %6904 = vmatprep.mubr.bf16.mxu0 0
      %6905 = vmatmul.mubr.bf16.gmra.mrb[0].mxu0 %v6831
      %v6906 = vpop.f32.mrb[0].mxu0
      %v6907 = vadd.f32 0.0, %v6906
      %v6908 = vpop.f32.mrb[0].mxu0
      %v6909 = vpop.f32.mrb[0].mxu0
      %v6910 = vadd.f32 0.0, %v6909
      %v6911 = vpop.f32.mrb[0].mxu0
      %6912 = vmatprep.mubr.bf16.mxu0 0
      %6913 = vmatmul.mubr.bf16.gmra.mrb[0].mxu0 %v6834
      %v6914 = vpop.f32.mrb[0].mxu0
      %v6915 = vadd.f32 0.0, %v6914
      %v6916 = vpop.f32.mrb[0].mxu0
      %v6917 = vpop.f32.mrb[0].mxu0
      %v6918 = vadd.f32 0.0, %v6917
      %v6919 = vpop.f32.mrb[0].mxu0
      %6920 = vmatprep.mubr.bf16.mxu0 0
      %6921 = vmatmul.mubr.bf16.gmra.mrb[0].mxu0 %v6837
      %v6922 = vpop.f32.mrb[0].mxu0
      %v6923 = vadd.f32 0.0, %v6922
      %v6924 = vpop.f32.mrb[0].mxu0
      %v6925 = vpop.f32.mrb[0].mxu0
      %v6926 = vadd.f32 0.0, %v6925
      %v6927 = vpop.f32.mrb[0].mxu0
      %6928 = vmatprep.mubr.bf16.mxu0 0
      %6929 = vmatmul.mubr.bf16.gmra.mrb[0].mxu0 %v6840
      %v6930 = vpop.f32.mrb[0].mxu0
      %v6931 = vadd.f32 0.0, %v6930
      %v6932 = vpop.f32.mrb[0].mxu0
      %v6933 = vpop.f32.mrb[0].mxu0
      %v6934 = vadd.f32 0.0, %v6933
      %v6935 = vpop.f32.mrb[0].mxu0
      %6936 = vmatprep.mubr.bf16.mxu0 0
      %6937 = vmatmul.mubr.bf16.gmra.mrb[0].mxu0 %v6843
      %v6938 = vpop.f32.mrb[0].mxu0
      %v6939 = vadd.f32 0.0, %v6938
      %v6940 = vpop.f32.mrb[0].mxu0
      %v6941 = vpop.f32.mrb[0].mxu0
      %v6942 = vadd.f32 0.0, %v6941
      %v6943 = vpop.f32.mrb[0].mxu0
      %6944 = vmatprep.mubr.bf16.mxu0 0
      %6945 = vmatmul.mubr.bf16.gmra.mrb[0].mxu0 %v6846
      %v6946 = vpop.f32.mrb[0].mxu0
      %v6947 = vadd.f32 0.0, %v6946
      %v6948 = vpop.f32.mrb[0].mxu0
      %v6949 = vpop.f32.mrb[0].mxu0
      %v6950 = vpop.f32.mrb[0].mxu0
      %6951 = vdwg.mxu0
      %v6952 = vadd.f32 %v6750, %v6883
      %v6953 = vadd.f32 %v6751, %v6886
      %v6954 = vadd.f32 %v6752, %v6891
      %v6955 = vadd.f32 %v6753, %v6894
      %v6956 = vadd.f32 %v6754, %v6899
      %v6957 = vadd.f32 %v6755, %v6902
      %v6958 = vadd.f32 %v6756, %v6907
      %v6959 = vadd.f32 %v6757, %v6910
      %v6960 = vadd.f32 %v6758, %v6915
      %v6961 = vadd.f32 %v6759, %v6918
      %v6962 = vadd.f32 %v6760, %v6923
      %v6963 = vadd.f32 %v6761, %v6926
      %v6964 = vadd.f32 %v6762, %v6931
      %v6965 = vadd.f32 %v6763, %v6934
      %v6966 = vadd.f32 %v6764, %v6939
      %v6967 = vadd.f32 %v6765, %v6942
      %v6968 = vadd.f32 %v6766, %v6947
      %v6969 = vld [vmem:[#allocation2 + $0x60] sm:$0x3]
      %s6970 = scalar_lea.vmem %s3, 736
      %v6971 = vld [vmem:[%s6970] sm:$0xf]
      %v6972 = vld [vmem:[%s6970 + $0x4] sm:$0xf]
      %v6973 = vld [vmem:[%s6970 + $0x8] sm:$0xf]
      %v6974 = vld [vmem:[%s6970 + $0xc] sm:$0xf]
      %v6975 = vld [vmem:[%s6970 + $0x10] sm:$0xf]
      %v6976 = vld [vmem:[%s6970 + $0x14] sm:$0xf]
      %v6977 = vld [vmem:[%s6970 + $0x18] sm:$0xf]
      %v6978 = vld [vmem:[%s6970 + $0x1c] sm:$0xf]
      %v6980 = vunpack.c.l.b16 %v6969
      %v6981 = vpack.c.b16 %v6980, %v6513
      %v6983 = vshrl.u32 %v6779, 16
      %v6985 = vrot.slane %v6983, 1
      %v6986 = vshll.u32 %v6779, 16
      %v6988 = vrot.slane %v6986, 2
      %v6989 = vor.u32 %v6985, %v6988
      %v6990 = vrot.slane %v6536, 1
      %v6991 = vrot.slane %v6532, 2
      %v6992 = vor.u32 %v6990, %v6991
      %v6993 = vsel %vm2246, %v6989, %v6992
      %v6994 = vrot.slane %v6544, 1
      %v6995 = vrot.slane %v6540, 2
      %v6996 = vor.u32 %v6994, %v6995
      %v6997 = vsel %vm2246, %v6992, %v6996
      %v6998 = vrot.slane %v6552, 1
      %v6999 = vrot.slane %v6548, 2
      %v7000 = vor.u32 %v6998, %v6999
      %v7001 = vsel %vm2246, %v6996, %v7000
      %v7002 = vrot.slane %v6560, 1
      %v7003 = vrot.slane %v6556, 2
      %v7004 = vor.u32 %v7002, %v7003
      %v7005 = vsel %vm2246, %v7000, %v7004
      %v7006 = vrot.slane %v6568, 1
      %v7007 = vrot.slane %v6564, 2
      %v7008 = vor.u32 %v7006, %v7007
      %v7009 = vsel %vm2246, %v7004, %v7008
      %v7010 = vrot.slane %v6576, 1
      %v7011 = vrot.slane %v6572, 2
      %v7012 = vor.u32 %v7010, %v7011
      %v7013 = vsel %vm2246, %v7008, %v7012
      %v7014 = vrot.slane %v6584, 1
      %v7015 = vrot.slane %v6580, 2
      %v7016 = vor.u32 %v7014, %v7015
      %v7017 = vsel %vm2246, %v7012, %v7016
      %v7019 = vshrl.u32 %v6981, 16
      %v7021 = vrot.slane %v7019, 1
      %v7022 = vshll.u32 %v6981, 16
      %v7024 = vrot.slane %v7022, 2
      %v7025 = vor.u32 %v7021, %v7024
      %v7026 = vsel %vm2246, %v7016, %v7025
      %v7035 = vunpack.c.l.b16 %v6971
      %v7036 = vunpack.c.l.b16 %v6972
      %v7037 = vunpack.c.l.b16 %v6973
      %v7038 = vunpack.c.l.b16 %v6974
      %v7039 = vunpack.c.l.b16 %v6975
      %v7040 = vunpack.c.l.b16 %v6976
      %v7041 = vunpack.c.l.b16 %v6977
      %v7042 = vunpack.c.l.b16 %v6978
      %v7043 = vpack.c.b16 %v7036, %v7035
      %v7044 = vpack.c.b16 %v7038, %v7037
      %v7045 = vpack.c.b16 %v7040, %v7039
      %v7046 = vpack.c.b16 %v7042, %v7041
      %v7052 = vsel %vm1750, %v6993, 0
      %v7055 = vsel %vm1750, %v6997, 0
      %v7058 = vsel %vm1750, %v7001, 0
      %v7061 = vsel %vm1750, %v7005, 0
      %v7064 = vsel %vm1750, %v7009, 0
      %v7067 = vsel %vm1750, %v7013, 0
      %v7070 = vsel %vm1750, %v7017, 0
      %v7073 = vsel %vm1750, %v7026, 0
      %v7076 = vsel %vm1750, %v7025, 0
      %7078 = vmatprep.subr.bf16.mxu0 0
      %7079 = vmatpush1.bf16.msra.mxu0 %v7043
      %7080 = vmatprep.subr.bf16.mxu0 0
      %7081 = vmatpush1.bf16.msra.mxu0 %v7044
      %7082 = vmatprep.subr.bf16.mxu0 0
      %7083 = vmatpush1.bf16.msra.mxu0 %v7045
      %7084 = vmatprep.subr.bf16.mxu0 0
      %7085 = vmatpush1.bf16.msra.mxu0 %v7046
      %7086 = vmatprep.subr.bf16.mxu0 0
      %7087 = vmatpush1.bf16.msra.mxu0 0
      %7088 = vmatprep.subr.bf16.mxu0 0
      %7089 = vmatpush1.bf16.msra.mxu0 0
      %7090 = vmatprep.subr.bf16.mxu0 0
      %7091 = vmatpush1.bf16.msra.mxu0 0
      %7092 = vmatprep.subr.bf16.mxu0 0
      %7093 = vmatpush1.bf16.msra.mxu0 0
      %7094 = vmatprep.subr.bf16.mxu0 0
      %7095 = vmatpush1.bf16.msra.mxu0 0
      %7096 = vmatprep.subr.bf16.mxu0 0
      %7097 = vmatpush1.bf16.msra.mxu0 0
      %7098 = vmatprep.subr.bf16.mxu0 0
      %7099 = vmatpush1.bf16.msra.mxu0 0
      %7100 = vmatprep.subr.bf16.mxu0 0
      %7101 = vmatpush1.bf16.msra.mxu0 0
      %7102 = vmatprep.subr.bf16.mxu0 0
      %7103 = vmatpush1.bf16.msra.mxu0 0
      %7104 = vmatprep.subr.bf16.mxu0 0
      %7105 = vmatpush1.bf16.msra.mxu0 0
      %7106 = vmatprep.subr.bf16.mxu0 0
      %7107 = vmatpush1.bf16.msra.mxu0 0
      %7108 = vmatprep.subr.bf16.mxu0 0
      %7109 = vmatpush1.bf16.msra.mxu0 0
      %7110 = vmatprep.mubr.bf16.mxu0 0
      %7111 = vmatmul.mubr.bf16.gmra.mrb[0].mxu0 %v7052
      %v7112 = vpop.f32.mrb[0].mxu0
      %v7113 = vadd.f32 0.0, %v7112
      %v7114 = vpop.f32.mrb[0].mxu0
      %v7115 = vpop.f32.mrb[0].mxu0
      %v7116 = vadd.f32 0.0, %v7115
      %v7117 = vpop.f32.mrb[0].mxu0
      %7118 = vmatprep.mubr.bf16.mxu0 0
      %7119 = vmatmul.mubr.bf16.gmra.mrb[0].mxu0 %v7055
      %v7120 = vpop.f32.mrb[0].mxu0
      %v7121 = vadd.f32 0.0, %v7120
      %v7122 = vpop.f32.mrb[0].mxu0
      %v7123 = vpop.f32.mrb[0].mxu0
      %v7124 = vadd.f32 0.0, %v7123
      %v7125 = vpop.f32.mrb[0].mxu0
      %7126 = vmatprep.mubr.bf16.mxu0 0
      %7127 = vmatmul.mubr.bf16.gmra.mrb[0].mxu0 %v7058
      %v7128 = vpop.f32.mrb[0].mxu0
      %v7129 = vadd.f32 0.0, %v7128
      %v7130 = vpop.f32.mrb[0].mxu0
      %v7131 = vpop.f32.mrb[0].mxu0
      %v7132 = vadd.f32 0.0, %v7131
      %v7133 = vpop.f32.mrb[0].mxu0
      %7134 = vmatprep.mubr.bf16.mxu0 0
      %7135 = vmatmul.mubr.bf16.gmra.mrb[0].mxu0 %v7061
      %v7136 = vpop.f32.mrb[0].mxu0
      %v7137 = vadd.f32 0.0, %v7136
      %v7138 = vpop.f32.mrb[0].mxu0
      %v7139 = vpop.f32.mrb[0].mxu0
      %v7140 = vadd.f32 0.0, %v7139
      %v7141 = vpop.f32.mrb[0].mxu0
      %7142 = vmatprep.mubr.bf16.mxu0 0
      %7143 = vmatmul.mubr.bf16.gmra.mrb[0].mxu0 %v7064
      %v7144 = vpop.f32.mrb[0].mxu0
      %v7145 = vadd.f32 0.0, %v7144
      %v7146 = vpop.f32.mrb[0].mxu0
      %v7147 = vpop.f32.mrb[0].mxu0
      %v7148 = vadd.f32 0.0, %v7147
      %v7149 = vpop.f32.mrb[0].mxu0
      %7150 = vmatprep.mubr.bf16.mxu0 0
      %7151 = vmatmul.mubr.bf16.gmra.mrb[0].mxu0 %v7067
      %v7152 = vpop.f32.mrb[0].mxu0
      %v7153 = vadd.f32 0.0, %v7152
      %v7154 = vpop.f32.mrb[0].mxu0
      %v7155 = vpop.f32.mrb[0].mxu0
      %v7156 = vadd.f32 0.0, %v7155
      %v7157 = vpop.f32.mrb[0].mxu0
      %7158 = vmatprep.mubr.bf16.mxu0 0
      %7159 = vmatmul.mubr.bf16.gmra.mrb[0].mxu0 %v7070
      %v7160 = vpop.f32.mrb[0].mxu0
      %v7161 = vadd.f32 0.0, %v7160
      %v7162 = vpop.f32.mrb[0].mxu0
      %v7163 = vpop.f32.mrb[0].mxu0
      %v7164 = vadd.f32 0.0, %v7163
      %v7165 = vpop.f32.mrb[0].mxu0
      %7166 = vmatprep.mubr.bf16.mxu0 0
      %7167 = vmatmul.mubr.bf16.gmra.mrb[0].mxu0 %v7073
      %v7168 = vpop.f32.mrb[0].mxu0
      %v7169 = vadd.f32 0.0, %v7168
      %v7170 = vpop.f32.mrb[0].mxu0
      %v7171 = vpop.f32.mrb[0].mxu0
      %v7172 = vadd.f32 0.0, %v7171
      %v7173 = vpop.f32.mrb[0].mxu0
      %7174 = vmatprep.mubr.bf16.mxu0 0
      %7175 = vmatmul.mubr.bf16.gmra.mrb[0].mxu0 %v7076
      %v7176 = vpop.f32.mrb[0].mxu0
      %v7177 = vadd.f32 0.0, %v7176
      %v7178 = vpop.f32.mrb[0].mxu0
      %v7179 = vpop.f32.mrb[0].mxu0
      %v7180 = vpop.f32.mrb[0].mxu0
      %7181 = vdwg.mxu0
      %v7182 = vadd.f32 %v6952, %v7113
      %v7183 = vadd.f32 %v6953, %v7116
      %v7184 = vadd.f32 %v6954, %v7121
      %v7185 = vadd.f32 %v6955, %v7124
      %v7186 = vadd.f32 %v6956, %v7129
      %v7187 = vadd.f32 %v6957, %v7132
      %v7188 = vadd.f32 %v6958, %v7137
      %v7189 = vadd.f32 %v6959, %v7140
      %v7190 = vadd.f32 %v6960, %v7145
      %v7191 = vadd.f32 %v6961, %v7148
      %v7192 = vadd.f32 %v6962, %v7153
      %v7193 = vadd.f32 %v6963, %v7156
      %v7194 = vadd.f32 %v6964, %v7161
      %v7195 = vadd.f32 %v6965, %v7164
      %v7196 = vadd.f32 %v6966, %v7169
      %v7197 = vadd.f32 %v6967, %v7172
      %v7198 = vadd.f32 %v6968, %v7177
      %v7199 = vld [vmem:[#allocation2 + $0x1c] sm:$0xc]
      %s7200 = scalar_lea.vmem %s3, 768
      %v7201 = vld [vmem:[%s7200] sm:$0xf]
      %v7202 = vld [vmem:[%s7200 + $0x4] sm:$0xf]
      %v7203 = vld [vmem:[%s7200 + $0x8] sm:$0xf]
      %v7204 = vld [vmem:[%s7200 + $0xc] sm:$0xf]
      %v7205 = vld [vmem:[%s7200 + $0x10] sm:$0xf]
      %v7206 = vld [vmem:[%s7200 + $0x14] sm:$0xf]
      %v7207 = vld [vmem:[%s7200 + $0x18] sm:$0xf]
      %v7208 = vld [vmem:[%s7200 + $0x1c] sm:$0xf]
      %v7210 = vunpack.c.l.b16 %v7199
      %v7211 = vpack.c.b16 %v6498, %v7210
      %v7212 = vrot.slane %v7211, 2
      %v7213 = vrot.slane %v6516, 2
      %v7214 = vsel %vm2477, %v7212, %v7213
      %v7215 = vrot.slane %v6517, 2
      %v7216 = vsel %vm2477, %v7213, %v7215
      %v7217 = vrot.slane %v6518, 2
      %v7218 = vsel %vm2477, %v7215, %v7217
      %v7219 = vrot.slane %v6519, 2
      %v7220 = vsel %vm2477, %v7217, %v7219
      %v7221 = vrot.slane %v6520, 2
      %v7222 = vsel %vm2477, %v7219, %v7221
      %v7223 = vrot.slane %v6521, 2
      %v7224 = vsel %vm2477, %v7221, %v7223
      %v7225 = vrot.slane %v6522, 2
      %v7226 = vsel %vm2477, %v7223, %v7225
      %v7227 = vrot.slane %v6981, 2
      %v7228 = vsel %vm2477, %v7225, %v7227
      %v7237 = vunpack.c.l.b16 %v7201
      %v7238 = vunpack.c.l.b16 %v7202
      %v7239 = vunpack.c.l.b16 %v7203
      %v7240 = vunpack.c.l.b16 %v7204
      %v7241 = vunpack.c.l.b16 %v7205
      %v7242 = vunpack.c.l.b16 %v7206
      %v7243 = vunpack.c.l.b16 %v7207
      %v7244 = vunpack.c.l.b16 %v7208
      %v7245 = vpack.c.b16 %v7238, %v7237
      %v7246 = vpack.c.b16 %v7240, %v7239
      %v7247 = vpack.c.b16 %v7242, %v7241
      %v7248 = vpack.c.b16 %v7244, %v7243
      %v7254 = vsel %vm1750, %v7214, 0
      %v7257 = vsel %vm1750, %v7216, 0
      %v7260 = vsel %vm1750, %v7218, 0
      %v7263 = vsel %vm1750, %v7220, 0
      %v7266 = vsel %vm1750, %v7222, 0
      %v7269 = vsel %vm1750, %v7224, 0
      %v7272 = vsel %vm1750, %v7226, 0
      %v7275 = vsel %vm1750, %v7228, 0
      %v7278 = vsel %vm1750, %v7227, 0
      %7280 = vmatprep.subr.bf16.mxu0 0
      %7281 = vmatpush1.bf16.msra.mxu0 %v7245
      %7282 = vmatprep.subr.bf16.mxu0 0
      %7283 = vmatpush1.bf16.msra.mxu0 %v7246
      %7284 = vmatprep.subr.bf16.mxu0 0
      %7285 = vmatpush1.bf16.msra.mxu0 %v7247
      %7286 = vmatprep.subr.bf16.mxu0 0
      %7287 = vmatpush1.bf16.msra.mxu0 %v7248
      %7288 = vmatprep.subr.bf16.mxu0 0
      %7289 = vmatpush1.bf16.msra.mxu0 0
      %7290 = vmatprep.subr.bf16.mxu0 0
      %7291 = vmatpush1.bf16.msra.mxu0 0
      %7292 = vmatprep.subr.bf16.mxu0 0
      %7293 = vmatpush1.bf16.msra.mxu0 0
      %7294 = vmatprep.subr.bf16.mxu0 0
      %7295 = vmatpush1.bf16.msra.mxu0 0
      %7296 = vmatprep.subr.bf16.mxu0 0
      %7297 = vmatpush1.bf16.msra.mxu0 0
      %7298 = vmatprep.subr.bf16.mxu0 0
      %7299 = vmatpush1.bf16.msra.mxu0 0
      %7300 = vmatprep.subr.bf16.mxu0 0
      %7301 = vmatpush1.bf16.msra.mxu0 0
      %7302 = vmatprep.subr.bf16.mxu0 0
      %7303 = vmatpush1.bf16.msra.mxu0 0
      %7304 = vmatprep.subr.bf16.mxu0 0
      %7305 = vmatpush1.bf16.msra.mxu0 0
      %7306 = vmatprep.subr.bf16.mxu0 0
      %7307 = vmatpush1.bf16.msra.mxu0 0
      %7308 = vmatprep.subr.bf16.mxu0 0
      %7309 = vmatpush1.bf16.msra.mxu0 0
      %7310 = vmatprep.subr.bf16.mxu0 0
      %7311 = vmatpush1.bf16.msra.mxu0 0
      %7312 = vmatprep.mubr.bf16.mxu0 0
      %7313 = vmatmul.mubr.bf16.gmra.mrb[0].mxu0 %v7254
      %v7314 = vpop.f32.mrb[0].mxu0
      %v7315 = vadd.f32 0.0, %v7314
      %v7316 = vpop.f32.mrb[0].mxu0
      %v7317 = vpop.f32.mrb[0].mxu0
      %v7318 = vadd.f32 0.0, %v7317
      %v7319 = vpop.f32.mrb[0].mxu0
      %7320 = vmatprep.mubr.bf16.mxu0 0
      %7321 = vmatmul.mubr.bf16.gmra.mrb[0].mxu0 %v7257
      %v7322 = vpop.f32.mrb[0].mxu0
      %v7323 = vadd.f32 0.0, %v7322
      %v7324 = vpop.f32.mrb[0].mxu0
      %v7325 = vpop.f32.mrb[0].mxu0
      %v7326 = vadd.f32 0.0, %v7325
      %v7327 = vpop.f32.mrb[0].mxu0
      %7328 = vmatprep.mubr.bf16.mxu0 0
      %7329 = vmatmul.mubr.bf16.gmra.mrb[0].mxu0 %v7260
      %v7330 = vpop.f32.mrb[0].mxu0
      %v7331 = vadd.f32 0.0, %v7330
      %v7332 = vpop.f32.mrb[0].mxu0
      %v7333 = vpop.f32.mrb[0].mxu0
      %v7334 = vadd.f32 0.0, %v7333
      %v7335 = vpop.f32.mrb[0].mxu0
      %7336 = vmatprep.mubr.bf16.mxu0 0
      %7337 = vmatmul.mubr.bf16.gmra.mrb[0].mxu0 %v7263
      %v7338 = vpop.f32.mrb[0].mxu0
      %v7339 = vadd.f32 0.0, %v7338
      %v7340 = vpop.f32.mrb[0].mxu0
      %v7341 = vpop.f32.mrb[0].mxu0
      %v7342 = vadd.f32 0.0, %v7341
      %v7343 = vpop.f32.mrb[0].mxu0
      %7344 = vmatprep.mubr.bf16.mxu0 0
      %7345 = vmatmul.mubr.bf16.gmra.mrb[0].mxu0 %v7266
      %v7346 = vpop.f32.mrb[0].mxu0
      %v7347 = vadd.f32 0.0, %v7346
      %v7348 = vpop.f32.mrb[0].mxu0
      %v7349 = vpop.f32.mrb[0].mxu0
      %v7350 = vadd.f32 0.0, %v7349
      %v7351 = vpop.f32.mrb[0].mxu0
      %7352 = vmatprep.mubr.bf16.mxu0 0
      %7353 = vmatmul.mubr.bf16.gmra.mrb[0].mxu0 %v7269
      %v7354 = vpop.f32.mrb[0].mxu0
      %v7355 = vadd.f32 0.0, %v7354
      %v7356 = vpop.f32.mrb[0].mxu0
      %v7357 = vpop.f32.mrb[0].mxu0
      %v7358 = vadd.f32 0.0, %v7357
      %v7359 = vpop.f32.mrb[0].mxu0
      %7360 = vmatprep.mubr.bf16.mxu0 0
      %7361 = vmatmul.mubr.bf16.gmra.mrb[0].mxu0 %v7272
      %v7362 = vpop.f32.mrb[0].mxu0
      %v7363 = vadd.f32 0.0, %v7362
      %v7364 = vpop.f32.mrb[0].mxu0
      %v7365 = vpop.f32.mrb[0].mxu0
      %v7366 = vadd.f32 0.0, %v7365
      %v7367 = vpop.f32.mrb[0].mxu0
      %7368 = vmatprep.mubr.bf16.mxu0 0
      %7369 = vmatmul.mubr.bf16.gmra.mrb[0].mxu0 %v7275
      %v7370 = vpop.f32.mrb[0].mxu0
      %v7371 = vadd.f32 0.0, %v7370
      %v7372 = vpop.f32.mrb[0].mxu0
      %v7373 = vpop.f32.mrb[0].mxu0
      %v7374 = vadd.f32 0.0, %v7373
      %v7375 = vpop.f32.mrb[0].mxu0
      %7376 = vmatprep.mubr.bf16.mxu0 0
      %7377 = vmatmul.mubr.bf16.gmra.mrb[0].mxu0 %v7278
      %v7378 = vpop.f32.mrb[0].mxu0
      %v7379 = vadd.f32 0.0, %v7378
      %v7380 = vpop.f32.mrb[0].mxu0
      %v7381 = vpop.f32.mrb[0].mxu0
      %v7382 = vpop.f32.mrb[0].mxu0
      %7383 = vdwg.mxu0
      %v7384 = vadd.f32 %v7182, %v7315
      %v7385 = vadd.f32 %v7183, %v7318
      %v7386 = vadd.f32 %v7184, %v7323
      %v7387 = vadd.f32 %v7185, %v7326
      %v7388 = vadd.f32 %v7186, %v7331
      %v7389 = vadd.f32 %v7187, %v7334
      %v7390 = vadd.f32 %v7188, %v7339
      %v7391 = vadd.f32 %v7189, %v7342
      %v7392 = vadd.f32 %v7190, %v7347
      %v7393 = vadd.f32 %v7191, %v7350
      %v7394 = vadd.f32 %v7192, %v7355
      %v7395 = vadd.f32 %v7193, %v7358
      %v7396 = vadd.f32 %v7194, %v7363
      %v7397 = vadd.f32 %v7195, %v7366
      %v7398 = vadd.f32 %v7196, %v7371
      %v7399 = vadd.f32 %v7197, %v7374
      %v7400 = vadd.f32 %v7198, %v7379
      %v7401 = vld [vmem:[%s4] sm:$0x1]
      %v7403 = vlaneseq
      %v7404 = vshrl.u32 %v7403, 7
      %v7405 = vsub.s32 0, %v7404
      %v7406 = vrot.slane %v7401, %v7405
      %v7408 = vadd.f32 %v7384, %v7406
      %v7409 = vadd.f32 %v7385, %v7406
      %v7410 = vadd.f32 %v7386, %v7406
      %v7411 = vadd.f32 %v7387, %v7406
      %v7412 = vadd.f32 %v7388, %v7406
      %v7413 = vadd.f32 %v7389, %v7406
      %v7414 = vadd.f32 %v7390, %v7406
      %v7415 = vadd.f32 %v7391, %v7406
      %v7416 = vadd.f32 %v7392, %v7406
      %v7417 = vadd.f32 %v7393, %v7406
      %v7418 = vadd.f32 %v7394, %v7406
      %v7419 = vadd.f32 %v7395, %v7406
      %v7420 = vadd.f32 %v7396, %v7406
      %v7421 = vadd.f32 %v7397, %v7406
      %v7422 = vadd.f32 %v7398, %v7406
      %v7423 = vadd.f32 %v7399, %v7406
      %v7424 = vadd.f32 %v7400, %v7406
      %v7425 = vmax.f32 %v7408, 0.0
      %v7426 = vmax.f32 %v7409, 0.0
      %v7427 = vmax.f32 %v7410, 0.0
      %v7428 = vmax.f32 %v7411, 0.0
      %v7429 = vmax.f32 %v7412, 0.0
      %v7430 = vmax.f32 %v7413, 0.0
      %v7431 = vmax.f32 %v7414, 0.0
      %v7432 = vmax.f32 %v7415, 0.0
      %v7433 = vmax.f32 %v7416, 0.0
      %v7434 = vmax.f32 %v7417, 0.0
      %v7435 = vmax.f32 %v7418, 0.0
      %v7436 = vmax.f32 %v7419, 0.0
      %v7437 = vmax.f32 %v7420, 0.0
      %v7438 = vmax.f32 %v7421, 0.0
      %v7439 = vmax.f32 %v7422, 0.0
      %v7440 = vmax.f32 %v7423, 0.0
      %v7441 = vmax.f32 %v7424, 0.0
      %v7442 = vld [vmem:[%s5] sm:$0xff]
      %v7443 = vld [vmem:[%s5 + $0x8] sm:$0xff]
      %v7444 = vld [vmem:[%s5 + $0x10] sm:$0xff]
      %v7445 = vld [vmem:[%s5 + $0x18] sm:$0xff]
      %v7446 = vld [vmem:[%s5 + $0x20] sm:$0xff]
      %v7447 = vld [vmem:[%s5 + $0x28] sm:$0xff]
      %v7448 = vld [vmem:[%s5 + $0x30] sm:$0xff]
      %v7449 = vld [vmem:[%s5 + $0x38] sm:$0xff]
      %vm7450 = vcmask 64512
      %v7452 = vsel %vm7450, %v7443, 0
      %v7455 = vsel %vm7450, %v7445, 0
      %v7458 = vsel %vm7450, %v7447, 0
      %v7461 = vsel %vm7450, %v7449, 0
      %7463 = vmatprep.subr.mxu0 0.0
      %7464 = vmatpush1.msra.mxu0 %v7425
      %7465 = vmatprep.subr.mxu0 0.0
      %7466 = vmatpush1.msra.mxu0 %v7426
      %7467 = vmatprep.subr.mxu0 0.0
      %7468 = vmatpush1.msra.mxu0 %v7427
      %7469 = vmatprep.subr.mxu0 0.0
      %7470 = vmatpush1.msra.mxu0 %v7428
      %7471 = vmatprep.subr.mxu0 0.0
      %7472 = vmatpush1.msra.mxu0 %v7429
      %7473 = vmatprep.subr.mxu0 0.0
      %7474 = vmatpush1.msra.mxu0 %v7430
      %7475 = vmatprep.subr.mxu0 0.0
      %7476 = vmatpush1.msra.mxu0 %v7431
      %7477 = vmatprep.subr.mxu0 0.0
      %7478 = vmatpush1.msra.mxu0 %v7432
      %7479 = vmatprep.subr.mxu0 0.0
      %7480 = vmatpush1.msra.mxu0 %v7433
      %7481 = vmatprep.subr.mxu0 0.0
      %7482 = vmatpush1.msra.mxu0 %v7434
      %7483 = vmatprep.subr.mxu0 0.0
      %7484 = vmatpush1.msra.mxu0 %v7435
      %7485 = vmatprep.subr.mxu0 0.0
      %7486 = vmatpush1.msra.mxu0 %v7436
      %7487 = vmatprep.subr.mxu0 0.0
      %7488 = vmatpush1.msra.mxu0 %v7437
      %7489 = vmatprep.subr.mxu0 0.0
      %7490 = vmatpush1.msra.mxu0 %v7438
      %7491 = vmatprep.subr.mxu0 0.0
      %7492 = vmatpush1.msra.mxu0 %v7439
      %7493 = vmatprep.subr.mxu0 0.0
      %7494 = vmatpush1.msra.mxu0 %v7440
      %7495 = vmatprep.subr.mxu0 0.0
      %7496 = vmatpush1.msra.mxu0 %v7441
      %7497 = vmatprep.subr.mxu0 0.0
      %7498 = vmatpush1.msra.mxu0 0.0
      %7499 = vmatprep.subr.mxu0 0.0
      %7500 = vmatpush1.msra.mxu0 0.0
      %7501 = vmatprep.subr.mxu0 0.0
      %7502 = vmatpush1.msra.mxu0 0.0
      %7503 = vmatprep.subr.mxu0 0.0
      %7504 = vmatpush1.msra.mxu0 0.0
      %7505 = vmatprep.subr.mxu0 0.0
      %7506 = vmatpush1.msra.mxu0 0.0
      %7507 = vmatprep.subr.mxu0 0.0
      %7508 = vmatpush1.msra.mxu0 0.0
      %7509 = vmatprep.subr.mxu0 0.0
      %7510 = vmatpush1.msra.mxu0 0.0
      %7511 = vmatprep.subr.mxu0 0.0
      %7512 = vmatpush1.msra.mxu0 0.0
      %7513 = vmatprep.subr.mxu0 0.0
      %7514 = vmatpush1.msra.mxu0 0.0
      %7515 = vmatprep.subr.mxu0 0.0
      %7516 = vmatpush1.msra.mxu0 0.0
      %7517 = vmatprep.subr.mxu0 0.0
      %7518 = vmatpush1.msra.mxu0 0.0
      %7519 = vmatprep.subr.mxu0 0.0
      %7520 = vmatpush1.msra.mxu0 0.0
      %7521 = vmatprep.subr.mxu0 0.0
      %7522 = vmatpush1.msra.mxu0 0.0
      %7523 = vmatprep.subr.mxu0 0.0
      %7524 = vmatpush1.msra.mxu0 0.0
      %7525 = vmatprep.subr.mxu0 0.0
      %7526 = vmatpush1.msra.mxu0 0.0
      %7527 = vmatprep.mubr.f32.mxu0 %v7452
      %7528 = vmatmul.mubr.f32.gmra.mrb[0].mxu0 %v7442
      %v7529 = vpop.f32.mrb[0].mxu0
      %v7530 = vadd.f32 0.0, %v7529
      %v7531 = vpop.f32.mrb[0].mxu0
      %7532 = vmatprep.mubr.f32.mxu0 %v7455
      %7533 = vmatmul.mubr.f32.gmra.mrb[0].mxu0 %v7444
      %v7534 = vpop.f32.mrb[0].mxu0
      %v7535 = vadd.f32 0.0, %v7534
      %v7536 = vpop.f32.mrb[0].mxu0
      %7537 = vmatprep.mubr.f32.mxu0 %v7458
      %7538 = vmatmul.mubr.f32.gmra.mrb[0].mxu0 %v7446
      %v7539 = vpop.f32.mrb[0].mxu0
      %v7540 = vadd.f32 0.0, %v7539
      %v7541 = vpop.f32.mrb[0].mxu0
      %7542 = vmatprep.mubr.f32.mxu0 %v7461
      %7543 = vmatmul.mubr.f32.gmra.mrb[0].mxu0 %v7448
      %v7544 = vpop.f32.mrb[0].mxu0
      %v7545 = vadd.f32 0.0, %v7544
      %v7546 = vpop.f32.mrb[0].mxu0
      %7547 = vdwg.mxu0
      %s7548 = scalar_lea.vmem %s5, 64
      %v7549 = vld [vmem:[%s7548] sm:$0xff]
      %v7550 = vld [vmem:[%s7548 + $0x8] sm:$0xff]
      %v7551 = vld [vmem:[%s7548 + $0x10] sm:$0xff]
      %v7552 = vld [vmem:[%s7548 + $0x18] sm:$0xff]
      %v7553 = vld [vmem:[%s7548 + $0x20] sm:$0xff]
      %v7554 = vld [vmem:[%s7548 + $0x28] sm:$0xff]
      %v7555 = vld [vmem:[%s7548 + $0x30] sm:$0xff]
      %v7556 = vld [vmem:[%s7548 + $0x38] sm:$0xff]
      %v7558 = vsel %vm7450, %v7550, 0
      %v7561 = vsel %vm7450, %v7552, 0
      %v7564 = vsel %vm7450, %v7554, 0
      %v7567 = vsel %vm7450, %v7556, 0
      %7569 = vmatprep.subr.mxu0 0.0
      %7570 = vmatpush1.msra.mxu0 %v7425
      %7571 = vmatprep.subr.mxu0 0.0
      %7572 = vmatpush1.msra.mxu0 %v7426
      %7573 = vmatprep.subr.mxu0 0.0
      %7574 = vmatpush1.msra.mxu0 %v7427
      %7575 = vmatprep.subr.mxu0 0.0
      %7576 = vmatpush1.msra.mxu0 %v7428
      %7577 = vmatprep.subr.mxu0 0.0
      %7578 = vmatpush1.msra.mxu0 %v7429
      %7579 = vmatprep.subr.mxu0 0.0
      %7580 = vmatpush1.msra.mxu0 %v7430
      %7581 = vmatprep.subr.mxu0 0.0
      %7582 = vmatpush1.msra.mxu0 %v7431
      %7583 = vmatprep.subr.mxu0 0.0
      %7584 = vmatpush1.msra.mxu0 %v7432
      %7585 = vmatprep.subr.mxu0 0.0
      %7586 = vmatpush1.msra.mxu0 %v7433
      %7587 = vmatprep.subr.mxu0 0.0
      %7588 = vmatpush1.msra.mxu0 %v7434
      %7589 = vmatprep.subr.mxu0 0.0
      %7590 = vmatpush1.msra.mxu0 %v7435
      %7591 = vmatprep.subr.mxu0 0.0
      %7592 = vmatpush1.msra.mxu0 %v7436
      %7593 = vmatprep.subr.mxu0 0.0
      %7594 = vmatpush1.msra.mxu0 %v7437
      %7595 = vmatprep.subr.mxu0 0.0
      %7596 = vmatpush1.msra.mxu0 %v7438
      %7597 = vmatprep.subr.mxu0 0.0
      %7598 = vmatpush1.msra.mxu0 %v7439
      %7599 = vmatprep.subr.mxu0 0.0
      %7600 = vmatpush1.msra.mxu0 %v7440
      %7601 = vmatprep.subr.mxu0 0.0
      %7602 = vmatpush1.msra.mxu0 %v7441
      %7603 = vmatprep.subr.mxu0 0.0
      %7604 = vmatpush1.msra.mxu0 0.0
      %7605 = vmatprep.subr.mxu0 0.0
      %7606 = vmatpush1.msra.mxu0 0.0
      %7607 = vmatprep.subr.mxu0 0.0
      %7608 = vmatpush1.msra.mxu0 0.0
      %7609 = vmatprep.subr.mxu0 0.0
      %7610 = vmatpush1.msra.mxu0 0.0
      %7611 = vmatprep.subr.mxu0 0.0
      %7612 = vmatpush1.msra.mxu0 0.0
      %7613 = vmatprep.subr.mxu0 0.0
      %7614 = vmatpush1.msra.mxu0 0.0
      %7615 = vmatprep.subr.mxu0 0.0
      %7616 = vmatpush1.msra.mxu0 0.0
      %7617 = vmatprep.subr.mxu0 0.0
      %7618 = vmatpush1.msra.mxu0 0.0
      %7619 = vmatprep.subr.mxu0 0.0
      %7620 = vmatpush1.msra.mxu0 0.0
      %7621 = vmatprep.subr.mxu0 0.0
      %7622 = vmatpush1.msra.mxu0 0.0
      %7623 = vmatprep.subr.mxu0 0.0
      %7624 = vmatpush1.msra.mxu0 0.0
      %7625 = vmatprep.subr.mxu0 0.0
      %7626 = vmatpush1.msra.mxu0 0.0
      %7627 = vmatprep.subr.mxu0 0.0
      %7628 = vmatpush1.msra.mxu0 0.0
      %7629 = vmatprep.subr.mxu0 0.0
      %7630 = vmatpush1.msra.mxu0 0.0
      %7631 = vmatprep.subr.mxu0 0.0
      %7632 = vmatpush1.msra.mxu0 0.0
      %7633 = vmatprep.mubr.f32.mxu0 %v7558
      %7634 = vmatmul.mubr.f32.gmra.mrb[0].mxu0 %v7549
      %v7635 = vpop.f32.mrb[0].mxu0
      %v7636 = vadd.f32 0.0, %v7635
      %v7637 = vpop.f32.mrb[0].mxu0
      %7638 = vmatprep.mubr.f32.mxu0 %v7561
      %7639 = vmatmul.mubr.f32.gmra.mrb[0].mxu0 %v7551
      %v7640 = vpop.f32.mrb[0].mxu0
      %v7641 = vadd.f32 0.0, %v7640
      %v7642 = vpop.f32.mrb[0].mxu0
      %7643 = vmatprep.mubr.f32.mxu0 %v7564
      %7644 = vmatmul.mubr.f32.gmra.mrb[0].mxu0 %v7553
      %v7645 = vpop.f32.mrb[0].mxu0
      %v7646 = vadd.f32 0.0, %v7645
      %v7647 = vpop.f32.mrb[0].mxu0
      %7648 = vmatprep.mubr.f32.mxu0 %v7567
      %7649 = vmatmul.mubr.f32.gmra.mrb[0].mxu0 %v7555
      %v7650 = vpop.f32.mrb[0].mxu0
      %v7651 = vadd.f32 0.0, %v7650
      %v7652 = vpop.f32.mrb[0].mxu0
      %7653 = vdwg.mxu0
      %v7654 = vmax.f32 %v7530, %v7636
      %v7655 = vmax.f32 %v7535, %v7641
      %v7656 = vmax.f32 %v7540, %v7646
      %v7657 = vmax.f32 %v7545, %v7651
      %s7658 = scalar_lea.vmem %s5, 128
      %v7659 = vld [vmem:[%s7658] sm:$0xff]
      %v7660 = vld [vmem:[%s7658 + $0x8] sm:$0xff]
      %v7661 = vld [vmem:[%s7658 + $0x10] sm:$0xff]
      %v7662 = vld [vmem:[%s7658 + $0x18] sm:$0xff]
      %v7663 = vld [vmem:[%s7658 + $0x20] sm:$0xff]
      %v7664 = vld [vmem:[%s7658 + $0x28] sm:$0xff]
      %v7665 = vld [vmem:[%s7658 + $0x30] sm:$0xff]
      %v7666 = vld [vmem:[%s7658 + $0x38] sm:$0xff]
      %v7668 = vsel %vm7450, %v7660, 0
      %v7671 = vsel %vm7450, %v7662, 0
      %v7674 = vsel %vm7450, %v7664, 0
      %v7677 = vsel %vm7450, %v7666, 0
      %7679 = vmatprep.subr.mxu0 0.0
      %7680 = vmatpush1.msra.mxu0 %v7425
      %7681 = vmatprep.subr.mxu0 0.0
      %7682 = vmatpush1.msra.mxu0 %v7426
      %7683 = vmatprep.subr.mxu0 0.0
      %7684 = vmatpush1.msra.mxu0 %v7427
      %7685 = vmatprep.subr.mxu0 0.0
      %7686 = vmatpush1.msra.mxu0 %v7428
      %7687 = vmatprep.subr.mxu0 0.0
      %7688 = vmatpush1.msra.mxu0 %v7429
      %7689 = vmatprep.subr.mxu0 0.0
      %7690 = vmatpush1.msra.mxu0 %v7430
      %7691 = vmatprep.subr.mxu0 0.0
      %7692 = vmatpush1.msra.mxu0 %v7431
      %7693 = vmatprep.subr.mxu0 0.0
      %7694 = vmatpush1.msra.mxu0 %v7432
      %7695 = vmatprep.subr.mxu0 0.0
      %7696 = vmatpush1.msra.mxu0 %v7433
      %7697 = vmatprep.subr.mxu0 0.0
      %7698 = vmatpush1.msra.mxu0 %v7434
      %7699 = vmatprep.subr.mxu0 0.0
      %7700 = vmatpush1.msra.mxu0 %v7435
      %7701 = vmatprep.subr.mxu0 0.0
      %7702 = vmatpush1.msra.mxu0 %v7436
      %7703 = vmatprep.subr.mxu0 0.0
      %7704 = vmatpush1.msra.mxu0 %v7437
      %7705 = vmatprep.subr.mxu0 0.0
      %7706 = vmatpush1.msra.mxu0 %v7438
      %7707 = vmatprep.subr.mxu0 0.0
      %7708 = vmatpush1.msra.mxu0 %v7439
      %7709 = vmatprep.subr.mxu0 0.0
      %7710 = vmatpush1.msra.mxu0 %v7440
      %7711 = vmatprep.subr.mxu0 0.0
      %7712 = vmatpush1.msra.mxu0 %v7441
      %7713 = vmatprep.subr.mxu0 0.0
      %7714 = vmatpush1.msra.mxu0 0.0
      %7715 = vmatprep.subr.mxu0 0.0
      %7716 = vmatpush1.msra.mxu0 0.0
      %7717 = vmatprep.subr.mxu0 0.0
      %7718 = vmatpush1.msra.mxu0 0.0
      %7719 = vmatprep.subr.mxu0 0.0
      %7720 = vmatpush1.msra.mxu0 0.0
      %7721 = vmatprep.subr.mxu0 0.0
      %7722 = vmatpush1.msra.mxu0 0.0
      %7723 = vmatprep.subr.mxu0 0.0
      %7724 = vmatpush1.msra.mxu0 0.0
      %7725 = vmatprep.subr.mxu0 0.0
      %7726 = vmatpush1.msra.mxu0 0.0
      %7727 = vmatprep.subr.mxu0 0.0
      %7728 = vmatpush1.msra.mxu0 0.0
      %7729 = vmatprep.subr.mxu0 0.0
      %7730 = vmatpush1.msra.mxu0 0.0
      %7731 = vmatprep.subr.mxu0 0.0
      %7732 = vmatpush1.msra.mxu0 0.0
      %7733 = vmatprep.subr.mxu0 0.0
      %7734 = vmatpush1.msra.mxu0 0.0
      %7735 = vmatprep.subr.mxu0 0.0
      %7736 = vmatpush1.msra.mxu0 0.0
      %7737 = vmatprep.subr.mxu0 0.0
      %7738 = vmatpush1.msra.mxu0 0.0
      %7739 = vmatprep.subr.mxu0 0.0
      %7740 = vmatpush1.msra.mxu0 0.0
      %7741 = vmatprep.subr.mxu0 0.0
      %7742 = vmatpush1.msra.mxu0 0.0
      %7743 = vmatprep.mubr.f32.mxu0 %v7668
      %7744 = vmatmul.mubr.f32.gmra.mrb[0].mxu0 %v7659
      %v7745 = vpop.f32.mrb[0].mxu0
      %v7746 = vadd.f32 0.0, %v7745
      %v7747 = vpop.f32.mrb[0].mxu0
      %7748 = vmatprep.mubr.f32.mxu0 %v7671
      %7749 = vmatmul.mubr.f32.gmra.mrb[0].mxu0 %v7661
      %v7750 = vpop.f32.mrb[0].mxu0
      %v7751 = vadd.f32 0.0, %v7750
      %v7752 = vpop.f32.mrb[0].mxu0
      %7753 = vmatprep.mubr.f32.mxu0 %v7674
      %7754 = vmatmul.mubr.f32.gmra.mrb[0].mxu0 %v7663
      %v7755 = vpop.f32.mrb[0].mxu0
      %v7756 = vadd.f32 0.0, %v7755
      %v7757 = vpop.f32.mrb[0].mxu0
      %7758 = vmatprep.mubr.f32.mxu0 %v7677
      %7759 = vmatmul.mubr.f32.gmra.mrb[0].mxu0 %v7665
      %v7760 = vpop.f32.mrb[0].mxu0
      %v7761 = vadd.f32 0.0, %v7760
      %v7762 = vpop.f32.mrb[0].mxu0
      %7763 = vdwg.mxu0
      %v7764 = vmax.f32 %v7654, %v7746
      %v7765 = vmax.f32 %v7655, %v7751
      %v7766 = vmax.f32 %v7656, %v7756
      %v7767 = vmax.f32 %v7657, %v7761
      %s7768 = scalar_lea.vmem %s5, 192
      %v7769 = vld [vmem:[%s7768] sm:$0xff]
      %v7770 = vld [vmem:[%s7768 + $0x8] sm:$0xff]
      %v7771 = vld [vmem:[%s7768 + $0x10] sm:$0xff]
      %v7772 = vld [vmem:[%s7768 + $0x18] sm:$0xff]
      %v7773 = vld [vmem:[%s7768 + $0x20] sm:$0xff]
      %v7774 = vld [vmem:[%s7768 + $0x28] sm:$0xff]
      %v7775 = vld [vmem:[%s7768 + $0x30] sm:$0xff]
      %v7776 = vld [vmem:[%s7768 + $0x38] sm:$0xff]
      %v7778 = vsel %vm7450, %v7770, 0
      %v7781 = vsel %vm7450, %v7772, 0
      %v7784 = vsel %vm7450, %v7774, 0
      %v7787 = vsel %vm7450, %v7776, 0
      %7789 = vmatprep.subr.mxu0 0.0
      %7790 = vmatpush1.msra.mxu0 %v7425
      %7791 = vmatprep.subr.mxu0 0.0
      %7792 = vmatpush1.msra.mxu0 %v7426
      %7793 = vmatprep.subr.mxu0 0.0
      %7794 = vmatpush1.msra.mxu0 %v7427
      %7795 = vmatprep.subr.mxu0 0.0
      %7796 = vmatpush1.msra.mxu0 %v7428
      %7797 = vmatprep.subr.mxu0 0.0
      %7798 = vmatpush1.msra.mxu0 %v7429
      %7799 = vmatprep.subr.mxu0 0.0
      %7800 = vmatpush1.msra.mxu0 %v7430
      %7801 = vmatprep.subr.mxu0 0.0
      %7802 = vmatpush1.msra.mxu0 %v7431
      %7803 = vmatprep.subr.mxu0 0.0
      %7804 = vmatpush1.msra.mxu0 %v7432
      %7805 = vmatprep.subr.mxu0 0.0
      %7806 = vmatpush1.msra.mxu0 %v7433
      %7807 = vmatprep.subr.mxu0 0.0
      %7808 = vmatpush1.msra.mxu0 %v7434
      %7809 = vmatprep.subr.mxu0 0.0
      %7810 = vmatpush1.msra.mxu0 %v7435
      %7811 = vmatprep.subr.mxu0 0.0
      %7812 = vmatpush1.msra.mxu0 %v7436
      %7813 = vmatprep.subr.mxu0 0.0
      %7814 = vmatpush1.msra.mxu0 %v7437
      %7815 = vmatprep.subr.mxu0 0.0
      %7816 = vmatpush1.msra.mxu0 %v7438
      %7817 = vmatprep.subr.mxu0 0.0
      %7818 = vmatpush1.msra.mxu0 %v7439
      %7819 = vmatprep.subr.mxu0 0.0
      %7820 = vmatpush1.msra.mxu0 %v7440
      %7821 = vmatprep.subr.mxu0 0.0
      %7822 = vmatpush1.msra.mxu0 %v7441
      %7823 = vmatprep.subr.mxu0 0.0
      %7824 = vmatpush1.msra.mxu0 0.0
      %7825 = vmatprep.subr.mxu0 0.0
      %7826 = vmatpush1.msra.mxu0 0.0
      %7827 = vmatprep.subr.mxu0 0.0
      %7828 = vmatpush1.msra.mxu0 0.0
      %7829 = vmatprep.subr.mxu0 0.0
      %7830 = vmatpush1.msra.mxu0 0.0
      %7831 = vmatprep.subr.mxu0 0.0
      %7832 = vmatpush1.msra.mxu0 0.0
      %7833 = vmatprep.subr.mxu0 0.0
      %7834 = vmatpush1.msra.mxu0 0.0
      %7835 = vmatprep.subr.mxu0 0.0
      %7836 = vmatpush1.msra.mxu0 0.0
      %7837 = vmatprep.subr.mxu0 0.0
      %7838 = vmatpush1.msra.mxu0 0.0
      %7839 = vmatprep.subr.mxu0 0.0
      %7840 = vmatpush1.msra.mxu0 0.0
      %7841 = vmatprep.subr.mxu0 0.0
      %7842 = vmatpush1.msra.mxu0 0.0
      %7843 = vmatprep.subr.mxu0 0.0
      %7844 = vmatpush1.msra.mxu0 0.0
      %7845 = vmatprep.subr.mxu0 0.0
      %7846 = vmatpush1.msra.mxu0 0.0
      %7847 = vmatprep.subr.mxu0 0.0
      %7848 = vmatpush1.msra.mxu0 0.0
      %7849 = vmatprep.subr.mxu0 0.0
      %7850 = vmatpush1.msra.mxu0 0.0
      %7851 = vmatprep.subr.mxu0 0.0
      %7852 = vmatpush1.msra.mxu0 0.0
      %7853 = vmatprep.mubr.f32.mxu0 %v7778
      %7854 = vmatmul.mubr.f32.gmra.mrb[0].mxu0 %v7769
      %v7855 = vpop.f32.mrb[0].mxu0
      %v7856 = vadd.f32 0.0, %v7855
      %v7857 = vpop.f32.mrb[0].mxu0
      %7858 = vmatprep.mubr.f32.mxu0 %v7781
      %7859 = vmatmul.mubr.f32.gmra.mrb[0].mxu0 %v7771
      %v7860 = vpop.f32.mrb[0].mxu0
      %v7861 = vadd.f32 0.0, %v7860
      %v7862 = vpop.f32.mrb[0].mxu0
      %7863 = vmatprep.mubr.f32.mxu0 %v7784
      %7864 = vmatmul.mubr.f32.gmra.mrb[0].mxu0 %v7773
      %v7865 = vpop.f32.mrb[0].mxu0
      %v7866 = vadd.f32 0.0, %v7865
      %v7867 = vpop.f32.mrb[0].mxu0
      %7868 = vmatprep.mubr.f32.mxu0 %v7787
      %7869 = vmatmul.mubr.f32.gmra.mrb[0].mxu0 %v7775
      %v7870 = vpop.f32.mrb[0].mxu0
      %v7871 = vadd.f32 0.0, %v7870
      %v7872 = vpop.f32.mrb[0].mxu0
      %7873 = vdwg.mxu0
      %v7874 = vmax.f32 %v7764, %v7856
      %v7875 = vmax.f32 %v7765, %v7861
      %v7876 = vmax.f32 %v7766, %v7866
      %v7877 = vmax.f32 %v7767, %v7871
      %7878 = vst.msk [vmem:[%s251] sm:$0xff] %vm1750, %v7874
      %7879 = vst.msk [vmem:[%s251 + $0x8] sm:$0xff] %vm1750, %v7875
      %7880 = vst.msk [vmem:[%s251 + $0x10] sm:$0xff] %vm1750, %v7876
      %7881 = vst.msk [vmem:[%s251 + $0x18] sm:$0xff] %vm1750, %v7877
      %p7882 = scmp.lt.s32.totalorder %s17, 1
      %s7883 = scalar_select %p7882, %s17, 1
      %s7884 = smul.addr %s7883, 4
      %s7885 = smul.addr %s7884, 8
      %s7886 = scalar_lea.vmem %s6, %s7885
      // Predicated region
      $region45: #{model_forward.2} parent=43 // pred_check
        %p7887 = pneg %p166
      $region46: #{model_forward.2} parent=43 // pred_check_branch
        %7889 = sbr.rel (%p7887) target = $region48
      $region47: #{model_forward.2} parent=43 // pred_region
        _
      $region48: #{model_forward.2} parent=43 // pred_fallthru
        _
    $region44: #{model_forward.2} parent=5 // pred_fallthru
      _
    %p7890 = scmp.le.s32.totalorder 2, %s12
    // Predicated region
    $region49: #{model_forward.2} parent=5 // pred_check
      %p7891 = pneg %p7890
    $region50: #{model_forward.2} parent=5 // pred_check_branch
      %7893 = sbr.rel (%p7891) target = $region52
    $region51: #{model_forward.2} parent=5 // pred_region
      %s7894 = ssub.s32 %s12, 2
      // Predicated region
      $region53: #{model_forward.2} parent=51 // pred_check
        %p7895 = pneg %p172
      $region54: #{model_forward.2} parent=51 // pred_check_branch
        %7897 = sbr.rel (%p7895) target = $region56
      $region55: #{model_forward.2} parent=51 // pred_region
        %p7898 = scmp.lt.s32.totalorder %s18, 1
        %s7899 = scalar_select %p7898, %s18, 1
        %s7900 = smul.addr %s7899, 4
        %s7901 = smul.addr %s7900, 8
        %s7902 = scalar_lea.vmem %s6, %s7901
      $region56: #{model_forward.2} parent=51 // pred_fallthru
        _
    $region52: #{model_forward.2} parent=5 // pred_fallthru
      _
  $region6: #{model_forward.2} parent=0 // loop_footer
    %s16 = sadd.s32 1, %s12
  $region7: #{model_forward.2} parent=0 // loop_footer_branch
    %11 = sbr.rel target = $region3
  $region8: #{model_forward.2} parent=0 // loop_exit
    _

// kernel: model_forward.3
$region0: #{model_forward.3}
  #allocation0 [shape = 'u32[]', space=smem, size = 0x4, offset = 0x4, fixed_abs, tag = 'smem constant byte address 0x4 - core index']
  #allocation1 [shape = 'u32[144,128]{1,0:T(1,128)}', space=vmem, size = 0x12000, scoped, tag = 'internal scratch']
  %s0 = inlined_call_operand.vmem [shape: f32[2,1600], index: 0, kind: input, shape index: {}]
  %s1 = inlined_call_operand.vmem [shape: bf16[1600,384], index: 1, kind: input, shape index: {}]
  %s2 = inlined_call_operand.vmem [shape: f32[1,384], index: 2, kind: input, shape index: {}]
  %s3 = inlined_call_operand.vmem [shape: bf16[384,192], index: 3, kind: input, shape index: {}]
  %s4 = inlined_call_operand.vmem [shape: f32[1,192], index: 4, kind: input, shape index: {}]
  %s5 = inlined_call_operand.vmem [shape: bf16[192,100], index: 5, kind: input, shape index: {}]
  %s6 = inlined_call_operand.vmem [shape: f32[1,100], index: 6, kind: input, shape index: {}]
  %s7 = inlined_call_operand.hbm [shape: f32[2,100], index: 7, kind: output, shape index: {}]
  %s8 = sld [smem:[#allocation0]]
  $region38: #{model_forward.3} parent=0
    _
  %s10 = ssub.s32 1, %s8
  %s11 = scalar_select 0, %s10, %s8
  $region1: #{model_forward.3} parent=0
    #allocation2 [shape = 'u8[1024]{0}', space=vmem, size = 0x400, scoped, tag = 'output window, operand 0, single buffered']
    #allocation3 [shape = 's32[1]{0}', space=sflag, size = 0x4, scoped, tag = 'scoped memory for model_forward.3']
    %12 = vsyncpa [#allocation3], 0
    // Predicated region
    $region2: #{model_forward.3} parent=1 // pred_check
      _
    $region3: #{model_forward.3} parent=1 // pred_check_branch
      %14 = sbr.rel (0) target = $region5
    $region4: #{model_forward.3} parent=1 // pred_region
      _
    $region5: #{model_forward.3} parent=1 // pred_fallthru
      _
    // Predicated region
    $region6: #{model_forward.3} parent=1 // pred_check
      _
    $region7: #{model_forward.3} parent=1 // pred_check_branch
      %16 = sbr.rel (0) target = $region9
    $region8: #{model_forward.3} parent=1 // pred_region
      _
    $region9: #{model_forward.3} parent=1 // pred_fallthru
      _
    // Predicated region
    $region10: #{model_forward.3} parent=1 // pred_check
      _
    $region11: #{model_forward.3} parent=1 // pred_check_branch
      %18 = sbr.rel (0) target = $region13
    $region12: #{model_forward.3} parent=1 // pred_region
      _
    $region13: #{model_forward.3} parent=1 // pred_fallthru
      _
    // Predicated region
    $region14: #{model_forward.3} parent=1 // pred_check
      _
    $region15: #{model_forward.3} parent=1 // pred_check_branch
      %20 = sbr.rel (0) target = $region17
    $region16: #{model_forward.3} parent=1 // pred_region
      _
    $region17: #{model_forward.3} parent=1 // pred_fallthru
      _
    // Predicated region
    $region18: #{model_forward.3} parent=1 // pred_check
      _
    $region19: #{model_forward.3} parent=1 // pred_check_branch
      %22 = sbr.rel (0) target = $region21
    $region20: #{model_forward.3} parent=1 // pred_region
      _
    $region21: #{model_forward.3} parent=1 // pred_fallthru
      _
    // Predicated region
    $region22: #{model_forward.3} parent=1 // pred_check
      _
    $region23: #{model_forward.3} parent=1 // pred_check_branch
      %24 = sbr.rel (0) target = $region25
    $region24: #{model_forward.3} parent=1 // pred_region
      _
    $region25: #{model_forward.3} parent=1 // pred_fallthru
      _
    // Predicated region
    $region26: #{model_forward.3} parent=1 // pred_check
      _
    $region27: #{model_forward.3} parent=1 // pred_check_branch
      %26 = sbr.rel (0) target = $region29
    $region28: #{model_forward.3} parent=1 // pred_region
      _
    $region29: #{model_forward.3} parent=1 // pred_fallthru
      _
    %v28 = vld [vmem:[%s0] sm:$0xff]
    %v29 = vld [vmem:[%s0 + $0x8] sm:$0xff]
    %v30 = vld [vmem:[%s0 + $0x10] sm:$0xff]
    %v31 = vld [vmem:[%s0 + $0x18] sm:$0x3]
    %v36 = vcombine.high %v28, %v28
    %v38 = vunpack.c.l.s4 1983009808
    %v39 = vunpack.c.0.s8 %v38
    %v40 = vlaneseq
    %v41 = vshrl.u32 %v40, 7
    %v42 = vsub.s32 %v39, %v41
    %v43 = vrot.slane %v28, %v42
    %v45 = vunpack.c.l.s4 1983009808
    %v46 = vunpack.c.0.s8 %v45
    %v47 = vlaneseq
    %v48 = vshrl.u32 %v47, 7
    %v49 = vsub.s32 %v46, %v48
    %v50 = vrot.slane %v36, %v49
    %v51 = vcombine.high %v43, %v43
    %v52 = vcombine.high %v50, %v50
    %v53 = vcombine.high %v29, %v29
    %v55 = vunpack.c.l.s4 1983009808
    %v56 = vunpack.c.0.s8 %v55
    %v57 = vlaneseq
    %v58 = vshrl.u32 %v57, 7
    %v59 = vsub.s32 %v56, %v58
    %v60 = vrot.slane %v29, %v59
    %v62 = vunpack.c.l.s4 1983009808
    %v63 = vunpack.c.0.s8 %v62
    %v64 = vlaneseq
    %v65 = vshrl.u32 %v64, 7
    %v66 = vsub.s32 %v63, %v65
    %v67 = vrot.slane %v53, %v66
    %v68 = vcombine.high %v60, %v60
    %v69 = vcombine.high %v67, %v67
    %v70 = vcombine.high %v30, %v30
    %v72 = vunpack.c.l.s4 1983009808
    %v73 = vunpack.c.0.s8 %v72
    %v74 = vlaneseq
    %v75 = vshrl.u32 %v74, 7
    %v76 = vsub.s32 %v73, %v75
    %v77 = vrot.slane %v30, %v76
    %v79 = vunpack.c.l.s4 1983009808
    %v80 = vunpack.c.0.s8 %v79
    %v81 = vlaneseq
    %v82 = vshrl.u32 %v81, 7
    %v83 = vsub.s32 %v80, %v82
    %v84 = vrot.slane %v70, %v83
    %v85 = vcombine.high %v77, %v77
    %v86 = vcombine.high %v84, %v84
    %v88 = vunpack.c.l.s4 1983009808
    %v89 = vunpack.c.0.s8 %v88
    %v90 = vlaneseq
    %v91 = vshrl.u32 %v90, 7
    %v92 = vsub.s32 %v89, %v91
    %v93 = vrot.slane %v31, %v92
    %v107 = vpack.c.bf16 %v43, %v43
    %v108 = vpack.c.bf16 %v51, %v51
    %v109 = vpack.c.bf16 %v50, %v50
    %v110 = vpack.c.bf16 %v52, %v52
    %v111 = vpack.c.bf16 %v60, %v60
    %v112 = vpack.c.bf16 %v68, %v68
    %v113 = vpack.c.bf16 %v67, %v67
    %v114 = vpack.c.bf16 %v69, %v69
    %v115 = vpack.c.bf16 %v77, %v77
    %v116 = vpack.c.bf16 %v85, %v85
    %v117 = vpack.c.bf16 %v84, %v84
    %v118 = vpack.c.bf16 %v86, %v86
    %v119 = vpack.c.bf16 %v93, %v93
    %v120 = vld [vmem:[%s1] sm:$0xff]
    %v121 = vld [vmem:[%s1 + $0x8] sm:$0xf]
    %v122 = vld [vmem:[%s1 + $0xc] sm:$0xff]
    %v123 = vld [vmem:[%s1 + $0x14] sm:$0xf]
    %v124 = vld [vmem:[%s1 + $0x18] sm:$0xff]
    %v125 = vld [vmem:[%s1 + $0x20] sm:$0xf]
    %v126 = vld [vmem:[%s1 + $0x24] sm:$0xff]
    %v127 = vld [vmem:[%s1 + $0x2c] sm:$0xf]
    %v128 = vld [vmem:[%s1 + $0x30] sm:$0xff]
    %v129 = vld [vmem:[%s1 + $0x38] sm:$0xf]
    %v130 = vld [vmem:[%s1 + $0x3c] sm:$0xff]
    %v131 = vld [vmem:[%s1 + $0x44] sm:$0xf]
    %v132 = vld [vmem:[%s1 + $0x48] sm:$0xff]
    %v133 = vld [vmem:[%s1 + $0x50] sm:$0xf]
    %v134 = vld [vmem:[%s1 + $0x54] sm:$0xff]
    %v135 = vld [vmem:[%s1 + $0x5c] sm:$0xf]
    %v136 = vld [vmem:[%s1 + $0x60] sm:$0xff]
    %v137 = vld [vmem:[%s1 + $0x68] sm:$0xf]
    %v138 = vld [vmem:[%s1 + $0x6c] sm:$0xff]
    %v139 = vld [vmem:[%s1 + $0x74] sm:$0xf]
    %v140 = vld [vmem:[%s1 + $0x78] sm:$0xff]
    %v141 = vld [vmem:[%s1 + $0x80] sm:$0xf]
    %v142 = vld [vmem:[%s1 + $0x84] sm:$0xff]
    %v143 = vld [vmem:[%s1 + $0x8c] sm:$0xf]
    %v144 = vld [vmem:[%s1 + $0x90] sm:$0xff]
    %v145 = vld [vmem:[%s1 + $0x98] sm:$0xf]
    %v146 = vld [vmem:[%s1 + $0x9c] sm:$0xff]
    %v147 = vld [vmem:[%s1 + $0xa4] sm:$0xf]
    %v148 = vld [vmem:[%s1 + $0xa8] sm:$0xff]
    %v149 = vld [vmem:[%s1 + $0xb0] sm:$0xf]
    %v150 = vld [vmem:[%s1 + $0xb4] sm:$0xff]
    %v151 = vld [vmem:[%s1 + $0xbc] sm:$0xf]
    %v152 = vld [vmem:[%s1 + $0xc0] sm:$0xff]
    %v153 = vld [vmem:[%s1 + $0xc8] sm:$0xf]
    %v154 = vld [vmem:[%s1 + $0xcc] sm:$0xff]
    %v155 = vld [vmem:[%s1 + $0xd4] sm:$0xf]
    %v156 = vld [vmem:[%s1 + $0xd8] sm:$0xff]
    %v157 = vld [vmem:[%s1 + $0xe0] sm:$0xf]
    %v158 = vld [vmem:[%s1 + $0xe4] sm:$0xff]
    %v159 = vld [vmem:[%s1 + $0xec] sm:$0xf]
    %v160 = vld [vmem:[%s1 + $0xf0] sm:$0xff]
    %v161 = vld [vmem:[%s1 + $0xf8] sm:$0xf]
    %v162 = vld [vmem:[%s1 + $0xfc] sm:$0xff]
    %v163 = vld [vmem:[%s1 + $0x104] sm:$0xf]
    %v164 = vld [vmem:[%s1 + $0x108] sm:$0xff]
    %v165 = vld [vmem:[%s1 + $0x110] sm:$0xf]
    %v166 = vld [vmem:[%s1 + $0x114] sm:$0xff]
    %v167 = vld [vmem:[%s1 + $0x11c] sm:$0xf]
    %v168 = vld [vmem:[%s1 + $0x120] sm:$0xff]
    %v169 = vld [vmem:[%s1 + $0x128] sm:$0xf]
    %v170 = vld [vmem:[%s1 + $0x12c] sm:$0xff]
    %v171 = vld [vmem:[%s1 + $0x134] sm:$0xf]
    %v172 = vld [vmem:[%s1 + $0x138] sm:$0xff]
    %v173 = vld [vmem:[%s1 + $0x140] sm:$0xf]
    %v174 = vld [vmem:[%s1 + $0x144] sm:$0xff]
    %v175 = vld [vmem:[%s1 + $0x14c] sm:$0xf]
    %v176 = vld [vmem:[%s1 + $0x150] sm:$0xff]
    %v177 = vld [vmem:[%s1 + $0x158] sm:$0xf]
    %v178 = vld [vmem:[%s1 + $0x15c] sm:$0xff]
    %v179 = vld [vmem:[%s1 + $0x164] sm:$0xf]
    %v180 = vld [vmem:[%s1 + $0x168] sm:$0xff]
    %v181 = vld [vmem:[%s1 + $0x170] sm:$0xf]
    %v182 = vld [vmem:[%s1 + $0x174] sm:$0xff]
    %v183 = vld [vmem:[%s1 + $0x17c] sm:$0xf]
    %v184 = vld [vmem:[%s1 + $0x180] sm:$0xff]
    %v185 = vld [vmem:[%s1 + $0x188] sm:$0xf]
    %v186 = vld [vmem:[%s1 + $0x18c] sm:$0xff]
    %v187 = vld [vmem:[%s1 + $0x194] sm:$0xf]
    %v188 = vld [vmem:[%s1 + $0x198] sm:$0xff]
    %v189 = vld [vmem:[%s1 + $0x1a0] sm:$0xf]
    %v190 = vld [vmem:[%s1 + $0x1a4] sm:$0xff]
    %v191 = vld [vmem:[%s1 + $0x1ac] sm:$0xf]
    %v192 = vld [vmem:[%s1 + $0x1b0] sm:$0xff]
    %v193 = vld [vmem:[%s1 + $0x1b8] sm:$0xf]
    %v194 = vld [vmem:[%s1 + $0x1bc] sm:$0xff]
    %v195 = vld [vmem:[%s1 + $0x1c4] sm:$0xf]
    %v196 = vld [vmem:[%s1 + $0x1c8] sm:$0xff]
    %v197 = vld [vmem:[%s1 + $0x1d0] sm:$0xf]
    %v198 = vld [vmem:[%s1 + $0x1d4] sm:$0xff]
    %v199 = vld [vmem:[%s1 + $0x1dc] sm:$0xf]
    %v200 = vld [vmem:[%s1 + $0x1e0] sm:$0xff]
    %v201 = vld [vmem:[%s1 + $0x1e8] sm:$0xf]
    %v202 = vld [vmem:[%s1 + $0x1ec] sm:$0xff]
    %v203 = vld [vmem:[%s1 + $0x1f4] sm:$0xf]
    %v204 = vld [vmem:[%s1 + $0x1f8] sm:$0xff]
    %v205 = vld [vmem:[%s1 + $0x200] sm:$0xf]
    %v206 = vld [vmem:[%s1 + $0x204] sm:$0xff]
    %v207 = vld [vmem:[%s1 + $0x20c] sm:$0xf]
    %v208 = vld [vmem:[%s1 + $0x210] sm:$0xff]
    %v209 = vld [vmem:[%s1 + $0x218] sm:$0xf]
    %v210 = vld [vmem:[%s1 + $0x21c] sm:$0xff]
    %v211 = vld [vmem:[%s1 + $0x224] sm:$0xf]
    %v212 = vld [vmem:[%s1 + $0x228] sm:$0xff]
    %v213 = vld [vmem:[%s1 + $0x230] sm:$0xf]
    %v214 = vld [vmem:[%s1 + $0x234] sm:$0xff]
    %v215 = vld [vmem:[%s1 + $0x23c] sm:$0xf]
    %v216 = vld [vmem:[%s1 + $0x240] sm:$0xff]
    %v217 = vld [vmem:[%s1 + $0x248] sm:$0xf]
    %v218 = vld [vmem:[%s1 + $0x24c] sm:$0xff]
    %v219 = vld [vmem:[%s1 + $0x254] sm:$0xf]
    %v220 = vld [vmem:[%s1 + $0x258] sm:$0xff]
    %v221 = vld [vmem:[%s1 + $0x260] sm:$0xf]
    %v222 = vld [vmem:[%s1 + $0x264] sm:$0xff]
    %v223 = vld [vmem:[%s1 + $0x26c] sm:$0xf]
    %v224 = vld [vmem:[%s1 + $0x270] sm:$0xff]
    %v225 = vld [vmem:[%s1 + $0x278] sm:$0xf]
    %v226 = vld [vmem:[%s1 + $0x27c] sm:$0xff]
    %v227 = vld [vmem:[%s1 + $0x284] sm:$0xf]
    %v228 = vld [vmem:[%s1 + $0x288] sm:$0xff]
    %v229 = vld [vmem:[%s1 + $0x290] sm:$0xf]
    %v230 = vld [vmem:[%s1 + $0x294] sm:$0xff]
    %v231 = vld [vmem:[%s1 + $0x29c] sm:$0xf]
    %v232 = vld [vmem:[%s1 + $0x2a0] sm:$0xff]
    %v233 = vld [vmem:[%s1 + $0x2a8] sm:$0xf]
    %v234 = vld [vmem:[%s1 + $0x2ac] sm:$0xff]
    %v235 = vld [vmem:[%s1 + $0x2b4] sm:$0xf]
    %v236 = vld [vmem:[%s1 + $0x2b8] sm:$0xff]
    %v237 = vld [vmem:[%s1 + $0x2c0] sm:$0xf]
    %v238 = vld [vmem:[%s1 + $0x2c4] sm:$0xff]
    %v239 = vld [vmem:[%s1 + $0x2cc] sm:$0xf]
    %v240 = vld [vmem:[%s1 + $0x2d0] sm:$0xff]
    %v241 = vld [vmem:[%s1 + $0x2d8] sm:$0xf]
    %v242 = vld [vmem:[%s1 + $0x2dc] sm:$0xff]
    %v243 = vld [vmem:[%s1 + $0x2e4] sm:$0xf]
    %v244 = vld [vmem:[%s1 + $0x2e8] sm:$0xff]
    %v245 = vld [vmem:[%s1 + $0x2f0] sm:$0xf]
    %v246 = vld [vmem:[%s1 + $0x2f4] sm:$0xff]
    %v247 = vld [vmem:[%s1 + $0x2fc] sm:$0xf]
    %v248 = vld [vmem:[%s1 + $0x300] sm:$0xff]
    %v249 = vld [vmem:[%s1 + $0x308] sm:$0xf]
    %v250 = vld [vmem:[%s1 + $0x30c] sm:$0xff]
    %v251 = vld [vmem:[%s1 + $0x314] sm:$0xf]
    %v252 = vld [vmem:[%s1 + $0x318] sm:$0xff]
    %v253 = vld [vmem:[%s1 + $0x320] sm:$0xf]
    %v254 = vld [vmem:[%s1 + $0x324] sm:$0xff]
    %v255 = vld [vmem:[%s1 + $0x32c] sm:$0xf]
    %v256 = vld [vmem:[%s1 + $0x330] sm:$0xff]
    %v257 = vld [vmem:[%s1 + $0x338] sm:$0xf]
    %v258 = vld [vmem:[%s1 + $0x33c] sm:$0xff]
    %v259 = vld [vmem:[%s1 + $0x344] sm:$0xf]
    %v260 = vld [vmem:[%s1 + $0x348] sm:$0xff]
    %v261 = vld [vmem:[%s1 + $0x350] sm:$0xf]
    %v262 = vld [vmem:[%s1 + $0x354] sm:$0xff]
    %v263 = vld [vmem:[%s1 + $0x35c] sm:$0xf]
    %v264 = vld [vmem:[%s1 + $0x360] sm:$0xff]
    %v265 = vld [vmem:[%s1 + $0x368] sm:$0xf]
    %v266 = vld [vmem:[%s1 + $0x36c] sm:$0xff]
    %v267 = vld [vmem:[%s1 + $0x374] sm:$0xf]
    %v268 = vld [vmem:[%s1 + $0x378] sm:$0xff]
    %v269 = vld [vmem:[%s1 + $0x380] sm:$0xf]
    %v270 = vld [vmem:[%s1 + $0x384] sm:$0xff]
    %v271 = vld [vmem:[%s1 + $0x38c] sm:$0xf]
    %v272 = vld [vmem:[%s1 + $0x390] sm:$0xff]
    %v273 = vld [vmem:[%s1 + $0x398] sm:$0xf]
    %v274 = vld [vmem:[%s1 + $0x39c] sm:$0xff]
    %v275 = vld [vmem:[%s1 + $0x3a4] sm:$0xf]
    %v276 = vld [vmem:[%s1 + $0x3a8] sm:$0xff]
    %v277 = vld [vmem:[%s1 + $0x3b0] sm:$0xf]
    %v278 = vld [vmem:[%s1 + $0x3b4] sm:$0xff]
    %v279 = vld [vmem:[%s1 + $0x3bc] sm:$0xf]
    %v280 = vld [vmem:[%s1 + $0x3c0] sm:$0xff]
    %v281 = vld [vmem:[%s1 + $0x3c8] sm:$0xf]
    %v282 = vld [vmem:[%s1 + $0x3cc] sm:$0xff]
    %v283 = vld [vmem:[%s1 + $0x3d4] sm:$0xf]
    %v284 = vld [vmem:[%s1 + $0x3d8] sm:$0xff]
    %v285 = vld [vmem:[%s1 + $0x3e0] sm:$0xf]
    %v286 = vld [vmem:[%s1 + $0x3e4] sm:$0xff]
    %v287 = vld [vmem:[%s1 + $0x3ec] sm:$0xf]
    %v288 = vld [vmem:[%s1 + $0x3f0] sm:$0xff]
    %v289 = vld [vmem:[%s1 + $0x3f8] sm:$0xf]
    %v290 = vld [vmem:[%s1 + $0x3fc] sm:$0xff]
    %v291 = vld [vmem:[%s1 + $0x404] sm:$0xf]
    %v292 = vld [vmem:[%s1 + $0x408] sm:$0xff]
    %v293 = vld [vmem:[%s1 + $0x410] sm:$0xf]
    %v294 = vld [vmem:[%s1 + $0x414] sm:$0xff]
    %v295 = vld [vmem:[%s1 + $0x41c] sm:$0xf]
    %v296 = vld [vmem:[%s1 + $0x420] sm:$0xff]
    %v297 = vld [vmem:[%s1 + $0x428] sm:$0xf]
    %v298 = vld [vmem:[%s1 + $0x42c] sm:$0xff]
    %v299 = vld [vmem:[%s1 + $0x434] sm:$0xf]
    %v300 = vld [vmem:[%s1 + $0x438] sm:$0xff]
    %v301 = vld [vmem:[%s1 + $0x440] sm:$0xf]
    %v302 = vld [vmem:[%s1 + $0x444] sm:$0xff]
    %v303 = vld [vmem:[%s1 + $0x44c] sm:$0xf]
    %v304 = vld [vmem:[%s1 + $0x450] sm:$0xff]
    %v305 = vld [vmem:[%s1 + $0x458] sm:$0xf]
    %v306 = vld [vmem:[%s1 + $0x45c] sm:$0xff]
    %v307 = vld [vmem:[%s1 + $0x464] sm:$0xf]
    %v308 = vld [vmem:[%s1 + $0x468] sm:$0xff]
    %v309 = vld [vmem:[%s1 + $0x470] sm:$0xf]
    %v310 = vld [vmem:[%s1 + $0x474] sm:$0xff]
    %v311 = vld [vmem:[%s1 + $0x47c] sm:$0xf]
    %v312 = vld [vmem:[%s1 + $0x480] sm:$0xff]
    %v313 = vld [vmem:[%s1 + $0x488] sm:$0xf]
    %v314 = vld [vmem:[%s1 + $0x48c] sm:$0xff]
    %v315 = vld [vmem:[%s1 + $0x494] sm:$0xf]
    %v316 = vld [vmem:[%s1 + $0x498] sm:$0xff]
    %v317 = vld [vmem:[%s1 + $0x4a0] sm:$0xf]
    %v318 = vld [vmem:[%s1 + $0x4a4] sm:$0xff]
    %v319 = vld [vmem:[%s1 + $0x4ac] sm:$0xf]
    %v320 = vld [vmem:[%s1 + $0x4b0] sm:$0xff]
    %v321 = vld [vmem:[%s1 + $0x4b8] sm:$0xf]
    %v322 = vld [vmem:[%s1 + $0x4bc] sm:$0xff]
    %v323 = vld [vmem:[%s1 + $0x4c4] sm:$0xf]
    %v324 = vld [vmem:[%s1 + $0x4c8] sm:$0xff]
    %v325 = vld [vmem:[%s1 + $0x4d0] sm:$0xf]
    %v326 = vld [vmem:[%s1 + $0x4d4] sm:$0xff]
    %v327 = vld [vmem:[%s1 + $0x4dc] sm:$0xf]
    %v328 = vld [vmem:[%s1 + $0x4e0] sm:$0xff]
    %v329 = vld [vmem:[%s1 + $0x4e8] sm:$0xf]
    %v330 = vld [vmem:[%s1 + $0x4ec] sm:$0xff]
    %v331 = vld [vmem:[%s1 + $0x4f4] sm:$0xf]
    %v332 = vld [vmem:[%s1 + $0x4f8] sm:$0xff]
    %v333 = vld [vmem:[%s1 + $0x500] sm:$0xf]
    %v334 = vld [vmem:[%s1 + $0x504] sm:$0xff]
    %v335 = vld [vmem:[%s1 + $0x50c] sm:$0xf]
    %v336 = vld [vmem:[%s1 + $0x510] sm:$0xff]
    %v337 = vld [vmem:[%s1 + $0x518] sm:$0xf]
    %v338 = vld [vmem:[%s1 + $0x51c] sm:$0xff]
    %v339 = vld [vmem:[%s1 + $0x524] sm:$0xf]
    %v340 = vld [vmem:[%s1 + $0x528] sm:$0xff]
    %v341 = vld [vmem:[%s1 + $0x530] sm:$0xf]
    %v342 = vld [vmem:[%s1 + $0x534] sm:$0xff]
    %v343 = vld [vmem:[%s1 + $0x53c] sm:$0xf]
    %v344 = vld [vmem:[%s1 + $0x540] sm:$0xff]
    %v345 = vld [vmem:[%s1 + $0x548] sm:$0xf]
    %v346 = vld [vmem:[%s1 + $0x54c] sm:$0xff]
    %v347 = vld [vmem:[%s1 + $0x554] sm:$0xf]
    %v348 = vld [vmem:[%s1 + $0x558] sm:$0xff]
    %v349 = vld [vmem:[%s1 + $0x560] sm:$0xf]
    %v350 = vld [vmem:[%s1 + $0x564] sm:$0xff]
    %v351 = vld [vmem:[%s1 + $0x56c] sm:$0xf]
    %v352 = vld [vmem:[%s1 + $0x570] sm:$0xff]
    %v353 = vld [vmem:[%s1 + $0x578] sm:$0xf]
    %v354 = vld [vmem:[%s1 + $0x57c] sm:$0xff]
    %v355 = vld [vmem:[%s1 + $0x584] sm:$0xf]
    %v356 = vld [vmem:[%s1 + $0x588] sm:$0xff]
    %v357 = vld [vmem:[%s1 + $0x590] sm:$0xf]
    %v358 = vld [vmem:[%s1 + $0x594] sm:$0xff]
    %v359 = vld [vmem:[%s1 + $0x59c] sm:$0xf]
    %v360 = vld [vmem:[%s1 + $0x5a0] sm:$0xff]
    %v361 = vld [vmem:[%s1 + $0x5a8] sm:$0xf]
    %v362 = vld [vmem:[%s1 + $0x5ac] sm:$0xff]
    %v363 = vld [vmem:[%s1 + $0x5b4] sm:$0xf]
    %v364 = vld [vmem:[%s1 + $0x5b8] sm:$0xff]
    %v365 = vld [vmem:[%s1 + $0x5c0] sm:$0xf]
    %v366 = vld [vmem:[%s1 + $0x5c4] sm:$0xff]
    %v367 = vld [vmem:[%s1 + $0x5cc] sm:$0xf]
    %v368 = vld [vmem:[%s1 + $0x5d0] sm:$0xff]
    %v369 = vld [vmem:[%s1 + $0x5d8] sm:$0xf]
    %v370 = vld [vmem:[%s1 + $0x5dc] sm:$0xff]
    %v371 = vld [vmem:[%s1 + $0x5e4] sm:$0xf]
    %v372 = vld [vmem:[%s1 + $0x5e8] sm:$0xff]
    %v373 = vld [vmem:[%s1 + $0x5f0] sm:$0xf]
    %v374 = vld [vmem:[%s1 + $0x5f4] sm:$0xff]
    %v375 = vld [vmem:[%s1 + $0x5fc] sm:$0xf]
    %v376 = vld [vmem:[%s1 + $0x600] sm:$0xff]
    %v377 = vld [vmem:[%s1 + $0x608] sm:$0xf]
    %v378 = vld [vmem:[%s1 + $0x60c] sm:$0xff]
    %v379 = vld [vmem:[%s1 + $0x614] sm:$0xf]
    %v380 = vld [vmem:[%s1 + $0x618] sm:$0xff]
    %v381 = vld [vmem:[%s1 + $0x620] sm:$0xf]
    %v382 = vld [vmem:[%s1 + $0x624] sm:$0xff]
    %v383 = vld [vmem:[%s1 + $0x62c] sm:$0xf]
    %v384 = vld [vmem:[%s1 + $0x630] sm:$0xff]
    %v385 = vld [vmem:[%s1 + $0x638] sm:$0xf]
    %v386 = vld [vmem:[%s1 + $0x63c] sm:$0xff]
    %v387 = vld [vmem:[%s1 + $0x644] sm:$0xf]
    %v388 = vld [vmem:[%s1 + $0x648] sm:$0xff]
    %v389 = vld [vmem:[%s1 + $0x650] sm:$0xf]
    %v390 = vld [vmem:[%s1 + $0x654] sm:$0xff]
    %v391 = vld [vmem:[%s1 + $0x65c] sm:$0xf]
    %v392 = vld [vmem:[%s1 + $0x660] sm:$0xff]
    %v393 = vld [vmem:[%s1 + $0x668] sm:$0xf]
    %v394 = vld [vmem:[%s1 + $0x66c] sm:$0xff]
    %v395 = vld [vmem:[%s1 + $0x674] sm:$0xf]
    %v396 = vld [vmem:[%s1 + $0x678] sm:$0xff]
    %v397 = vld [vmem:[%s1 + $0x680] sm:$0xf]
    %v398 = vld [vmem:[%s1 + $0x684] sm:$0xff]
    %v399 = vld [vmem:[%s1 + $0x68c] sm:$0xf]
    %v400 = vld [vmem:[%s1 + $0x690] sm:$0xff]
    %v401 = vld [vmem:[%s1 + $0x698] sm:$0xf]
    %v402 = vld [vmem:[%s1 + $0x69c] sm:$0xff]
    %v403 = vld [vmem:[%s1 + $0x6a4] sm:$0xf]
    %v404 = vld [vmem:[%s1 + $0x6a8] sm:$0xff]
    %v405 = vld [vmem:[%s1 + $0x6b0] sm:$0xf]
    %v406 = vld [vmem:[%s1 + $0x6b4] sm:$0xff]
    %v407 = vld [vmem:[%s1 + $0x6bc] sm:$0xf]
    %v408 = vld [vmem:[%s1 + $0x6c0] sm:$0xff]
    %v409 = vld [vmem:[%s1 + $0x6c8] sm:$0xf]
    %v410 = vld [vmem:[%s1 + $0x6cc] sm:$0xff]
    %v411 = vld [vmem:[%s1 + $0x6d4] sm:$0xf]
    %v412 = vld [vmem:[%s1 + $0x6d8] sm:$0xff]
    %v413 = vld [vmem:[%s1 + $0x6e0] sm:$0xf]
    %v414 = vld [vmem:[%s1 + $0x6e4] sm:$0xff]
    %v415 = vld [vmem:[%s1 + $0x6ec] sm:$0xf]
    %v416 = vld [vmem:[%s1 + $0x6f0] sm:$0xff]
    %v417 = vld [vmem:[%s1 + $0x6f8] sm:$0xf]
    %v418 = vld [vmem:[%s1 + $0x6fc] sm:$0xff]
    %v419 = vld [vmem:[%s1 + $0x704] sm:$0xf]
    %v420 = vld [vmem:[%s1 + $0x708] sm:$0xff]
    %v421 = vld [vmem:[%s1 + $0x710] sm:$0xf]
    %v422 = vld [vmem:[%s1 + $0x714] sm:$0xff]
    %v423 = vld [vmem:[%s1 + $0x71c] sm:$0xf]
    %v424 = vld [vmem:[%s1 + $0x720] sm:$0xff]
    %v425 = vld [vmem:[%s1 + $0x728] sm:$0xf]
    %v426 = vld [vmem:[%s1 + $0x72c] sm:$0xff]
    %v427 = vld [vmem:[%s1 + $0x734] sm:$0xf]
    %v428 = vld [vmem:[%s1 + $0x738] sm:$0xff]
    %v429 = vld [vmem:[%s1 + $0x740] sm:$0xf]
    %v430 = vld [vmem:[%s1 + $0x744] sm:$0xff]
    %v431 = vld [vmem:[%s1 + $0x74c] sm:$0xf]
    %v432 = vld [vmem:[%s1 + $0x750] sm:$0xff]
    %v433 = vld [vmem:[%s1 + $0x758] sm:$0xf]
    %v434 = vld [vmem:[%s1 + $0x75c] sm:$0xff]
    %v435 = vld [vmem:[%s1 + $0x764] sm:$0xf]
    %v436 = vld [vmem:[%s1 + $0x768] sm:$0xff]
    %v437 = vld [vmem:[%s1 + $0x770] sm:$0xf]
    %v438 = vld [vmem:[%s1 + $0x774] sm:$0xff]
    %v439 = vld [vmem:[%s1 + $0x77c] sm:$0xf]
    %v440 = vld [vmem:[%s1 + $0x780] sm:$0xff]
    %v441 = vld [vmem:[%s1 + $0x788] sm:$0xf]
    %v442 = vld [vmem:[%s1 + $0x78c] sm:$0xff]
    %v443 = vld [vmem:[%s1 + $0x794] sm:$0xf]
    %v444 = vld [vmem:[%s1 + $0x798] sm:$0xff]
    %v445 = vld [vmem:[%s1 + $0x7a0] sm:$0xf]
    %v446 = vld [vmem:[%s1 + $0x7a4] sm:$0xff]
    %v447 = vld [vmem:[%s1 + $0x7ac] sm:$0xf]
    %v448 = vld [vmem:[%s1 + $0x7b0] sm:$0xff]
    %v449 = vld [vmem:[%s1 + $0x7b8] sm:$0xf]
    %v450 = vld [vmem:[%s1 + $0x7bc] sm:$0xff]
    %v451 = vld [vmem:[%s1 + $0x7c4] sm:$0xf]
    %v452 = vld [vmem:[%s1 + $0x7c8] sm:$0xff]
    %v453 = vld [vmem:[%s1 + $0x7d0] sm:$0xf]
    %v454 = vld [vmem:[%s1 + $0x7d4] sm:$0xff]
    %v455 = vld [vmem:[%s1 + $0x7dc] sm:$0xf]
    %v456 = vld [vmem:[%s1 + $0x7e0] sm:$0xff]
    %v457 = vld [vmem:[%s1 + $0x7e8] sm:$0xf]
    %v458 = vld [vmem:[%s1 + $0x7ec] sm:$0xff]
    %v459 = vld [vmem:[%s1 + $0x7f4] sm:$0xf]
    %v460 = vld [vmem:[%s1 + $0x7f8] sm:$0xff]
    %v461 = vld [vmem:[%s1 + $0x800] sm:$0xf]
    %v462 = vld [vmem:[%s1 + $0x804] sm:$0xff]
    %v463 = vld [vmem:[%s1 + $0x80c] sm:$0xf]
    %v464 = vld [vmem:[%s1 + $0x810] sm:$0xff]
    %v465 = vld [vmem:[%s1 + $0x818] sm:$0xf]
    %v466 = vld [vmem:[%s1 + $0x81c] sm:$0xff]
    %v467 = vld [vmem:[%s1 + $0x824] sm:$0xf]
    %v468 = vld [vmem:[%s1 + $0x828] sm:$0xff]
    %v469 = vld [vmem:[%s1 + $0x830] sm:$0xf]
    %v470 = vld [vmem:[%s1 + $0x834] sm:$0xff]
    %v471 = vld [vmem:[%s1 + $0x83c] sm:$0xf]
    %v472 = vld [vmem:[%s1 + $0x840] sm:$0xff]
    %v473 = vld [vmem:[%s1 + $0x848] sm:$0xf]
    %v474 = vld [vmem:[%s1 + $0x84c] sm:$0xff]
    %v475 = vld [vmem:[%s1 + $0x854] sm:$0xf]
    %v476 = vld [vmem:[%s1 + $0x858] sm:$0xff]
    %v477 = vld [vmem:[%s1 + $0x860] sm:$0xf]
    %v478 = vld [vmem:[%s1 + $0x864] sm:$0xff]
    %v479 = vld [vmem:[%s1 + $0x86c] sm:$0xf]
    %v480 = vld [vmem:[%s1 + $0x870] sm:$0xff]
    %v481 = vld [vmem:[%s1 + $0x878] sm:$0xf]
    %v482 = vld [vmem:[%s1 + $0x87c] sm:$0xff]
    %v483 = vld [vmem:[%s1 + $0x884] sm:$0xf]
    %v484 = vld [vmem:[%s1 + $0x888] sm:$0xff]
    %v485 = vld [vmem:[%s1 + $0x890] sm:$0xf]
    %v486 = vld [vmem:[%s1 + $0x894] sm:$0xff]
    %v487 = vld [vmem:[%s1 + $0x89c] sm:$0xf]
    %v488 = vld [vmem:[%s1 + $0x8a0] sm:$0xff]
    %v489 = vld [vmem:[%s1 + $0x8a8] sm:$0xf]
    %v490 = vld [vmem:[%s1 + $0x8ac] sm:$0xff]
    %v491 = vld [vmem:[%s1 + $0x8b4] sm:$0xf]
    %v492 = vld [vmem:[%s1 + $0x8b8] sm:$0xff]
    %v493 = vld [vmem:[%s1 + $0x8c0] sm:$0xf]
    %v494 = vld [vmem:[%s1 + $0x8c4] sm:$0xff]
    %v495 = vld [vmem:[%s1 + $0x8cc] sm:$0xf]
    %v496 = vld [vmem:[%s1 + $0x8d0] sm:$0xff]
    %v497 = vld [vmem:[%s1 + $0x8d8] sm:$0xf]
    %v498 = vld [vmem:[%s1 + $0x8dc] sm:$0xff]
    %v499 = vld [vmem:[%s1 + $0x8e4] sm:$0xf]
    %v500 = vld [vmem:[%s1 + $0x8e8] sm:$0xff]
    %v501 = vld [vmem:[%s1 + $0x8f0] sm:$0xf]
    %v502 = vld [vmem:[%s1 + $0x8f4] sm:$0xff]
    %v503 = vld [vmem:[%s1 + $0x8fc] sm:$0xf]
    %v504 = vld [vmem:[%s1 + $0x900] sm:$0xff]
    %v505 = vld [vmem:[%s1 + $0x908] sm:$0xf]
    %v506 = vld [vmem:[%s1 + $0x90c] sm:$0xff]
    %v507 = vld [vmem:[%s1 + $0x914] sm:$0xf]
    %v508 = vld [vmem:[%s1 + $0x918] sm:$0xff]
    %v509 = vld [vmem:[%s1 + $0x920] sm:$0xf]
    %v510 = vld [vmem:[%s1 + $0x924] sm:$0xff]
    %v511 = vld [vmem:[%s1 + $0x92c] sm:$0xf]
    %v512 = vld [vmem:[%s1 + $0x930] sm:$0xff]
    %v513 = vld [vmem:[%s1 + $0x938] sm:$0xf]
    %v514 = vld [vmem:[%s1 + $0x93c] sm:$0xff]
    %v515 = vld [vmem:[%s1 + $0x944] sm:$0xf]
    %v516 = vld [vmem:[%s1 + $0x948] sm:$0xff]
    %v517 = vld [vmem:[%s1 + $0x950] sm:$0xf]
    %v518 = vld [vmem:[%s1 + $0x954] sm:$0xff]
    %v519 = vld [vmem:[%s1 + $0x95c] sm:$0xf]
    %v520 = vld [vmem:[%s2] sm:$0x7]
    %v522 = vlaneseq
    %v523 = vshrl.u32 %v522, 7
    %v524 = vsub.s32 0, %v523
    %v525 = vrot.slane %v520, %v524
    %v526 = vlaneseq
    %v527 = vshrl.u32 %v526, 7
    %v528 = vsub.s32 1, %v527
    %v529 = vrot.slane %v520, %v528
    %v530 = vlaneseq
    %v531 = vshrl.u32 %v530, 7
    %v532 = vsub.s32 2, %v531
    %v533 = vrot.slane %v520, %v532
    %v937 = vunpack.c.l.b16 %v120
    %v938 = vunpack.c.h.b16 %v120
    %v939 = vunpack.c.l.b16 %v121
    %v940 = vunpack.c.l.b16 %v122
    %v941 = vunpack.c.h.b16 %v122
    %v942 = vunpack.c.l.b16 %v123
    %v943 = vunpack.c.l.b16 %v124
    %v944 = vunpack.c.h.b16 %v124
    %v945 = vunpack.c.l.b16 %v125
    %v946 = vunpack.c.l.b16 %v126
    %v947 = vunpack.c.h.b16 %v126
    %v948 = vunpack.c.l.b16 %v127
    %v949 = vunpack.c.l.b16 %v128
    %v950 = vunpack.c.h.b16 %v128
    %v951 = vunpack.c.l.b16 %v129
    %v952 = vunpack.c.l.b16 %v130
    %v953 = vunpack.c.h.b16 %v130
    %v954 = vunpack.c.l.b16 %v131
    %v955 = vunpack.c.l.b16 %v132
    %v956 = vunpack.c.h.b16 %v132
    %v957 = vunpack.c.l.b16 %v133
    %v958 = vunpack.c.l.b16 %v134
    %v959 = vunpack.c.h.b16 %v134
    %v960 = vunpack.c.l.b16 %v135
    %v961 = vunpack.c.l.b16 %v136
    %v962 = vunpack.c.h.b16 %v136
    %v963 = vunpack.c.l.b16 %v137
    %v964 = vunpack.c.l.b16 %v138
    %v965 = vunpack.c.h.b16 %v138
    %v966 = vunpack.c.l.b16 %v139
    %v967 = vunpack.c.l.b16 %v140
    %v968 = vunpack.c.h.b16 %v140
    %v969 = vunpack.c.l.b16 %v141
    %v970 = vunpack.c.l.b16 %v142
    %v971 = vunpack.c.h.b16 %v142
    %v972 = vunpack.c.l.b16 %v143
    %v973 = vunpack.c.l.b16 %v144
    %v974 = vunpack.c.h.b16 %v144
    %v975 = vunpack.c.l.b16 %v145
    %v976 = vunpack.c.l.b16 %v146
    %v977 = vunpack.c.h.b16 %v146
    %v978 = vunpack.c.l.b16 %v147
    %v979 = vunpack.c.l.b16 %v148
    %v980 = vunpack.c.h.b16 %v148
    %v981 = vunpack.c.l.b16 %v149
    %v982 = vunpack.c.l.b16 %v150
    %v983 = vunpack.c.h.b16 %v150
    %v984 = vunpack.c.l.b16 %v151
    %v985 = vunpack.c.l.b16 %v152
    %v986 = vunpack.c.h.b16 %v152
    %v987 = vunpack.c.l.b16 %v153
    %v988 = vunpack.c.l.b16 %v154
    %v989 = vunpack.c.h.b16 %v154
    %v990 = vunpack.c.l.b16 %v155
    %v991 = vunpack.c.l.b16 %v156
    %v992 = vunpack.c.h.b16 %v156
    %v993 = vunpack.c.l.b16 %v157
    %v994 = vunpack.c.l.b16 %v158
    %v995 = vunpack.c.h.b16 %v158
    %v996 = vunpack.c.l.b16 %v159
    %v997 = vunpack.c.l.b16 %v160
    %v998 = vunpack.c.h.b16 %v160
    %v999 = vunpack.c.l.b16 %v161
    %v1000 = vunpack.c.l.b16 %v162
    %v1001 = vunpack.c.h.b16 %v162
    %v1002 = vunpack.c.l.b16 %v163
    %v1003 = vunpack.c.l.b16 %v164
    %v1004 = vunpack.c.h.b16 %v164
    %v1005 = vunpack.c.l.b16 %v165
    %v1006 = vunpack.c.l.b16 %v166
    %v1007 = vunpack.c.h.b16 %v166
    %v1008 = vunpack.c.l.b16 %v167
    %v1009 = vunpack.c.l.b16 %v168
    %v1010 = vunpack.c.h.b16 %v168
    %v1011 = vunpack.c.l.b16 %v169
    %v1012 = vunpack.c.l.b16 %v170
    %v1013 = vunpack.c.h.b16 %v170
    %v1014 = vunpack.c.l.b16 %v171
    %v1015 = vunpack.c.l.b16 %v172
    %v1016 = vunpack.c.h.b16 %v172
    %v1017 = vunpack.c.l.b16 %v173
    %v1018 = vunpack.c.l.b16 %v174
    %v1019 = vunpack.c.h.b16 %v174
    %v1020 = vunpack.c.l.b16 %v175
    %v1021 = vunpack.c.l.b16 %v176
    %v1022 = vunpack.c.h.b16 %v176
    %v1023 = vunpack.c.l.b16 %v177
    %v1024 = vunpack.c.l.b16 %v178
    %v1025 = vunpack.c.h.b16 %v178
    %v1026 = vunpack.c.l.b16 %v179
    %v1027 = vunpack.c.l.b16 %v180
    %v1028 = vunpack.c.h.b16 %v180
    %v1029 = vunpack.c.l.b16 %v181
    %v1030 = vunpack.c.l.b16 %v182
    %v1031 = vunpack.c.h.b16 %v182
    %v1032 = vunpack.c.l.b16 %v183
    %v1033 = vunpack.c.l.b16 %v184
    %v1034 = vunpack.c.h.b16 %v184
    %v1035 = vunpack.c.l.b16 %v185
    %v1036 = vunpack.c.l.b16 %v186
    %v1037 = vunpack.c.h.b16 %v186
    %v1038 = vunpack.c.l.b16 %v187
    %v1039 = vunpack.c.l.b16 %v188
    %v1040 = vunpack.c.h.b16 %v188
    %v1041 = vunpack.c.l.b16 %v189
    %v1042 = vunpack.c.l.b16 %v190
    %v1043 = vunpack.c.h.b16 %v190
    %v1044 = vunpack.c.l.b16 %v191
    %v1045 = vunpack.c.l.b16 %v192
    %v1046 = vunpack.c.h.b16 %v192
    %v1047 = vunpack.c.l.b16 %v193
    %v1048 = vunpack.c.l.b16 %v194
    %v1049 = vunpack.c.h.b16 %v194
    %v1050 = vunpack.c.l.b16 %v195
    %v1051 = vunpack.c.l.b16 %v196
    %v1052 = vunpack.c.h.b16 %v196
    %v1053 = vunpack.c.l.b16 %v197
    %v1054 = vunpack.c.l.b16 %v198
    %v1055 = vunpack.c.h.b16 %v198
    %v1056 = vunpack.c.l.b16 %v199
    %v1057 = vunpack.c.l.b16 %v200
    %v1058 = vunpack.c.h.b16 %v200
    %v1059 = vunpack.c.l.b16 %v201
    %v1060 = vunpack.c.l.b16 %v202
    %v1061 = vunpack.c.h.b16 %v202
    %v1062 = vunpack.c.l.b16 %v203
    %v1063 = vunpack.c.l.b16 %v204
    %v1064 = vunpack.c.h.b16 %v204
    %v1065 = vunpack.c.l.b16 %v205
    %v1066 = vunpack.c.l.b16 %v206
    %v1067 = vunpack.c.h.b16 %v206
    %v1068 = vunpack.c.l.b16 %v207
    %v1069 = vunpack.c.l.b16 %v208
    %v1070 = vunpack.c.h.b16 %v208
    %v1071 = vunpack.c.l.b16 %v209
    %v1072 = vunpack.c.l.b16 %v210
    %v1073 = vunpack.c.h.b16 %v210
    %v1074 = vunpack.c.l.b16 %v211
    %v1075 = vunpack.c.l.b16 %v212
    %v1076 = vunpack.c.h.b16 %v212
    %v1077 = vunpack.c.l.b16 %v213
    %v1078 = vunpack.c.l.b16 %v214
    %v1079 = vunpack.c.h.b16 %v214
    %v1080 = vunpack.c.l.b16 %v215
    %v1081 = vunpack.c.l.b16 %v216
    %v1082 = vunpack.c.h.b16 %v216
    %v1083 = vunpack.c.l.b16 %v217
    %v1084 = vunpack.c.l.b16 %v218
    %v1085 = vunpack.c.h.b16 %v218
    %v1086 = vunpack.c.l.b16 %v219
    %v1087 = vunpack.c.l.b16 %v220
    %v1088 = vunpack.c.h.b16 %v220
    %v1089 = vunpack.c.l.b16 %v221
    %v1090 = vunpack.c.l.b16 %v222
    %v1091 = vunpack.c.h.b16 %v222
    %v1092 = vunpack.c.l.b16 %v223
    %v1093 = vunpack.c.l.b16 %v224
    %v1094 = vunpack.c.h.b16 %v224
    %v1095 = vunpack.c.l.b16 %v225
    %v1096 = vunpack.c.l.b16 %v226
    %v1097 = vunpack.c.h.b16 %v226
    %v1098 = vunpack.c.l.b16 %v227
    %v1099 = vunpack.c.l.b16 %v228
    %v1100 = vunpack.c.h.b16 %v228
    %v1101 = vunpack.c.l.b16 %v229
    %v1102 = vunpack.c.l.b16 %v230
    %v1103 = vunpack.c.h.b16 %v230
    %v1104 = vunpack.c.l.b16 %v231
    %v1105 = vunpack.c.l.b16 %v232
    %v1106 = vunpack.c.h.b16 %v232
    %v1107 = vunpack.c.l.b16 %v233
    %v1108 = vunpack.c.l.b16 %v234
    %v1109 = vunpack.c.h.b16 %v234
    %v1110 = vunpack.c.l.b16 %v235
    %v1111 = vunpack.c.l.b16 %v236
    %v1112 = vunpack.c.h.b16 %v236
    %v1113 = vunpack.c.l.b16 %v237
    %v1114 = vunpack.c.l.b16 %v238
    %v1115 = vunpack.c.h.b16 %v238
    %v1116 = vunpack.c.l.b16 %v239
    %v1117 = vunpack.c.l.b16 %v240
    %v1118 = vunpack.c.h.b16 %v240
    %v1119 = vunpack.c.l.b16 %v241
    %v1120 = vunpack.c.l.b16 %v242
    %v1121 = vunpack.c.h.b16 %v242
    %v1122 = vunpack.c.l.b16 %v243
    %v1123 = vunpack.c.l.b16 %v244
    %v1124 = vunpack.c.h.b16 %v244
    %v1125 = vunpack.c.l.b16 %v245
    %v1126 = vunpack.c.l.b16 %v246
    %v1127 = vunpack.c.h.b16 %v246
    %v1128 = vunpack.c.l.b16 %v247
    %v1129 = vunpack.c.l.b16 %v248
    %v1130 = vunpack.c.h.b16 %v248
    %v1131 = vunpack.c.l.b16 %v249
    %v1132 = vunpack.c.l.b16 %v250
    %v1133 = vunpack.c.h.b16 %v250
    %v1134 = vunpack.c.l.b16 %v251
    %v1135 = vunpack.c.l.b16 %v252
    %v1136 = vunpack.c.h.b16 %v252
    %v1137 = vunpack.c.l.b16 %v253
    %v1138 = vunpack.c.l.b16 %v254
    %v1139 = vunpack.c.h.b16 %v254
    %v1140 = vunpack.c.l.b16 %v255
    %v1141 = vunpack.c.l.b16 %v256
    %v1142 = vunpack.c.h.b16 %v256
    %v1143 = vunpack.c.l.b16 %v257
    %v1144 = vunpack.c.l.b16 %v258
    %v1145 = vunpack.c.h.b16 %v258
    %v1146 = vunpack.c.l.b16 %v259
    %v1147 = vunpack.c.l.b16 %v260
    %v1148 = vunpack.c.h.b16 %v260
    %v1149 = vunpack.c.l.b16 %v261
    %v1150 = vunpack.c.l.b16 %v262
    %v1151 = vunpack.c.h.b16 %v262
    %v1152 = vunpack.c.l.b16 %v263
    %v1153 = vunpack.c.l.b16 %v264
    %v1154 = vunpack.c.h.b16 %v264
    %v1155 = vunpack.c.l.b16 %v265
    %v1156 = vunpack.c.l.b16 %v266
    %v1157 = vunpack.c.h.b16 %v266
    %v1158 = vunpack.c.l.b16 %v267
    %v1159 = vunpack.c.l.b16 %v268
    %v1160 = vunpack.c.h.b16 %v268
    %v1161 = vunpack.c.l.b16 %v269
    %v1162 = vunpack.c.l.b16 %v270
    %v1163 = vunpack.c.h.b16 %v270
    %v1164 = vunpack.c.l.b16 %v271
    %v1165 = vunpack.c.l.b16 %v272
    %v1166 = vunpack.c.h.b16 %v272
    %v1167 = vunpack.c.l.b16 %v273
    %v1168 = vunpack.c.l.b16 %v274
    %v1169 = vunpack.c.h.b16 %v274
    %v1170 = vunpack.c.l.b16 %v275
    %v1171 = vunpack.c.l.b16 %v276
    %v1172 = vunpack.c.h.b16 %v276
    %v1173 = vunpack.c.l.b16 %v277
    %v1174 = vunpack.c.l.b16 %v278
    %v1175 = vunpack.c.h.b16 %v278
    %v1176 = vunpack.c.l.b16 %v279
    %v1177 = vunpack.c.l.b16 %v280
    %v1178 = vunpack.c.h.b16 %v280
    %v1179 = vunpack.c.l.b16 %v281
    %v1180 = vunpack.c.l.b16 %v282
    %v1181 = vunpack.c.h.b16 %v282
    %v1182 = vunpack.c.l.b16 %v283
    %v1183 = vunpack.c.l.b16 %v284
    %v1184 = vunpack.c.h.b16 %v284
    %v1185 = vunpack.c.l.b16 %v285
    %v1186 = vunpack.c.l.b16 %v286
    %v1187 = vunpack.c.h.b16 %v286
    %v1188 = vunpack.c.l.b16 %v287
    %v1189 = vunpack.c.l.b16 %v288
    %v1190 = vunpack.c.h.b16 %v288
    %v1191 = vunpack.c.l.b16 %v289
    %v1192 = vunpack.c.l.b16 %v290
    %v1193 = vunpack.c.h.b16 %v290
    %v1194 = vunpack.c.l.b16 %v291
    %v1195 = vunpack.c.l.b16 %v292
    %v1196 = vunpack.c.h.b16 %v292
    %v1197 = vunpack.c.l.b16 %v293
    %v1198 = vunpack.c.l.b16 %v294
    %v1199 = vunpack.c.h.b16 %v294
    %v1200 = vunpack.c.l.b16 %v295
    %v1201 = vunpack.c.l.b16 %v296
    %v1202 = vunpack.c.h.b16 %v296
    %v1203 = vunpack.c.l.b16 %v297
    %v1204 = vunpack.c.l.b16 %v298
    %v1205 = vunpack.c.h.b16 %v298
    %v1206 = vunpack.c.l.b16 %v299
    %v1207 = vunpack.c.l.b16 %v300
    %v1208 = vunpack.c.h.b16 %v300
    %v1209 = vunpack.c.l.b16 %v301
    %v1210 = vunpack.c.l.b16 %v302
    %v1211 = vunpack.c.h.b16 %v302
    %v1212 = vunpack.c.l.b16 %v303
    %v1213 = vunpack.c.l.b16 %v304
    %v1214 = vunpack.c.h.b16 %v304
    %v1215 = vunpack.c.l.b16 %v305
    %v1216 = vunpack.c.l.b16 %v306
    %v1217 = vunpack.c.h.b16 %v306
    %v1218 = vunpack.c.l.b16 %v307
    %v1219 = vunpack.c.l.b16 %v308
    %v1220 = vunpack.c.h.b16 %v308
    %v1221 = vunpack.c.l.b16 %v309
    %v1222 = vunpack.c.l.b16 %v310
    %v1223 = vunpack.c.h.b16 %v310
    %v1224 = vunpack.c.l.b16 %v311
    %v1225 = vunpack.c.l.b16 %v312
    %v1226 = vunpack.c.h.b16 %v312
    %v1227 = vunpack.c.l.b16 %v313
    %v1228 = vunpack.c.l.b16 %v314
    %v1229 = vunpack.c.h.b16 %v314
    %v1230 = vunpack.c.l.b16 %v315
    %v1231 = vunpack.c.l.b16 %v316
    %v1232 = vunpack.c.h.b16 %v316
    %v1233 = vunpack.c.l.b16 %v317
    %v1234 = vunpack.c.l.b16 %v318
    %v1235 = vunpack.c.h.b16 %v318
    %v1236 = vunpack.c.l.b16 %v319
    %v1237 = vunpack.c.l.b16 %v320
    %v1238 = vunpack.c.h.b16 %v320
    %v1239 = vunpack.c.l.b16 %v321
    %v1240 = vunpack.c.l.b16 %v322
    %v1241 = vunpack.c.h.b16 %v322
    %v1242 = vunpack.c.l.b16 %v323
    %v1243 = vunpack.c.l.b16 %v324
    %v1244 = vunpack.c.h.b16 %v324
    %v1245 = vunpack.c.l.b16 %v325
    %v1246 = vunpack.c.l.b16 %v326
    %v1247 = vunpack.c.h.b16 %v326
    %v1248 = vunpack.c.l.b16 %v327
    %v1249 = vunpack.c.l.b16 %v328
    %v1250 = vunpack.c.h.b16 %v328
    %v1251 = vunpack.c.l.b16 %v329
    %v1252 = vunpack.c.l.b16 %v330
    %v1253 = vunpack.c.h.b16 %v330
    %v1254 = vunpack.c.l.b16 %v331
    %v1255 = vunpack.c.l.b16 %v332
    %v1256 = vunpack.c.h.b16 %v332
    %v1257 = vunpack.c.l.b16 %v333
    %v1258 = vunpack.c.l.b16 %v334
    %v1259 = vunpack.c.h.b16 %v334
    %v1260 = vunpack.c.l.b16 %v335
    %v1261 = vunpack.c.l.b16 %v336
    %v1262 = vunpack.c.h.b16 %v336
    %v1263 = vunpack.c.l.b16 %v337
    %v1264 = vunpack.c.l.b16 %v338
    %v1265 = vunpack.c.h.b16 %v338
    %v1266 = vunpack.c.l.b16 %v339
    %v1267 = vunpack.c.l.b16 %v340
    %v1268 = vunpack.c.h.b16 %v340
    %v1269 = vunpack.c.l.b16 %v341
    %v1270 = vunpack.c.l.b16 %v342
    %v1271 = vunpack.c.h.b16 %v342
    %v1272 = vunpack.c.l.b16 %v343
    %v1273 = vunpack.c.l.b16 %v344
    %v1274 = vunpack.c.h.b16 %v344
    %v1275 = vunpack.c.l.b16 %v345
    %v1276 = vunpack.c.l.b16 %v346
    %v1277 = vunpack.c.h.b16 %v346
    %v1278 = vunpack.c.l.b16 %v347
    %v1279 = vunpack.c.l.b16 %v348
    %v1280 = vunpack.c.h.b16 %v348
    %v1281 = vunpack.c.l.b16 %v349
    %v1282 = vunpack.c.l.b16 %v350
    %v1283 = vunpack.c.h.b16 %v350
    %v1284 = vunpack.c.l.b16 %v351
    %v1285 = vunpack.c.l.b16 %v352
    %v1286 = vunpack.c.h.b16 %v352
    %v1287 = vunpack.c.l.b16 %v353
    %v1288 = vunpack.c.l.b16 %v354
    %v1289 = vunpack.c.h.b16 %v354
    %v1290 = vunpack.c.l.b16 %v355
    %v1291 = vunpack.c.l.b16 %v356
    %v1292 = vunpack.c.h.b16 %v356
    %v1293 = vunpack.c.l.b16 %v357
    %v1294 = vunpack.c.l.b16 %v358
    %v1295 = vunpack.c.h.b16 %v358
    %v1296 = vunpack.c.l.b16 %v359
    %v1297 = vunpack.c.l.b16 %v360
    %v1298 = vunpack.c.h.b16 %v360
    %v1299 = vunpack.c.l.b16 %v361
    %v1300 = vunpack.c.l.b16 %v362
    %v1301 = vunpack.c.h.b16 %v362
    %v1302 = vunpack.c.l.b16 %v363
    %v1303 = vunpack.c.l.b16 %v364
    %v1304 = vunpack.c.h.b16 %v364
    %v1305 = vunpack.c.l.b16 %v365
    %v1306 = vunpack.c.l.b16 %v366
    %v1307 = vunpack.c.h.b16 %v366
    %v1308 = vunpack.c.l.b16 %v367
    %v1309 = vunpack.c.l.b16 %v368
    %v1310 = vunpack.c.h.b16 %v368
    %v1311 = vunpack.c.l.b16 %v369
    %v1312 = vunpack.c.l.b16 %v370
    %v1313 = vunpack.c.h.b16 %v370
    %v1314 = vunpack.c.l.b16 %v371
    %v1315 = vunpack.c.l.b16 %v372
    %v1316 = vunpack.c.h.b16 %v372
    %v1317 = vunpack.c.l.b16 %v373
    %v1318 = vunpack.c.l.b16 %v374
    %v1319 = vunpack.c.h.b16 %v374
    %v1320 = vunpack.c.l.b16 %v375
    %v1321 = vunpack.c.l.b16 %v376
    %v1322 = vunpack.c.h.b16 %v376
    %v1323 = vunpack.c.l.b16 %v377
    %v1324 = vunpack.c.l.b16 %v378
    %v1325 = vunpack.c.h.b16 %v378
    %v1326 = vunpack.c.l.b16 %v379
    %v1327 = vunpack.c.l.b16 %v380
    %v1328 = vunpack.c.h.b16 %v380
    %v1329 = vunpack.c.l.b16 %v381
    %v1330 = vunpack.c.l.b16 %v382
    %v1331 = vunpack.c.h.b16 %v382
    %v1332 = vunpack.c.l.b16 %v383
    %v1333 = vunpack.c.l.b16 %v384
    %v1334 = vunpack.c.h.b16 %v384
    %v1335 = vunpack.c.l.b16 %v385
    %v1336 = vunpack.c.l.b16 %v386
    %v1337 = vunpack.c.h.b16 %v386
    %v1338 = vunpack.c.l.b16 %v387
    %v1339 = vunpack.c.l.b16 %v388
    %v1340 = vunpack.c.h.b16 %v388
    %v1341 = vunpack.c.l.b16 %v389
    %v1342 = vunpack.c.l.b16 %v390
    %v1343 = vunpack.c.h.b16 %v390
    %v1344 = vunpack.c.l.b16 %v391
    %v1345 = vunpack.c.l.b16 %v392
    %v1346 = vunpack.c.h.b16 %v392
    %v1347 = vunpack.c.l.b16 %v393
    %v1348 = vunpack.c.l.b16 %v394
    %v1349 = vunpack.c.h.b16 %v394
    %v1350 = vunpack.c.l.b16 %v395
    %v1351 = vunpack.c.l.b16 %v396
    %v1352 = vunpack.c.h.b16 %v396
    %v1353 = vunpack.c.l.b16 %v397
    %v1354 = vunpack.c.l.b16 %v398
    %v1355 = vunpack.c.h.b16 %v398
    %v1356 = vunpack.c.l.b16 %v399
    %v1357 = vunpack.c.l.b16 %v400
    %v1358 = vunpack.c.h.b16 %v400
    %v1359 = vunpack.c.l.b16 %v401
    %v1360 = vunpack.c.l.b16 %v402
    %v1361 = vunpack.c.h.b16 %v402
    %v1362 = vunpack.c.l.b16 %v403
    %v1363 = vunpack.c.l.b16 %v404
    %v1364 = vunpack.c.h.b16 %v404
    %v1365 = vunpack.c.l.b16 %v405
    %v1366 = vunpack.c.l.b16 %v406
    %v1367 = vunpack.c.h.b16 %v406
    %v1368 = vunpack.c.l.b16 %v407
    %v1369 = vunpack.c.l.b16 %v408
    %v1370 = vunpack.c.h.b16 %v408
    %v1371 = vunpack.c.l.b16 %v409
    %v1372 = vunpack.c.l.b16 %v410
    %v1373 = vunpack.c.h.b16 %v410
    %v1374 = vunpack.c.l.b16 %v411
    %v1375 = vunpack.c.l.b16 %v412
    %v1376 = vunpack.c.h.b16 %v412
    %v1377 = vunpack.c.l.b16 %v413
    %v1378 = vunpack.c.l.b16 %v414
    %v1379 = vunpack.c.h.b16 %v414
    %v1380 = vunpack.c.l.b16 %v415
    %v1381 = vunpack.c.l.b16 %v416
    %v1382 = vunpack.c.h.b16 %v416
    %v1383 = vunpack.c.l.b16 %v417
    %v1384 = vunpack.c.l.b16 %v418
    %v1385 = vunpack.c.h.b16 %v418
    %v1386 = vunpack.c.l.b16 %v419
    %v1387 = vunpack.c.l.b16 %v420
    %v1388 = vunpack.c.h.b16 %v420
    %v1389 = vunpack.c.l.b16 %v421
    %v1390 = vunpack.c.l.b16 %v422
    %v1391 = vunpack.c.h.b16 %v422
    %v1392 = vunpack.c.l.b16 %v423
    %v1393 = vunpack.c.l.b16 %v424
    %v1394 = vunpack.c.h.b16 %v424
    %v1395 = vunpack.c.l.b16 %v425
    %v1396 = vunpack.c.l.b16 %v426
    %v1397 = vunpack.c.h.b16 %v426
    %v1398 = vunpack.c.l.b16 %v427
    %v1399 = vunpack.c.l.b16 %v428
    %v1400 = vunpack.c.h.b16 %v428
    %v1401 = vunpack.c.l.b16 %v429
    %v1402 = vunpack.c.l.b16 %v430
    %v1403 = vunpack.c.h.b16 %v430
    %v1404 = vunpack.c.l.b16 %v431
    %v1405 = vunpack.c.l.b16 %v432
    %v1406 = vunpack.c.h.b16 %v432
    %v1407 = vunpack.c.l.b16 %v433
    %v1408 = vunpack.c.l.b16 %v434
    %v1409 = vunpack.c.h.b16 %v434
    %v1410 = vunpack.c.l.b16 %v435
    %v1411 = vunpack.c.l.b16 %v436
    %v1412 = vunpack.c.h.b16 %v436
    %v1413 = vunpack.c.l.b16 %v437
    %v1414 = vunpack.c.l.b16 %v438
    %v1415 = vunpack.c.h.b16 %v438
    %v1416 = vunpack.c.l.b16 %v439
    %v1417 = vunpack.c.l.b16 %v440
    %v1418 = vunpack.c.h.b16 %v440
    %v1419 = vunpack.c.l.b16 %v441
    %v1420 = vunpack.c.l.b16 %v442
    %v1421 = vunpack.c.h.b16 %v442
    %v1422 = vunpack.c.l.b16 %v443
    %v1423 = vunpack.c.l.b16 %v444
    %v1424 = vunpack.c.h.b16 %v444
    %v1425 = vunpack.c.l.b16 %v445
    %v1426 = vunpack.c.l.b16 %v446
    %v1427 = vunpack.c.h.b16 %v446
    %v1428 = vunpack.c.l.b16 %v447
    %v1429 = vunpack.c.l.b16 %v448
    %v1430 = vunpack.c.h.b16 %v448
    %v1431 = vunpack.c.l.b16 %v449
    %v1432 = vunpack.c.l.b16 %v450
    %v1433 = vunpack.c.h.b16 %v450
    %v1434 = vunpack.c.l.b16 %v451
    %v1435 = vunpack.c.l.b16 %v452
    %v1436 = vunpack.c.h.b16 %v452
    %v1437 = vunpack.c.l.b16 %v453
    %v1438 = vunpack.c.l.b16 %v454
    %v1439 = vunpack.c.h.b16 %v454
    %v1440 = vunpack.c.l.b16 %v455
    %v1441 = vunpack.c.l.b16 %v456
    %v1442 = vunpack.c.h.b16 %v456
    %v1443 = vunpack.c.l.b16 %v457
    %v1444 = vunpack.c.l.b16 %v458
    %v1445 = vunpack.c.h.b16 %v458
    %v1446 = vunpack.c.l.b16 %v459
    %v1447 = vunpack.c.l.b16 %v460
    %v1448 = vunpack.c.h.b16 %v460
    %v1449 = vunpack.c.l.b16 %v461
    %v1450 = vunpack.c.l.b16 %v462
    %v1451 = vunpack.c.h.b16 %v462
    %v1452 = vunpack.c.l.b16 %v463
    %v1453 = vunpack.c.l.b16 %v464
    %v1454 = vunpack.c.h.b16 %v464
    %v1455 = vunpack.c.l.b16 %v465
    %v1456 = vunpack.c.l.b16 %v466
    %v1457 = vunpack.c.h.b16 %v466
    %v1458 = vunpack.c.l.b16 %v467
    %v1459 = vunpack.c.l.b16 %v468
    %v1460 = vunpack.c.h.b16 %v468
    %v1461 = vunpack.c.l.b16 %v469
    %v1462 = vunpack.c.l.b16 %v470
    %v1463 = vunpack.c.h.b16 %v470
    %v1464 = vunpack.c.l.b16 %v471
    %v1465 = vunpack.c.l.b16 %v472
    %v1466 = vunpack.c.h.b16 %v472
    %v1467 = vunpack.c.l.b16 %v473
    %v1468 = vunpack.c.l.b16 %v474
    %v1469 = vunpack.c.h.b16 %v474
    %v1470 = vunpack.c.l.b16 %v475
    %v1471 = vunpack.c.l.b16 %v476
    %v1472 = vunpack.c.h.b16 %v476
    %v1473 = vunpack.c.l.b16 %v477
    %v1474 = vunpack.c.l.b16 %v478
    %v1475 = vunpack.c.h.b16 %v478
    %v1476 = vunpack.c.l.b16 %v479
    %v1477 = vunpack.c.l.b16 %v480
    %v1478 = vunpack.c.h.b16 %v480
    %v1479 = vunpack.c.l.b16 %v481
    %v1480 = vunpack.c.l.b16 %v482
    %v1481 = vunpack.c.h.b16 %v482
    %v1482 = vunpack.c.l.b16 %v483
    %v1483 = vunpack.c.l.b16 %v484
    %v1484 = vunpack.c.h.b16 %v484
    %v1485 = vunpack.c.l.b16 %v485
    %v1486 = vunpack.c.l.b16 %v486
    %v1487 = vunpack.c.h.b16 %v486
    %v1488 = vunpack.c.l.b16 %v487
    %v1489 = vunpack.c.l.b16 %v488
    %v1490 = vunpack.c.h.b16 %v488
    %v1491 = vunpack.c.l.b16 %v489
    %v1492 = vunpack.c.l.b16 %v490
    %v1493 = vunpack.c.h.b16 %v490
    %v1494 = vunpack.c.l.b16 %v491
    %v1495 = vunpack.c.l.b16 %v492
    %v1496 = vunpack.c.h.b16 %v492
    %v1497 = vunpack.c.l.b16 %v493
    %v1498 = vunpack.c.l.b16 %v494
    %v1499 = vunpack.c.h.b16 %v494
    %v1500 = vunpack.c.l.b16 %v495
    %v1501 = vunpack.c.l.b16 %v496
    %v1502 = vunpack.c.h.b16 %v496
    %v1503 = vunpack.c.l.b16 %v497
    %v1504 = vunpack.c.l.b16 %v498
    %v1505 = vunpack.c.h.b16 %v498
    %v1506 = vunpack.c.l.b16 %v499
    %v1507 = vunpack.c.l.b16 %v500
    %v1508 = vunpack.c.h.b16 %v500
    %v1509 = vunpack.c.l.b16 %v501
    %v1510 = vunpack.c.l.b16 %v502
    %v1511 = vunpack.c.h.b16 %v502
    %v1512 = vunpack.c.l.b16 %v503
    %v1513 = vunpack.c.l.b16 %v504
    %v1514 = vunpack.c.h.b16 %v504
    %v1515 = vunpack.c.l.b16 %v505
    %v1516 = vunpack.c.l.b16 %v506
    %v1517 = vunpack.c.h.b16 %v506
    %v1518 = vunpack.c.l.b16 %v507
    %v1519 = vunpack.c.l.b16 %v508
    %v1520 = vunpack.c.h.b16 %v508
    %v1521 = vunpack.c.l.b16 %v509
    %v1522 = vunpack.c.l.b16 %v510
    %v1523 = vunpack.c.h.b16 %v510
    %v1524 = vunpack.c.l.b16 %v511
    %v1525 = vunpack.c.l.b16 %v512
    %v1526 = vunpack.c.h.b16 %v512
    %v1527 = vunpack.c.l.b16 %v513
    %v1528 = vunpack.c.l.b16 %v514
    %v1529 = vunpack.c.h.b16 %v514
    %v1530 = vunpack.c.l.b16 %v515
    %v1531 = vunpack.c.l.b16 %v516
    %v1532 = vunpack.c.h.b16 %v516
    %v1533 = vunpack.c.l.b16 %v517
    %v1534 = vunpack.c.l.b16 %v518
    %v1535 = vunpack.c.h.b16 %v518
    %v1536 = vunpack.c.l.b16 %v519
    %v1537 = vpack.c.b16 %v940, %v937
    %v1538 = vpack.c.b16 %v941, %v938
    %v1539 = vpack.c.b16 %v942, %v939
    %v1540 = vpack.c.b16 %v946, %v943
    %v1541 = vpack.c.b16 %v947, %v944
    %v1542 = vpack.c.b16 %v948, %v945
    %v1543 = vpack.c.b16 %v952, %v949
    %v1544 = vpack.c.b16 %v953, %v950
    %v1545 = vpack.c.b16 %v954, %v951
    %v1546 = vpack.c.b16 %v958, %v955
    %v1547 = vpack.c.b16 %v959, %v956
    %v1548 = vpack.c.b16 %v960, %v957
    %v1549 = vpack.c.b16 %v964, %v961
    %v1550 = vpack.c.b16 %v965, %v962
    %v1551 = vpack.c.b16 %v966, %v963
    %v1552 = vpack.c.b16 %v970, %v967
    %v1553 = vpack.c.b16 %v971, %v968
    %v1554 = vpack.c.b16 %v972, %v969
    %v1555 = vpack.c.b16 %v976, %v973
    %v1556 = vpack.c.b16 %v977, %v974
    %v1557 = vpack.c.b16 %v978, %v975
    %v1558 = vpack.c.b16 %v982, %v979
    %v1559 = vpack.c.b16 %v983, %v980
    %v1560 = vpack.c.b16 %v984, %v981
    %v1561 = vpack.c.b16 %v988, %v985
    %v1562 = vpack.c.b16 %v989, %v986
    %v1563 = vpack.c.b16 %v990, %v987
    %v1564 = vpack.c.b16 %v994, %v991
    %v1565 = vpack.c.b16 %v995, %v992
    %v1566 = vpack.c.b16 %v996, %v993
    %v1567 = vpack.c.b16 %v1000, %v997
    %v1568 = vpack.c.b16 %v1001, %v998
    %v1569 = vpack.c.b16 %v1002, %v999
    %v1570 = vpack.c.b16 %v1006, %v1003
    %v1571 = vpack.c.b16 %v1007, %v1004
    %v1572 = vpack.c.b16 %v1008, %v1005
    %v1573 = vpack.c.b16 %v1012, %v1009
    %v1574 = vpack.c.b16 %v1013, %v1010
    %v1575 = vpack.c.b16 %v1014, %v1011
    %v1576 = vpack.c.b16 %v1018, %v1015
    %v1577 = vpack.c.b16 %v1019, %v1016
    %v1578 = vpack.c.b16 %v1020, %v1017
    %v1579 = vpack.c.b16 %v1024, %v1021
    %v1580 = vpack.c.b16 %v1025, %v1022
    %v1581 = vpack.c.b16 %v1026, %v1023
    %v1582 = vpack.c.b16 %v1030, %v1027
    %v1583 = vpack.c.b16 %v1031, %v1028
    %v1584 = vpack.c.b16 %v1032, %v1029
    %v1585 = vpack.c.b16 %v1036, %v1033
    %v1586 = vpack.c.b16 %v1037, %v1034
    %v1587 = vpack.c.b16 %v1038, %v1035
    %v1588 = vpack.c.b16 %v1042, %v1039
    %v1589 = vpack.c.b16 %v1043, %v1040
    %v1590 = vpack.c.b16 %v1044, %v1041
    %v1591 = vpack.c.b16 %v1048, %v1045
    %v1592 = vpack.c.b16 %v1049, %v1046
    %v1593 = vpack.c.b16 %v1050, %v1047
    %v1594 = vpack.c.b16 %v1054, %v1051
    %v1595 = vpack.c.b16 %v1055, %v1052
    %v1596 = vpack.c.b16 %v1056, %v1053
    %v1597 = vpack.c.b16 %v1060, %v1057
    %v1598 = vpack.c.b16 %v1061, %v1058
    %v1599 = vpack.c.b16 %v1062, %v1059
    %v1600 = vpack.c.b16 %v1066, %v1063
    %v1601 = vpack.c.b16 %v1067, %v1064
    %v1602 = vpack.c.b16 %v1068, %v1065
    %v1603 = vpack.c.b16 %v1072, %v1069
    %v1604 = vpack.c.b16 %v1073, %v1070
    %v1605 = vpack.c.b16 %v1074, %v1071
    %v1606 = vpack.c.b16 %v1078, %v1075
    %v1607 = vpack.c.b16 %v1079, %v1076
    %v1608 = vpack.c.b16 %v1080, %v1077
    %v1609 = vpack.c.b16 %v1084, %v1081
    %v1610 = vpack.c.b16 %v1085, %v1082
    %v1611 = vpack.c.b16 %v1086, %v1083
    %v1612 = vpack.c.b16 %v1090, %v1087
    %v1613 = vpack.c.b16 %v1091, %v1088
    %v1614 = vpack.c.b16 %v1092, %v1089
    %v1615 = vpack.c.b16 %v1096, %v1093
    %v1616 = vpack.c.b16 %v1097, %v1094
    %v1617 = vpack.c.b16 %v1098, %v1095
    %v1618 = vpack.c.b16 %v1102, %v1099
    %v1619 = vpack.c.b16 %v1103, %v1100
    %v1620 = vpack.c.b16 %v1104, %v1101
    %v1621 = vpack.c.b16 %v1108, %v1105
    %v1622 = vpack.c.b16 %v1109, %v1106
    %v1623 = vpack.c.b16 %v1110, %v1107
    %v1624 = vpack.c.b16 %v1114, %v1111
    %v1625 = vpack.c.b16 %v1115, %v1112
    %v1626 = vpack.c.b16 %v1116, %v1113
    %v1627 = vpack.c.b16 %v1120, %v1117
    %v1628 = vpack.c.b16 %v1121, %v1118
    %v1629 = vpack.c.b16 %v1122, %v1119
    %v1630 = vpack.c.b16 %v1126, %v1123
    %v1631 = vpack.c.b16 %v1127, %v1124
    %v1632 = vpack.c.b16 %v1128, %v1125
    %v1633 = vpack.c.b16 %v1132, %v1129
    %v1634 = vpack.c.b16 %v1133, %v1130
    %v1635 = vpack.c.b16 %v1134, %v1131
    %v1636 = vpack.c.b16 %v1138, %v1135
    %v1637 = vpack.c.b16 %v1139, %v1136
    %v1638 = vpack.c.b16 %v1140, %v1137
    %v1639 = vpack.c.b16 %v1144, %v1141
    %v1640 = vpack.c.b16 %v1145, %v1142
    %v1641 = vpack.c.b16 %v1146, %v1143
    %v1642 = vpack.c.b16 %v1150, %v1147
    %v1643 = vpack.c.b16 %v1151, %v1148
    %v1644 = vpack.c.b16 %v1152, %v1149
    %v1645 = vpack.c.b16 %v1156, %v1153
    %v1646 = vpack.c.b16 %v1157, %v1154
    %v1647 = vpack.c.b16 %v1158, %v1155
    %v1648 = vpack.c.b16 %v1162, %v1159
    %v1649 = vpack.c.b16 %v1163, %v1160
    %v1650 = vpack.c.b16 %v1164, %v1161
    %v1651 = vpack.c.b16 %v1168, %v1165
    %v1652 = vpack.c.b16 %v1169, %v1166
    %v1653 = vpack.c.b16 %v1170, %v1167
    %v1654 = vpack.c.b16 %v1174, %v1171
    %v1655 = vpack.c.b16 %v1175, %v1172
    %v1656 = vpack.c.b16 %v1176, %v1173
    %v1657 = vpack.c.b16 %v1180, %v1177
    %v1658 = vpack.c.b16 %v1181, %v1178
    %v1659 = vpack.c.b16 %v1182, %v1179
    %v1660 = vpack.c.b16 %v1186, %v1183
    %v1661 = vpack.c.b16 %v1187, %v1184
    %v1662 = vpack.c.b16 %v1188, %v1185
    %v1663 = vpack.c.b16 %v1192, %v1189
    %v1664 = vpack.c.b16 %v1193, %v1190
    %v1665 = vpack.c.b16 %v1194, %v1191
    %v1666 = vpack.c.b16 %v1198, %v1195
    %v1667 = vpack.c.b16 %v1199, %v1196
    %v1668 = vpack.c.b16 %v1200, %v1197
    %v1669 = vpack.c.b16 %v1204, %v1201
    %v1670 = vpack.c.b16 %v1205, %v1202
    %v1671 = vpack.c.b16 %v1206, %v1203
    %v1672 = vpack.c.b16 %v1210, %v1207
    %v1673 = vpack.c.b16 %v1211, %v1208
    %v1674 = vpack.c.b16 %v1212, %v1209
    %v1675 = vpack.c.b16 %v1216, %v1213
    %v1676 = vpack.c.b16 %v1217, %v1214
    %v1677 = vpack.c.b16 %v1218, %v1215
    %v1678 = vpack.c.b16 %v1222, %v1219
    %v1679 = vpack.c.b16 %v1223, %v1220
    %v1680 = vpack.c.b16 %v1224, %v1221
    %v1681 = vpack.c.b16 %v1228, %v1225
    %v1682 = vpack.c.b16 %v1229, %v1226
    %v1683 = vpack.c.b16 %v1230, %v1227
    %v1684 = vpack.c.b16 %v1234, %v1231
    %v1685 = vpack.c.b16 %v1235, %v1232
    %v1686 = vpack.c.b16 %v1236, %v1233
    %v1687 = vpack.c.b16 %v1240, %v1237
    %v1688 = vpack.c.b16 %v1241, %v1238
    %v1689 = vpack.c.b16 %v1242, %v1239
    %v1690 = vpack.c.b16 %v1246, %v1243
    %v1691 = vpack.c.b16 %v1247, %v1244
    %v1692 = vpack.c.b16 %v1248, %v1245
    %v1693 = vpack.c.b16 %v1252, %v1249
    %v1694 = vpack.c.b16 %v1253, %v1250
    %v1695 = vpack.c.b16 %v1254, %v1251
    %v1696 = vpack.c.b16 %v1258, %v1255
    %v1697 = vpack.c.b16 %v1259, %v1256
    %v1698 = vpack.c.b16 %v1260, %v1257
    %v1699 = vpack.c.b16 %v1264, %v1261
    %v1700 = vpack.c.b16 %v1265, %v1262
    %v1701 = vpack.c.b16 %v1266, %v1263
    %v1702 = vpack.c.b16 %v1270, %v1267
    %v1703 = vpack.c.b16 %v1271, %v1268
    %v1704 = vpack.c.b16 %v1272, %v1269
    %v1705 = vpack.c.b16 %v1276, %v1273
    %v1706 = vpack.c.b16 %v1277, %v1274
    %v1707 = vpack.c.b16 %v1278, %v1275
    %v1708 = vpack.c.b16 %v1282, %v1279
    %v1709 = vpack.c.b16 %v1283, %v1280
    %v1710 = vpack.c.b16 %v1284, %v1281
    %v1711 = vpack.c.b16 %v1288, %v1285
    %v1712 = vpack.c.b16 %v1289, %v1286
    %v1713 = vpack.c.b16 %v1290, %v1287
    %v1714 = vpack.c.b16 %v1294, %v1291
    %v1715 = vpack.c.b16 %v1295, %v1292
    %v1716 = vpack.c.b16 %v1296, %v1293
    %v1717 = vpack.c.b16 %v1300, %v1297
    %v1718 = vpack.c.b16 %v1301, %v1298
    %v1719 = vpack.c.b16 %v1302, %v1299
    %v1720 = vpack.c.b16 %v1306, %v1303
    %v1721 = vpack.c.b16 %v1307, %v1304
    %v1722 = vpack.c.b16 %v1308, %v1305
    %v1723 = vpack.c.b16 %v1312, %v1309
    %v1724 = vpack.c.b16 %v1313, %v1310
    %v1725 = vpack.c.b16 %v1314, %v1311
    %v1726 = vpack.c.b16 %v1318, %v1315
    %v1727 = vpack.c.b16 %v1319, %v1316
    %v1728 = vpack.c.b16 %v1320, %v1317
    %v1729 = vpack.c.b16 %v1324, %v1321
    %v1730 = vpack.c.b16 %v1325, %v1322
    %v1731 = vpack.c.b16 %v1326, %v1323
    %v1732 = vpack.c.b16 %v1330, %v1327
    %v1733 = vpack.c.b16 %v1331, %v1328
    %v1734 = vpack.c.b16 %v1332, %v1329
    %v1735 = vpack.c.b16 %v1336, %v1333
    %v1736 = vpack.c.b16 %v1337, %v1334
    %v1737 = vpack.c.b16 %v1338, %v1335
    %v1738 = vpack.c.b16 %v1342, %v1339
    %v1739 = vpack.c.b16 %v1343, %v1340
    %v1740 = vpack.c.b16 %v1344, %v1341
    %v1741 = vpack.c.b16 %v1348, %v1345
    %v1742 = vpack.c.b16 %v1349, %v1346
    %v1743 = vpack.c.b16 %v1350, %v1347
    %v1744 = vpack.c.b16 %v1354, %v1351
    %v1745 = vpack.c.b16 %v1355, %v1352
    %v1746 = vpack.c.b16 %v1356, %v1353
    %v1747 = vpack.c.b16 %v1360, %v1357
    %v1748 = vpack.c.b16 %v1361, %v1358
    %v1749 = vpack.c.b16 %v1362, %v1359
    %v1750 = vpack.c.b16 %v1366, %v1363
    %v1751 = vpack.c.b16 %v1367, %v1364
    %v1752 = vpack.c.b16 %v1368, %v1365
    %v1753 = vpack.c.b16 %v1372, %v1369
    %v1754 = vpack.c.b16 %v1373, %v1370
    %v1755 = vpack.c.b16 %v1374, %v1371
    %v1756 = vpack.c.b16 %v1378, %v1375
    %v1757 = vpack.c.b16 %v1379, %v1376
    %v1758 = vpack.c.b16 %v1380, %v1377
    %v1759 = vpack.c.b16 %v1384, %v1381
    %v1760 = vpack.c.b16 %v1385, %v1382
    %v1761 = vpack.c.b16 %v1386, %v1383
    %v1762 = vpack.c.b16 %v1390, %v1387
    %v1763 = vpack.c.b16 %v1391, %v1388
    %v1764 = vpack.c.b16 %v1392, %v1389
    %v1765 = vpack.c.b16 %v1396, %v1393
    %v1766 = vpack.c.b16 %v1397, %v1394
    %v1767 = vpack.c.b16 %v1398, %v1395
    %v1768 = vpack.c.b16 %v1402, %v1399
    %v1769 = vpack.c.b16 %v1403, %v1400
    %v1770 = vpack.c.b16 %v1404, %v1401
    %v1771 = vpack.c.b16 %v1408, %v1405
    %v1772 = vpack.c.b16 %v1409, %v1406
    %v1773 = vpack.c.b16 %v1410, %v1407
    %v1774 = vpack.c.b16 %v1414, %v1411
    %v1775 = vpack.c.b16 %v1415, %v1412
    %v1776 = vpack.c.b16 %v1416, %v1413
    %v1777 = vpack.c.b16 %v1420, %v1417
    %v1778 = vpack.c.b16 %v1421, %v1418
    %v1779 = vpack.c.b16 %v1422, %v1419
    %v1780 = vpack.c.b16 %v1426, %v1423
    %v1781 = vpack.c.b16 %v1427, %v1424
    %v1782 = vpack.c.b16 %v1428, %v1425
    %v1783 = vpack.c.b16 %v1432, %v1429
    %v1784 = vpack.c.b16 %v1433, %v1430
    %v1785 = vpack.c.b16 %v1434, %v1431
    %v1786 = vpack.c.b16 %v1438, %v1435
    %v1787 = vpack.c.b16 %v1439, %v1436
    %v1788 = vpack.c.b16 %v1440, %v1437
    %v1789 = vpack.c.b16 %v1444, %v1441
    %v1790 = vpack.c.b16 %v1445, %v1442
    %v1791 = vpack.c.b16 %v1446, %v1443
    %v1792 = vpack.c.b16 %v1450, %v1447
    %v1793 = vpack.c.b16 %v1451, %v1448
    %v1794 = vpack.c.b16 %v1452, %v1449
    %v1795 = vpack.c.b16 %v1456, %v1453
    %v1796 = vpack.c.b16 %v1457, %v1454
    %v1797 = vpack.c.b16 %v1458, %v1455
    %v1798 = vpack.c.b16 %v1462, %v1459
    %v1799 = vpack.c.b16 %v1463, %v1460
    %v1800 = vpack.c.b16 %v1464, %v1461
    %v1801 = vpack.c.b16 %v1468, %v1465
    %v1802 = vpack.c.b16 %v1469, %v1466
    %v1803 = vpack.c.b16 %v1470, %v1467
    %v1804 = vpack.c.b16 %v1474, %v1471
    %v1805 = vpack.c.b16 %v1475, %v1472
    %v1806 = vpack.c.b16 %v1476, %v1473
    %v1807 = vpack.c.b16 %v1480, %v1477
    %v1808 = vpack.c.b16 %v1481, %v1478
    %v1809 = vpack.c.b16 %v1482, %v1479
    %v1810 = vpack.c.b16 %v1486, %v1483
    %v1811 = vpack.c.b16 %v1487, %v1484
    %v1812 = vpack.c.b16 %v1488, %v1485
    %v1813 = vpack.c.b16 %v1492, %v1489
    %v1814 = vpack.c.b16 %v1493, %v1490
    %v1815 = vpack.c.b16 %v1494, %v1491
    %v1816 = vpack.c.b16 %v1498, %v1495
    %v1817 = vpack.c.b16 %v1499, %v1496
    %v1818 = vpack.c.b16 %v1500, %v1497
    %v1819 = vpack.c.b16 %v1504, %v1501
    %v1820 = vpack.c.b16 %v1505, %v1502
    %v1821 = vpack.c.b16 %v1506, %v1503
    %v1822 = vpack.c.b16 %v1510, %v1507
    %v1823 = vpack.c.b16 %v1511, %v1508
    %v1824 = vpack.c.b16 %v1512, %v1509
    %v1825 = vpack.c.b16 %v1516, %v1513
    %v1826 = vpack.c.b16 %v1517, %v1514
    %v1827 = vpack.c.b16 %v1518, %v1515
    %v1828 = vpack.c.b16 %v1522, %v1519
    %v1829 = vpack.c.b16 %v1523, %v1520
    %v1830 = vpack.c.b16 %v1524, %v1521
    %v1831 = vpack.c.b16 %v1528, %v1525
    %v1832 = vpack.c.b16 %v1529, %v1526
    %v1833 = vpack.c.b16 %v1530, %v1527
    %v1834 = vpack.c.b16 %v1534, %v1531
    %v1835 = vpack.c.b16 %v1535, %v1532
    %v1836 = vpack.c.b16 %v1536, %v1533
    %vm2137 = vcmask 523264
    %v2139 = vsel %vm2137, %v119, 0
    %2141 = vmatprep.subr.bf16.mxu0 %v1538
    %2142 = vmatpush1.bf16.msra.mxu0 %v1537
    %2143 = vmatprep.subr.bf16.mxu0 %v1541
    %2144 = vmatpush1.bf16.msra.mxu0 %v1540
    %2145 = vmatprep.subr.bf16.mxu0 %v1544
    %2146 = vmatpush1.bf16.msra.mxu0 %v1543
    %2147 = vmatprep.subr.bf16.mxu0 %v1547
    %2148 = vmatpush1.bf16.msra.mxu0 %v1546
    %2149 = vmatprep.subr.bf16.mxu0 %v1550
    %2150 = vmatpush1.bf16.msra.mxu0 %v1549
    %2151 = vmatprep.subr.bf16.mxu0 %v1553
    %2152 = vmatpush1.bf16.msra.mxu0 %v1552
    %2153 = vmatprep.subr.bf16.mxu0 %v1556
    %2154 = vmatpush1.bf16.msra.mxu0 %v1555
    %2155 = vmatprep.subr.bf16.mxu0 %v1559
    %2156 = vmatpush1.bf16.msra.mxu0 %v1558
    %2157 = vmatprep.subr.bf16.mxu0 %v1562
    %2158 = vmatpush1.bf16.msra.mxu0 %v1561
    %2159 = vmatprep.subr.bf16.mxu0 %v1565
    %2160 = vmatpush1.bf16.msra.mxu0 %v1564
    %2161 = vmatprep.subr.bf16.mxu0 %v1568
    %2162 = vmatpush1.bf16.msra.mxu0 %v1567
    %2163 = vmatprep.subr.bf16.mxu0 %v1571
    %2164 = vmatpush1.bf16.msra.mxu0 %v1570
    %2165 = vmatprep.subr.bf16.mxu0 %v1574
    %2166 = vmatpush1.bf16.msra.mxu0 %v1573
    %2167 = vmatprep.subr.bf16.mxu0 %v1577
    %2168 = vmatpush1.bf16.msra.mxu0 %v1576
    %2169 = vmatprep.subr.bf16.mxu0 %v1580
    %2170 = vmatpush1.bf16.msra.mxu0 %v1579
    %2171 = vmatprep.subr.bf16.mxu0 %v1583
    %2172 = vmatpush1.bf16.msra.mxu0 %v1582
    %2173 = vmatprep.mubr.bf16.mxu0 %v108
    %2174 = vmatmul.mubr.bf16.gmra.mrb[0].mxu0 %v107
    %v2175 = vpop.f32.mrb[0].mxu0
    %v2176 = vadd.f32 %v525, %v2175
    %v2177 = vpop.f32.mrb[0].mxu0
    %v2178 = vadd.f32 %v529, %v2177
    %v2179 = vpop.f32.mrb[0].mxu0
    %v2180 = vpop.f32.mrb[0].mxu0
    %2181 = vdwg.mxu0
    %2182 = vmatprep.subr.bf16.mxu0 %v1586
    %2183 = vmatpush1.bf16.msra.mxu0 %v1585
    %2184 = vmatprep.subr.bf16.mxu0 %v1589
    %2185 = vmatpush1.bf16.msra.mxu0 %v1588
    %2186 = vmatprep.subr.bf16.mxu0 %v1592
    %2187 = vmatpush1.bf16.msra.mxu0 %v1591
    %2188 = vmatprep.subr.bf16.mxu0 %v1595
    %2189 = vmatpush1.bf16.msra.mxu0 %v1594
    %2190 = vmatprep.subr.bf16.mxu0 %v1598
    %2191 = vmatpush1.bf16.msra.mxu0 %v1597
    %2192 = vmatprep.subr.bf16.mxu0 %v1601
    %2193 = vmatpush1.bf16.msra.mxu0 %v1600
    %2194 = vmatprep.subr.bf16.mxu0 %v1604
    %2195 = vmatpush1.bf16.msra.mxu0 %v1603
    %2196 = vmatprep.subr.bf16.mxu0 %v1607
    %2197 = vmatpush1.bf16.msra.mxu0 %v1606
    %2198 = vmatprep.subr.bf16.mxu0 %v1610
    %2199 = vmatpush1.bf16.msra.mxu0 %v1609
    %2200 = vmatprep.subr.bf16.mxu0 %v1613
    %2201 = vmatpush1.bf16.msra.mxu0 %v1612
    %2202 = vmatprep.subr.bf16.mxu0 %v1616
    %2203 = vmatpush1.bf16.msra.mxu0 %v1615
    %2204 = vmatprep.subr.bf16.mxu0 %v1619
    %2205 = vmatpush1.bf16.msra.mxu0 %v1618
    %2206 = vmatprep.subr.bf16.mxu0 %v1622
    %2207 = vmatpush1.bf16.msra.mxu0 %v1621
    %2208 = vmatprep.subr.bf16.mxu0 %v1625
    %2209 = vmatpush1.bf16.msra.mxu0 %v1624
    %2210 = vmatprep.subr.bf16.mxu0 %v1628
    %2211 = vmatpush1.bf16.msra.mxu0 %v1627
    %2212 = vmatprep.subr.bf16.mxu0 %v1631
    %2213 = vmatpush1.bf16.msra.mxu0 %v1630
    %2214 = vmatprep.mubr.bf16.mxu0 %v110
    %2215 = vmatmul.mubr.bf16.gmra.mrb[0].mxu0 %v109
    %v2216 = vpop.f32.mrb[0].mxu0
    %v2217 = vadd.f32 %v2176, %v2216
    %v2218 = vpop.f32.mrb[0].mxu0
    %v2219 = vadd.f32 %v2178, %v2218
    %v2220 = vpop.f32.mrb[0].mxu0
    %v2221 = vpop.f32.mrb[0].mxu0
    %2222 = vdwg.mxu0
    %2223 = vmatprep.subr.bf16.mxu0 %v1634
    %2224 = vmatpush1.bf16.msra.mxu0 %v1633
    %2225 = vmatprep.subr.bf16.mxu0 %v1637
    %2226 = vmatpush1.bf16.msra.mxu0 %v1636
    %2227 = vmatprep.subr.bf16.mxu0 %v1640
    %2228 = vmatpush1.bf16.msra.mxu0 %v1639
    %2229 = vmatprep.subr.bf16.mxu0 %v1643
    %2230 = vmatpush1.bf16.msra.mxu0 %v1642
    %2231 = vmatprep.subr.bf16.mxu0 %v1646
    %2232 = vmatpush1.bf16.msra.mxu0 %v1645
    %2233 = vmatprep.subr.bf16.mxu0 %v1649
    %2234 = vmatpush1.bf16.msra.mxu0 %v1648
    %2235 = vmatprep.subr.bf16.mxu0 %v1652
    %2236 = vmatpush1.bf16.msra.mxu0 %v1651
    %2237 = vmatprep.subr.bf16.mxu0 %v1655
    %2238 = vmatpush1.bf16.msra.mxu0 %v1654
    %2239 = vmatprep.subr.bf16.mxu0 %v1658
    %2240 = vmatpush1.bf16.msra.mxu0 %v1657
    %2241 = vmatprep.subr.bf16.mxu0 %v1661
    %2242 = vmatpush1.bf16.msra.mxu0 %v1660
    %2243 = vmatprep.subr.bf16.mxu0 %v1664
    %2244 = vmatpush1.bf16.msra.mxu0 %v1663
    %2245 = vmatprep.subr.bf16.mxu0 %v1667
    %2246 = vmatpush1.bf16.msra.mxu0 %v1666
    %2247 = vmatprep.subr.bf16.mxu0 %v1670
    %2248 = vmatpush1.bf16.msra.mxu0 %v1669
    %2249 = vmatprep.subr.bf16.mxu0 %v1673
    %2250 = vmatpush1.bf16.msra.mxu0 %v1672
    %2251 = vmatprep.subr.bf16.mxu0 %v1676
    %2252 = vmatpush1.bf16.msra.mxu0 %v1675
    %2253 = vmatprep.subr.bf16.mxu0 %v1679
    %2254 = vmatpush1.bf16.msra.mxu0 %v1678
    %2255 = vmatprep.mubr.bf16.mxu0 %v112
    %2256 = vmatmul.mubr.bf16.gmra.mrb[0].mxu0 %v111
    %v2257 = vpop.f32.mrb[0].mxu0
    %v2258 = vadd.f32 %v2217, %v2257
    %v2259 = vpop.f32.mrb[0].mxu0
    %v2260 = vadd.f32 %v2219, %v2259
    %v2261 = vpop.f32.mrb[0].mxu0
    %v2262 = vpop.f32.mrb[0].mxu0
    %2263 = vdwg.mxu0
    %2264 = vmatprep.subr.bf16.mxu0 %v1682
    %2265 = vmatpush1.bf16.msra.mxu0 %v1681
    %2266 = vmatprep.subr.bf16.mxu0 %v1685
    %2267 = vmatpush1.bf16.msra.mxu0 %v1684
    %2268 = vmatprep.subr.bf16.mxu0 %v1688
    %2269 = vmatpush1.bf16.msra.mxu0 %v1687
    %2270 = vmatprep.subr.bf16.mxu0 %v1691
    %2271 = vmatpush1.bf16.msra.mxu0 %v1690
    %2272 = vmatprep.subr.bf16.mxu0 %v1694
    %2273 = vmatpush1.bf16.msra.mxu0 %v1693
    %2274 = vmatprep.subr.bf16.mxu0 %v1697
    %2275 = vmatpush1.bf16.msra.mxu0 %v1696
    %2276 = vmatprep.subr.bf16.mxu0 %v1700
    %2277 = vmatpush1.bf16.msra.mxu0 %v1699
    %2278 = vmatprep.subr.bf16.mxu0 %v1703
    %2279 = vmatpush1.bf16.msra.mxu0 %v1702
    %2280 = vmatprep.subr.bf16.mxu0 %v1706
    %2281 = vmatpush1.bf16.msra.mxu0 %v1705
    %2282 = vmatprep.subr.bf16.mxu0 %v1709
    %2283 = vmatpush1.bf16.msra.mxu0 %v1708
    %2284 = vmatprep.subr.bf16.mxu0 %v1712
    %2285 = vmatpush1.bf16.msra.mxu0 %v1711
    %2286 = vmatprep.subr.bf16.mxu0 %v1715
    %2287 = vmatpush1.bf16.msra.mxu0 %v1714
    %2288 = vmatprep.subr.bf16.mxu0 %v1718
    %2289 = vmatpush1.bf16.msra.mxu0 %v1717
    %2290 = vmatprep.subr.bf16.mxu0 %v1721
    %2291 = vmatpush1.bf16.msra.mxu0 %v1720
    %2292 = vmatprep.subr.bf16.mxu0 %v1724
    %2293 = vmatpush1.bf16.msra.mxu0 %v1723
    %2294 = vmatprep.subr.bf16.mxu0 %v1727
    %2295 = vmatpush1.bf16.msra.mxu0 %v1726
    %2296 = vmatprep.mubr.bf16.mxu0 %v114
    %2297 = vmatmul.mubr.bf16.gmra.mrb[0].mxu0 %v113
    %v2298 = vpop.f32.mrb[0].mxu0
    %v2299 = vadd.f32 %v2258, %v2298
    %v2300 = vpop.f32.mrb[0].mxu0
    %v2301 = vadd.f32 %v2260, %v2300
    %v2302 = vpop.f32.mrb[0].mxu0
    %v2303 = vpop.f32.mrb[0].mxu0
    %2304 = vdwg.mxu0
    %2305 = vmatprep.subr.bf16.mxu0 %v1730
    %2306 = vmatpush1.bf16.msra.mxu0 %v1729
    %2307 = vmatprep.subr.bf16.mxu0 %v1733
    %2308 = vmatpush1.bf16.msra.mxu0 %v1732
    %2309 = vmatprep.subr.bf16.mxu0 %v1736
    %2310 = vmatpush1.bf16.msra.mxu0 %v1735
    %2311 = vmatprep.subr.bf16.mxu0 %v1739
    %2312 = vmatpush1.bf16.msra.mxu0 %v1738
    %2313 = vmatprep.subr.bf16.mxu0 %v1742
    %2314 = vmatpush1.bf16.msra.mxu0 %v1741
    %2315 = vmatprep.subr.bf16.mxu0 %v1745
    %2316 = vmatpush1.bf16.msra.mxu0 %v1744
    %2317 = vmatprep.subr.bf16.mxu0 %v1748
    %2318 = vmatpush1.bf16.msra.mxu0 %v1747
    %2319 = vmatprep.subr.bf16.mxu0 %v1751
    %2320 = vmatpush1.bf16.msra.mxu0 %v1750
    %2321 = vmatprep.subr.bf16.mxu0 %v1754
    %2322 = vmatpush1.bf16.msra.mxu0 %v1753
    %2323 = vmatprep.subr.bf16.mxu0 %v1757
    %2324 = vmatpush1.bf16.msra.mxu0 %v1756
    %2325 = vmatprep.subr.bf16.mxu0 %v1760
    %2326 = vmatpush1.bf16.msra.mxu0 %v1759
    %2327 = vmatprep.subr.bf16.mxu0 %v1763
    %2328 = vmatpush1.bf16.msra.mxu0 %v1762
    %2329 = vmatprep.subr.bf16.mxu0 %v1766
    %2330 = vmatpush1.bf16.msra.mxu0 %v1765
    %2331 = vmatprep.subr.bf16.mxu0 %v1769
    %2332 = vmatpush1.bf16.msra.mxu0 %v1768
    %2333 = vmatprep.subr.bf16.mxu0 %v1772
    %2334 = vmatpush1.bf16.msra.mxu0 %v1771
    %2335 = vmatprep.subr.bf16.mxu0 %v1775
    %2336 = vmatpush1.bf16.msra.mxu0 %v1774
    %2337 = vmatprep.mubr.bf16.mxu0 %v116
    %2338 = vmatmul.mubr.bf16.gmra.mrb[0].mxu0 %v115
    %v2339 = vpop.f32.mrb[0].mxu0
    %v2340 = vadd.f32 %v2299, %v2339
    %v2341 = vpop.f32.mrb[0].mxu0
    %v2342 = vadd.f32 %v2301, %v2341
    %v2343 = vpop.f32.mrb[0].mxu0
    %v2344 = vpop.f32.mrb[0].mxu0
    %2345 = vdwg.mxu0
    %2346 = vmatprep.subr.bf16.mxu0 %v1778
    %2347 = vmatpush1.bf16.msra.mxu0 %v1777
    %2348 = vmatprep.subr.bf16.mxu0 %v1781
    %2349 = vmatpush1.bf16.msra.mxu0 %v1780
    %2350 = vmatprep.subr.bf16.mxu0 %v1784
    %2351 = vmatpush1.bf16.msra.mxu0 %v1783
    %2352 = vmatprep.subr.bf16.mxu0 %v1787
    %2353 = vmatpush1.bf16.msra.mxu0 %v1786
    %2354 = vmatprep.subr.bf16.mxu0 %v1790
    %2355 = vmatpush1.bf16.msra.mxu0 %v1789
    %2356 = vmatprep.subr.bf16.mxu0 %v1793
    %2357 = vmatpush1.bf16.msra.mxu0 %v1792
    %2358 = vmatprep.subr.bf16.mxu0 %v1796
    %2359 = vmatpush1.bf16.msra.mxu0 %v1795
    %2360 = vmatprep.subr.bf16.mxu0 %v1799
    %2361 = vmatpush1.bf16.msra.mxu0 %v1798
    %2362 = vmatprep.subr.bf16.mxu0 %v1802
    %2363 = vmatpush1.bf16.msra.mxu0 %v1801
    %2364 = vmatprep.subr.bf16.mxu0 %v1805
    %2365 = vmatpush1.bf16.msra.mxu0 %v1804
    %2366 = vmatprep.subr.bf16.mxu0 %v1808
    %2367 = vmatpush1.bf16.msra.mxu0 %v1807
    %2368 = vmatprep.subr.bf16.mxu0 %v1811
    %2369 = vmatpush1.bf16.msra.mxu0 %v1810
    %2370 = vmatprep.subr.bf16.mxu0 %v1814
    %2371 = vmatpush1.bf16.msra.mxu0 %v1813
    %2372 = vmatprep.subr.bf16.mxu0 %v1817
    %2373 = vmatpush1.bf16.msra.mxu0 %v1816
    %2374 = vmatprep.subr.bf16.mxu0 %v1820
    %2375 = vmatpush1.bf16.msra.mxu0 %v1819
    %2376 = vmatprep.subr.bf16.mxu0 %v1823
    %2377 = vmatpush1.bf16.msra.mxu0 %v1822
    %2378 = vmatprep.mubr.bf16.mxu0 %v118
    %2379 = vmatmul.mubr.bf16.gmra.mrb[0].mxu0 %v117
    %v2380 = vpop.f32.mrb[0].mxu0
    %v2381 = vadd.f32 %v2340, %v2380
    %v2382 = vpop.f32.mrb[0].mxu0
    %v2383 = vadd.f32 %v2342, %v2382
    %v2384 = vpop.f32.mrb[0].mxu0
    %v2385 = vpop.f32.mrb[0].mxu0
    %2386 = vdwg.mxu0
    %2387 = vmatprep.subr.bf16.mxu0 %v1826
    %2388 = vmatpush1.bf16.msra.mxu0 %v1825
    %2389 = vmatprep.subr.bf16.mxu0 %v1829
    %2390 = vmatpush1.bf16.msra.mxu0 %v1828
    %2391 = vmatprep.subr.bf16.mxu0 %v1832
    %2392 = vmatpush1.bf16.msra.mxu0 %v1831
    %2393 = vmatprep.subr.bf16.mxu0 %v1835
    %2394 = vmatpush1.bf16.msra.mxu0 %v1834
    %2395 = vmatprep.subr.bf16.mxu0 0
    %2396 = vmatpush1.bf16.msra.mxu0 0
    %2397 = vmatprep.subr.bf16.mxu0 0
    %2398 = vmatpush1.bf16.msra.mxu0 0
    %2399 = vmatprep.subr.bf16.mxu0 0
    %2400 = vmatpush1.bf16.msra.mxu0 0
    %2401 = vmatprep.subr.bf16.mxu0 0
    %2402 = vmatpush1.bf16.msra.mxu0 0
    %2403 = vmatprep.subr.bf16.mxu0 0
    %2404 = vmatpush1.bf16.msra.mxu0 0
    %2405 = vmatprep.subr.bf16.mxu0 0
    %2406 = vmatpush1.bf16.msra.mxu0 0
    %2407 = vmatprep.subr.bf16.mxu0 0
    %2408 = vmatpush1.bf16.msra.mxu0 0
    %2409 = vmatprep.subr.bf16.mxu0 0
    %2410 = vmatpush1.bf16.msra.mxu0 0
    %2411 = vmatprep.subr.bf16.mxu0 0
    %2412 = vmatpush1.bf16.msra.mxu0 0
    %2413 = vmatprep.subr.bf16.mxu0 0
    %2414 = vmatpush1.bf16.msra.mxu0 0
    %2415 = vmatprep.subr.bf16.mxu0 0
    %2416 = vmatpush1.bf16.msra.mxu0 0
    %2417 = vmatprep.subr.bf16.mxu0 0
    %2418 = vmatpush1.bf16.msra.mxu0 0
    %2419 = vmatprep.mubr.bf16.mxu0 0
    %2420 = vmatmul.mubr.bf16.gmra.mrb[0].mxu0 %v2139
    %v2421 = vpop.f32.mrb[0].mxu0
    %v2422 = vadd.f32 %v2381, %v2421
    %v2423 = vpop.f32.mrb[0].mxu0
    %v2424 = vadd.f32 %v2383, %v2423
    %v2425 = vpop.f32.mrb[0].mxu0
    %v2426 = vpop.f32.mrb[0].mxu0
    %2427 = vdwg.mxu0
    %2428 = vmatprep.subr.bf16.mxu0 0
    %2429 = vmatpush1.bf16.msra.mxu0 %v1539
    %2430 = vmatprep.subr.bf16.mxu0 0
    %2431 = vmatpush1.bf16.msra.mxu0 %v1542
    %2432 = vmatprep.subr.bf16.mxu0 0
    %2433 = vmatpush1.bf16.msra.mxu0 %v1545
    %2434 = vmatprep.subr.bf16.mxu0 0
    %2435 = vmatpush1.bf16.msra.mxu0 %v1548
    %2436 = vmatprep.subr.bf16.mxu0 0
    %2437 = vmatpush1.bf16.msra.mxu0 %v1551
    %2438 = vmatprep.subr.bf16.mxu0 0
    %2439 = vmatpush1.bf16.msra.mxu0 %v1554
    %2440 = vmatprep.subr.bf16.mxu0 0
    %2441 = vmatpush1.bf16.msra.mxu0 %v1557
    %2442 = vmatprep.subr.bf16.mxu0 0
    %2443 = vmatpush1.bf16.msra.mxu0 %v1560
    %2444 = vmatprep.subr.bf16.mxu0 0
    %2445 = vmatpush1.bf16.msra.mxu0 %v1563
    %2446 = vmatprep.subr.bf16.mxu0 0
    %2447 = vmatpush1.bf16.msra.mxu0 %v1566
    %2448 = vmatprep.subr.bf16.mxu0 0
    %2449 = vmatpush1.bf16.msra.mxu0 %v1569
    %2450 = vmatprep.subr.bf16.mxu0 0
    %2451 = vmatpush1.bf16.msra.mxu0 %v1572
    %2452 = vmatprep.subr.bf16.mxu0 0
    %2453 = vmatpush1.bf16.msra.mxu0 %v1575
    %2454 = vmatprep.subr.bf16.mxu0 0
    %2455 = vmatpush1.bf16.msra.mxu0 %v1578
    %2456 = vmatprep.subr.bf16.mxu0 0
    %2457 = vmatpush1.bf16.msra.mxu0 %v1581
    %2458 = vmatprep.subr.bf16.mxu0 0
    %2459 = vmatpush1.bf16.msra.mxu0 %v1584
    %2460 = vmatprep.mubr.bf16.mxu0 %v108
    %2461 = vmatmul.mubr.bf16.gmra.mrb[0].mxu0 %v107
    %v2462 = vpop.f32.mrb[0].mxu0
    %v2463 = vadd.f32 %v533, %v2462
    %v2464 = vpop.f32.mrb[0].mxu0
    %v2465 = vpop.f32.mrb[0].mxu0
    %v2466 = vpop.f32.mrb[0].mxu0
    %2467 = vdwg.mxu0
    %2468 = vmatprep.subr.bf16.mxu0 0
    %2469 = vmatpush1.bf16.msra.mxu0 %v1587
    %2470 = vmatprep.subr.bf16.mxu0 0
    %2471 = vmatpush1.bf16.msra.mxu0 %v1590
    %2472 = vmatprep.subr.bf16.mxu0 0
    %2473 = vmatpush1.bf16.msra.mxu0 %v1593
    %2474 = vmatprep.subr.bf16.mxu0 0
    %2475 = vmatpush1.bf16.msra.mxu0 %v1596
    %2476 = vmatprep.subr.bf16.mxu0 0
    %2477 = vmatpush1.bf16.msra.mxu0 %v1599
    %2478 = vmatprep.subr.bf16.mxu0 0
    %2479 = vmatpush1.bf16.msra.mxu0 %v1602
    %2480 = vmatprep.subr.bf16.mxu0 0
    %2481 = vmatpush1.bf16.msra.mxu0 %v1605
    %2482 = vmatprep.subr.bf16.mxu0 0
    %2483 = vmatpush1.bf16.msra.mxu0 %v1608
    %2484 = vmatprep.subr.bf16.mxu0 0
    %2485 = vmatpush1.bf16.msra.mxu0 %v1611
    %2486 = vmatprep.subr.bf16.mxu0 0
    %2487 = vmatpush1.bf16.msra.mxu0 %v1614
    %2488 = vmatprep.subr.bf16.mxu0 0
    %2489 = vmatpush1.bf16.msra.mxu0 %v1617
    %2490 = vmatprep.subr.bf16.mxu0 0
    %2491 = vmatpush1.bf16.msra.mxu0 %v1620
    %2492 = vmatprep.subr.bf16.mxu0 0
    %2493 = vmatpush1.bf16.msra.mxu0 %v1623
    %2494 = vmatprep.subr.bf16.mxu0 0
    %2495 = vmatpush1.bf16.msra.mxu0 %v1626
    %2496 = vmatprep.subr.bf16.mxu0 0
    %2497 = vmatpush1.bf16.msra.mxu0 %v1629
    %2498 = vmatprep.subr.bf16.mxu0 0
    %2499 = vmatpush1.bf16.msra.mxu0 %v1632
    %2500 = vmatprep.mubr.bf16.mxu0 %v110
    %2501 = vmatmul.mubr.bf16.gmra.mrb[0].mxu0 %v109
    %v2502 = vpop.f32.mrb[0].mxu0
    %v2503 = vadd.f32 %v2463, %v2502
    %v2504 = vpop.f32.mrb[0].mxu0
    %v2505 = vpop.f32.mrb[0].mxu0
    %v2506 = vpop.f32.mrb[0].mxu0
    %2507 = vdwg.mxu0
    %2508 = vmatprep.subr.bf16.mxu0 0
    %2509 = vmatpush1.bf16.msra.mxu0 %v1635
    %2510 = vmatprep.subr.bf16.mxu0 0
    %2511 = vmatpush1.bf16.msra.mxu0 %v1638
    %2512 = vmatprep.subr.bf16.mxu0 0
    %2513 = vmatpush1.bf16.msra.mxu0 %v1641
    %2514 = vmatprep.subr.bf16.mxu0 0
    %2515 = vmatpush1.bf16.msra.mxu0 %v1644
    %2516 = vmatprep.subr.bf16.mxu0 0
    %2517 = vmatpush1.bf16.msra.mxu0 %v1647
    %2518 = vmatprep.subr.bf16.mxu0 0
    %2519 = vmatpush1.bf16.msra.mxu0 %v1650
    %2520 = vmatprep.subr.bf16.mxu0 0
    %2521 = vmatpush1.bf16.msra.mxu0 %v1653
    %2522 = vmatprep.subr.bf16.mxu0 0
    %2523 = vmatpush1.bf16.msra.mxu0 %v1656
    %2524 = vmatprep.subr.bf16.mxu0 0
    %2525 = vmatpush1.bf16.msra.mxu0 %v1659
    %2526 = vmatprep.subr.bf16.mxu0 0
    %2527 = vmatpush1.bf16.msra.mxu0 %v1662
    %2528 = vmatprep.subr.bf16.mxu0 0
    %2529 = vmatpush1.bf16.msra.mxu0 %v1665
    %2530 = vmatprep.subr.bf16.mxu0 0
    %2531 = vmatpush1.bf16.msra.mxu0 %v1668
    %2532 = vmatprep.subr.bf16.mxu0 0
    %2533 = vmatpush1.bf16.msra.mxu0 %v1671
    %2534 = vmatprep.subr.bf16.mxu0 0
    %2535 = vmatpush1.bf16.msra.mxu0 %v1674
    %2536 = vmatprep.subr.bf16.mxu0 0
    %2537 = vmatpush1.bf16.msra.mxu0 %v1677
    %2538 = vmatprep.subr.bf16.mxu0 0
    %2539 = vmatpush1.bf16.msra.mxu0 %v1680
    %2540 = vmatprep.mubr.bf16.mxu0 %v112
    %2541 = vmatmul.mubr.bf16.gmra.mrb[0].mxu0 %v111
    %v2542 = vpop.f32.mrb[0].mxu0
    %v2543 = vadd.f32 %v2503, %v2542
    %v2544 = vpop.f32.mrb[0].mxu0
    %v2545 = vpop.f32.mrb[0].mxu0
    %v2546 = vpop.f32.mrb[0].mxu0
    %2547 = vdwg.mxu0
    %2548 = vmatprep.subr.bf16.mxu0 0
    %2549 = vmatpush1.bf16.msra.mxu0 %v1683
    %2550 = vmatprep.subr.bf16.mxu0 0
    %2551 = vmatpush1.bf16.msra.mxu0 %v1686
    %2552 = vmatprep.subr.bf16.mxu0 0
    %2553 = vmatpush1.bf16.msra.mxu0 %v1689
    %2554 = vmatprep.subr.bf16.mxu0 0
    %2555 = vmatpush1.bf16.msra.mxu0 %v1692
    %2556 = vmatprep.subr.bf16.mxu0 0
    %2557 = vmatpush1.bf16.msra.mxu0 %v1695
    %2558 = vmatprep.subr.bf16.mxu0 0
    %2559 = vmatpush1.bf16.msra.mxu0 %v1698
    %2560 = vmatprep.subr.bf16.mxu0 0
    %2561 = vmatpush1.bf16.msra.mxu0 %v1701
    %2562 = vmatprep.subr.bf16.mxu0 0
    %2563 = vmatpush1.bf16.msra.mxu0 %v1704
    %2564 = vmatprep.subr.bf16.mxu0 0
    %2565 = vmatpush1.bf16.msra.mxu0 %v1707
    %2566 = vmatprep.subr.bf16.mxu0 0
    %2567 = vmatpush1.bf16.msra.mxu0 %v1710
    %2568 = vmatprep.subr.bf16.mxu0 0
    %2569 = vmatpush1.bf16.msra.mxu0 %v1713
    %2570 = vmatprep.subr.bf16.mxu0 0
    %2571 = vmatpush1.bf16.msra.mxu0 %v1716
    %2572 = vmatprep.subr.bf16.mxu0 0
    %2573 = vmatpush1.bf16.msra.mxu0 %v1719
    %2574 = vmatprep.subr.bf16.mxu0 0
    %2575 = vmatpush1.bf16.msra.mxu0 %v1722
    %2576 = vmatprep.subr.bf16.mxu0 0
    %2577 = vmatpush1.bf16.msra.mxu0 %v1725
    %2578 = vmatprep.subr.bf16.mxu0 0
    %2579 = vmatpush1.bf16.msra.mxu0 %v1728
    %2580 = vmatprep.mubr.bf16.mxu0 %v114
    %2581 = vmatmul.mubr.bf16.gmra.mrb[0].mxu0 %v113
    %v2582 = vpop.f32.mrb[0].mxu0
    %v2583 = vadd.f32 %v2543, %v2582
    %v2584 = vpop.f32.mrb[0].mxu0
    %v2585 = vpop.f32.mrb[0].mxu0
    %v2586 = vpop.f32.mrb[0].mxu0
    %2587 = vdwg.mxu0
    %2588 = vmatprep.subr.bf16.mxu0 0
    %2589 = vmatpush1.bf16.msra.mxu0 %v1731
    %2590 = vmatprep.subr.bf16.mxu0 0
    %2591 = vmatpush1.bf16.msra.mxu0 %v1734
    %2592 = vmatprep.subr.bf16.mxu0 0
    %2593 = vmatpush1.bf16.msra.mxu0 %v1737
    %2594 = vmatprep.subr.bf16.mxu0 0
    %2595 = vmatpush1.bf16.msra.mxu0 %v1740
    %2596 = vmatprep.subr.bf16.mxu0 0
    %2597 = vmatpush1.bf16.msra.mxu0 %v1743
    %2598 = vmatprep.subr.bf16.mxu0 0
    %2599 = vmatpush1.bf16.msra.mxu0 %v1746
    %2600 = vmatprep.subr.bf16.mxu0 0
    %2601 = vmatpush1.bf16.msra.mxu0 %v1749
    %2602 = vmatprep.subr.bf16.mxu0 0
    %2603 = vmatpush1.bf16.msra.mxu0 %v1752
    %2604 = vmatprep.subr.bf16.mxu0 0
    %2605 = vmatpush1.bf16.msra.mxu0 %v1755
    %2606 = vmatprep.subr.bf16.mxu0 0
    %2607 = vmatpush1.bf16.msra.mxu0 %v1758
    %2608 = vmatprep.subr.bf16.mxu0 0
    %2609 = vmatpush1.bf16.msra.mxu0 %v1761
    %2610 = vmatprep.subr.bf16.mxu0 0
    %2611 = vmatpush1.bf16.msra.mxu0 %v1764
    %2612 = vmatprep.subr.bf16.mxu0 0
    %2613 = vmatpush1.bf16.msra.mxu0 %v1767
    %2614 = vmatprep.subr.bf16.mxu0 0
    %2615 = vmatpush1.bf16.msra.mxu0 %v1770
    %2616 = vmatprep.subr.bf16.mxu0 0
    %2617 = vmatpush1.bf16.msra.mxu0 %v1773
    %2618 = vmatprep.subr.bf16.mxu0 0
    %2619 = vmatpush1.bf16.msra.mxu0 %v1776
    %2620 = vmatprep.mubr.bf16.mxu0 %v116
    %2621 = vmatmul.mubr.bf16.gmra.mrb[0].mxu0 %v115
    %v2622 = vpop.f32.mrb[0].mxu0
    %v2623 = vadd.f32 %v2583, %v2622
    %v2624 = vpop.f32.mrb[0].mxu0
    %v2625 = vpop.f32.mrb[0].mxu0
    %v2626 = vpop.f32.mrb[0].mxu0
    %2627 = vdwg.mxu0
    %2628 = vmatprep.subr.bf16.mxu0 0
    %2629 = vmatpush1.bf16.msra.mxu0 %v1779
    %2630 = vmatprep.subr.bf16.mxu0 0
    %2631 = vmatpush1.bf16.msra.mxu0 %v1782
    %2632 = vmatprep.subr.bf16.mxu0 0
    %2633 = vmatpush1.bf16.msra.mxu0 %v1785
    %2634 = vmatprep.subr.bf16.mxu0 0
    %2635 = vmatpush1.bf16.msra.mxu0 %v1788
    %2636 = vmatprep.subr.bf16.mxu0 0
    %2637 = vmatpush1.bf16.msra.mxu0 %v1791
    %2638 = vmatprep.subr.bf16.mxu0 0
    %2639 = vmatpush1.bf16.msra.mxu0 %v1794
    %2640 = vmatprep.subr.bf16.mxu0 0
    %2641 = vmatpush1.bf16.msra.mxu0 %v1797
    %2642 = vmatprep.subr.bf16.mxu0 0
    %2643 = vmatpush1.bf16.msra.mxu0 %v1800
    %2644 = vmatprep.subr.bf16.mxu0 0
    %2645 = vmatpush1.bf16.msra.mxu0 %v1803
    %2646 = vmatprep.subr.bf16.mxu0 0
    %2647 = vmatpush1.bf16.msra.mxu0 %v1806
    %2648 = vmatprep.subr.bf16.mxu0 0
    %2649 = vmatpush1.bf16.msra.mxu0 %v1809
    %2650 = vmatprep.subr.bf16.mxu0 0
    %2651 = vmatpush1.bf16.msra.mxu0 %v1812
    %2652 = vmatprep.subr.bf16.mxu0 0
    %2653 = vmatpush1.bf16.msra.mxu0 %v1815
    %2654 = vmatprep.subr.bf16.mxu0 0
    %2655 = vmatpush1.bf16.msra.mxu0 %v1818
    %2656 = vmatprep.subr.bf16.mxu0 0
    %2657 = vmatpush1.bf16.msra.mxu0 %v1821
    %2658 = vmatprep.subr.bf16.mxu0 0
    %2659 = vmatpush1.bf16.msra.mxu0 %v1824
    %2660 = vmatprep.mubr.bf16.mxu0 %v118
    %2661 = vmatmul.mubr.bf16.gmra.mrb[0].mxu0 %v117
    %v2662 = vpop.f32.mrb[0].mxu0
    %v2663 = vadd.f32 %v2623, %v2662
    %v2664 = vpop.f32.mrb[0].mxu0
    %v2665 = vpop.f32.mrb[0].mxu0
    %v2666 = vpop.f32.mrb[0].mxu0
    %2667 = vdwg.mxu0
    %2668 = vmatprep.subr.bf16.mxu0 0
    %2669 = vmatpush1.bf16.msra.mxu0 %v1827
    %2670 = vmatprep.subr.bf16.mxu0 0
    %2671 = vmatpush1.bf16.msra.mxu0 %v1830
    %2672 = vmatprep.subr.bf16.mxu0 0
    %2673 = vmatpush1.bf16.msra.mxu0 %v1833
    %2674 = vmatprep.subr.bf16.mxu0 0
    %2675 = vmatpush1.bf16.msra.mxu0 %v1836
    %2676 = vmatprep.subr.bf16.mxu0 0
    %2677 = vmatpush1.bf16.msra.mxu0 0
    %2678 = vmatprep.subr.bf16.mxu0 0
    %2679 = vmatpush1.bf16.msra.mxu0 0
    %2680 = vmatprep.subr.bf16.mxu0 0
    %2681 = vmatpush1.bf16.msra.mxu0 0
    %2682 = vmatprep.subr.bf16.mxu0 0
    %2683 = vmatpush1.bf16.msra.mxu0 0
    %2684 = vmatprep.subr.bf16.mxu0 0
    %2685 = vmatpush1.bf16.msra.mxu0 0
    %2686 = vmatprep.subr.bf16.mxu0 0
    %2687 = vmatpush1.bf16.msra.mxu0 0
    %2688 = vmatprep.subr.bf16.mxu0 0
    %2689 = vmatpush1.bf16.msra.mxu0 0
    %2690 = vmatprep.subr.bf16.mxu0 0
    %2691 = vmatpush1.bf16.msra.mxu0 0
    %2692 = vmatprep.subr.bf16.mxu0 0
    %2693 = vmatpush1.bf16.msra.mxu0 0
    %2694 = vmatprep.subr.bf16.mxu0 0
    %2695 = vmatpush1.bf16.msra.mxu0 0
    %2696 = vmatprep.subr.bf16.mxu0 0
    %2697 = vmatpush1.bf16.msra.mxu0 0
    %2698 = vmatprep.subr.bf16.mxu0 0
    %2699 = vmatpush1.bf16.msra.mxu0 0
    %2700 = vmatprep.mubr.bf16.mxu0 0
    %2701 = vmatmul.mubr.bf16.gmra.mrb[0].mxu0 %v2139
    %v2702 = vpop.f32.mrb[0].mxu0
    %v2703 = vadd.f32 %v2663, %v2702
    %v2704 = vpop.f32.mrb[0].mxu0
    %v2705 = vpop.f32.mrb[0].mxu0
    %v2706 = vpop.f32.mrb[0].mxu0
    %2707 = vdwg.mxu0
    %v2708 = vmax.f32 %v2422, 0.0
    %v2709 = vmax.f32 %v2424, 0.0
    %v2710 = vmax.f32 %v2703, 0.0
    %v2711 = vpack.c.bf16 %v2708, %v2708
    %v2712 = vpack.c.bf16 %v2709, %v2709
    %v2713 = vpack.c.bf16 %v2710, %v2710
    %v2714 = vld [vmem:[%s3] sm:$0xff]
    %v2715 = vld [vmem:[%s3 + $0x8] sm:$0xff]
    %v2716 = vld [vmem:[%s3 + $0x10] sm:$0xff]
    %v2717 = vld [vmem:[%s3 + $0x18] sm:$0xff]
    %v2718 = vld [vmem:[%s3 + $0x20] sm:$0xff]
    %v2719 = vld [vmem:[%s3 + $0x28] sm:$0xff]
    %v2720 = vld [vmem:[%s3 + $0x30] sm:$0xff]
    %v2721 = vld [vmem:[%s3 + $0x38] sm:$0xff]
    %v2722 = vld [vmem:[%s3 + $0x40] sm:$0xff]
    %v2723 = vld [vmem:[%s3 + $0x48] sm:$0xff]
    %v2724 = vld [vmem:[%s3 + $0x50] sm:$0xff]
    %v2725 = vld [vmem:[%s3 + $0x58] sm:$0xff]
    %v2726 = vld [vmem:[%s3 + $0x60] sm:$0xff]
    %v2727 = vld [vmem:[%s3 + $0x68] sm:$0xff]
    %v2728 = vld [vmem:[%s3 + $0x70] sm:$0xff]
    %v2729 = vld [vmem:[%s3 + $0x78] sm:$0xff]
    %v2730 = vld [vmem:[%s3 + $0x80] sm:$0xff]
    %v2731 = vld [vmem:[%s3 + $0x88] sm:$0xff]
    %v2732 = vld [vmem:[%s3 + $0x90] sm:$0xff]
    %v2733 = vld [vmem:[%s3 + $0x98] sm:$0xff]
    %v2734 = vld [vmem:[%s3 + $0xa0] sm:$0xff]
    %v2735 = vld [vmem:[%s3 + $0xa8] sm:$0xff]
    %v2736 = vld [vmem:[%s3 + $0xb0] sm:$0xff]
    %v2737 = vld [vmem:[%s3 + $0xb8] sm:$0xff]
    %v2738 = vld [vmem:[%s3 + $0xc0] sm:$0xff]
    %v2739 = vld [vmem:[%s3 + $0xc8] sm:$0xff]
    %v2740 = vld [vmem:[%s3 + $0xd0] sm:$0xff]
    %v2741 = vld [vmem:[%s3 + $0xd8] sm:$0xff]
    %v2742 = vld [vmem:[%s3 + $0xe0] sm:$0xff]
    %v2743 = vld [vmem:[%s3 + $0xe8] sm:$0xff]
    %v2744 = vld [vmem:[%s3 + $0xf0] sm:$0xff]
    %v2745 = vld [vmem:[%s3 + $0xf8] sm:$0xff]
    %v2746 = vld [vmem:[%s3 + $0x100] sm:$0xff]
    %v2747 = vld [vmem:[%s3 + $0x108] sm:$0xff]
    %v2748 = vld [vmem:[%s3 + $0x110] sm:$0xff]
    %v2749 = vld [vmem:[%s3 + $0x118] sm:$0xff]
    %v2750 = vld [vmem:[%s3 + $0x120] sm:$0xff]
    %v2751 = vld [vmem:[%s3 + $0x128] sm:$0xff]
    %v2752 = vld [vmem:[%s3 + $0x130] sm:$0xff]
    %v2753 = vld [vmem:[%s3 + $0x138] sm:$0xff]
    %v2754 = vld [vmem:[%s3 + $0x140] sm:$0xff]
    %v2755 = vld [vmem:[%s3 + $0x148] sm:$0xff]
    %v2756 = vld [vmem:[%s3 + $0x150] sm:$0xff]
    %v2757 = vld [vmem:[%s3 + $0x158] sm:$0xff]
    %v2758 = vld [vmem:[%s3 + $0x160] sm:$0xff]
    %v2759 = vld [vmem:[%s3 + $0x168] sm:$0xff]
    %v2760 = vld [vmem:[%s3 + $0x170] sm:$0xff]
    %v2761 = vld [vmem:[%s3 + $0x178] sm:$0xff]
    %v2762 = vld [vmem:[%s4] sm:$0x3]
    %v2764 = vlaneseq
    %v2765 = vshrl.u32 %v2764, 7
    %v2766 = vsub.s32 0, %v2765
    %v2767 = vrot.slane %v2762, %v2766
    %v2768 = vlaneseq
    %v2769 = vshrl.u32 %v2768, 7
    %v2770 = vsub.s32 1, %v2769
    %v2771 = vrot.slane %v2762, %v2770
    %v2822 = vunpack.c.l.b16 %v2714
    %v2823 = vunpack.c.h.b16 %v2714
    %v2824 = vunpack.c.l.b16 %v2715
    %v2825 = vunpack.c.h.b16 %v2715
    %v2826 = vunpack.c.l.b16 %v2716
    %v2827 = vunpack.c.h.b16 %v2716
    %v2828 = vunpack.c.l.b16 %v2717
    %v2829 = vunpack.c.h.b16 %v2717
    %v2830 = vunpack.c.l.b16 %v2718
    %v2831 = vunpack.c.h.b16 %v2718
    %v2832 = vunpack.c.l.b16 %v2719
    %v2833 = vunpack.c.h.b16 %v2719
    %v2834 = vunpack.c.l.b16 %v2720
    %v2835 = vunpack.c.h.b16 %v2720
    %v2836 = vunpack.c.l.b16 %v2721
    %v2837 = vunpack.c.h.b16 %v2721
    %v2838 = vunpack.c.l.b16 %v2722
    %v2839 = vunpack.c.h.b16 %v2722
    %v2840 = vunpack.c.l.b16 %v2723
    %v2841 = vunpack.c.h.b16 %v2723
    %v2842 = vunpack.c.l.b16 %v2724
    %v2843 = vunpack.c.h.b16 %v2724
    %v2844 = vunpack.c.l.b16 %v2725
    %v2845 = vunpack.c.h.b16 %v2725
    %v2846 = vunpack.c.l.b16 %v2726
    %v2847 = vunpack.c.h.b16 %v2726
    %v2848 = vunpack.c.l.b16 %v2727
    %v2849 = vunpack.c.h.b16 %v2727
    %v2850 = vunpack.c.l.b16 %v2728
    %v2851 = vunpack.c.h.b16 %v2728
    %v2852 = vunpack.c.l.b16 %v2729
    %v2853 = vunpack.c.h.b16 %v2729
    %v2854 = vunpack.c.l.b16 %v2730
    %v2855 = vunpack.c.h.b16 %v2730
    %v2856 = vunpack.c.l.b16 %v2731
    %v2857 = vunpack.c.h.b16 %v2731
    %v2858 = vunpack.c.l.b16 %v2732
    %v2859 = vunpack.c.h.b16 %v2732
    %v2860 = vunpack.c.l.b16 %v2733
    %v2861 = vunpack.c.h.b16 %v2733
    %v2862 = vunpack.c.l.b16 %v2734
    %v2863 = vunpack.c.h.b16 %v2734
    %v2864 = vunpack.c.l.b16 %v2735
    %v2865 = vunpack.c.h.b16 %v2735
    %v2866 = vunpack.c.l.b16 %v2736
    %v2867 = vunpack.c.h.b16 %v2736
    %v2868 = vunpack.c.l.b16 %v2737
    %v2869 = vunpack.c.h.b16 %v2737
    %v2870 = vunpack.c.l.b16 %v2738
    %v2871 = vunpack.c.h.b16 %v2738
    %v2872 = vunpack.c.l.b16 %v2739
    %v2873 = vunpack.c.h.b16 %v2739
    %v2874 = vunpack.c.l.b16 %v2740
    %v2875 = vunpack.c.h.b16 %v2740
    %v2876 = vunpack.c.l.b16 %v2741
    %v2877 = vunpack.c.h.b16 %v2741
    %v2878 = vunpack.c.l.b16 %v2742
    %v2879 = vunpack.c.h.b16 %v2742
    %v2880 = vunpack.c.l.b16 %v2743
    %v2881 = vunpack.c.h.b16 %v2743
    %v2882 = vunpack.c.l.b16 %v2744
    %v2883 = vunpack.c.h.b16 %v2744
    %v2884 = vunpack.c.l.b16 %v2745
    %v2885 = vunpack.c.h.b16 %v2745
    %v2886 = vunpack.c.l.b16 %v2746
    %v2887 = vunpack.c.h.b16 %v2746
    %v2888 = vunpack.c.l.b16 %v2747
    %v2889 = vunpack.c.h.b16 %v2747
    %v2890 = vunpack.c.l.b16 %v2748
    %v2891 = vunpack.c.h.b16 %v2748
    %v2892 = vunpack.c.l.b16 %v2749
    %v2893 = vunpack.c.h.b16 %v2749
    %v2894 = vunpack.c.l.b16 %v2750
    %v2895 = vunpack.c.h.b16 %v2750
    %v2896 = vunpack.c.l.b16 %v2751
    %v2897 = vunpack.c.h.b16 %v2751
    %v2898 = vunpack.c.l.b16 %v2752
    %v2899 = vunpack.c.h.b16 %v2752
    %v2900 = vunpack.c.l.b16 %v2753
    %v2901 = vunpack.c.h.b16 %v2753
    %v2902 = vunpack.c.l.b16 %v2754
    %v2903 = vunpack.c.h.b16 %v2754
    %v2904 = vunpack.c.l.b16 %v2755
    %v2905 = vunpack.c.h.b16 %v2755
    %v2906 = vunpack.c.l.b16 %v2756
    %v2907 = vunpack.c.h.b16 %v2756
    %v2908 = vunpack.c.l.b16 %v2757
    %v2909 = vunpack.c.h.b16 %v2757
    %v2910 = vunpack.c.l.b16 %v2758
    %v2911 = vunpack.c.h.b16 %v2758
    %v2912 = vunpack.c.l.b16 %v2759
    %v2913 = vunpack.c.h.b16 %v2759
    %v2914 = vunpack.c.l.b16 %v2760
    %v2915 = vunpack.c.h.b16 %v2760
    %v2916 = vunpack.c.l.b16 %v2761
    %v2917 = vunpack.c.h.b16 %v2761
    %v2918 = vpack.c.b16 %v2824, %v2822
    %v2919 = vpack.c.b16 %v2825, %v2823
    %v2920 = vpack.c.b16 %v2828, %v2826
    %v2921 = vpack.c.b16 %v2829, %v2827
    %v2922 = vpack.c.b16 %v2832, %v2830
    %v2923 = vpack.c.b16 %v2833, %v2831
    %v2924 = vpack.c.b16 %v2836, %v2834
    %v2925 = vpack.c.b16 %v2837, %v2835
    %v2926 = vpack.c.b16 %v2840, %v2838
    %v2927 = vpack.c.b16 %v2841, %v2839
    %v2928 = vpack.c.b16 %v2844, %v2842
    %v2929 = vpack.c.b16 %v2845, %v2843
    %v2930 = vpack.c.b16 %v2848, %v2846
    %v2931 = vpack.c.b16 %v2849, %v2847
    %v2932 = vpack.c.b16 %v2852, %v2850
    %v2933 = vpack.c.b16 %v2853, %v2851
    %v2934 = vpack.c.b16 %v2856, %v2854
    %v2935 = vpack.c.b16 %v2857, %v2855
    %v2936 = vpack.c.b16 %v2860, %v2858
    %v2937 = vpack.c.b16 %v2861, %v2859
    %v2938 = vpack.c.b16 %v2864, %v2862
    %v2939 = vpack.c.b16 %v2865, %v2863
    %v2940 = vpack.c.b16 %v2868, %v2866
    %v2941 = vpack.c.b16 %v2869, %v2867
    %v2942 = vpack.c.b16 %v2872, %v2870
    %v2943 = vpack.c.b16 %v2873, %v2871
    %v2944 = vpack.c.b16 %v2876, %v2874
    %v2945 = vpack.c.b16 %v2877, %v2875
    %v2946 = vpack.c.b16 %v2880, %v2878
    %v2947 = vpack.c.b16 %v2881, %v2879
    %v2948 = vpack.c.b16 %v2884, %v2882
    %v2949 = vpack.c.b16 %v2885, %v2883
    %v2950 = vpack.c.b16 %v2888, %v2886
    %v2951 = vpack.c.b16 %v2889, %v2887
    %v2952 = vpack.c.b16 %v2892, %v2890
    %v2953 = vpack.c.b16 %v2893, %v2891
    %v2954 = vpack.c.b16 %v2896, %v2894
    %v2955 = vpack.c.b16 %v2897, %v2895
    %v2956 = vpack.c.b16 %v2900, %v2898
    %v2957 = vpack.c.b16 %v2901, %v2899
    %v2958 = vpack.c.b16 %v2904, %v2902
    %v2959 = vpack.c.b16 %v2905, %v2903
    %v2960 = vpack.c.b16 %v2908, %v2906
    %v2961 = vpack.c.b16 %v2909, %v2907
    %v2962 = vpack.c.b16 %v2912, %v2910
    %v2963 = vpack.c.b16 %v2913, %v2911
    %v2964 = vpack.c.b16 %v2916, %v2914
    %v2965 = vpack.c.b16 %v2917, %v2915
    %3014 = vmatprep.subr.bf16.mxu0 %v2919
    %3015 = vmatpush1.bf16.msra.mxu0 %v2918
    %3016 = vmatprep.subr.bf16.mxu0 %v2921
    %3017 = vmatpush1.bf16.msra.mxu0 %v2920
    %3018 = vmatprep.subr.bf16.mxu0 %v2923
    %3019 = vmatpush1.bf16.msra.mxu0 %v2922
    %3020 = vmatprep.subr.bf16.mxu0 %v2925
    %3021 = vmatpush1.bf16.msra.mxu0 %v2924
    %3022 = vmatprep.subr.bf16.mxu0 %v2927
    %3023 = vmatpush1.bf16.msra.mxu0 %v2926
    %3024 = vmatprep.subr.bf16.mxu0 %v2929
    %3025 = vmatpush1.bf16.msra.mxu0 %v2928
    %3026 = vmatprep.subr.bf16.mxu0 %v2931
    %3027 = vmatpush1.bf16.msra.mxu0 %v2930
    %3028 = vmatprep.subr.bf16.mxu0 %v2933
    %3029 = vmatpush1.bf16.msra.mxu0 %v2932
    %3030 = vmatprep.subr.bf16.mxu0 %v2935
    %3031 = vmatpush1.bf16.msra.mxu0 %v2934
    %3032 = vmatprep.subr.bf16.mxu0 %v2937
    %3033 = vmatpush1.bf16.msra.mxu0 %v2936
    %3034 = vmatprep.subr.bf16.mxu0 %v2939
    %3035 = vmatpush1.bf16.msra.mxu0 %v2938
    %3036 = vmatprep.subr.bf16.mxu0 %v2941
    %3037 = vmatpush1.bf16.msra.mxu0 %v2940
    %3038 = vmatprep.subr.bf16.mxu0 %v2943
    %3039 = vmatpush1.bf16.msra.mxu0 %v2942
    %3040 = vmatprep.subr.bf16.mxu0 %v2945
    %3041 = vmatpush1.bf16.msra.mxu0 %v2944
    %3042 = vmatprep.subr.bf16.mxu0 %v2947
    %3043 = vmatpush1.bf16.msra.mxu0 %v2946
    %3044 = vmatprep.subr.bf16.mxu0 %v2949
    %3045 = vmatpush1.bf16.msra.mxu0 %v2948
    %3046 = vmatprep.mubr.bf16.mxu0 %v2712
    %3047 = vmatmul.mubr.bf16.gmra.mrb[0].mxu0 %v2711
    %v3048 = vpop.f32.mrb[0].mxu0
    %v3049 = vadd.f32 %v2767, %v3048
    %v3050 = vpop.f32.mrb[0].mxu0
    %v3051 = vadd.f32 %v2771, %v3050
    %v3052 = vpop.f32.mrb[0].mxu0
    %v3053 = vpop.f32.mrb[0].mxu0
    %3054 = vdwg.mxu0
    %3055 = vmatprep.subr.bf16.mxu0 %v2951
    %3056 = vmatpush1.bf16.msra.mxu0 %v2950
    %3057 = vmatprep.subr.bf16.mxu0 %v2953
    %3058 = vmatpush1.bf16.msra.mxu0 %v2952
    %3059 = vmatprep.subr.bf16.mxu0 %v2955
    %3060 = vmatpush1.bf16.msra.mxu0 %v2954
    %3061 = vmatprep.subr.bf16.mxu0 %v2957
    %3062 = vmatpush1.bf16.msra.mxu0 %v2956
    %3063 = vmatprep.subr.bf16.mxu0 %v2959
    %3064 = vmatpush1.bf16.msra.mxu0 %v2958
    %3065 = vmatprep.subr.bf16.mxu0 %v2961
    %3066 = vmatpush1.bf16.msra.mxu0 %v2960
    %3067 = vmatprep.subr.bf16.mxu0 %v2963
    %3068 = vmatpush1.bf16.msra.mxu0 %v2962
    %3069 = vmatprep.subr.bf16.mxu0 %v2965
    %3070 = vmatpush1.bf16.msra.mxu0 %v2964
    %3071 = vmatprep.subr.bf16.mxu0 0
    %3072 = vmatpush1.bf16.msra.mxu0 0
    %3073 = vmatprep.subr.bf16.mxu0 0
    %3074 = vmatpush1.bf16.msra.mxu0 0
    %3075 = vmatprep.subr.bf16.mxu0 0
    %3076 = vmatpush1.bf16.msra.mxu0 0
    %3077 = vmatprep.subr.bf16.mxu0 0
    %3078 = vmatpush1.bf16.msra.mxu0 0
    %3079 = vmatprep.subr.bf16.mxu0 0
    %3080 = vmatpush1.bf16.msra.mxu0 0
    %3081 = vmatprep.subr.bf16.mxu0 0
    %3082 = vmatpush1.bf16.msra.mxu0 0
    %3083 = vmatprep.subr.bf16.mxu0 0
    %3084 = vmatpush1.bf16.msra.mxu0 0
    %3085 = vmatprep.subr.bf16.mxu0 0
    %3086 = vmatpush1.bf16.msra.mxu0 0
    %3087 = vmatprep.mubr.bf16.mxu0 0
    %3088 = vmatmul.mubr.bf16.gmra.mrb[0].mxu0 %v2713
    %v3089 = vpop.f32.mrb[0].mxu0
    %v3090 = vadd.f32 %v3049, %v3089
    %v3091 = vpop.f32.mrb[0].mxu0
    %v3092 = vadd.f32 %v3051, %v3091
    %v3093 = vpop.f32.mrb[0].mxu0
    %v3094 = vpop.f32.mrb[0].mxu0
    %3095 = vdwg.mxu0
    %v3096 = vmax.f32 %v3090, 0.0
    %v3097 = vmax.f32 %v3092, 0.0
    %v3098 = vpack.c.bf16 %v3096, %v3096
    %v3099 = vpack.c.bf16 %v3097, %v3097
    %v3100 = vld [vmem:[%s5] sm:$0xf]
    %v3101 = vld [vmem:[%s5 + $0x4] sm:$0xf]
    %v3102 = vld [vmem:[%s5 + $0x8] sm:$0xf]
    %v3103 = vld [vmem:[%s5 + $0xc] sm:$0xf]
    %v3104 = vld [vmem:[%s5 + $0x10] sm:$0xf]
    %v3105 = vld [vmem:[%s5 + $0x14] sm:$0xf]
    %v3106 = vld [vmem:[%s5 + $0x18] sm:$0xf]
    %v3107 = vld [vmem:[%s5 + $0x1c] sm:$0xf]
    %v3108 = vld [vmem:[%s5 + $0x20] sm:$0xf]
    %v3109 = vld [vmem:[%s5 + $0x24] sm:$0xf]
    %v3110 = vld [vmem:[%s5 + $0x28] sm:$0xf]
    %v3111 = vld [vmem:[%s5 + $0x2c] sm:$0xf]
    %v3112 = vld [vmem:[%s5 + $0x30] sm:$0xf]
    %v3113 = vld [vmem:[%s5 + $0x34] sm:$0xf]
    %v3114 = vld [vmem:[%s5 + $0x38] sm:$0xf]
    %v3115 = vld [vmem:[%s5 + $0x3c] sm:$0xf]
    %v3116 = vld [vmem:[%s5 + $0x40] sm:$0xf]
    %v3117 = vld [vmem:[%s5 + $0x44] sm:$0xf]
    %v3118 = vld [vmem:[%s5 + $0x48] sm:$0xf]
    %v3119 = vld [vmem:[%s5 + $0x4c] sm:$0xf]
    %v3120 = vld [vmem:[%s5 + $0x50] sm:$0xf]
    %v3121 = vld [vmem:[%s5 + $0x54] sm:$0xf]
    %v3122 = vld [vmem:[%s5 + $0x58] sm:$0xf]
    %v3123 = vld [vmem:[%s5 + $0x5c] sm:$0xf]
    %v3124 = vld [vmem:[%s6] sm:$0x1]
    %v3126 = vlaneseq
    %v3127 = vshrl.u32 %v3126, 7
    %v3128 = vsub.s32 0, %v3127
    %v3129 = vrot.slane %v3124, %v3128
    %v3155 = vunpack.c.l.b16 %v3100
    %v3156 = vunpack.c.l.b16 %v3101
    %v3157 = vunpack.c.l.b16 %v3102
    %v3158 = vunpack.c.l.b16 %v3103
    %v3159 = vunpack.c.l.b16 %v3104
    %v3160 = vunpack.c.l.b16 %v3105
    %v3161 = vunpack.c.l.b16 %v3106
    %v3162 = vunpack.c.l.b16 %v3107
    %v3163 = vunpack.c.l.b16 %v3108
    %v3164 = vunpack.c.l.b16 %v3109
    %v3165 = vunpack.c.l.b16 %v3110
    %v3166 = vunpack.c.l.b16 %v3111
    %v3167 = vunpack.c.l.b16 %v3112
    %v3168 = vunpack.c.l.b16 %v3113
    %v3169 = vunpack.c.l.b16 %v3114
    %v3170 = vunpack.c.l.b16 %v3115
    %v3171 = vunpack.c.l.b16 %v3116
    %v3172 = vunpack.c.l.b16 %v3117
    %v3173 = vunpack.c.l.b16 %v3118
    %v3174 = vunpack.c.l.b16 %v3119
    %v3175 = vunpack.c.l.b16 %v3120
    %v3176 = vunpack.c.l.b16 %v3121
    %v3177 = vunpack.c.l.b16 %v3122
    %v3178 = vunpack.c.l.b16 %v3123
    %v3179 = vpack.c.b16 %v3156, %v3155
    %v3180 = vpack.c.b16 %v3158, %v3157
    %v3181 = vpack.c.b16 %v3160, %v3159
    %v3182 = vpack.c.b16 %v3162, %v3161
    %v3183 = vpack.c.b16 %v3164, %v3163
    %v3184 = vpack.c.b16 %v3166, %v3165
    %v3185 = vpack.c.b16 %v3168, %v3167
    %v3186 = vpack.c.b16 %v3170, %v3169
    %v3187 = vpack.c.b16 %v3172, %v3171
    %v3188 = vpack.c.b16 %v3174, %v3173
    %v3189 = vpack.c.b16 %v3176, %v3175
    %v3190 = vpack.c.b16 %v3178, %v3177
    %v3204 = vsel %vm2137, %v3099, 0
    %3206 = vmatprep.subr.bf16.mxu0 0
    %3207 = vmatpush1.bf16.msra.mxu0 %v3179
    %3208 = vmatprep.subr.bf16.mxu0 0
    %3209 = vmatpush1.bf16.msra.mxu0 %v3180
    %3210 = vmatprep.subr.bf16.mxu0 0
    %3211 = vmatpush1.bf16.msra.mxu0 %v3181
    %3212 = vmatprep.subr.bf16.mxu0 0
    %3213 = vmatpush1.bf16.msra.mxu0 %v3182
    %3214 = vmatprep.subr.bf16.mxu0 0
    %3215 = vmatpush1.bf16.msra.mxu0 %v3183
    %3216 = vmatprep.subr.bf16.mxu0 0
    %3217 = vmatpush1.bf16.msra.mxu0 %v3184
    %3218 = vmatprep.subr.bf16.mxu0 0
    %3219 = vmatpush1.bf16.msra.mxu0 %v3185
    %3220 = vmatprep.subr.bf16.mxu0 0
    %3221 = vmatpush1.bf16.msra.mxu0 %v3186
    %3222 = vmatprep.subr.bf16.mxu0 0
    %3223 = vmatpush1.bf16.msra.mxu0 %v3187
    %3224 = vmatprep.subr.bf16.mxu0 0
    %3225 = vmatpush1.bf16.msra.mxu0 %v3188
    %3226 = vmatprep.subr.bf16.mxu0 0
    %3227 = vmatpush1.bf16.msra.mxu0 %v3189
    %3228 = vmatprep.subr.bf16.mxu0 0
    %3229 = vmatpush1.bf16.msra.mxu0 %v3190
    %3230 = vmatprep.subr.bf16.mxu0 0
    %3231 = vmatpush1.bf16.msra.mxu0 0
    %3232 = vmatprep.subr.bf16.mxu0 0
    %3233 = vmatpush1.bf16.msra.mxu0 0
    %3234 = vmatprep.subr.bf16.mxu0 0
    %3235 = vmatpush1.bf16.msra.mxu0 0
    %3236 = vmatprep.subr.bf16.mxu0 0
    %3237 = vmatpush1.bf16.msra.mxu0 0
    %3238 = vmatprep.mubr.bf16.mxu0 %v3204
    %3239 = vmatmul.mubr.bf16.gmra.mrb[0].mxu0 %v3098
    %v3240 = vpop.f32.mrb[0].mxu0
    %v3241 = vadd.f32 %v3129, %v3240
    %v3242 = vpop.f32.mrb[0].mxu0
    %v3243 = vpop.f32.mrb[0].mxu0
    %v3244 = vpop.f32.mrb[0].mxu0
    %3245 = vdwg.mxu0
    %vm3246 = vcmask 812032
    %3247 = vst.msk [vmem:[#allocation2] sm:$0x3] %vm3246, %v3241
    // Predicated region
    $region30: #{model_forward.3} parent=1 // pred_check
      _
    $region31: #{model_forward.3} parent=1 // pred_check_branch
      %3249 = sbr.rel (0) target = $region33
    $region32: #{model_forward.3} parent=1 // pred_region
      %s3251 = ssub.s32 32, 32
      %3252 = vsyncadd [#allocation3], %s3251
      %s3254 = sshll.u32 [#allocation2], 4
      %s3255 = int_to_ptr.vmem [resolvable:$true] %s3254
      %3257 = dma.vmem_to_hbm [thread:$0]  %s3255, 32, %s7, [#allocation3]
    $region33: #{model_forward.3} parent=1 // pred_fallthru
      _
    // Predicated region
    $region34: #{model_forward.3} parent=1 // pred_check
      _
    $region35: #{model_forward.3} parent=1 // pred_check_branch
      %3259 = sbr.rel (0) target = $region37
    $region36: #{model_forward.3} parent=1 // pred_region
      %3260 = dma.done [#allocation3], 32
    $region37: #{model_forward.3} parent=1 // pred_fallthru
      _
    %3261 = vsyncpa [#allocation3], 1

</llo_original>
